<compile_context>
chip_gen: v5e
topology: v5e:2x2
jax: 0.10.0
libtpu: 0.0.40
codegen_flags: <defaults>
</compile_context>

<pallas_src>
import math

import numpy as np

import jax
import jax.numpy as jnp
from jax.experimental import pallas as pl
from jax.experimental.pallas import tpu as pltpu

BN_EPS = 1e-5        # nn.BatchNorm2d default
CPAD = 128           # every channel dim zero-padded to one 128-lane vreg width
NCPAD = 128          # class dim padded to 128 -> lane-dense final store


# --------------------------------------------------------------------------
# Constant-operand construction (pure layout / shape work, done once)
# --------------------------------------------------------------------------
def _conv_out(h):
    # output spatial size for kernel=3, stride=2, padding=1
    return (h - 1) // 2 + 1


def _build_gather(n, h, w):
    """0/1 matrices that turn 3x3 / stride-2 / pad-1 patch extraction into GEMMs.

    S[k, mo, mi] = 1 where tap k = (dh, dw) of output cell (n, ho, wo) reads
    input cell (n, 2*ho+dh-1, 2*wo+dw-1); taps that fall in the zero padding
    leave the row all-zero.  Rows are ordered (n, ho, wo) / (n, h, w).
    """
    ho, wo = _conv_out(h), _conv_out(w)
    s = np.zeros((9, n * ho * wo, n * h * w), np.float32)
    for dh in range(3):
        for dw in range(3):
            k = dh * 3 + dw
            for b in range(n):
                for i in range(ho):
                    hi = 2 * i + dh - 1
                    if hi < 0 or hi >= h:
                        continue
                    for j in range(wo):
                        wi = 2 * j + dw - 1
                        if wi < 0 or wi >= w:
                            continue
                        s[k, (b * ho + i) * wo + j, (b * h + hi) * w + wi] = 1.0
    return s, ho, wo


def prepare_operands(params, batch, input_channels, height, width, num_classes):
    """Build the kernel's constant operands once: gather matrices plus padded /
    re-laid-out weights, all in MXU/lane-friendly shapes."""
    ops = []
    m_out = []
    c_in, h, w = input_channels, height, width
    for i in range(1, 4):
        conv_w = params[f"conv{i}_w"]                          # (C_out, C_in, 3, 3)
        c_out = conv_w.shape[0]
        s_np, ho, wo = _build_gather(batch, h, w)
        s_i = jnp.asarray(s_np, dtype=jnp.bfloat16)            # (9, M_out, M_in)
        # Per-tap weight: W_k[c_in, c_out] = conv_w[c_out, c_in, kh, kw]
        w_i = jnp.transpose(conv_w, (2, 3, 1, 0)).reshape(9, c_in, c_out)
        w_i = jnp.pad(w_i, ((0, 0), (0, CPAD - c_in), (0, CPAD - c_out)))
        g_i = jnp.pad(params[f"bn{i}_gamma"], (0, CPAD - c_out)).reshape(1, CPAD)
        be_i = jnp.pad(params[f"bn{i}_beta"], (0, CPAD - c_out)).reshape(1, CPAD)
        # NOTE: the conv bias is intentionally *not* used: training-mode
        # BatchNorm subtracts the per-channel batch mean, which cancels a
        # per-channel bias exactly.
        ops += [s_i, w_i.astype(jnp.bfloat16),
                g_i.astype(jnp.float32), be_i.astype(jnp.float32)]
        m_out.append(batch * ho * wo)
        c_in, h, w = c_out, ho, wo
    # Final Linear: fold the NCHW flatten (feature = c*Ho*Wo + ho*Wo + wo) into
    # the weight layout -> one (CPAD, NCPAD) slab per output spatial position s.
    s3 = h * w
    wfc = jnp.transpose(params["fc_w"].reshape(num_classes, c_in, s3), (2, 1, 0))
    wfc = jnp.pad(wfc, ((0, 0), (0, CPAD - c_in), (0, NCPAD - num_classes)))
    bfc = jnp.pad(params["fc_b"], (0, NCPAD - num_classes)).reshape(1, NCPAD)
    ops += [wfc.astype(jnp.float32), bfc.astype(jnp.float32)]
    dims = dict(m_out=tuple(m_out), s3=s3, batch=batch)
    return ops, dims


# --------------------------------------------------------------------------
# Fused Pallas kernel (whole network, everything VMEM-resident)
# --------------------------------------------------------------------------
def _make_fused_kernel(dims):
    m1, m2, m3 = dims["m_out"]
    s3, nb = dims["s3"], dims["batch"]

    def conv_bn_relu(x_bf16, s_ref, w_ref, g_ref, beta_ref, m_rows):
        acc = jnp.zeros((m_rows, CPAD), jnp.float32)
        for k in range(9):  # static 3x3 taps, fully unrolled
            # 0/1 gather matrix: input rows -> patch rows (exact, <=1 term/row)
            gathered = jnp.dot(s_ref[k], x_bf16,
                               preferred_element_type=jnp.float32)
            acc = acc + jnp.dot(gathered.astype(jnp.bfloat16), w_ref[k],
                                preferred_element_type=jnp.float32)
        # BatchNorm: training-mode batch statistics (biased variance), f32.
        mean = jnp.mean(acc, axis=0, keepdims=True)
        var = jnp.mean(jnp.square(acc - mean), axis=0, keepdims=True)
        y = (acc - mean) * jax.lax.rsqrt(var + BN_EPS)
        return jnp.maximum(y * g_ref[...] + beta_ref[...], 0.0)

    def kernel(x_ref,
               s1, w1, g1, b1,
               s2, w2, g2, b2,
               s3_ref, w3, g3, b3,
               wfc_ref, bfc_ref, o_ref):
        y1 = conv_bn_relu(x_ref[...], s1, w1, g1, b1, m1)
        y2 = conv_bn_relu(y1.astype(jnp.bfloat16), s2, w2, g2, b2, m2)
        y3 = conv_bn_relu(y2.astype(jnp.bfloat16), s3_ref, w3, g3, b3, m3)
        # fc with the NCHW flatten folded into the weight: rows of y3 are
        # ordered (n, spatial); accumulate one weight slab per spatial pos.
        logits = jnp.zeros((nb, NCPAD), jnp.float32)
        for s in range(s3):
            rows = jnp.concatenate(
                [y3[n * s3 + s: n * s3 + s + 1, :] for n in range(nb)], axis=0)
            logits = logits + jnp.dot(rows, wfc_ref[s],
                                      preferred_element_type=jnp.float32)
        o_ref[...] = logits + bfc_ref[...]

    return kernel


def _full_spec(shape):
    n = len(shape)
    return pl.BlockSpec(shape, lambda: (0,) * n)


# --------------------------------------------------------------------------
# Parameters (deterministic, synthetic; mirrors the module's parameterization)
# --------------------------------------------------------------------------
def init_params(key, input_channels, num_classes, width, height):
    keys = jax.random.split(key, 14)
    params = {}
    c, ki = input_channels, 0
    for i in range(1, 4):
        co = c * 2
        fan_in = c * 9
        params[f"conv{i}_w"] = (
            jax.random.normal(keys[ki], (co, c, 3, 3), jnp.float32) / math.sqrt(fan_in)
        )
        # Conv bias exists in the module but is a mathematical no-op under
        # train-mode BatchNorm (mean subtraction cancels it); kept for fidelity.
        params[f"conv{i}_b"] = 0.1 * jax.random.normal(keys[ki + 1], (co,), jnp.float32)
        params[f"bn{i}_gamma"] = 1.0 + 0.1 * jax.random.normal(
            keys[ki + 2], (co,), jnp.float32
        )
        params[f"bn{i}_beta"] = 0.1 * jax.random.normal(
            keys[ki + 3], (co,), jnp.float32
        )
        c, ki = co, ki + 4
    in_fc = c * math.ceil(width / (2 * 4)) * math.ceil(height / (2 * 4))
    params["fc_w"] = (
        jax.random.normal(keys[ki], (num_classes, in_fc), jnp.float32)
        / math.sqrt(in_fc)
    )
    params["fc_b"] = 0.1 * jax.random.normal(keys[ki + 1], (num_classes,), jnp.float32)
    return params


# --------------------------------------------------------------------------
# Forward pass (mirrors Conv2DNet.forward)
# --------------------------------------------------------------------------
def conv2dnet_forward(x_nchw, params, *, num_classes):
    batch, c_in, height, width = x_nchw.shape
    ops, dims = prepare_operands(params, batch, c_in, height, width, num_classes)
    kernel = _make_fused_kernel(dims)

    # Input layout prep (XLA, tiny): NCHW -> rows ordered (n, h, w), channels
    # zero-padded to the 128-lane width, bf16 for the MXU.
    x_rows = jnp.transpose(x_nchw, (0, 2, 3, 1)).reshape(batch * height * width, c_in)
    x_rows = jnp.pad(x_rows, ((0, 0), (0, CPAD - c_in))).astype(jnp.bfloat16)

    operands = [x_rows] + ops
    out = pl.pallas_call(
        kernel,
        out_shape=jax.ShapeDtypeStruct((batch, NCPAD), jnp.float32),
        in_specs=[_full_spec(op.shape) for op in operands],
        out_specs=_full_spec((batch, NCPAD)),
        # All operands together are ~2.5 MiB; raise scoped VMEM explicitly so
        # the same code has headroom on v5e (16 MiB default scoped limit).
        compiler_params=pltpu.CompilerParams(vmem_limit_bytes=32 * 1024 * 1024),
    )(*operands)
    return out[:, :num_classes]


# --------------------------------------------------------------------------
if __name__ == "__main__":
    # Small, module-consistent shapes: B=2, C=4, W=H=16, 10 classes.
    batch, in_c, width, height, num_classes = 2, 4, 16, 16, 10

    key = jax.random.PRNGKey(0)
    k_x, k_p = jax.random.split(key)
    x = jax.random.normal(k_x, (batch, in_c, height, width), jnp.float32)
    params = init_params(k_p, in_c, num_classes, width, height)

    logits = conv2dnet_forward(x, params, num_classes=num_classes)
    logits = jax.block_until_ready(logits)

    assert logits.shape == (batch, num_classes), logits.shape
    assert logits.dtype == jnp.float32
    print("KERNEL_OK")
</pallas_src>

<mosaic_0001>
module attributes {stable_mosaic.version = 11 : i64} {
  func.func @kernel(%arg0: memref<512x128xbf16, #tpu.memory_space<vmem>>, %arg1: memref<9x128x512xbf16, #tpu.memory_space<vmem>>, %arg2: memref<9x128x128xbf16, #tpu.memory_space<vmem>>, %arg3: memref<1x128xf32, #tpu.memory_space<vmem>>, %arg4: memref<1x128xf32, #tpu.memory_space<vmem>>, %arg5: memref<9x32x128xbf16, #tpu.memory_space<vmem>>, %arg6: memref<9x128x128xbf16, #tpu.memory_space<vmem>>, %arg7: memref<1x128xf32, #tpu.memory_space<vmem>>, %arg8: memref<1x128xf32, #tpu.memory_space<vmem>>, %arg9: memref<9x8x32xbf16, #tpu.memory_space<vmem>>, %arg10: memref<9x128x128xbf16, #tpu.memory_space<vmem>>, %arg11: memref<1x128xf32, #tpu.memory_space<vmem>>, %arg12: memref<1x128xf32, #tpu.memory_space<vmem>>, %arg13: memref<4x128x128xf32, #tpu.memory_space<vmem>>, %arg14: memref<1x128xf32, #tpu.memory_space<vmem>>, %arg15: memref<2x128xf32, #tpu.memory_space<vmem>>) attributes {dimension_semantics = [], scalar_prefetch = 0 : i64, scratch_operands = 0 : i64, tpu.core_type = #tpu.core_type<tc>} {
    %c0 = arith.constant 0 : index
    %c0_0 = arith.constant 0 : index
    %0 = vector.load %arg0[%c0, %c0_0] : memref<512x128xbf16, #tpu.memory_space<vmem>>, vector<512x128xbf16>
    %cst = arith.constant 0.000000e+00 : f32
    %1 = vector.broadcast %cst : f32 to vector<128x128xf32>
    %c0_1 = arith.constant 0 : index
    %c0_2 = arith.constant 0 : index
    %c0_3 = arith.constant 0 : index
    %2 = vector.load %arg1[%c0_1, %c0_2, %c0_3] : memref<9x128x512xbf16, #tpu.memory_space<vmem>>, vector<1x128x512xbf16>
    %3 = vector.shape_cast %2 : vector<1x128x512xbf16> to vector<128x512xbf16>
    %cst_4 = arith.constant dense<0.000000e+00> : vector<128x128xf32>
    %4 = tpu.matmul %3, %0, %cst_4 {dimension_numbers = #tpu.dot_dimension_numbers<[1], [0], [0], [1], [0, 0, 1, 1], [], []>} : vector<128x512xbf16>, vector<512x128xbf16>, vector<128x128xf32> -> vector<128x128xf32>
    %5 = arith.truncf %4 : vector<128x128xf32> to vector<128x128xbf16>
    %c0_5 = arith.constant 0 : index
    %c0_6 = arith.constant 0 : index
    %c0_7 = arith.constant 0 : index
    %6 = vector.load %arg2[%c0_5, %c0_6, %c0_7] : memref<9x128x128xbf16, #tpu.memory_space<vmem>>, vector<1x128x128xbf16>
    %7 = vector.shape_cast %6 : vector<1x128x128xbf16> to vector<128x128xbf16>
    %cst_8 = arith.constant dense<0.000000e+00> : vector<128x128xf32>
    %8 = tpu.matmul %5, %7, %cst_8 {dimension_numbers = #tpu.dot_dimension_numbers<[1], [0], [0], [1], [0, 0, 1, 1], [], []>} : vector<128x128xbf16>, vector<128x128xbf16>, vector<128x128xf32> -> vector<128x128xf32>
    %9 = arith.addf %1, %8 : vector<128x128xf32>
    %c1 = arith.constant 1 : index
    %c0_9 = arith.constant 0 : index
    %c0_10 = arith.constant 0 : index
    %10 = vector.load %arg1[%c1, %c0_9, %c0_10] : memref<9x128x512xbf16, #tpu.memory_space<vmem>>, vector<1x128x512xbf16>
    %11 = vector.shape_cast %10 : vector<1x128x512xbf16> to vector<128x512xbf16>
    %cst_11 = arith.constant dense<0.000000e+00> : vector<128x128xf32>
    %12 = tpu.matmul %11, %0, %cst_11 {dimension_numbers = #tpu.dot_dimension_numbers<[1], [0], [0], [1], [0, 0, 1, 1], [], []>} : vector<128x512xbf16>, vector<512x128xbf16>, vector<128x128xf32> -> vector<128x128xf32>
    %13 = arith.truncf %12 : vector<128x128xf32> to vector<128x128xbf16>
    %c1_12 = arith.constant 1 : index
    %c0_13 = arith.constant 0 : index
    %c0_14 = arith.constant 0 : index
    %14 = vector.load %arg2[%c1_12, %c0_13, %c0_14] : memref<9x128x128xbf16, #tpu.memory_space<vmem>>, vector<1x128x128xbf16>
    %15 = vector.shape_cast %14 : vector<1x128x128xbf16> to vector<128x128xbf16>
    %cst_15 = arith.constant dense<0.000000e+00> : vector<128x128xf32>
    %16 = tpu.matmul %13, %15, %cst_15 {dimension_numbers = #tpu.dot_dimension_numbers<[1], [0], [0], [1], [0, 0, 1, 1], [], []>} : vector<128x128xbf16>, vector<128x128xbf16>, vector<128x128xf32> -> vector<128x128xf32>
    %17 = arith.addf %9, %16 : vector<128x128xf32>
    %c2 = arith.constant 2 : index
    %c0_16 = arith.constant 0 : index
    %c0_17 = arith.constant 0 : index
    %18 = vector.load %arg1[%c2, %c0_16, %c0_17] : memref<9x128x512xbf16, #tpu.memory_space<vmem>>, vector<1x128x512xbf16>
    %19 = vector.shape_cast %18 : vector<1x128x512xbf16> to vector<128x512xbf16>
    %cst_18 = arith.constant dense<0.000000e+00> : vector<128x128xf32>
    %20 = tpu.matmul %19, %0, %cst_18 {dimension_numbers = #tpu.dot_dimension_numbers<[1], [0], [0], [1], [0, 0, 1, 1], [], []>} : vector<128x512xbf16>, vector<512x128xbf16>, vector<128x128xf32> -> vector<128x128xf32>
    %21 = arith.truncf %20 : vector<128x128xf32> to vector<128x128xbf16>
    %c2_19 = arith.constant 2 : index
    %c0_20 = arith.constant 0 : index
    %c0_21 = arith.constant 0 : index
    %22 = vector.load %arg2[%c2_19, %c0_20, %c0_21] : memref<9x128x128xbf16, #tpu.memory_space<vmem>>, vector<1x128x128xbf16>
    %23 = vector.shape_cast %22 : vector<1x128x128xbf16> to vector<128x128xbf16>
    %cst_22 = arith.constant dense<0.000000e+00> : vector<128x128xf32>
    %24 = tpu.matmul %21, %23, %cst_22 {dimension_numbers = #tpu.dot_dimension_numbers<[1], [0], [0], [1], [0, 0, 1, 1], [], []>} : vector<128x128xbf16>, vector<128x128xbf16>, vector<128x128xf32> -> vector<128x128xf32>
    %25 = arith.addf %17, %24 : vector<128x128xf32>
    %c3 = arith.constant 3 : index
    %c0_23 = arith.constant 0 : index
    %c0_24 = arith.constant 0 : index
    %26 = vector.load %arg1[%c3, %c0_23, %c0_24] : memref<9x128x512xbf16, #tpu.memory_space<vmem>>, vector<1x128x512xbf16>
    %27 = vector.shape_cast %26 : vector<1x128x512xbf16> to vector<128x512xbf16>
    %cst_25 = arith.constant dense<0.000000e+00> : vector<128x128xf32>
    %28 = tpu.matmul %27, %0, %cst_25 {dimension_numbers = #tpu.dot_dimension_numbers<[1], [0], [0], [1], [0, 0, 1, 1], [], []>} : vector<128x512xbf16>, vector<512x128xbf16>, vector<128x128xf32> -> vector<128x128xf32>
    %29 = arith.truncf %28 : vector<128x128xf32> to vector<128x128xbf16>
    %c3_26 = arith.constant 3 : index
    %c0_27 = arith.constant 0 : index
    %c0_28 = arith.constant 0 : index
    %30 = vector.load %arg2[%c3_26, %c0_27, %c0_28] : memref<9x128x128xbf16, #tpu.memory_space<vmem>>, vector<1x128x128xbf16>
    %31 = vector.shape_cast %30 : vector<1x128x128xbf16> to vector<128x128xbf16>
    %cst_29 = arith.constant dense<0.000000e+00> : vector<128x128xf32>
    %32 = tpu.matmul %29, %31, %cst_29 {dimension_numbers = #tpu.dot_dimension_numbers<[1], [0], [0], [1], [0, 0, 1, 1], [], []>} : vector<128x128xbf16>, vector<128x128xbf16>, vector<128x128xf32> -> vector<128x128xf32>
    %33 = arith.addf %25, %32 : vector<128x128xf32>
    %c4 = arith.constant 4 : index
    %c0_30 = arith.constant 0 : index
    %c0_31 = arith.constant 0 : index
    %34 = vector.load %arg1[%c4, %c0_30, %c0_31] : memref<9x128x512xbf16, #tpu.memory_space<vmem>>, vector<1x128x512xbf16>
    %35 = vector.shape_cast %34 : vector<1x128x512xbf16> to vector<128x512xbf16>
    %cst_32 = arith.constant dense<0.000000e+00> : vector<128x128xf32>
    %36 = tpu.matmul %35, %0, %cst_32 {dimension_numbers = #tpu.dot_dimension_numbers<[1], [0], [0], [1], [0, 0, 1, 1], [], []>} : vector<128x512xbf16>, vector<512x128xbf16>, vector<128x128xf32> -> vector<128x128xf32>
    %37 = arith.truncf %36 : vector<128x128xf32> to vector<128x128xbf16>
    %c4_33 = arith.constant 4 : index
    %c0_34 = arith.constant 0 : index
    %c0_35 = arith.constant 0 : index
    %38 = vector.load %arg2[%c4_33, %c0_34, %c0_35] : memref<9x128x128xbf16, #tpu.memory_space<vmem>>, vector<1x128x128xbf16>
    %39 = vector.shape_cast %38 : vector<1x128x128xbf16> to vector<128x128xbf16>
    %cst_36 = arith.constant dense<0.000000e+00> : vector<128x128xf32>
    %40 = tpu.matmul %37, %39, %cst_36 {dimension_numbers = #tpu.dot_dimension_numbers<[1], [0], [0], [1], [0, 0, 1, 1], [], []>} : vector<128x128xbf16>, vector<128x128xbf16>, vector<128x128xf32> -> vector<128x128xf32>
    %41 = arith.addf %33, %40 : vector<128x128xf32>
    %c5 = arith.constant 5 : index
    %c0_37 = arith.constant 0 : index
    %c0_38 = arith.constant 0 : index
    %42 = vector.load %arg1[%c5, %c0_37, %c0_38] : memref<9x128x512xbf16, #tpu.memory_space<vmem>>, vector<1x128x512xbf16>
    %43 = vector.shape_cast %42 : vector<1x128x512xbf16> to vector<128x512xbf16>
    %cst_39 = arith.constant dense<0.000000e+00> : vector<128x128xf32>
    %44 = tpu.matmul %43, %0, %cst_39 {dimension_numbers = #tpu.dot_dimension_numbers<[1], [0], [0], [1], [0, 0, 1, 1], [], []>} : vector<128x512xbf16>, vector<512x128xbf16>, vector<128x128xf32> -> vector<128x128xf32>
    %45 = arith.truncf %44 : vector<128x128xf32> to vector<128x128xbf16>
    %c5_40 = arith.constant 5 : index
    %c0_41 = arith.constant 0 : index
    %c0_42 = arith.constant 0 : index
    %46 = vector.load %arg2[%c5_40, %c0_41, %c0_42] : memref<9x128x128xbf16, #tpu.memory_space<vmem>>, vector<1x128x128xbf16>
    %47 = vector.shape_cast %46 : vector<1x128x128xbf16> to vector<128x128xbf16>
    %cst_43 = arith.constant dense<0.000000e+00> : vector<128x128xf32>
    %48 = tpu.matmul %45, %47, %cst_43 {dimension_numbers = #tpu.dot_dimension_numbers<[1], [0], [0], [1], [0, 0, 1, 1], [], []>} : vector<128x128xbf16>, vector<128x128xbf16>, vector<128x128xf32> -> vector<128x128xf32>
    %49 = arith.addf %41, %48 : vector<128x128xf32>
    %c6 = arith.constant 6 : index
    %c0_44 = arith.constant 0 : index
    %c0_45 = arith.constant 0 : index
    %50 = vector.load %arg1[%c6, %c0_44, %c0_45] : memref<9x128x512xbf16, #tpu.memory_space<vmem>>, vector<1x128x512xbf16>
    %51 = vector.shape_cast %50 : vector<1x128x512xbf16> to vector<128x512xbf16>
    %cst_46 = arith.constant dense<0.000000e+00> : vector<128x128xf32>
    %52 = tpu.matmul %51, %0, %cst_46 {dimension_numbers = #tpu.dot_dimension_numbers<[1], [0], [0], [1], [0, 0, 1, 1], [], []>} : vector<128x512xbf16>, vector<512x128xbf16>, vector<128x128xf32> -> vector<128x128xf32>
    %53 = arith.truncf %52 : vector<128x128xf32> to vector<128x128xbf16>
    %c6_47 = arith.constant 6 : index
    %c0_48 = arith.constant 0 : index
    %c0_49 = arith.constant 0 : index
    %54 = vector.load %arg2[%c6_47, %c0_48, %c0_49] : memref<9x128x128xbf16, #tpu.memory_space<vmem>>, vector<1x128x128xbf16>
    %55 = vector.shape_cast %54 : vector<1x128x128xbf16> to vector<128x128xbf16>
    %cst_50 = arith.constant dense<0.000000e+00> : vector<128x128xf32>
    %56 = tpu.matmul %53, %55, %cst_50 {dimension_numbers = #tpu.dot_dimension_numbers<[1], [0], [0], [1], [0, 0, 1, 1], [], []>} : vector<128x128xbf16>, vector<128x128xbf16>, vector<128x128xf32> -> vector<128x128xf32>
    %57 = arith.addf %49, %56 : vector<128x128xf32>
    %c7 = arith.constant 7 : index
    %c0_51 = arith.constant 0 : index
    %c0_52 = arith.constant 0 : index
    %58 = vector.load %arg1[%c7, %c0_51, %c0_52] : memref<9x128x512xbf16, #tpu.memory_space<vmem>>, vector<1x128x512xbf16>
    %59 = vector.shape_cast %58 : vector<1x128x512xbf16> to vector<128x512xbf16>
    %cst_53 = arith.constant dense<0.000000e+00> : vector<128x128xf32>
    %60 = tpu.matmul %59, %0, %cst_53 {dimension_numbers = #tpu.dot_dimension_numbers<[1], [0], [0], [1], [0, 0, 1, 1], [], []>} : vector<128x512xbf16>, vector<512x128xbf16>, vector<128x128xf32> -> vector<128x128xf32>
    %61 = arith.truncf %60 : vector<128x128xf32> to vector<128x128xbf16>
    %c7_54 = arith.constant 7 : index
    %c0_55 = arith.constant 0 : index
    %c0_56 = arith.constant 0 : index
    %62 = vector.load %arg2[%c7_54, %c0_55, %c0_56] : memref<9x128x128xbf16, #tpu.memory_space<vmem>>, vector<1x128x128xbf16>
    %63 = vector.shape_cast %62 : vector<1x128x128xbf16> to vector<128x128xbf16>
    %cst_57 = arith.constant dense<0.000000e+00> : vector<128x128xf32>
    %64 = tpu.matmul %61, %63, %cst_57 {dimension_numbers = #tpu.dot_dimension_numbers<[1], [0], [0], [1], [0, 0, 1, 1], [], []>} : vector<128x128xbf16>, vector<128x128xbf16>, vector<128x128xf32> -> vector<128x128xf32>
    %65 = arith.addf %57, %64 : vector<128x128xf32>
    %c8 = arith.constant 8 : index
    %c0_58 = arith.constant 0 : index
    %c0_59 = arith.constant 0 : index
    %66 = vector.load %arg1[%c8, %c0_58, %c0_59] : memref<9x128x512xbf16, #tpu.memory_space<vmem>>, vector<1x128x512xbf16>
    %67 = vector.shape_cast %66 : vector<1x128x512xbf16> to vector<128x512xbf16>
    %cst_60 = arith.constant dense<0.000000e+00> : vector<128x128xf32>
    %68 = tpu.matmul %67, %0, %cst_60 {dimension_numbers = #tpu.dot_dimension_numbers<[1], [0], [0], [1], [0, 0, 1, 1], [], []>} : vector<128x512xbf16>, vector<512x128xbf16>, vector<128x128xf32> -> vector<128x128xf32>
    %69 = arith.truncf %68 : vector<128x128xf32> to vector<128x128xbf16>
    %c8_61 = arith.constant 8 : index
    %c0_62 = arith.constant 0 : index
    %c0_63 = arith.constant 0 : index
    %70 = vector.load %arg2[%c8_61, %c0_62, %c0_63] : memref<9x128x128xbf16, #tpu.memory_space<vmem>>, vector<1x128x128xbf16>
    %71 = vector.shape_cast %70 : vector<1x128x128xbf16> to vector<128x128xbf16>
    %cst_64 = arith.constant dense<0.000000e+00> : vector<128x128xf32>
    %72 = tpu.matmul %69, %71, %cst_64 {dimension_numbers = #tpu.dot_dimension_numbers<[1], [0], [0], [1], [0, 0, 1, 1], [], []>} : vector<128x128xbf16>, vector<128x128xbf16>, vector<128x128xf32> -> vector<128x128xf32>
    %73 = arith.addf %65, %72 : vector<128x128xf32>
    %cst_65 = arith.constant dense<0.000000e+00> : vector<128xf32>
    %74 = vector.multi_reduction <add>, %73, %cst_65 [0] : vector<128x128xf32> to vector<128xf32>
    %75 = vector.shape_cast %74 : vector<128xf32> to vector<1x128xf32>
    %cst_66 = arith.constant 1.280000e+02 : f32
    %76 = vector.broadcast %cst_66 : f32 to vector<1x128xf32>
    %77 = arith.divf %75, %76 : vector<1x128xf32>
    %78 = vector.broadcast %77 : vector<1x128xf32> to vector<128x128xf32>
    %79 = arith.subf %73, %78 : vector<128x128xf32>
    %80 = arith.mulf %79, %79 : vector<128x128xf32>
    %cst_67 = arith.constant dense<0.000000e+00> : vector<128xf32>
    %81 = vector.multi_reduction <add>, %80, %cst_67 [0] : vector<128x128xf32> to vector<128xf32>
    %82 = vector.shape_cast %81 : vector<128xf32> to vector<1x128xf32>
    %cst_68 = arith.constant 1.280000e+02 : f32
    %83 = vector.broadcast %cst_68 : f32 to vector<1x128xf32>
    %84 = arith.divf %82, %83 : vector<1x128xf32>
    %85 = vector.broadcast %77 : vector<1x128xf32> to vector<128x128xf32>
    %86 = arith.subf %73, %85 : vector<128x128xf32>
    %cst_69 = arith.constant 9.99999974E-6 : f32
    %87 = vector.broadcast %cst_69 : f32 to vector<1x128xf32>
    %88 = arith.addf %84, %87 : vector<1x128xf32>
    %89 = math.rsqrt %88 : vector<1x128xf32>
    %90 = vector.broadcast %89 : vector<1x128xf32> to vector<128x128xf32>
    %91 = arith.mulf %86, %90 : vector<128x128xf32>
    %c0_70 = arith.constant 0 : index
    %c0_71 = arith.constant 0 : index
    %92 = vector.load %arg3[%c0_70, %c0_71] : memref<1x128xf32, #tpu.memory_space<vmem>>, vector<1x128xf32>
    %93 = vector.broadcast %92 : vector<1x128xf32> to vector<128x128xf32>
    %94 = arith.mulf %91, %93 : vector<128x128xf32>
    %c0_72 = arith.constant 0 : index
    %c0_73 = arith.constant 0 : index
    %95 = vector.load %arg4[%c0_72, %c0_73] : memref<1x128xf32, #tpu.memory_space<vmem>>, vector<1x128xf32>
    %96 = vector.broadcast %95 : vector<1x128xf32> to vector<128x128xf32>
    %97 = arith.addf %94, %96 : vector<128x128xf32>
    %cst_74 = arith.constant 0.000000e+00 : f32
    %98 = vector.broadcast %cst_74 : f32 to vector<128x128xf32>
    %99 = arith.maximumf %97, %98 : vector<128x128xf32>
    %100 = arith.truncf %99 : vector<128x128xf32> to vector<128x128xbf16>
    %cst_75 = arith.constant 0.000000e+00 : f32
    %101 = vector.broadcast %cst_75 : f32 to vector<32x128xf32>
    %c0_76 = arith.constant 0 : index
    %c0_77 = arith.constant 0 : index
    %c0_78 = arith.constant 0 : index
    %102 = vector.load %arg5[%c0_76, %c0_77, %c0_78] : memref<9x32x128xbf16, #tpu.memory_space<vmem>>, vector<1x32x128xbf16>
    %103 = vector.shape_cast %102 : vector<1x32x128xbf16> to vector<32x128xbf16>
    %cst_79 = arith.constant dense<0.000000e+00> : vector<32x128xf32>
    %104 = tpu.matmul %103, %100, %cst_79 {dimension_numbers = #tpu.dot_dimension_numbers<[1], [0], [0], [1], [0, 0, 1, 1], [], []>} : vector<32x128xbf16>, vector<128x128xbf16>, vector<32x128xf32> -> vector<32x128xf32>
    %105 = arith.truncf %104 : vector<32x128xf32> to vector<32x128xbf16>
    %c0_80 = arith.constant 0 : index
    %c0_81 = arith.constant 0 : index
    %c0_82 = arith.constant 0 : index
    %106 = vector.load %arg6[%c0_80, %c0_81, %c0_82] : memref<9x128x128xbf16, #tpu.memory_space<vmem>>, vector<1x128x128xbf16>
    %107 = vector.shape_cast %106 : vector<1x128x128xbf16> to vector<128x128xbf16>
    %cst_83 = arith.constant dense<0.000000e+00> : vector<32x128xf32>
    %108 = tpu.matmul %105, %107, %cst_83 {dimension_numbers = #tpu.dot_dimension_numbers<[1], [0], [0], [1], [0, 0, 1, 1], [], []>} : vector<32x128xbf16>, vector<128x128xbf16>, vector<32x128xf32> -> vector<32x128xf32>
    %109 = arith.addf %101, %108 : vector<32x128xf32>
    %c1_84 = arith.constant 1 : index
    %c0_85 = arith.constant 0 : index
    %c0_86 = arith.constant 0 : index
    %110 = vector.load %arg5[%c1_84, %c0_85, %c0_86] : memref<9x32x128xbf16, #tpu.memory_space<vmem>>, vector<1x32x128xbf16>
    %111 = vector.shape_cast %110 : vector<1x32x128xbf16> to vector<32x128xbf16>
    %cst_87 = arith.constant dense<0.000000e+00> : vector<32x128xf32>
    %112 = tpu.matmul %111, %100, %cst_87 {dimension_numbers = #tpu.dot_dimension_numbers<[1], [0], [0], [1], [0, 0, 1, 1], [], []>} : vector<32x128xbf16>, vector<128x128xbf16>, vector<32x128xf32> -> vector<32x128xf32>
    %113 = arith.truncf %112 : vector<32x128xf32> to vector<32x128xbf16>
    %c1_88 = arith.constant 1 : index
    %c0_89 = arith.constant 0 : index
    %c0_90 = arith.constant 0 : index
    %114 = vector.load %arg6[%c1_88, %c0_89, %c0_90] : memref<9x128x128xbf16, #tpu.memory_space<vmem>>, vector<1x128x128xbf16>
    %115 = vector.shape_cast %114 : vector<1x128x128xbf16> to vector<128x128xbf16>
    %cst_91 = arith.constant dense<0.000000e+00> : vector<32x128xf32>
    %116 = tpu.matmul %113, %115, %cst_91 {dimension_numbers = #tpu.dot_dimension_numbers<[1], [0], [0], [1], [0, 0, 1, 1], [], []>} : vector<32x128xbf16>, vector<128x128xbf16>, vector<32x128xf32> -> vector<32x128xf32>
    %117 = arith.addf %109, %116 : vector<32x128xf32>
    %c2_92 = arith.constant 2 : index
    %c0_93 = arith.constant 0 : index
    %c0_94 = arith.constant 0 : index
    %118 = vector.load %arg5[%c2_92, %c0_93, %c0_94] : memref<9x32x128xbf16, #tpu.memory_space<vmem>>, vector<1x32x128xbf16>
    %119 = vector.shape_cast %118 : vector<1x32x128xbf16> to vector<32x128xbf16>
    %cst_95 = arith.constant dense<0.000000e+00> : vector<32x128xf32>
    %120 = tpu.matmul %119, %100, %cst_95 {dimension_numbers = #tpu.dot_dimension_numbers<[1], [0], [0], [1], [0, 0, 1, 1], [], []>} : vector<32x128xbf16>, vector<128x128xbf16>, vector<32x128xf32> -> vector<32x128xf32>
    %121 = arith.truncf %120 : vector<32x128xf32> to vector<32x128xbf16>
    %c2_96 = arith.constant 2 : index
    %c0_97 = arith.constant 0 : index
    %c0_98 = arith.constant 0 : index
    %122 = vector.load %arg6[%c2_96, %c0_97, %c0_98] : memref<9x128x128xbf16, #tpu.memory_space<vmem>>, vector<1x128x128xbf16>
    %123 = vector.shape_cast %122 : vector<1x128x128xbf16> to vector<128x128xbf16>
    %cst_99 = arith.constant dense<0.000000e+00> : vector<32x128xf32>
    %124 = tpu.matmul %121, %123, %cst_99 {dimension_numbers = #tpu.dot_dimension_numbers<[1], [0], [0], [1], [0, 0, 1, 1], [], []>} : vector<32x128xbf16>, vector<128x128xbf16>, vector<32x128xf32> -> vector<32x128xf32>
    %125 = arith.addf %117, %124 : vector<32x128xf32>
    %c3_100 = arith.constant 3 : index
    %c0_101 = arith.constant 0 : index
    %c0_102 = arith.constant 0 : index
    %126 = vector.load %arg5[%c3_100, %c0_101, %c0_102] : memref<9x32x128xbf16, #tpu.memory_space<vmem>>, vector<1x32x128xbf16>
    %127 = vector.shape_cast %126 : vector<1x32x128xbf16> to vector<32x128xbf16>
    %cst_103 = arith.constant dense<0.000000e+00> : vector<32x128xf32>
    %128 = tpu.matmul %127, %100, %cst_103 {dimension_numbers = #tpu.dot_dimension_numbers<[1], [0], [0], [1], [0, 0, 1, 1], [], []>} : vector<32x128xbf16>, vector<128x128xbf16>, vector<32x128xf32> -> vector<32x128xf32>
    %129 = arith.truncf %128 : vector<32x128xf32> to vector<32x128xbf16>
    %c3_104 = arith.constant 3 : index
    %c0_105 = arith.constant 0 : index
    %c0_106 = arith.constant 0 : index
    %130 = vector.load %arg6[%c3_104, %c0_105, %c0_106] : memref<9x128x128xbf16, #tpu.memory_space<vmem>>, vector<1x128x128xbf16>
    %131 = vector.shape_cast %130 : vector<1x128x128xbf16> to vector<128x128xbf16>
    %cst_107 = arith.constant dense<0.000000e+00> : vector<32x128xf32>
    %132 = tpu.matmul %129, %131, %cst_107 {dimension_numbers = #tpu.dot_dimension_numbers<[1], [0], [0], [1], [0, 0, 1, 1], [], []>} : vector<32x128xbf16>, vector<128x128xbf16>, vector<32x128xf32> -> vector<32x128xf32>
    %133 = arith.addf %125, %132 : vector<32x128xf32>
    %c4_108 = arith.constant 4 : index
    %c0_109 = arith.constant 0 : index
    %c0_110 = arith.constant 0 : index
    %134 = vector.load %arg5[%c4_108, %c0_109, %c0_110] : memref<9x32x128xbf16, #tpu.memory_space<vmem>>, vector<1x32x128xbf16>
    %135 = vector.shape_cast %134 : vector<1x32x128xbf16> to vector<32x128xbf16>
    %cst_111 = arith.constant dense<0.000000e+00> : vector<32x128xf32>
    %136 = tpu.matmul %135, %100, %cst_111 {dimension_numbers = #tpu.dot_dimension_numbers<[1], [0], [0], [1], [0, 0, 1, 1], [], []>} : vector<32x128xbf16>, vector<128x128xbf16>, vector<32x128xf32> -> vector<32x128xf32>
    %137 = arith.truncf %136 : vector<32x128xf32> to vector<32x128xbf16>
    %c4_112 = arith.constant 4 : index
    %c0_113 = arith.constant 0 : index
    %c0_114 = arith.constant 0 : index
    %138 = vector.load %arg6[%c4_112, %c0_113, %c0_114] : memref<9x128x128xbf16, #tpu.memory_space<vmem>>, vector<1x128x128xbf16>
    %139 = vector.shape_cast %138 : vector<1x128x128xbf16> to vector<128x128xbf16>
    %cst_115 = arith.constant dense<0.000000e+00> : vector<32x128xf32>
    %140 = tpu.matmul %137, %139, %cst_115 {dimension_numbers = #tpu.dot_dimension_numbers<[1], [0], [0], [1], [0, 0, 1, 1], [], []>} : vector<32x128xbf16>, vector<128x128xbf16>, vector<32x128xf32> -> vector<32x128xf32>
    %141 = arith.addf %133, %140 : vector<32x128xf32>
    %c5_116 = arith.constant 5 : index
    %c0_117 = arith.constant 0 : index
    %c0_118 = arith.constant 0 : index
    %142 = vector.load %arg5[%c5_116, %c0_117, %c0_118] : memref<9x32x128xbf16, #tpu.memory_space<vmem>>, vector<1x32x128xbf16>
    %143 = vector.shape_cast %142 : vector<1x32x128xbf16> to vector<32x128xbf16>
    %cst_119 = arith.constant dense<0.000000e+00> : vector<32x128xf32>
    %144 = tpu.matmul %143, %100, %cst_119 {dimension_numbers = #tpu.dot_dimension_numbers<[1], [0], [0], [1], [0, 0, 1, 1], [], []>} : vector<32x128xbf16>, vector<128x128xbf16>, vector<32x128xf32> -> vector<32x128xf32>
    %145 = arith.truncf %144 : vector<32x128xf32> to vector<32x128xbf16>
    %c5_120 = arith.constant 5 : index
    %c0_121 = arith.constant 0 : index
    %c0_122 = arith.constant 0 : index
    %146 = vector.load %arg6[%c5_120, %c0_121, %c0_122] : memref<9x128x128xbf16, #tpu.memory_space<vmem>>, vector<1x128x128xbf16>
    %147 = vector.shape_cast %146 : vector<1x128x128xbf16> to vector<128x128xbf16>
    %cst_123 = arith.constant dense<0.000000e+00> : vector<32x128xf32>
    %148 = tpu.matmul %145, %147, %cst_123 {dimension_numbers = #tpu.dot_dimension_numbers<[1], [0], [0], [1], [0, 0, 1, 1], [], []>} : vector<32x128xbf16>, vector<128x128xbf16>, vector<32x128xf32> -> vector<32x128xf32>
    %149 = arith.addf %141, %148 : vector<32x128xf32>
    %c6_124 = arith.constant 6 : index
    %c0_125 = arith.constant 0 : index
    %c0_126 = arith.constant 0 : index
    %150 = vector.load %arg5[%c6_124, %c0_125, %c0_126] : memref<9x32x128xbf16, #tpu.memory_space<vmem>>, vector<1x32x128xbf16>
    %151 = vector.shape_cast %150 : vector<1x32x128xbf16> to vector<32x128xbf16>
    %cst_127 = arith.constant dense<0.000000e+00> : vector<32x128xf32>
    %152 = tpu.matmul %151, %100, %cst_127 {dimension_numbers = #tpu.dot_dimension_numbers<[1], [0], [0], [1], [0, 0, 1, 1], [], []>} : vector<32x128xbf16>, vector<128x128xbf16>, vector<32x128xf32> -> vector<32x128xf32>
    %153 = arith.truncf %152 : vector<32x128xf32> to vector<32x128xbf16>
    %c6_128 = arith.constant 6 : index
    %c0_129 = arith.constant 0 : index
    %c0_130 = arith.constant 0 : index
    %154 = vector.load %arg6[%c6_128, %c0_129, %c0_130] : memref<9x128x128xbf16, #tpu.memory_space<vmem>>, vector<1x128x128xbf16>
    %155 = vector.shape_cast %154 : vector<1x128x128xbf16> to vector<128x128xbf16>
    %cst_131 = arith.constant dense<0.000000e+00> : vector<32x128xf32>
    %156 = tpu.matmul %153, %155, %cst_131 {dimension_numbers = #tpu.dot_dimension_numbers<[1], [0], [0], [1], [0, 0, 1, 1], [], []>} : vector<32x128xbf16>, vector<128x128xbf16>, vector<32x128xf32> -> vector<32x128xf32>
    %157 = arith.addf %149, %156 : vector<32x128xf32>
    %c7_132 = arith.constant 7 : index
    %c0_133 = arith.constant 0 : index
    %c0_134 = arith.constant 0 : index
    %158 = vector.load %arg5[%c7_132, %c0_133, %c0_134] : memref<9x32x128xbf16, #tpu.memory_space<vmem>>, vector<1x32x128xbf16>
    %159 = vector.shape_cast %158 : vector<1x32x128xbf16> to vector<32x128xbf16>
    %cst_135 = arith.constant dense<0.000000e+00> : vector<32x128xf32>
    %160 = tpu.matmul %159, %100, %cst_135 {dimension_numbers = #tpu.dot_dimension_numbers<[1], [0], [0], [1], [0, 0, 1, 1], [], []>} : vector<32x128xbf16>, vector<128x128xbf16>, vector<32x128xf32> -> vector<32x128xf32>
    %161 = arith.truncf %160 : vector<32x128xf32> to vector<32x128xbf16>
    %c7_136 = arith.constant 7 : index
    %c0_137 = arith.constant 0 : index
    %c0_138 = arith.constant 0 : index
    %162 = vector.load %arg6[%c7_136, %c0_137, %c0_138] : memref<9x128x128xbf16, #tpu.memory_space<vmem>>, vector<1x128x128xbf16>
    %163 = vector.shape_cast %162 : vector<1x128x128xbf16> to vector<128x128xbf16>
    %cst_139 = arith.constant dense<0.000000e+00> : vector<32x128xf32>
    %164 = tpu.matmul %161, %163, %cst_139 {dimension_numbers = #tpu.dot_dimension_numbers<[1], [0], [0], [1], [0, 0, 1, 1], [], []>} : vector<32x128xbf16>, vector<128x128xbf16>, vector<32x128xf32> -> vector<32x128xf32>
    %165 = arith.addf %157, %164 : vector<32x128xf32>
    %c8_140 = arith.constant 8 : index
    %c0_141 = arith.constant 0 : index
    %c0_142 = arith.constant 0 : index
    %166 = vector.load %arg5[%c8_140, %c0_141, %c0_142] : memref<9x32x128xbf16, #tpu.memory_space<vmem>>, vector<1x32x128xbf16>
    %167 = vector.shape_cast %166 : vector<1x32x128xbf16> to vector<32x128xbf16>
    %cst_143 = arith.constant dense<0.000000e+00> : vector<32x128xf32>
    %168 = tpu.matmul %167, %100, %cst_143 {dimension_numbers = #tpu.dot_dimension_numbers<[1], [0], [0], [1], [0, 0, 1, 1], [], []>} : vector<32x128xbf16>, vector<128x128xbf16>, vector<32x128xf32> -> vector<32x128xf32>
    %169 = arith.truncf %168 : vector<32x128xf32> to vector<32x128xbf16>
    %c8_144 = arith.constant 8 : index
    %c0_145 = arith.constant 0 : index
    %c0_146 = arith.constant 0 : index
    %170 = vector.load %arg6[%c8_144, %c0_145, %c0_146] : memref<9x128x128xbf16, #tpu.memory_space<vmem>>, vector<1x128x128xbf16>
    %171 = vector.shape_cast %170 : vector<1x128x128xbf16> to vector<128x128xbf16>
    %cst_147 = arith.constant dense<0.000000e+00> : vector<32x128xf32>
    %172 = tpu.matmul %169, %171, %cst_147 {dimension_numbers = #tpu.dot_dimension_numbers<[1], [0], [0], [1], [0, 0, 1, 1], [], []>} : vector<32x128xbf16>, vector<128x128xbf16>, vector<32x128xf32> -> vector<32x128xf32>
    %173 = arith.addf %165, %172 : vector<32x128xf32>
    %cst_148 = arith.constant dense<0.000000e+00> : vector<128xf32>
    %174 = vector.multi_reduction <add>, %173, %cst_148 [0] : vector<32x128xf32> to vector<128xf32>
    %175 = vector.shape_cast %174 : vector<128xf32> to vector<1x128xf32>
    %cst_149 = arith.constant 3.200000e+01 : f32
    %176 = vector.broadcast %cst_149 : f32 to vector<1x128xf32>
    %177 = arith.divf %175, %176 : vector<1x128xf32>
    %178 = vector.broadcast %177 : vector<1x128xf32> to vector<32x128xf32>
    %179 = arith.subf %173, %178 : vector<32x128xf32>
    %180 = arith.mulf %179, %179 : vector<32x128xf32>
    %cst_150 = arith.constant dense<0.000000e+00> : vector<128xf32>
    %181 = vector.multi_reduction <add>, %180, %cst_150 [0] : vector<32x128xf32> to vector<128xf32>
    %182 = vector.shape_cast %181 : vector<128xf32> to vector<1x128xf32>
    %cst_151 = arith.constant 3.200000e+01 : f32
    %183 = vector.broadcast %cst_151 : f32 to vector<1x128xf32>
    %184 = arith.divf %182, %183 : vector<1x128xf32>
    %185 = vector.broadcast %177 : vector<1x128xf32> to vector<32x128xf32>
    %186 = arith.subf %173, %185 : vector<32x128xf32>
    %cst_152 = arith.constant 9.99999974E-6 : f32
    %187 = vector.broadcast %cst_152 : f32 to vector<1x128xf32>
    %188 = arith.addf %184, %187 : vector<1x128xf32>
    %189 = math.rsqrt %188 : vector<1x128xf32>
    %190 = vector.broadcast %189 : vector<1x128xf32> to vector<32x128xf32>
    %191 = arith.mulf %186, %190 : vector<32x128xf32>
    %c0_153 = arith.constant 0 : index
    %c0_154 = arith.constant 0 : index
    %192 = vector.load %arg7[%c0_153, %c0_154] : memref<1x128xf32, #tpu.memory_space<vmem>>, vector<1x128xf32>
    %193 = vector.broadcast %192 : vector<1x128xf32> to vector<32x128xf32>
    %194 = arith.mulf %191, %193 : vector<32x128xf32>
    %c0_155 = arith.constant 0 : index
    %c0_156 = arith.constant 0 : index
    %195 = vector.load %arg8[%c0_155, %c0_156] : memref<1x128xf32, #tpu.memory_space<vmem>>, vector<1x128xf32>
    %196 = vector.broadcast %195 : vector<1x128xf32> to vector<32x128xf32>
    %197 = arith.addf %194, %196 : vector<32x128xf32>
    %cst_157 = arith.constant 0.000000e+00 : f32
    %198 = vector.broadcast %cst_157 : f32 to vector<32x128xf32>
    %199 = arith.maximumf %197, %198 : vector<32x128xf32>
    %200 = arith.truncf %199 : vector<32x128xf32> to vector<32x128xbf16>
    %cst_158 = arith.constant 0.000000e+00 : f32
    %201 = vector.broadcast %cst_158 : f32 to vector<8x128xf32>
    %c0_159 = arith.constant 0 : index
    %c0_160 = arith.constant 0 : index
    %c0_161 = arith.constant 0 : index
    %202 = vector.load %arg9[%c0_159, %c0_160, %c0_161] : memref<9x8x32xbf16, #tpu.memory_space<vmem>>, vector<1x8x32xbf16>
    %203 = vector.shape_cast %202 : vector<1x8x32xbf16> to vector<8x32xbf16>
    %cst_162 = arith.constant dense<0.000000e+00> : vector<8x128xf32>
    %204 = tpu.matmul %203, %200, %cst_162 {dimension_numbers = #tpu.dot_dimension_numbers<[1], [0], [0], [1], [0, 0, 1, 1], [], []>} : vector<8x32xbf16>, vector<32x128xbf16>, vector<8x128xf32> -> vector<8x128xf32>
    %205 = arith.truncf %204 : vector<8x128xf32> to vector<8x128xbf16>
    %c0_163 = arith.constant 0 : index
    %c0_164 = arith.constant 0 : index
    %c0_165 = arith.constant 0 : index
    %206 = vector.load %arg10[%c0_163, %c0_164, %c0_165] : memref<9x128x128xbf16, #tpu.memory_space<vmem>>, vector<1x128x128xbf16>
    %207 = vector.shape_cast %206 : vector<1x128x128xbf16> to vector<128x128xbf16>
    %cst_166 = arith.constant dense<0.000000e+00> : vector<8x128xf32>
    %208 = tpu.matmul %205, %207, %cst_166 {dimension_numbers = #tpu.dot_dimension_numbers<[1], [0], [0], [1], [0, 0, 1, 1], [], []>} : vector<8x128xbf16>, vector<128x128xbf16>, vector<8x128xf32> -> vector<8x128xf32>
    %209 = arith.addf %201, %208 : vector<8x128xf32>
    %c1_167 = arith.constant 1 : index
    %c0_168 = arith.constant 0 : index
    %c0_169 = arith.constant 0 : index
    %210 = vector.load %arg9[%c1_167, %c0_168, %c0_169] : memref<9x8x32xbf16, #tpu.memory_space<vmem>>, vector<1x8x32xbf16>
    %211 = vector.shape_cast %210 : vector<1x8x32xbf16> to vector<8x32xbf16>
    %cst_170 = arith.constant dense<0.000000e+00> : vector<8x128xf32>
    %212 = tpu.matmul %211, %200, %cst_170 {dimension_numbers = #tpu.dot_dimension_numbers<[1], [0], [0], [1], [0, 0, 1, 1], [], []>} : vector<8x32xbf16>, vector<32x128xbf16>, vector<8x128xf32> -> vector<8x128xf32>
    %213 = arith.truncf %212 : vector<8x128xf32> to vector<8x128xbf16>
    %c1_171 = arith.constant 1 : index
    %c0_172 = arith.constant 0 : index
    %c0_173 = arith.constant 0 : index
    %214 = vector.load %arg10[%c1_171, %c0_172, %c0_173] : memref<9x128x128xbf16, #tpu.memory_space<vmem>>, vector<1x128x128xbf16>
    %215 = vector.shape_cast %214 : vector<1x128x128xbf16> to vector<128x128xbf16>
    %cst_174 = arith.constant dense<0.000000e+00> : vector<8x128xf32>
    %216 = tpu.matmul %213, %215, %cst_174 {dimension_numbers = #tpu.dot_dimension_numbers<[1], [0], [0], [1], [0, 0, 1, 1], [], []>} : vector<8x128xbf16>, vector<128x128xbf16>, vector<8x128xf32> -> vector<8x128xf32>
    %217 = arith.addf %209, %216 : vector<8x128xf32>
    %c2_175 = arith.constant 2 : index
    %c0_176 = arith.constant 0 : index
    %c0_177 = arith.constant 0 : index
    %218 = vector.load %arg9[%c2_175, %c0_176, %c0_177] : memref<9x8x32xbf16, #tpu.memory_space<vmem>>, vector<1x8x32xbf16>
    %219 = vector.shape_cast %218 : vector<1x8x32xbf16> to vector<8x32xbf16>
    %cst_178 = arith.constant dense<0.000000e+00> : vector<8x128xf32>
    %220 = tpu.matmul %219, %200, %cst_178 {dimension_numbers = #tpu.dot_dimension_numbers<[1], [0], [0], [1], [0, 0, 1, 1], [], []>} : vector<8x32xbf16>, vector<32x128xbf16>, vector<8x128xf32> -> vector<8x128xf32>
    %221 = arith.truncf %220 : vector<8x128xf32> to vector<8x128xbf16>
    %c2_179 = arith.constant 2 : index
    %c0_180 = arith.constant 0 : index
    %c0_181 = arith.constant 0 : index
    %222 = vector.load %arg10[%c2_179, %c0_180, %c0_181] : memref<9x128x128xbf16, #tpu.memory_space<vmem>>, vector<1x128x128xbf16>
    %223 = vector.shape_cast %222 : vector<1x128x128xbf16> to vector<128x128xbf16>
    %cst_182 = arith.constant dense<0.000000e+00> : vector<8x128xf32>
    %224 = tpu.matmul %221, %223, %cst_182 {dimension_numbers = #tpu.dot_dimension_numbers<[1], [0], [0], [1], [0, 0, 1, 1], [], []>} : vector<8x128xbf16>, vector<128x128xbf16>, vector<8x128xf32> -> vector<8x128xf32>
    %225 = arith.addf %217, %224 : vector<8x128xf32>
    %c3_183 = arith.constant 3 : index
    %c0_184 = arith.constant 0 : index
    %c0_185 = arith.constant 0 : index
    %226 = vector.load %arg9[%c3_183, %c0_184, %c0_185] : memref<9x8x32xbf16, #tpu.memory_space<vmem>>, vector<1x8x32xbf16>
    %227 = vector.shape_cast %226 : vector<1x8x32xbf16> to vector<8x32xbf16>
    %cst_186 = arith.constant dense<0.000000e+00> : vector<8x128xf32>
    %228 = tpu.matmul %227, %200, %cst_186 {dimension_numbers = #tpu.dot_dimension_numbers<[1], [0], [0], [1], [0, 0, 1, 1], [], []>} : vector<8x32xbf16>, vector<32x128xbf16>, vector<8x128xf32> -> vector<8x128xf32>
    %229 = arith.truncf %228 : vector<8x128xf32> to vector<8x128xbf16>
    %c3_187 = arith.constant 3 : index
    %c0_188 = arith.constant 0 : index
    %c0_189 = arith.constant 0 : index
    %230 = vector.load %arg10[%c3_187, %c0_188, %c0_189] : memref<9x128x128xbf16, #tpu.memory_space<vmem>>, vector<1x128x128xbf16>
    %231 = vector.shape_cast %230 : vector<1x128x128xbf16> to vector<128x128xbf16>
    %cst_190 = arith.constant dense<0.000000e+00> : vector<8x128xf32>
    %232 = tpu.matmul %229, %231, %cst_190 {dimension_numbers = #tpu.dot_dimension_numbers<[1], [0], [0], [1], [0, 0, 1, 1], [], []>} : vector<8x128xbf16>, vector<128x128xbf16>, vector<8x128xf32> -> vector<8x128xf32>
    %233 = arith.addf %225, %232 : vector<8x128xf32>
    %c4_191 = arith.constant 4 : index
    %c0_192 = arith.constant 0 : index
    %c0_193 = arith.constant 0 : index
    %234 = vector.load %arg9[%c4_191, %c0_192, %c0_193] : memref<9x8x32xbf16, #tpu.memory_space<vmem>>, vector<1x8x32xbf16>
    %235 = vector.shape_cast %234 : vector<1x8x32xbf16> to vector<8x32xbf16>
    %cst_194 = arith.constant dense<0.000000e+00> : vector<8x128xf32>
    %236 = tpu.matmul %235, %200, %cst_194 {dimension_numbers = #tpu.dot_dimension_numbers<[1], [0], [0], [1], [0, 0, 1, 1], [], []>} : vector<8x32xbf16>, vector<32x128xbf16>, vector<8x128xf32> -> vector<8x128xf32>
    %237 = arith.truncf %236 : vector<8x128xf32> to vector<8x128xbf16>
    %c4_195 = arith.constant 4 : index
    %c0_196 = arith.constant 0 : index
    %c0_197 = arith.constant 0 : index
    %238 = vector.load %arg10[%c4_195, %c0_196, %c0_197] : memref<9x128x128xbf16, #tpu.memory_space<vmem>>, vector<1x128x128xbf16>
    %239 = vector.shape_cast %238 : vector<1x128x128xbf16> to vector<128x128xbf16>
    %cst_198 = arith.constant dense<0.000000e+00> : vector<8x128xf32>
    %240 = tpu.matmul %237, %239, %cst_198 {dimension_numbers = #tpu.dot_dimension_numbers<[1], [0], [0], [1], [0, 0, 1, 1], [], []>} : vector<8x128xbf16>, vector<128x128xbf16>, vector<8x128xf32> -> vector<8x128xf32>
    %241 = arith.addf %233, %240 : vector<8x128xf32>
    %c5_199 = arith.constant 5 : index
    %c0_200 = arith.constant 0 : index
    %c0_201 = arith.constant 0 : index
    %242 = vector.load %arg9[%c5_199, %c0_200, %c0_201] : memref<9x8x32xbf16, #tpu.memory_space<vmem>>, vector<1x8x32xbf16>
    %243 = vector.shape_cast %242 : vector<1x8x32xbf16> to vector<8x32xbf16>
    %cst_202 = arith.constant dense<0.000000e+00> : vector<8x128xf32>
    %244 = tpu.matmul %243, %200, %cst_202 {dimension_numbers = #tpu.dot_dimension_numbers<[1], [0], [0], [1], [0, 0, 1, 1], [], []>} : vector<8x32xbf16>, vector<32x128xbf16>, vector<8x128xf32> -> vector<8x128xf32>
    %245 = arith.truncf %244 : vector<8x128xf32> to vector<8x128xbf16>
    %c5_203 = arith.constant 5 : index
    %c0_204 = arith.constant 0 : index
    %c0_205 = arith.constant 0 : index
    %246 = vector.load %arg10[%c5_203, %c0_204, %c0_205] : memref<9x128x128xbf16, #tpu.memory_space<vmem>>, vector<1x128x128xbf16>
    %247 = vector.shape_cast %246 : vector<1x128x128xbf16> to vector<128x128xbf16>
    %cst_206 = arith.constant dense<0.000000e+00> : vector<8x128xf32>
    %248 = tpu.matmul %245, %247, %cst_206 {dimension_numbers = #tpu.dot_dimension_numbers<[1], [0], [0], [1], [0, 0, 1, 1], [], []>} : vector<8x128xbf16>, vector<128x128xbf16>, vector<8x128xf32> -> vector<8x128xf32>
    %249 = arith.addf %241, %248 : vector<8x128xf32>
    %c6_207 = arith.constant 6 : index
    %c0_208 = arith.constant 0 : index
    %c0_209 = arith.constant 0 : index
    %250 = vector.load %arg9[%c6_207, %c0_208, %c0_209] : memref<9x8x32xbf16, #tpu.memory_space<vmem>>, vector<1x8x32xbf16>
    %251 = vector.shape_cast %250 : vector<1x8x32xbf16> to vector<8x32xbf16>
    %cst_210 = arith.constant dense<0.000000e+00> : vector<8x128xf32>
    %252 = tpu.matmul %251, %200, %cst_210 {dimension_numbers = #tpu.dot_dimension_numbers<[1], [0], [0], [1], [0, 0, 1, 1], [], []>} : vector<8x32xbf16>, vector<32x128xbf16>, vector<8x128xf32> -> vector<8x128xf32>
    %253 = arith.truncf %252 : vector<8x128xf32> to vector<8x128xbf16>
    %c6_211 = arith.constant 6 : index
    %c0_212 = arith.constant 0 : index
    %c0_213 = arith.constant 0 : index
    %254 = vector.load %arg10[%c6_211, %c0_212, %c0_213] : memref<9x128x128xbf16, #tpu.memory_space<vmem>>, vector<1x128x128xbf16>
    %255 = vector.shape_cast %254 : vector<1x128x128xbf16> to vector<128x128xbf16>
    %cst_214 = arith.constant dense<0.000000e+00> : vector<8x128xf32>
    %256 = tpu.matmul %253, %255, %cst_214 {dimension_numbers = #tpu.dot_dimension_numbers<[1], [0], [0], [1], [0, 0, 1, 1], [], []>} : vector<8x128xbf16>, vector<128x128xbf16>, vector<8x128xf32> -> vector<8x128xf32>
    %257 = arith.addf %249, %256 : vector<8x128xf32>
    %c7_215 = arith.constant 7 : index
    %c0_216 = arith.constant 0 : index
    %c0_217 = arith.constant 0 : index
    %258 = vector.load %arg9[%c7_215, %c0_216, %c0_217] : memref<9x8x32xbf16, #tpu.memory_space<vmem>>, vector<1x8x32xbf16>
    %259 = vector.shape_cast %258 : vector<1x8x32xbf16> to vector<8x32xbf16>
    %cst_218 = arith.constant dense<0.000000e+00> : vector<8x128xf32>
    %260 = tpu.matmul %259, %200, %cst_218 {dimension_numbers = #tpu.dot_dimension_numbers<[1], [0], [0], [1], [0, 0, 1, 1], [], []>} : vector<8x32xbf16>, vector<32x128xbf16>, vector<8x128xf32> -> vector<8x128xf32>
    %261 = arith.truncf %260 : vector<8x128xf32> to vector<8x128xbf16>
    %c7_219 = arith.constant 7 : index
    %c0_220 = arith.constant 0 : index
    %c0_221 = arith.constant 0 : index
    %262 = vector.load %arg10[%c7_219, %c0_220, %c0_221] : memref<9x128x128xbf16, #tpu.memory_space<vmem>>, vector<1x128x128xbf16>
    %263 = vector.shape_cast %262 : vector<1x128x128xbf16> to vector<128x128xbf16>
    %cst_222 = arith.constant dense<0.000000e+00> : vector<8x128xf32>
    %264 = tpu.matmul %261, %263, %cst_222 {dimension_numbers = #tpu.dot_dimension_numbers<[1], [0], [0], [1], [0, 0, 1, 1], [], []>} : vector<8x128xbf16>, vector<128x128xbf16>, vector<8x128xf32> -> vector<8x128xf32>
    %265 = arith.addf %257, %264 : vector<8x128xf32>
    %c8_223 = arith.constant 8 : index
    %c0_224 = arith.constant 0 : index
    %c0_225 = arith.constant 0 : index
    %266 = vector.load %arg9[%c8_223, %c0_224, %c0_225] : memref<9x8x32xbf16, #tpu.memory_space<vmem>>, vector<1x8x32xbf16>
    %267 = vector.shape_cast %266 : vector<1x8x32xbf16> to vector<8x32xbf16>
    %cst_226 = arith.constant dense<0.000000e+00> : vector<8x128xf32>
    %268 = tpu.matmul %267, %200, %cst_226 {dimension_numbers = #tpu.dot_dimension_numbers<[1], [0], [0], [1], [0, 0, 1, 1], [], []>} : vector<8x32xbf16>, vector<32x128xbf16>, vector<8x128xf32> -> vector<8x128xf32>
    %269 = arith.truncf %268 : vector<8x128xf32> to vector<8x128xbf16>
    %c8_227 = arith.constant 8 : index
    %c0_228 = arith.constant 0 : index
    %c0_229 = arith.constant 0 : index
    %270 = vector.load %arg10[%c8_227, %c0_228, %c0_229] : memref<9x128x128xbf16, #tpu.memory_space<vmem>>, vector<1x128x128xbf16>
    %271 = vector.shape_cast %270 : vector<1x128x128xbf16> to vector<128x128xbf16>
    %cst_230 = arith.constant dense<0.000000e+00> : vector<8x128xf32>
    %272 = tpu.matmul %269, %271, %cst_230 {dimension_numbers = #tpu.dot_dimension_numbers<[1], [0], [0], [1], [0, 0, 1, 1], [], []>} : vector<8x128xbf16>, vector<128x128xbf16>, vector<8x128xf32> -> vector<8x128xf32>
    %273 = arith.addf %265, %272 : vector<8x128xf32>
    %cst_231 = arith.constant dense<0.000000e+00> : vector<128xf32>
    %274 = vector.multi_reduction <add>, %273, %cst_231 [0] : vector<8x128xf32> to vector<128xf32>
    %275 = vector.shape_cast %274 : vector<128xf32> to vector<1x128xf32>
    %cst_232 = arith.constant 8.000000e+00 : f32
    %276 = vector.broadcast %cst_232 : f32 to vector<1x128xf32>
    %277 = arith.divf %275, %276 : vector<1x128xf32>
    %278 = vector.broadcast %277 : vector<1x128xf32> to vector<8x128xf32>
    %279 = arith.subf %273, %278 : vector<8x128xf32>
    %280 = arith.mulf %279, %279 : vector<8x128xf32>
    %cst_233 = arith.constant dense<0.000000e+00> : vector<128xf32>
    %281 = vector.multi_reduction <add>, %280, %cst_233 [0] : vector<8x128xf32> to vector<128xf32>
    %282 = vector.shape_cast %281 : vector<128xf32> to vector<1x128xf32>
    %cst_234 = arith.constant 8.000000e+00 : f32
    %283 = vector.broadcast %cst_234 : f32 to vector<1x128xf32>
    %284 = arith.divf %282, %283 : vector<1x128xf32>
    %285 = vector.broadcast %277 : vector<1x128xf32> to vector<8x128xf32>
    %286 = arith.subf %273, %285 : vector<8x128xf32>
    %cst_235 = arith.constant 9.99999974E-6 : f32
    %287 = vector.broadcast %cst_235 : f32 to vector<1x128xf32>
    %288 = arith.addf %284, %287 : vector<1x128xf32>
    %289 = math.rsqrt %288 : vector<1x128xf32>
    %290 = vector.broadcast %289 : vector<1x128xf32> to vector<8x128xf32>
    %291 = arith.mulf %286, %290 : vector<8x128xf32>
    %c0_236 = arith.constant 0 : index
    %c0_237 = arith.constant 0 : index
    %292 = vector.load %arg11[%c0_236, %c0_237] : memref<1x128xf32, #tpu.memory_space<vmem>>, vector<1x128xf32>
    %293 = vector.broadcast %292 : vector<1x128xf32> to vector<8x128xf32>
    %294 = arith.mulf %291, %293 : vector<8x128xf32>
    %c0_238 = arith.constant 0 : index
    %c0_239 = arith.constant 0 : index
    %295 = vector.load %arg12[%c0_238, %c0_239] : memref<1x128xf32, #tpu.memory_space<vmem>>, vector<1x128xf32>
    %296 = vector.broadcast %295 : vector<1x128xf32> to vector<8x128xf32>
    %297 = arith.addf %294, %296 : vector<8x128xf32>
    %cst_240 = arith.constant 0.000000e+00 : f32
    %298 = vector.broadcast %cst_240 : f32 to vector<8x128xf32>
    %299 = arith.maximumf %297, %298 : vector<8x128xf32>
    %cst_241 = arith.constant 0.000000e+00 : f32
    %300 = vector.broadcast %cst_241 : f32 to vector<2x128xf32>
    %301 = vector.extract_strided_slice %299 {offsets = [0, 0], sizes = [1, 128], strides = [1, 1]} : vector<8x128xf32> to vector<1x128xf32>
    %302 = vector.extract_strided_slice %299 {offsets = [4, 0], sizes = [1, 128], strides = [1, 1]} : vector<8x128xf32> to vector<1x128xf32>
    %303 = tpu.concatenate %301, %302 in 0 : vector<1x128xf32>, vector<1x128xf32> -> vector<2x128xf32>
    %c0_242 = arith.constant 0 : index
    %c0_243 = arith.constant 0 : index
    %c0_244 = arith.constant 0 : index
    %304 = vector.load %arg13[%c0_242, %c0_243, %c0_244] : memref<4x128x128xf32, #tpu.memory_space<vmem>>, vector<1x128x128xf32>
    %305 = vector.shape_cast %304 : vector<1x128x128xf32> to vector<128x128xf32>
    %cst_245 = arith.constant dense<0.000000e+00> : vector<2x128xf32>
    %306 = tpu.matmul %303, %305, %cst_245 {dimension_numbers = #tpu.dot_dimension_numbers<[1], [0], [0], [1], [0, 0, 1, 1], [], []>} : vector<2x128xf32>, vector<128x128xf32>, vector<2x128xf32> -> vector<2x128xf32>
    %307 = arith.addf %300, %306 : vector<2x128xf32>
    %308 = vector.extract_strided_slice %299 {offsets = [1, 0], sizes = [1, 128], strides = [1, 1]} : vector<8x128xf32> to vector<1x128xf32>
    %309 = vector.extract_strided_slice %299 {offsets = [5, 0], sizes = [1, 128], strides = [1, 1]} : vector<8x128xf32> to vector<1x128xf32>
    %310 = tpu.concatenate %308, %309 in 0 : vector<1x128xf32>, vector<1x128xf32> -> vector<2x128xf32>
    %c1_246 = arith.constant 1 : index
    %c0_247 = arith.constant 0 : index
    %c0_248 = arith.constant 0 : index
    %311 = vector.load %arg13[%c1_246, %c0_247, %c0_248] : memref<4x128x128xf32, #tpu.memory_space<vmem>>, vector<1x128x128xf32>
    %312 = vector.shape_cast %311 : vector<1x128x128xf32> to vector<128x128xf32>
    %cst_249 = arith.constant dense<0.000000e+00> : vector<2x128xf32>
    %313 = tpu.matmul %310, %312, %cst_249 {dimension_numbers = #tpu.dot_dimension_numbers<[1], [0], [0], [1], [0, 0, 1, 1], [], []>} : vector<2x128xf32>, vector<128x128xf32>, vector<2x128xf32> -> vector<2x128xf32>
    %314 = arith.addf %307, %313 : vector<2x128xf32>
    %315 = vector.extract_strided_slice %299 {offsets = [2, 0], sizes = [1, 128], strides = [1, 1]} : vector<8x128xf32> to vector<1x128xf32>
    %316 = vector.extract_strided_slice %299 {offsets = [6, 0], sizes = [1, 128], strides = [1, 1]} : vector<8x128xf32> to vector<1x128xf32>
    %317 = tpu.concatenate %315, %316 in 0 : vector<1x128xf32>, vector<1x128xf32> -> vector<2x128xf32>
    %c2_250 = arith.constant 2 : index
    %c0_251 = arith.constant 0 : index
    %c0_252 = arith.constant 0 : index
    %318 = vector.load %arg13[%c2_250, %c0_251, %c0_252] : memref<4x128x128xf32, #tpu.memory_space<vmem>>, vector<1x128x128xf32>
    %319 = vector.shape_cast %318 : vector<1x128x128xf32> to vector<128x128xf32>
    %cst_253 = arith.constant dense<0.000000e+00> : vector<2x128xf32>
    %320 = tpu.matmul %317, %319, %cst_253 {dimension_numbers = #tpu.dot_dimension_numbers<[1], [0], [0], [1], [0, 0, 1, 1], [], []>} : vector<2x128xf32>, vector<128x128xf32>, vector<2x128xf32> -> vector<2x128xf32>
    %321 = arith.addf %314, %320 : vector<2x128xf32>
    %322 = vector.extract_strided_slice %299 {offsets = [3, 0], sizes = [1, 128], strides = [1, 1]} : vector<8x128xf32> to vector<1x128xf32>
    %323 = vector.extract_strided_slice %299 {offsets = [7, 0], sizes = [1, 128], strides = [1, 1]} : vector<8x128xf32> to vector<1x128xf32>
    %324 = tpu.concatenate %322, %323 in 0 : vector<1x128xf32>, vector<1x128xf32> -> vector<2x128xf32>
    %c3_254 = arith.constant 3 : index
    %c0_255 = arith.constant 0 : index
    %c0_256 = arith.constant 0 : index
    %325 = vector.load %arg13[%c3_254, %c0_255, %c0_256] : memref<4x128x128xf32, #tpu.memory_space<vmem>>, vector<1x128x128xf32>
    %326 = vector.shape_cast %325 : vector<1x128x128xf32> to vector<128x128xf32>
    %cst_257 = arith.constant dense<0.000000e+00> : vector<2x128xf32>
    %327 = tpu.matmul %324, %326, %cst_257 {dimension_numbers = #tpu.dot_dimension_numbers<[1], [0], [0], [1], [0, 0, 1, 1], [], []>} : vector<2x128xf32>, vector<128x128xf32>, vector<2x128xf32> -> vector<2x128xf32>
    %328 = arith.addf %321, %327 : vector<2x128xf32>
    %c0_258 = arith.constant 0 : index
    %c0_259 = arith.constant 0 : index
    %329 = vector.load %arg14[%c0_258, %c0_259] : memref<1x128xf32, #tpu.memory_space<vmem>>, vector<1x128xf32>
    %330 = vector.broadcast %329 : vector<1x128xf32> to vector<2x128xf32>
    %331 = arith.addf %328, %330 : vector<2x128xf32>
    %c0_260 = arith.constant 0 : index
    %c0_261 = arith.constant 0 : index
    %332 = vector.load %arg15[%c0_260, %c0_261] : memref<2x128xf32, #tpu.memory_space<vmem>>, vector<2x128xf32>
    tpu.vector_store %arg15[%c0_260, %c0_261], %331 {strides = array<i32>} : memref<2x128xf32, #tpu.memory_space<vmem>>, vector<2x128xf32>,
    return
  }
}

</mosaic_0001>

<llo_original>
// kernel: tpu_custom_call.1
$region0: #{tpu_custom_call.1}
  #allocation0 [shape = 'u32[]', space=smem, size = 0x4, offset = 0x4, fixed_abs, tag = 'smem constant byte address 0x4 - core index']
  #allocation1 [shape = 'u32[72,128]{1,0:T(1,128)}', space=vmem, size = 0x9000, scoped, tag = 'internal scratch']
  %s0 = inlined_call_operand.hbm [shape: bf16[512,128], index: 0, kind: input, shape index: {}]
  %s1 = inlined_call_operand.hbm [shape: bf16[9,128,512], index: 1, kind: input, shape index: {}]
  %s2 = inlined_call_operand.hbm [shape: bf16[9,128,128], index: 2, kind: input, shape index: {}]
  %s3 = inlined_call_operand.hbm [shape: f32[1,128], index: 3, kind: input, shape index: {}]
  %s4 = inlined_call_operand.hbm [shape: f32[1,128], index: 4, kind: input, shape index: {}]
  %s5 = inlined_call_operand.hbm [shape: bf16[9,32,128], index: 5, kind: input, shape index: {}]
  %s6 = inlined_call_operand.hbm [shape: bf16[9,128,128], index: 6, kind: input, shape index: {}]
  %s7 = inlined_call_operand.hbm [shape: f32[1,128], index: 7, kind: input, shape index: {}]
  %s8 = inlined_call_operand.hbm [shape: f32[1,128], index: 8, kind: input, shape index: {}]
  %s9 = inlined_call_operand.hbm [shape: bf16[9,8,32], index: 9, kind: input, shape index: {}]
  %s10 = inlined_call_operand.hbm [shape: bf16[9,128,128], index: 10, kind: input, shape index: {}]
  %s11 = inlined_call_operand.hbm [shape: f32[1,128], index: 11, kind: input, shape index: {}]
  %s12 = inlined_call_operand.hbm [shape: f32[1,128], index: 12, kind: input, shape index: {}]
  %s13 = inlined_call_operand.hbm [shape: f32[4,128,128], index: 13, kind: input, shape index: {}]
  %s14 = inlined_call_operand.hbm [shape: f32[1,128], index: 14, kind: input, shape index: {}]
  %s15 = inlined_call_operand.hbm [shape: f32[2,128], index: 15, kind: output, shape index: {}]
  %s16 = sld [smem:[#allocation0]]
  $region130: #{tpu_custom_call.1} parent=0
    _
  %s18 = ssub.s32 1, %s16
  %s19 = scalar_select 0, %s18, %s16
  $region1: #{tpu_custom_call.1} parent=0
    #allocation2 [shape = 'u8[131072]{0}', space=vmem, size = 0x20000, scoped, tag = 'input window, operand 0, single buffered']
    #allocation3 [shape = 's32[1]{0}', space=sflag, size = 0x4, scoped, tag = 'scoped memory for tpu_custom_call.1']
    #allocation4 [shape = 's32[1]{0}', space=sflag, size = 0x4, scoped, tag = 'scoped memory for tpu_custom_call.1']
    #allocation5 [shape = 'u8[1179648]{0}', space=vmem, size = 0x120000, scoped, tag = 'input window, operand 1, single buffered']
    #allocation6 [shape = 's32[1]{0}', space=sflag, size = 0x4, scoped, tag = 'scoped memory for tpu_custom_call.1']
    #allocation7 [shape = 'u8[294912]{0}', space=vmem, size = 0x48000, scoped, tag = 'input window, operand 2, single buffered']
    #allocation8 [shape = 'u8[512]{0}', space=vmem, size = 0x400, scoped, tag = 'input window, operand 3, single buffered']
    #allocation9 [shape = 's32[1]{0}', space=sflag, size = 0x4, scoped, tag = 'scoped memory for tpu_custom_call.1']
    #allocation10 [shape = 'u8[512]{0}', space=vmem, size = 0x400, scoped, tag = 'input window, operand 4, single buffered']
    #allocation11 [shape = 'u8[73728]{0}', space=vmem, size = 0x12000, scoped, tag = 'input window, operand 5, single buffered']
    #allocation12 [shape = 's32[1]{0}', space=sflag, size = 0x4, scoped, tag = 'scoped memory for tpu_custom_call.1']
    #allocation13 [shape = 'u8[294912]{0}', space=vmem, size = 0x48000, scoped, tag = 'input window, operand 6, single buffered']
    #allocation14 [shape = 'u8[512]{0}', space=vmem, size = 0x400, scoped, tag = 'input window, operand 7, single buffered']
    #allocation15 [shape = 's32[1]{0}', space=sflag, size = 0x4, scoped, tag = 'scoped memory for tpu_custom_call.1']
    #allocation16 [shape = 'u8[512]{0}', space=vmem, size = 0x400, scoped, tag = 'input window, operand 8, single buffered']
    #allocation17 [shape = 'u8[18432]{0}', space=vmem, size = 0x4800, scoped, tag = 'input window, operand 9, single buffered']
    #allocation18 [shape = 's32[1]{0}', space=sflag, size = 0x4, scoped, tag = 'scoped memory for tpu_custom_call.1']
    #allocation19 [shape = 'u8[294912]{0}', space=vmem, size = 0x48000, scoped, tag = 'input window, operand 10, single buffered']
    #allocation20 [shape = 'u8[512]{0}', space=vmem, size = 0x400, scoped, tag = 'input window, operand 11, single buffered']
    #allocation21 [shape = 's32[1]{0}', space=sflag, size = 0x4, scoped, tag = 'scoped memory for tpu_custom_call.1']
    #allocation22 [shape = 'u8[512]{0}', space=vmem, size = 0x400, scoped, tag = 'input window, operand 12, single buffered']
    #allocation23 [shape = 'u8[262144]{0}', space=vmem, size = 0x40000, scoped, tag = 'input window, operand 13, single buffered']
    #allocation24 [shape = 's32[1]{0}', space=sflag, size = 0x4, scoped, tag = 'scoped memory for tpu_custom_call.1']
    #allocation25 [shape = 'u8[512]{0}', space=vmem, size = 0x400, scoped, tag = 'input window, operand 14, single buffered']
    #allocation26 [shape = 'u8[1024]{0}', space=vmem, size = 0x400, scoped, tag = 'output window, operand 0, single buffered']
    %20 = vsyncpa [#allocation3], 0
    %21 = vsyncpa [#allocation6], 0
    %22 = vsyncpa [#allocation9], 0
    %23 = vsyncpa [#allocation12], 0
    %24 = vsyncpa [#allocation15], 0
    %25 = vsyncpa [#allocation18], 0
    %26 = vsyncpa [#allocation21], 0
    %27 = vsyncpa [#allocation24], 0
    %28 = vsyncpa [#allocation4], 0
    // Predicated region
    $region2: #{tpu_custom_call.1} parent=1 // pred_check
      _
    $region3: #{tpu_custom_call.1} parent=1 // pred_check_branch
      %30 = sbr.rel (0) target = $region5
    $region4: #{tpu_custom_call.1} parent=1 // pred_region
      %32 = vsyncadd [#allocation3], 0
      %s33 = sshll.u32 %s0, 4
      %s34 = int_to_ptr.hbm [resolvable:$true] %s33
      %s35 = sshll.u32 [#allocation2], 4
      %s36 = int_to_ptr.vmem [resolvable:$true] %s35
      %41 = dma.hbm_to_vmem [thread:$0]  %s34, 4096, %s36, [#allocation3], 64, 64, 4
    $region5: #{tpu_custom_call.1} parent=1 // pred_fallthru
      _
    // Predicated region
    $region6: #{tpu_custom_call.1} parent=1 // pred_check
      _
    $region7: #{tpu_custom_call.1} parent=1 // pred_check_branch
      %43 = sbr.rel (0) target = $region9
    $region8: #{tpu_custom_call.1} parent=1 // pred_region
      %45 = vsyncadd [#allocation6], 0
      %s46 = sshll.u32 %s1, 4
      %s47 = int_to_ptr.hbm [resolvable:$true] %s46
      %s48 = sshll.u32 [#allocation5], 4
      %s49 = int_to_ptr.vmem [resolvable:$true] %s48
      %54 = dma.hbm_to_vmem [thread:$0]  %s47, 36864, %s49, [#allocation6], 256, 256, 16
    $region9: #{tpu_custom_call.1} parent=1 // pred_fallthru
      _
    // Predicated region
    $region10: #{tpu_custom_call.1} parent=1 // pred_check
      _
    $region11: #{tpu_custom_call.1} parent=1 // pred_check_branch
      %56 = sbr.rel (0) target = $region13
    $region12: #{tpu_custom_call.1} parent=1 // pred_region
      %58 = vsyncadd [#allocation6], 0
      %s59 = sshll.u32 %s2, 4
      %s60 = int_to_ptr.hbm [resolvable:$true] %s59
      %s61 = sshll.u32 [#allocation7], 4
      %s62 = int_to_ptr.vmem [resolvable:$true] %s61
      %67 = dma.hbm_to_vmem [thread:$0]  %s60, 9216, %s62, [#allocation6], 64, 64, 4
    $region13: #{tpu_custom_call.1} parent=1 // pred_fallthru
      _
    // Predicated region
    $region14: #{tpu_custom_call.1} parent=1 // pred_check
      _
    $region15: #{tpu_custom_call.1} parent=1 // pred_check_branch
      %69 = sbr.rel (0) target = $region17
    $region16: #{tpu_custom_call.1} parent=1 // pred_region
      %71 = vsyncadd [#allocation9], 0
      %s73 = sshll.u32 %s3, 4
      %s74 = int_to_ptr.hbm [resolvable:$true] %s73
      %s75 = sshll.u32 [#allocation8], 4
      %s76 = int_to_ptr.vmem [resolvable:$true] %s75
      %78 = dma.hbm_to_vmem [thread:$0]  %s74, 16, %s76, [#allocation9]
    $region17: #{tpu_custom_call.1} parent=1 // pred_fallthru
      _
    // Predicated region
    $region18: #{tpu_custom_call.1} parent=1 // pred_check
      _
    $region19: #{tpu_custom_call.1} parent=1 // pred_check_branch
      %80 = sbr.rel (0) target = $region21
    $region20: #{tpu_custom_call.1} parent=1 // pred_region
      %82 = vsyncadd [#allocation9], 0
      %s84 = sshll.u32 %s4, 4
      %s85 = int_to_ptr.hbm [resolvable:$true] %s84
      %s86 = sshll.u32 [#allocation10], 4
      %s87 = int_to_ptr.vmem [resolvable:$true] %s86
      %89 = dma.hbm_to_vmem [thread:$0]  %s85, 16, %s87, [#allocation9]
    $region21: #{tpu_custom_call.1} parent=1 // pred_fallthru
      _
    // Predicated region
    $region22: #{tpu_custom_call.1} parent=1 // pred_check
      _
    $region23: #{tpu_custom_call.1} parent=1 // pred_check_branch
      %91 = sbr.rel (0) target = $region25
    $region24: #{tpu_custom_call.1} parent=1 // pred_region
      %93 = vsyncadd [#allocation12], 0
      %s94 = sshll.u32 %s5, 4
      %s95 = int_to_ptr.hbm [resolvable:$true] %s94
      %s96 = sshll.u32 [#allocation11], 4
      %s97 = int_to_ptr.vmem [resolvable:$true] %s96
      %102 = dma.hbm_to_vmem [thread:$0]  %s95, 2304, %s97, [#allocation12], 64, 64, 4
    $region25: #{tpu_custom_call.1} parent=1 // pred_fallthru
      _
    // Predicated region
    $region26: #{tpu_custom_call.1} parent=1 // pred_check
      _
    $region27: #{tpu_custom_call.1} parent=1 // pred_check_branch
      %104 = sbr.rel (0) target = $region29
    $region28: #{tpu_custom_call.1} parent=1 // pred_region
      %106 = vsyncadd [#allocation12], 0
      %s107 = sshll.u32 %s6, 4
      %s108 = int_to_ptr.hbm [resolvable:$true] %s107
      %s109 = sshll.u32 [#allocation13], 4
      %s110 = int_to_ptr.vmem [resolvable:$true] %s109
      %115 = dma.hbm_to_vmem [thread:$0]  %s108, 9216, %s110, [#allocation12], 64, 64, 4
    $region29: #{tpu_custom_call.1} parent=1 // pred_fallthru
      _
    // Predicated region
    $region30: #{tpu_custom_call.1} parent=1 // pred_check
      _
    $region31: #{tpu_custom_call.1} parent=1 // pred_check_branch
      %117 = sbr.rel (0) target = $region33
    $region32: #{tpu_custom_call.1} parent=1 // pred_region
      %119 = vsyncadd [#allocation15], 0
      %s121 = sshll.u32 %s7, 4
      %s122 = int_to_ptr.hbm [resolvable:$true] %s121
      %s123 = sshll.u32 [#allocation14], 4
      %s124 = int_to_ptr.vmem [resolvable:$true] %s123
      %126 = dma.hbm_to_vmem [thread:$0]  %s122, 16, %s124, [#allocation15]
    $region33: #{tpu_custom_call.1} parent=1 // pred_fallthru
      _
    // Predicated region
    $region34: #{tpu_custom_call.1} parent=1 // pred_check
      _
    $region35: #{tpu_custom_call.1} parent=1 // pred_check_branch
      %128 = sbr.rel (0) target = $region37
    $region36: #{tpu_custom_call.1} parent=1 // pred_region
      %130 = vsyncadd [#allocation15], 0
      %s132 = sshll.u32 %s8, 4
      %s133 = int_to_ptr.hbm [resolvable:$true] %s132
      %s134 = sshll.u32 [#allocation16], 4
      %s135 = int_to_ptr.vmem [resolvable:$true] %s134
      %137 = dma.hbm_to_vmem [thread:$0]  %s133, 16, %s135, [#allocation15]
    $region37: #{tpu_custom_call.1} parent=1 // pred_fallthru
      _
    // Predicated region
    $region38: #{tpu_custom_call.1} parent=1 // pred_check
      _
    $region39: #{tpu_custom_call.1} parent=1 // pred_check_branch
      %139 = sbr.rel (0) target = $region41
    $region40: #{tpu_custom_call.1} parent=1 // pred_region
      %141 = vsyncadd [#allocation18], 0
      %s142 = sshll.u32 %s9, 4
      %s143 = int_to_ptr.hbm [resolvable:$true] %s142
      %s144 = sshll.u32 [#allocation17], 4
      %s145 = int_to_ptr.vmem [resolvable:$true] %s144
      %150 = dma.hbm_to_vmem [thread:$0]  %s143, 576, %s145, [#allocation18], 64, 64, 4
    $region41: #{tpu_custom_call.1} parent=1 // pred_fallthru
      _
    // Predicated region
    $region42: #{tpu_custom_call.1} parent=1 // pred_check
      _
    $region43: #{tpu_custom_call.1} parent=1 // pred_check_branch
      %152 = sbr.rel (0) target = $region45
    $region44: #{tpu_custom_call.1} parent=1 // pred_region
      %154 = vsyncadd [#allocation18], 0
      %s155 = sshll.u32 %s10, 4
      %s156 = int_to_ptr.hbm [resolvable:$true] %s155
      %s157 = sshll.u32 [#allocation19], 4
      %s158 = int_to_ptr.vmem [resolvable:$true] %s157
      %163 = dma.hbm_to_vmem [thread:$0]  %s156, 9216, %s158, [#allocation18], 64, 64, 4
    $region45: #{tpu_custom_call.1} parent=1 // pred_fallthru
      _
    // Predicated region
    $region46: #{tpu_custom_call.1} parent=1 // pred_check
      _
    $region47: #{tpu_custom_call.1} parent=1 // pred_check_branch
      %165 = sbr.rel (0) target = $region49
    $region48: #{tpu_custom_call.1} parent=1 // pred_region
      %167 = vsyncadd [#allocation21], 0
      %s169 = sshll.u32 %s11, 4
      %s170 = int_to_ptr.hbm [resolvable:$true] %s169
      %s171 = sshll.u32 [#allocation20], 4
      %s172 = int_to_ptr.vmem [resolvable:$true] %s171
      %174 = dma.hbm_to_vmem [thread:$0]  %s170, 16, %s172, [#allocation21]
    $region49: #{tpu_custom_call.1} parent=1 // pred_fallthru
      _
    // Predicated region
    $region50: #{tpu_custom_call.1} parent=1 // pred_check
      _
    $region51: #{tpu_custom_call.1} parent=1 // pred_check_branch
      %176 = sbr.rel (0) target = $region53
    $region52: #{tpu_custom_call.1} parent=1 // pred_region
      %178 = vsyncadd [#allocation21], 0
      %s180 = sshll.u32 %s12, 4
      %s181 = int_to_ptr.hbm [resolvable:$true] %s180
      %s182 = sshll.u32 [#allocation22], 4
      %s183 = int_to_ptr.vmem [resolvable:$true] %s182
      %185 = dma.hbm_to_vmem [thread:$0]  %s181, 16, %s183, [#allocation21]
    $region53: #{tpu_custom_call.1} parent=1 // pred_fallthru
      _
    // Predicated region
    $region54: #{tpu_custom_call.1} parent=1 // pred_check
      _
    $region55: #{tpu_custom_call.1} parent=1 // pred_check_branch
      %187 = sbr.rel (0) target = $region57
    $region56: #{tpu_custom_call.1} parent=1 // pred_region
      %189 = vsyncadd [#allocation24], 0
      %s190 = sshll.u32 %s13, 4
      %s191 = int_to_ptr.hbm [resolvable:$true] %s190
      %s192 = sshll.u32 [#allocation23], 4
      %s193 = int_to_ptr.vmem [resolvable:$true] %s192
      %198 = dma.hbm_to_vmem [thread:$0]  %s191, 8192, %s193, [#allocation24], 128, 128, 8
    $region57: #{tpu_custom_call.1} parent=1 // pred_fallthru
      _
    // Predicated region
    $region58: #{tpu_custom_call.1} parent=1 // pred_check
      _
    $region59: #{tpu_custom_call.1} parent=1 // pred_check_branch
      %200 = sbr.rel (0) target = $region61
    $region60: #{tpu_custom_call.1} parent=1 // pred_region
      %202 = vsyncadd [#allocation24], 0
      %s204 = sshll.u32 %s14, 4
      %s205 = int_to_ptr.hbm [resolvable:$true] %s204
      %s206 = sshll.u32 [#allocation25], 4
      %s207 = int_to_ptr.vmem [resolvable:$true] %s206
      %209 = dma.hbm_to_vmem [thread:$0]  %s205, 16, %s207, [#allocation24]
    $region61: #{tpu_custom_call.1} parent=1 // pred_fallthru
      _
    // Predicated region
    $region62: #{tpu_custom_call.1} parent=1 // pred_check
      _
    $region63: #{tpu_custom_call.1} parent=1 // pred_check_branch
      %211 = sbr.rel (0) target = $region65
    $region64: #{tpu_custom_call.1} parent=1 // pred_region
      %213 = dma.done [#allocation3], 4096
    $region65: #{tpu_custom_call.1} parent=1 // pred_fallthru
      _
    // Predicated region
    $region66: #{tpu_custom_call.1} parent=1 // pred_check
      _
    $region67: #{tpu_custom_call.1} parent=1 // pred_check_branch
      %215 = sbr.rel (0) target = $region69
    $region68: #{tpu_custom_call.1} parent=1 // pred_region
      %217 = dma.done [#allocation6], 36864
    $region69: #{tpu_custom_call.1} parent=1 // pred_fallthru
      _
    // Predicated region
    $region70: #{tpu_custom_call.1} parent=1 // pred_check
      _
    $region71: #{tpu_custom_call.1} parent=1 // pred_check_branch
      %219 = sbr.rel (0) target = $region73
    $region72: #{tpu_custom_call.1} parent=1 // pred_region
      %221 = dma.done [#allocation6], 9216
    $region73: #{tpu_custom_call.1} parent=1 // pred_fallthru
      _
    // Predicated region
    $region74: #{tpu_custom_call.1} parent=1 // pred_check
      _
    $region75: #{tpu_custom_call.1} parent=1 // pred_check_branch
      %223 = sbr.rel (0) target = $region77
    $region76: #{tpu_custom_call.1} parent=1 // pred_region
      %225 = dma.done [#allocation9], 16
    $region77: #{tpu_custom_call.1} parent=1 // pred_fallthru
      _
    // Predicated region
    $region78: #{tpu_custom_call.1} parent=1 // pred_check
      _
    $region79: #{tpu_custom_call.1} parent=1 // pred_check_branch
      %227 = sbr.rel (0) target = $region81
    $region80: #{tpu_custom_call.1} parent=1 // pred_region
      %229 = dma.done [#allocation9], 16
    $region81: #{tpu_custom_call.1} parent=1 // pred_fallthru
      _
    // Predicated region
    $region82: #{tpu_custom_call.1} parent=1 // pred_check
      _
    $region83: #{tpu_custom_call.1} parent=1 // pred_check_branch
      %231 = sbr.rel (0) target = $region85
    $region84: #{tpu_custom_call.1} parent=1 // pred_region
      %233 = dma.done [#allocation12], 2304
    $region85: #{tpu_custom_call.1} parent=1 // pred_fallthru
      _
    // Predicated region
    $region86: #{tpu_custom_call.1} parent=1 // pred_check
      _
    $region87: #{tpu_custom_call.1} parent=1 // pred_check_branch
      %235 = sbr.rel (0) target = $region89
    $region88: #{tpu_custom_call.1} parent=1 // pred_region
      %237 = dma.done [#allocation12], 9216
    $region89: #{tpu_custom_call.1} parent=1 // pred_fallthru
      _
    // Predicated region
    $region90: #{tpu_custom_call.1} parent=1 // pred_check
      _
    $region91: #{tpu_custom_call.1} parent=1 // pred_check_branch
      %239 = sbr.rel (0) target = $region93
    $region92: #{tpu_custom_call.1} parent=1 // pred_region
      %241 = dma.done [#allocation15], 16
    $region93: #{tpu_custom_call.1} parent=1 // pred_fallthru
      _
    // Predicated region
    $region94: #{tpu_custom_call.1} parent=1 // pred_check
      _
    $region95: #{tpu_custom_call.1} parent=1 // pred_check_branch
      %243 = sbr.rel (0) target = $region97
    $region96: #{tpu_custom_call.1} parent=1 // pred_region
      %245 = dma.done [#allocation15], 16
    $region97: #{tpu_custom_call.1} parent=1 // pred_fallthru
      _
    // Predicated region
    $region98: #{tpu_custom_call.1} parent=1 // pred_check
      _
    $region99: #{tpu_custom_call.1} parent=1 // pred_check_branch
      %247 = sbr.rel (0) target = $region101
    $region100: #{tpu_custom_call.1} parent=1 // pred_region
      %249 = dma.done [#allocation18], 576
    $region101: #{tpu_custom_call.1} parent=1 // pred_fallthru
      _
    // Predicated region
    $region102: #{tpu_custom_call.1} parent=1 // pred_check
      _
    $region103: #{tpu_custom_call.1} parent=1 // pred_check_branch
      %251 = sbr.rel (0) target = $region105
    $region104: #{tpu_custom_call.1} parent=1 // pred_region
      %253 = dma.done [#allocation18], 9216
    $region105: #{tpu_custom_call.1} parent=1 // pred_fallthru
      _
    // Predicated region
    $region106: #{tpu_custom_call.1} parent=1 // pred_check
      _
    $region107: #{tpu_custom_call.1} parent=1 // pred_check_branch
      %255 = sbr.rel (0) target = $region109
    $region108: #{tpu_custom_call.1} parent=1 // pred_region
      %257 = dma.done [#allocation21], 16
    $region109: #{tpu_custom_call.1} parent=1 // pred_fallthru
      _
    // Predicated region
    $region110: #{tpu_custom_call.1} parent=1 // pred_check
      _
    $region111: #{tpu_custom_call.1} parent=1 // pred_check_branch
      %259 = sbr.rel (0) target = $region113
    $region112: #{tpu_custom_call.1} parent=1 // pred_region
      %261 = dma.done [#allocation21], 16
    $region113: #{tpu_custom_call.1} parent=1 // pred_fallthru
      _
    // Predicated region
    $region114: #{tpu_custom_call.1} parent=1 // pred_check
      _
    $region115: #{tpu_custom_call.1} parent=1 // pred_check_branch
      %263 = sbr.rel (0) target = $region117
    $region116: #{tpu_custom_call.1} parent=1 // pred_region
      %265 = dma.done [#allocation24], 8192
    $region117: #{tpu_custom_call.1} parent=1 // pred_fallthru
      _
    // Predicated region
    $region118: #{tpu_custom_call.1} parent=1 // pred_check
      _
    $region119: #{tpu_custom_call.1} parent=1 // pred_check_branch
      %267 = sbr.rel (0) target = $region121
    $region120: #{tpu_custom_call.1} parent=1 // pred_region
      %269 = dma.done [#allocation24], 16
    $region121: #{tpu_custom_call.1} parent=1 // pred_fallthru
      _
    %v271 = vld [vmem:[#allocation2] sm:$0xf]
    %v272 = vld [vmem:[#allocation2 + $0x4] sm:$0xf]
    %v273 = vld [vmem:[#allocation2 + $0x8] sm:$0xf]
    %v274 = vld [vmem:[#allocation2 + $0xc] sm:$0xf]
    %v275 = vld [vmem:[#allocation2 + $0x10] sm:$0xf]
    %v276 = vld [vmem:[#allocation2 + $0x14] sm:$0xf]
    %v277 = vld [vmem:[#allocation2 + $0x18] sm:$0xf]
    %v278 = vld [vmem:[#allocation2 + $0x1c] sm:$0xf]
    %v279 = vld [vmem:[#allocation2 + $0x20] sm:$0xf]
    %v280 = vld [vmem:[#allocation2 + $0x24] sm:$0xf]
    %v281 = vld [vmem:[#allocation2 + $0x28] sm:$0xf]
    %v282 = vld [vmem:[#allocation2 + $0x2c] sm:$0xf]
    %v283 = vld [vmem:[#allocation2 + $0x30] sm:$0xf]
    %v284 = vld [vmem:[#allocation2 + $0x34] sm:$0xf]
    %v285 = vld [vmem:[#allocation2 + $0x38] sm:$0xf]
    %v286 = vld [vmem:[#allocation2 + $0x3c] sm:$0xf]
    %v287 = vld [vmem:[#allocation2 + $0x40] sm:$0xf]
    %v288 = vld [vmem:[#allocation2 + $0x44] sm:$0xf]
    %v289 = vld [vmem:[#allocation2 + $0x48] sm:$0xf]
    %v290 = vld [vmem:[#allocation2 + $0x4c] sm:$0xf]
    %v291 = vld [vmem:[#allocation2 + $0x50] sm:$0xf]
    %v292 = vld [vmem:[#allocation2 + $0x54] sm:$0xf]
    %v293 = vld [vmem:[#allocation2 + $0x58] sm:$0xf]
    %v294 = vld [vmem:[#allocation2 + $0x5c] sm:$0xf]
    %v295 = vld [vmem:[#allocation2 + $0x60] sm:$0xf]
    %v296 = vld [vmem:[#allocation2 + $0x64] sm:$0xf]
    %v297 = vld [vmem:[#allocation2 + $0x68] sm:$0xf]
    %v298 = vld [vmem:[#allocation2 + $0x6c] sm:$0xf]
    %v299 = vld [vmem:[#allocation2 + $0x70] sm:$0xf]
    %v300 = vld [vmem:[#allocation2 + $0x74] sm:$0xf]
    %v301 = vld [vmem:[#allocation2 + $0x78] sm:$0xf]
    %v302 = vld [vmem:[#allocation2 + $0x7c] sm:$0xf]
    %v303 = vld [vmem:[#allocation2 + $0x80] sm:$0xf]
    %v304 = vld [vmem:[#allocation2 + $0x84] sm:$0xf]
    %v305 = vld [vmem:[#allocation2 + $0x88] sm:$0xf]
    %v306 = vld [vmem:[#allocation2 + $0x8c] sm:$0xf]
    %v307 = vld [vmem:[#allocation2 + $0x90] sm:$0xf]
    %v308 = vld [vmem:[#allocation2 + $0x94] sm:$0xf]
    %v309 = vld [vmem:[#allocation2 + $0x98] sm:$0xf]
    %v310 = vld [vmem:[#allocation2 + $0x9c] sm:$0xf]
    %v311 = vld [vmem:[#allocation2 + $0xa0] sm:$0xf]
    %v312 = vld [vmem:[#allocation2 + $0xa4] sm:$0xf]
    %v313 = vld [vmem:[#allocation2 + $0xa8] sm:$0xf]
    %v314 = vld [vmem:[#allocation2 + $0xac] sm:$0xf]
    %v315 = vld [vmem:[#allocation2 + $0xb0] sm:$0xf]
    %v316 = vld [vmem:[#allocation2 + $0xb4] sm:$0xf]
    %v317 = vld [vmem:[#allocation2 + $0xb8] sm:$0xf]
    %v318 = vld [vmem:[#allocation2 + $0xbc] sm:$0xf]
    %v319 = vld [vmem:[#allocation2 + $0xc0] sm:$0xf]
    %v320 = vld [vmem:[#allocation2 + $0xc4] sm:$0xf]
    %v321 = vld [vmem:[#allocation2 + $0xc8] sm:$0xf]
    %v322 = vld [vmem:[#allocation2 + $0xcc] sm:$0xf]
    %v323 = vld [vmem:[#allocation2 + $0xd0] sm:$0xf]
    %v324 = vld [vmem:[#allocation2 + $0xd4] sm:$0xf]
    %v325 = vld [vmem:[#allocation2 + $0xd8] sm:$0xf]
    %v326 = vld [vmem:[#allocation2 + $0xdc] sm:$0xf]
    %v327 = vld [vmem:[#allocation2 + $0xe0] sm:$0xf]
    %v328 = vld [vmem:[#allocation2 + $0xe4] sm:$0xf]
    %v329 = vld [vmem:[#allocation2 + $0xe8] sm:$0xf]
    %v330 = vld [vmem:[#allocation2 + $0xec] sm:$0xf]
    %v331 = vld [vmem:[#allocation2 + $0xf0] sm:$0xf]
    %v332 = vld [vmem:[#allocation2 + $0xf4] sm:$0xf]
    %v333 = vld [vmem:[#allocation2 + $0xf8] sm:$0xf]
    %v334 = vld [vmem:[#allocation2 + $0xfc] sm:$0xf]
    %v335 = vld [vmem:[#allocation5] sm:$0xff]
    %v336 = vld [vmem:[#allocation5 + $0x8] sm:$0xff]
    %v337 = vld [vmem:[#allocation5 + $0x10] sm:$0xff]
    %v338 = vld [vmem:[#allocation5 + $0x18] sm:$0xff]
    %v339 = vld [vmem:[#allocation5 + $0x20] sm:$0xff]
    %v340 = vld [vmem:[#allocation5 + $0x28] sm:$0xff]
    %v341 = vld [vmem:[#allocation5 + $0x30] sm:$0xff]
    %v342 = vld [vmem:[#allocation5 + $0x38] sm:$0xff]
    %v343 = vld [vmem:[#allocation5 + $0x40] sm:$0xff]
    %v344 = vld [vmem:[#allocation5 + $0x48] sm:$0xff]
    %v345 = vld [vmem:[#allocation5 + $0x50] sm:$0xff]
    %v346 = vld [vmem:[#allocation5 + $0x58] sm:$0xff]
    %v347 = vld [vmem:[#allocation5 + $0x60] sm:$0xff]
    %v348 = vld [vmem:[#allocation5 + $0x68] sm:$0xff]
    %v349 = vld [vmem:[#allocation5 + $0x70] sm:$0xff]
    %v350 = vld [vmem:[#allocation5 + $0x78] sm:$0xff]
    %v351 = vld [vmem:[#allocation5 + $0x80] sm:$0xff]
    %v352 = vld [vmem:[#allocation5 + $0x88] sm:$0xff]
    %v353 = vld [vmem:[#allocation5 + $0x90] sm:$0xff]
    %v354 = vld [vmem:[#allocation5 + $0x98] sm:$0xff]
    %v355 = vld [vmem:[#allocation5 + $0xa0] sm:$0xff]
    %v356 = vld [vmem:[#allocation5 + $0xa8] sm:$0xff]
    %v357 = vld [vmem:[#allocation5 + $0xb0] sm:$0xff]
    %v358 = vld [vmem:[#allocation5 + $0xb8] sm:$0xff]
    %v359 = vld [vmem:[#allocation5 + $0xc0] sm:$0xff]
    %v360 = vld [vmem:[#allocation5 + $0xc8] sm:$0xff]
    %v361 = vld [vmem:[#allocation5 + $0xd0] sm:$0xff]
    %v362 = vld [vmem:[#allocation5 + $0xd8] sm:$0xff]
    %v363 = vld [vmem:[#allocation5 + $0xe0] sm:$0xff]
    %v364 = vld [vmem:[#allocation5 + $0xe8] sm:$0xff]
    %v365 = vld [vmem:[#allocation5 + $0xf0] sm:$0xff]
    %v366 = vld [vmem:[#allocation5 + $0xf8] sm:$0xff]
    %v399 = vunpack.c.l.b16 %v335
    %v400 = vunpack.c.h.b16 %v335
    %v401 = vunpack.c.l.b16 %v336
    %v402 = vunpack.c.h.b16 %v336
    %v403 = vunpack.c.l.b16 %v337
    %v404 = vunpack.c.h.b16 %v337
    %v405 = vunpack.c.l.b16 %v338
    %v406 = vunpack.c.h.b16 %v338
    %v407 = vunpack.c.l.b16 %v339
    %v408 = vunpack.c.h.b16 %v339
    %v409 = vunpack.c.l.b16 %v340
    %v410 = vunpack.c.h.b16 %v340
    %v411 = vunpack.c.l.b16 %v341
    %v412 = vunpack.c.h.b16 %v341
    %v413 = vunpack.c.l.b16 %v342
    %v414 = vunpack.c.h.b16 %v342
    %v415 = vunpack.c.l.b16 %v343
    %v416 = vunpack.c.h.b16 %v343
    %v417 = vunpack.c.l.b16 %v344
    %v418 = vunpack.c.h.b16 %v344
    %v419 = vunpack.c.l.b16 %v345
    %v420 = vunpack.c.h.b16 %v345
    %v421 = vunpack.c.l.b16 %v346
    %v422 = vunpack.c.h.b16 %v346
    %v423 = vunpack.c.l.b16 %v347
    %v424 = vunpack.c.h.b16 %v347
    %v425 = vunpack.c.l.b16 %v348
    %v426 = vunpack.c.h.b16 %v348
    %v427 = vunpack.c.l.b16 %v349
    %v428 = vunpack.c.h.b16 %v349
    %v429 = vunpack.c.l.b16 %v350
    %v430 = vunpack.c.h.b16 %v350
    %v431 = vunpack.c.l.b16 %v351
    %v432 = vunpack.c.h.b16 %v351
    %v433 = vunpack.c.l.b16 %v352
    %v434 = vunpack.c.h.b16 %v352
    %v435 = vunpack.c.l.b16 %v353
    %v436 = vunpack.c.h.b16 %v353
    %v437 = vunpack.c.l.b16 %v354
    %v438 = vunpack.c.h.b16 %v354
    %v439 = vunpack.c.l.b16 %v355
    %v440 = vunpack.c.h.b16 %v355
    %v441 = vunpack.c.l.b16 %v356
    %v442 = vunpack.c.h.b16 %v356
    %v443 = vunpack.c.l.b16 %v357
    %v444 = vunpack.c.h.b16 %v357
    %v445 = vunpack.c.l.b16 %v358
    %v446 = vunpack.c.h.b16 %v358
    %v447 = vunpack.c.l.b16 %v359
    %v448 = vunpack.c.h.b16 %v359
    %v449 = vunpack.c.l.b16 %v360
    %v450 = vunpack.c.h.b16 %v360
    %v451 = vunpack.c.l.b16 %v361
    %v452 = vunpack.c.h.b16 %v361
    %v453 = vunpack.c.l.b16 %v362
    %v454 = vunpack.c.h.b16 %v362
    %v455 = vunpack.c.l.b16 %v363
    %v456 = vunpack.c.h.b16 %v363
    %v457 = vunpack.c.l.b16 %v364
    %v458 = vunpack.c.h.b16 %v364
    %v459 = vunpack.c.l.b16 %v365
    %v460 = vunpack.c.h.b16 %v365
    %v461 = vunpack.c.l.b16 %v366
    %v462 = vunpack.c.h.b16 %v366
    %v463 = vpack.c.b16 %v403, %v399
    %v464 = vpack.c.b16 %v404, %v400
    %v465 = vpack.c.b16 %v405, %v401
    %v466 = vpack.c.b16 %v406, %v402
    %v467 = vpack.c.b16 %v411, %v407
    %v468 = vpack.c.b16 %v412, %v408
    %v469 = vpack.c.b16 %v413, %v409
    %v470 = vpack.c.b16 %v414, %v410
    %v471 = vpack.c.b16 %v419, %v415
    %v472 = vpack.c.b16 %v420, %v416
    %v473 = vpack.c.b16 %v421, %v417
    %v474 = vpack.c.b16 %v422, %v418
    %v475 = vpack.c.b16 %v427, %v423
    %v476 = vpack.c.b16 %v428, %v424
    %v477 = vpack.c.b16 %v429, %v425
    %v478 = vpack.c.b16 %v430, %v426
    %v479 = vpack.c.b16 %v435, %v431
    %v480 = vpack.c.b16 %v436, %v432
    %v481 = vpack.c.b16 %v437, %v433
    %v482 = vpack.c.b16 %v438, %v434
    %v483 = vpack.c.b16 %v443, %v439
    %v484 = vpack.c.b16 %v444, %v440
    %v485 = vpack.c.b16 %v445, %v441
    %v486 = vpack.c.b16 %v446, %v442
    %v487 = vpack.c.b16 %v451, %v447
    %v488 = vpack.c.b16 %v452, %v448
    %v489 = vpack.c.b16 %v453, %v449
    %v490 = vpack.c.b16 %v454, %v450
    %v491 = vpack.c.b16 %v459, %v455
    %v492 = vpack.c.b16 %v460, %v456
    %v493 = vpack.c.b16 %v461, %v457
    %v494 = vpack.c.b16 %v462, %v458
    %v591 = vunpack.c.l.b16 %v271
    %v592 = vunpack.c.l.b16 %v272
    %v593 = vunpack.c.l.b16 %v273
    %v594 = vunpack.c.l.b16 %v274
    %v595 = vunpack.c.l.b16 %v275
    %v596 = vunpack.c.l.b16 %v276
    %v597 = vunpack.c.l.b16 %v277
    %v598 = vunpack.c.l.b16 %v278
    %v599 = vunpack.c.l.b16 %v279
    %v600 = vunpack.c.l.b16 %v280
    %v601 = vunpack.c.l.b16 %v281
    %v602 = vunpack.c.l.b16 %v282
    %v603 = vunpack.c.l.b16 %v283
    %v604 = vunpack.c.l.b16 %v284
    %v605 = vunpack.c.l.b16 %v285
    %v606 = vunpack.c.l.b16 %v286
    %v607 = vunpack.c.l.b16 %v287
    %v608 = vunpack.c.l.b16 %v288
    %v609 = vunpack.c.l.b16 %v289
    %v610 = vunpack.c.l.b16 %v290
    %v611 = vunpack.c.l.b16 %v291
    %v612 = vunpack.c.l.b16 %v292
    %v613 = vunpack.c.l.b16 %v293
    %v614 = vunpack.c.l.b16 %v294
    %v615 = vunpack.c.l.b16 %v295
    %v616 = vunpack.c.l.b16 %v296
    %v617 = vunpack.c.l.b16 %v297
    %v618 = vunpack.c.l.b16 %v298
    %v619 = vunpack.c.l.b16 %v299
    %v620 = vunpack.c.l.b16 %v300
    %v621 = vunpack.c.l.b16 %v301
    %v622 = vunpack.c.l.b16 %v302
    %v623 = vunpack.c.l.b16 %v303
    %v624 = vunpack.c.l.b16 %v304
    %v625 = vunpack.c.l.b16 %v305
    %v626 = vunpack.c.l.b16 %v306
    %v627 = vunpack.c.l.b16 %v307
    %v628 = vunpack.c.l.b16 %v308
    %v629 = vunpack.c.l.b16 %v309
    %v630 = vunpack.c.l.b16 %v310
    %v631 = vunpack.c.l.b16 %v311
    %v632 = vunpack.c.l.b16 %v312
    %v633 = vunpack.c.l.b16 %v313
    %v634 = vunpack.c.l.b16 %v314
    %v635 = vunpack.c.l.b16 %v315
    %v636 = vunpack.c.l.b16 %v316
    %v637 = vunpack.c.l.b16 %v317
    %v638 = vunpack.c.l.b16 %v318
    %v639 = vunpack.c.l.b16 %v319
    %v640 = vunpack.c.l.b16 %v320
    %v641 = vunpack.c.l.b16 %v321
    %v642 = vunpack.c.l.b16 %v322
    %v643 = vunpack.c.l.b16 %v323
    %v644 = vunpack.c.l.b16 %v324
    %v645 = vunpack.c.l.b16 %v325
    %v646 = vunpack.c.l.b16 %v326
    %v647 = vunpack.c.l.b16 %v327
    %v648 = vunpack.c.l.b16 %v328
    %v649 = vunpack.c.l.b16 %v329
    %v650 = vunpack.c.l.b16 %v330
    %v651 = vunpack.c.l.b16 %v331
    %v652 = vunpack.c.l.b16 %v332
    %v653 = vunpack.c.l.b16 %v333
    %v654 = vunpack.c.l.b16 %v334
    %v655 = vpack.c.b16 %v592, %v591
    %v656 = vpack.c.b16 %v594, %v593
    %v657 = vpack.c.b16 %v596, %v595
    %v658 = vpack.c.b16 %v598, %v597
    %v659 = vpack.c.b16 %v600, %v599
    %v660 = vpack.c.b16 %v602, %v601
    %v661 = vpack.c.b16 %v604, %v603
    %v662 = vpack.c.b16 %v606, %v605
    %v663 = vpack.c.b16 %v608, %v607
    %v664 = vpack.c.b16 %v610, %v609
    %v665 = vpack.c.b16 %v612, %v611
    %v666 = vpack.c.b16 %v614, %v613
    %v667 = vpack.c.b16 %v616, %v615
    %v668 = vpack.c.b16 %v618, %v617
    %v669 = vpack.c.b16 %v620, %v619
    %v670 = vpack.c.b16 %v622, %v621
    %v671 = vpack.c.b16 %v624, %v623
    %v672 = vpack.c.b16 %v626, %v625
    %v673 = vpack.c.b16 %v628, %v627
    %v674 = vpack.c.b16 %v630, %v629
    %v675 = vpack.c.b16 %v632, %v631
    %v676 = vpack.c.b16 %v634, %v633
    %v677 = vpack.c.b16 %v636, %v635
    %v678 = vpack.c.b16 %v638, %v637
    %v679 = vpack.c.b16 %v640, %v639
    %v680 = vpack.c.b16 %v642, %v641
    %v681 = vpack.c.b16 %v644, %v643
    %v682 = vpack.c.b16 %v646, %v645
    %v683 = vpack.c.b16 %v648, %v647
    %v684 = vpack.c.b16 %v650, %v649
    %v685 = vpack.c.b16 %v652, %v651
    %v686 = vpack.c.b16 %v654, %v653
    %719 = vmatpush.bf16.msra.mxu0 %v662
    %720 = vmatpush.bf16.msra.mxu0 %v661
    %721 = vmatpush.bf16.msra.mxu0 %v660
    %722 = vmatpush.bf16.msra.mxu0 %v659
    %723 = vmatpush.bf16.msra.mxu0 %v658
    %724 = vmatpush.bf16.msra.mxu0 %v657
    %725 = vmatpush.bf16.msra.mxu0 %v656
    %726 = vmatpush.bf16.msra.mxu0 %v655
    %727 = vmatmul.bf16.gmra.mxu0 %v463
    %v728 = vpop.f32.mrf.mxu0
    %v729 = vadd.f32 0.0, %v728
    %v730 = vpop.f32.mrf.mxu0
    %v731 = vadd.f32 0.0, %v730
    %732 = vmatmul.bf16.gmra.mxu0 %v467
    %v733 = vpop.f32.mrf.mxu0
    %v734 = vadd.f32 0.0, %v733
    %v735 = vpop.f32.mrf.mxu0
    %v736 = vadd.f32 0.0, %v735
    %737 = vmatmul.bf16.gmra.mxu0 %v471
    %v738 = vpop.f32.mrf.mxu0
    %v739 = vadd.f32 0.0, %v738
    %v740 = vpop.f32.mrf.mxu0
    %v741 = vadd.f32 0.0, %v740
    %742 = vmatmul.bf16.gmra.mxu0 %v475
    %v743 = vpop.f32.mrf.mxu0
    %v744 = vadd.f32 0.0, %v743
    %v745 = vpop.f32.mrf.mxu0
    %v746 = vadd.f32 0.0, %v745
    %747 = vmatmul.bf16.gmra.mxu0 %v479
    %v748 = vpop.f32.mrf.mxu0
    %v749 = vadd.f32 0.0, %v748
    %v750 = vpop.f32.mrf.mxu0
    %v751 = vadd.f32 0.0, %v750
    %752 = vmatmul.bf16.gmra.mxu0 %v483
    %v753 = vpop.f32.mrf.mxu0
    %v754 = vadd.f32 0.0, %v753
    %v755 = vpop.f32.mrf.mxu0
    %v756 = vadd.f32 0.0, %v755
    %757 = vmatmul.bf16.gmra.mxu0 %v487
    %v758 = vpop.f32.mrf.mxu0
    %v759 = vadd.f32 0.0, %v758
    %v760 = vpop.f32.mrf.mxu0
    %v761 = vadd.f32 0.0, %v760
    %762 = vmatmul.bf16.gmra.mxu0 %v491
    %v763 = vpop.f32.mrf.mxu0
    %v764 = vadd.f32 0.0, %v763
    %v765 = vpop.f32.mrf.mxu0
    %v766 = vadd.f32 0.0, %v765
    %767 = vdwg.mxu0
    %768 = vmatpush.bf16.msra.mxu0 %v670
    %769 = vmatpush.bf16.msra.mxu0 %v669
    %770 = vmatpush.bf16.msra.mxu0 %v668
    %771 = vmatpush.bf16.msra.mxu0 %v667
    %772 = vmatpush.bf16.msra.mxu0 %v666
    %773 = vmatpush.bf16.msra.mxu0 %v665
    %774 = vmatpush.bf16.msra.mxu0 %v664
    %775 = vmatpush.bf16.msra.mxu0 %v663
    %776 = vmatmul.bf16.gmra.mxu0 %v464
    %v777 = vpop.f32.mrf.mxu0
    %v778 = vadd.f32 %v729, %v777
    %v779 = vpop.f32.mrf.mxu0
    %v780 = vadd.f32 %v731, %v779
    %781 = vmatmul.bf16.gmra.mxu0 %v468
    %v782 = vpop.f32.mrf.mxu0
    %v783 = vadd.f32 %v734, %v782
    %v784 = vpop.f32.mrf.mxu0
    %v785 = vadd.f32 %v736, %v784
    %786 = vmatmul.bf16.gmra.mxu0 %v472
    %v787 = vpop.f32.mrf.mxu0
    %v788 = vadd.f32 %v739, %v787
    %v789 = vpop.f32.mrf.mxu0
    %v790 = vadd.f32 %v741, %v789
    %791 = vmatmul.bf16.gmra.mxu0 %v476
    %v792 = vpop.f32.mrf.mxu0
    %v793 = vadd.f32 %v744, %v792
    %v794 = vpop.f32.mrf.mxu0
    %v795 = vadd.f32 %v746, %v794
    %796 = vmatmul.bf16.gmra.mxu0 %v480
    %v797 = vpop.f32.mrf.mxu0
    %v798 = vadd.f32 %v749, %v797
    %v799 = vpop.f32.mrf.mxu0
    %v800 = vadd.f32 %v751, %v799
    %801 = vmatmul.bf16.gmra.mxu0 %v484
    %v802 = vpop.f32.mrf.mxu0
    %v803 = vadd.f32 %v754, %v802
    %v804 = vpop.f32.mrf.mxu0
    %v805 = vadd.f32 %v756, %v804
    %806 = vmatmul.bf16.gmra.mxu0 %v488
    %v807 = vpop.f32.mrf.mxu0
    %v808 = vadd.f32 %v759, %v807
    %v809 = vpop.f32.mrf.mxu0
    %v810 = vadd.f32 %v761, %v809
    %811 = vmatmul.bf16.gmra.mxu0 %v492
    %v812 = vpop.f32.mrf.mxu0
    %v813 = vadd.f32 %v764, %v812
    %v814 = vpop.f32.mrf.mxu0
    %v815 = vadd.f32 %v766, %v814
    %816 = vdwg.mxu0
    %817 = vmatpush.bf16.msra.mxu0 %v678
    %818 = vmatpush.bf16.msra.mxu0 %v677
    %819 = vmatpush.bf16.msra.mxu0 %v676
    %820 = vmatpush.bf16.msra.mxu0 %v675
    %821 = vmatpush.bf16.msra.mxu0 %v674
    %822 = vmatpush.bf16.msra.mxu0 %v673
    %823 = vmatpush.bf16.msra.mxu0 %v672
    %824 = vmatpush.bf16.msra.mxu0 %v671
    %825 = vmatmul.bf16.gmra.mxu0 %v465
    %v826 = vpop.f32.mrf.mxu0
    %v827 = vadd.f32 %v778, %v826
    %v828 = vpop.f32.mrf.mxu0
    %v829 = vadd.f32 %v780, %v828
    %830 = vmatmul.bf16.gmra.mxu0 %v469
    %v831 = vpop.f32.mrf.mxu0
    %v832 = vadd.f32 %v783, %v831
    %v833 = vpop.f32.mrf.mxu0
    %v834 = vadd.f32 %v785, %v833
    %835 = vmatmul.bf16.gmra.mxu0 %v473
    %v836 = vpop.f32.mrf.mxu0
    %v837 = vadd.f32 %v788, %v836
    %v838 = vpop.f32.mrf.mxu0
    %v839 = vadd.f32 %v790, %v838
    %840 = vmatmul.bf16.gmra.mxu0 %v477
    %v841 = vpop.f32.mrf.mxu0
    %v842 = vadd.f32 %v793, %v841
    %v843 = vpop.f32.mrf.mxu0
    %v844 = vadd.f32 %v795, %v843
    %845 = vmatmul.bf16.gmra.mxu0 %v481
    %v846 = vpop.f32.mrf.mxu0
    %v847 = vadd.f32 %v798, %v846
    %v848 = vpop.f32.mrf.mxu0
    %v849 = vadd.f32 %v800, %v848
    %850 = vmatmul.bf16.gmra.mxu0 %v485
    %v851 = vpop.f32.mrf.mxu0
    %v852 = vadd.f32 %v803, %v851
    %v853 = vpop.f32.mrf.mxu0
    %v854 = vadd.f32 %v805, %v853
    %855 = vmatmul.bf16.gmra.mxu0 %v489
    %v856 = vpop.f32.mrf.mxu0
    %v857 = vadd.f32 %v808, %v856
    %v858 = vpop.f32.mrf.mxu0
    %v859 = vadd.f32 %v810, %v858
    %860 = vmatmul.bf16.gmra.mxu0 %v493
    %v861 = vpop.f32.mrf.mxu0
    %v862 = vadd.f32 %v813, %v861
    %v863 = vpop.f32.mrf.mxu0
    %v864 = vadd.f32 %v815, %v863
    %865 = vdwg.mxu0
    %866 = vmatpush.bf16.msra.mxu0 %v686
    %867 = vmatpush.bf16.msra.mxu0 %v685
    %868 = vmatpush.bf16.msra.mxu0 %v684
    %869 = vmatpush.bf16.msra.mxu0 %v683
    %870 = vmatpush.bf16.msra.mxu0 %v682
    %871 = vmatpush.bf16.msra.mxu0 %v681
    %872 = vmatpush.bf16.msra.mxu0 %v680
    %873 = vmatpush.bf16.msra.mxu0 %v679
    %874 = vmatmul.bf16.gmra.mxu0 %v466
    %v875 = vpop.f32.mrf.mxu0
    %v876 = vadd.f32 %v827, %v875
    %v877 = vpop.f32.mrf.mxu0
    %v878 = vadd.f32 %v829, %v877
    %879 = vmatmul.bf16.gmra.mxu0 %v470
    %v880 = vpop.f32.mrf.mxu0
    %v881 = vadd.f32 %v832, %v880
    %v882 = vpop.f32.mrf.mxu0
    %v883 = vadd.f32 %v834, %v882
    %884 = vmatmul.bf16.gmra.mxu0 %v474
    %v885 = vpop.f32.mrf.mxu0
    %v886 = vadd.f32 %v837, %v885
    %v887 = vpop.f32.mrf.mxu0
    %v888 = vadd.f32 %v839, %v887
    %889 = vmatmul.bf16.gmra.mxu0 %v478
    %v890 = vpop.f32.mrf.mxu0
    %v891 = vadd.f32 %v842, %v890
    %v892 = vpop.f32.mrf.mxu0
    %v893 = vadd.f32 %v844, %v892
    %894 = vmatmul.bf16.gmra.mxu0 %v482
    %v895 = vpop.f32.mrf.mxu0
    %v896 = vadd.f32 %v847, %v895
    %v897 = vpop.f32.mrf.mxu0
    %v898 = vadd.f32 %v849, %v897
    %899 = vmatmul.bf16.gmra.mxu0 %v486
    %v900 = vpop.f32.mrf.mxu0
    %v901 = vadd.f32 %v852, %v900
    %v902 = vpop.f32.mrf.mxu0
    %v903 = vadd.f32 %v854, %v902
    %904 = vmatmul.bf16.gmra.mxu0 %v490
    %v905 = vpop.f32.mrf.mxu0
    %v906 = vadd.f32 %v857, %v905
    %v907 = vpop.f32.mrf.mxu0
    %v908 = vadd.f32 %v859, %v907
    %909 = vmatmul.bf16.gmra.mxu0 %v494
    %v910 = vpop.f32.mrf.mxu0
    %v911 = vadd.f32 %v862, %v910
    %v912 = vpop.f32.mrf.mxu0
    %v913 = vadd.f32 %v864, %v912
    %914 = vdwg.mxu0
    %v915 = vpack.c.bf16 %v878, %v876
    %v916 = vpack.c.bf16 %v883, %v881
    %v917 = vpack.c.bf16 %v888, %v886
    %v918 = vpack.c.bf16 %v893, %v891
    %v919 = vpack.c.bf16 %v898, %v896
    %v920 = vpack.c.bf16 %v903, %v901
    %v921 = vpack.c.bf16 %v908, %v906
    %v922 = vpack.c.bf16 %v913, %v911
    %v923 = vld [vmem:[#allocation7] sm:$0xf]
    %v924 = vld [vmem:[#allocation7 + $0x4] sm:$0xf]
    %v925 = vld [vmem:[#allocation7 + $0x8] sm:$0xf]
    %v926 = vld [vmem:[#allocation7 + $0xc] sm:$0xf]
    %v927 = vld [vmem:[#allocation7 + $0x10] sm:$0xf]
    %v928 = vld [vmem:[#allocation7 + $0x14] sm:$0xf]
    %v929 = vld [vmem:[#allocation7 + $0x18] sm:$0xf]
    %v930 = vld [vmem:[#allocation7 + $0x1c] sm:$0xf]
    %v931 = vld [vmem:[#allocation7 + $0x20] sm:$0xf]
    %v932 = vld [vmem:[#allocation7 + $0x24] sm:$0xf]
    %v933 = vld [vmem:[#allocation7 + $0x28] sm:$0xf]
    %v934 = vld [vmem:[#allocation7 + $0x2c] sm:$0xf]
    %v935 = vld [vmem:[#allocation7 + $0x30] sm:$0xf]
    %v936 = vld [vmem:[#allocation7 + $0x34] sm:$0xf]
    %v937 = vld [vmem:[#allocation7 + $0x38] sm:$0xf]
    %v938 = vld [vmem:[#allocation7 + $0x3c] sm:$0xf]
    %s939 = scalar_lea.vmem [#allocation5], 256
    %v940 = vld [vmem:[%s939] sm:$0xff]
    %v941 = vld [vmem:[%s939 + $0x8] sm:$0xff]
    %v942 = vld [vmem:[%s939 + $0x10] sm:$0xff]
    %v943 = vld [vmem:[%s939 + $0x18] sm:$0xff]
    %v944 = vld [vmem:[%s939 + $0x20] sm:$0xff]
    %v945 = vld [vmem:[%s939 + $0x28] sm:$0xff]
    %v946 = vld [vmem:[%s939 + $0x30] sm:$0xff]
    %v947 = vld [vmem:[%s939 + $0x38] sm:$0xff]
    %v948 = vld [vmem:[%s939 + $0x40] sm:$0xff]
    %v949 = vld [vmem:[%s939 + $0x48] sm:$0xff]
    %v950 = vld [vmem:[%s939 + $0x50] sm:$0xff]
    %v951 = vld [vmem:[%s939 + $0x58] sm:$0xff]
    %v952 = vld [vmem:[%s939 + $0x60] sm:$0xff]
    %v953 = vld [vmem:[%s939 + $0x68] sm:$0xff]
    %v954 = vld [vmem:[%s939 + $0x70] sm:$0xff]
    %v955 = vld [vmem:[%s939 + $0x78] sm:$0xff]
    %v956 = vld [vmem:[%s939 + $0x80] sm:$0xff]
    %v957 = vld [vmem:[%s939 + $0x88] sm:$0xff]
    %v958 = vld [vmem:[%s939 + $0x90] sm:$0xff]
    %v959 = vld [vmem:[%s939 + $0x98] sm:$0xff]
    %v960 = vld [vmem:[%s939 + $0xa0] sm:$0xff]
    %v961 = vld [vmem:[%s939 + $0xa8] sm:$0xff]
    %v962 = vld [vmem:[%s939 + $0xb0] sm:$0xff]
    %v963 = vld [vmem:[%s939 + $0xb8] sm:$0xff]
    %v964 = vld [vmem:[%s939 + $0xc0] sm:$0xff]
    %v965 = vld [vmem:[%s939 + $0xc8] sm:$0xff]
    %v966 = vld [vmem:[%s939 + $0xd0] sm:$0xff]
    %v967 = vld [vmem:[%s939 + $0xd8] sm:$0xff]
    %v968 = vld [vmem:[%s939 + $0xe0] sm:$0xff]
    %v969 = vld [vmem:[%s939 + $0xe8] sm:$0xff]
    %v970 = vld [vmem:[%s939 + $0xf0] sm:$0xff]
    %v971 = vld [vmem:[%s939 + $0xf8] sm:$0xff]
    %v1004 = vunpack.c.l.b16 %v940
    %v1005 = vunpack.c.h.b16 %v940
    %v1006 = vunpack.c.l.b16 %v941
    %v1007 = vunpack.c.h.b16 %v941
    %v1008 = vunpack.c.l.b16 %v942
    %v1009 = vunpack.c.h.b16 %v942
    %v1010 = vunpack.c.l.b16 %v943
    %v1011 = vunpack.c.h.b16 %v943
    %v1012 = vunpack.c.l.b16 %v944
    %v1013 = vunpack.c.h.b16 %v944
    %v1014 = vunpack.c.l.b16 %v945
    %v1015 = vunpack.c.h.b16 %v945
    %v1016 = vunpack.c.l.b16 %v946
    %v1017 = vunpack.c.h.b16 %v946
    %v1018 = vunpack.c.l.b16 %v947
    %v1019 = vunpack.c.h.b16 %v947
    %v1020 = vunpack.c.l.b16 %v948
    %v1021 = vunpack.c.h.b16 %v948
    %v1022 = vunpack.c.l.b16 %v949
    %v1023 = vunpack.c.h.b16 %v949
    %v1024 = vunpack.c.l.b16 %v950
    %v1025 = vunpack.c.h.b16 %v950
    %v1026 = vunpack.c.l.b16 %v951
    %v1027 = vunpack.c.h.b16 %v951
    %v1028 = vunpack.c.l.b16 %v952
    %v1029 = vunpack.c.h.b16 %v952
    %v1030 = vunpack.c.l.b16 %v953
    %v1031 = vunpack.c.h.b16 %v953
    %v1032 = vunpack.c.l.b16 %v954
    %v1033 = vunpack.c.h.b16 %v954
    %v1034 = vunpack.c.l.b16 %v955
    %v1035 = vunpack.c.h.b16 %v955
    %v1036 = vunpack.c.l.b16 %v956
    %v1037 = vunpack.c.h.b16 %v956
    %v1038 = vunpack.c.l.b16 %v957
    %v1039 = vunpack.c.h.b16 %v957
    %v1040 = vunpack.c.l.b16 %v958
    %v1041 = vunpack.c.h.b16 %v958
    %v1042 = vunpack.c.l.b16 %v959
    %v1043 = vunpack.c.h.b16 %v959
    %v1044 = vunpack.c.l.b16 %v960
    %v1045 = vunpack.c.h.b16 %v960
    %v1046 = vunpack.c.l.b16 %v961
    %v1047 = vunpack.c.h.b16 %v961
    %v1048 = vunpack.c.l.b16 %v962
    %v1049 = vunpack.c.h.b16 %v962
    %v1050 = vunpack.c.l.b16 %v963
    %v1051 = vunpack.c.h.b16 %v963
    %v1052 = vunpack.c.l.b16 %v964
    %v1053 = vunpack.c.h.b16 %v964
    %v1054 = vunpack.c.l.b16 %v965
    %v1055 = vunpack.c.h.b16 %v965
    %v1056 = vunpack.c.l.b16 %v966
    %v1057 = vunpack.c.h.b16 %v966
    %v1058 = vunpack.c.l.b16 %v967
    %v1059 = vunpack.c.h.b16 %v967
    %v1060 = vunpack.c.l.b16 %v968
    %v1061 = vunpack.c.h.b16 %v968
    %v1062 = vunpack.c.l.b16 %v969
    %v1063 = vunpack.c.h.b16 %v969
    %v1064 = vunpack.c.l.b16 %v970
    %v1065 = vunpack.c.h.b16 %v970
    %v1066 = vunpack.c.l.b16 %v971
    %v1067 = vunpack.c.h.b16 %v971
    %v1068 = vpack.c.b16 %v1008, %v1004
    %v1069 = vpack.c.b16 %v1009, %v1005
    %v1070 = vpack.c.b16 %v1010, %v1006
    %v1071 = vpack.c.b16 %v1011, %v1007
    %v1072 = vpack.c.b16 %v1016, %v1012
    %v1073 = vpack.c.b16 %v1017, %v1013
    %v1074 = vpack.c.b16 %v1018, %v1014
    %v1075 = vpack.c.b16 %v1019, %v1015
    %v1076 = vpack.c.b16 %v1024, %v1020
    %v1077 = vpack.c.b16 %v1025, %v1021
    %v1078 = vpack.c.b16 %v1026, %v1022
    %v1079 = vpack.c.b16 %v1027, %v1023
    %v1080 = vpack.c.b16 %v1032, %v1028
    %v1081 = vpack.c.b16 %v1033, %v1029
    %v1082 = vpack.c.b16 %v1034, %v1030
    %v1083 = vpack.c.b16 %v1035, %v1031
    %v1084 = vpack.c.b16 %v1040, %v1036
    %v1085 = vpack.c.b16 %v1041, %v1037
    %v1086 = vpack.c.b16 %v1042, %v1038
    %v1087 = vpack.c.b16 %v1043, %v1039
    %v1088 = vpack.c.b16 %v1048, %v1044
    %v1089 = vpack.c.b16 %v1049, %v1045
    %v1090 = vpack.c.b16 %v1050, %v1046
    %v1091 = vpack.c.b16 %v1051, %v1047
    %v1092 = vpack.c.b16 %v1056, %v1052
    %v1093 = vpack.c.b16 %v1057, %v1053
    %v1094 = vpack.c.b16 %v1058, %v1054
    %v1095 = vpack.c.b16 %v1059, %v1055
    %v1096 = vpack.c.b16 %v1064, %v1060
    %v1097 = vpack.c.b16 %v1065, %v1061
    %v1098 = vpack.c.b16 %v1066, %v1062
    %v1099 = vpack.c.b16 %v1067, %v1063
    %1132 = vmatpush.bf16.msra.mxu0 %v662
    %1133 = vmatpush.bf16.msra.mxu0 %v661
    %1134 = vmatpush.bf16.msra.mxu0 %v660
    %1135 = vmatpush.bf16.msra.mxu0 %v659
    %1136 = vmatpush.bf16.msra.mxu0 %v658
    %1137 = vmatpush.bf16.msra.mxu0 %v657
    %1138 = vmatpush.bf16.msra.mxu0 %v656
    %1139 = vmatpush.bf16.msra.mxu0 %v655
    %1140 = vmatmul.bf16.gmra.mxu0 %v1068
    %v1141 = vpop.f32.mrf.mxu0
    %v1142 = vadd.f32 0.0, %v1141
    %v1143 = vpop.f32.mrf.mxu0
    %v1144 = vadd.f32 0.0, %v1143
    %1145 = vmatmul.bf16.gmra.mxu0 %v1072
    %v1146 = vpop.f32.mrf.mxu0
    %v1147 = vadd.f32 0.0, %v1146
    %v1148 = vpop.f32.mrf.mxu0
    %v1149 = vadd.f32 0.0, %v1148
    %1150 = vmatmul.bf16.gmra.mxu0 %v1076
    %v1151 = vpop.f32.mrf.mxu0
    %v1152 = vadd.f32 0.0, %v1151
    %v1153 = vpop.f32.mrf.mxu0
    %v1154 = vadd.f32 0.0, %v1153
    %1155 = vmatmul.bf16.gmra.mxu0 %v1080
    %v1156 = vpop.f32.mrf.mxu0
    %v1157 = vadd.f32 0.0, %v1156
    %v1158 = vpop.f32.mrf.mxu0
    %v1159 = vadd.f32 0.0, %v1158
    %1160 = vmatmul.bf16.gmra.mxu0 %v1084
    %v1161 = vpop.f32.mrf.mxu0
    %v1162 = vadd.f32 0.0, %v1161
    %v1163 = vpop.f32.mrf.mxu0
    %v1164 = vadd.f32 0.0, %v1163
    %1165 = vmatmul.bf16.gmra.mxu0 %v1088
    %v1166 = vpop.f32.mrf.mxu0
    %v1167 = vadd.f32 0.0, %v1166
    %v1168 = vpop.f32.mrf.mxu0
    %v1169 = vadd.f32 0.0, %v1168
    %1170 = vmatmul.bf16.gmra.mxu0 %v1092
    %v1171 = vpop.f32.mrf.mxu0
    %v1172 = vadd.f32 0.0, %v1171
    %v1173 = vpop.f32.mrf.mxu0
    %v1174 = vadd.f32 0.0, %v1173
    %1175 = vmatmul.bf16.gmra.mxu0 %v1096
    %v1176 = vpop.f32.mrf.mxu0
    %v1177 = vadd.f32 0.0, %v1176
    %v1178 = vpop.f32.mrf.mxu0
    %v1179 = vadd.f32 0.0, %v1178
    %1180 = vdwg.mxu0
    %1181 = vmatpush.bf16.msra.mxu0 %v670
    %1182 = vmatpush.bf16.msra.mxu0 %v669
    %1183 = vmatpush.bf16.msra.mxu0 %v668
    %1184 = vmatpush.bf16.msra.mxu0 %v667
    %1185 = vmatpush.bf16.msra.mxu0 %v666
    %1186 = vmatpush.bf16.msra.mxu0 %v665
    %1187 = vmatpush.bf16.msra.mxu0 %v664
    %1188 = vmatpush.bf16.msra.mxu0 %v663
    %1189 = vmatmul.bf16.gmra.mxu0 %v1069
    %v1190 = vpop.f32.mrf.mxu0
    %v1191 = vadd.f32 %v1142, %v1190
    %v1192 = vpop.f32.mrf.mxu0
    %v1193 = vadd.f32 %v1144, %v1192
    %1194 = vmatmul.bf16.gmra.mxu0 %v1073
    %v1195 = vpop.f32.mrf.mxu0
    %v1196 = vadd.f32 %v1147, %v1195
    %v1197 = vpop.f32.mrf.mxu0
    %v1198 = vadd.f32 %v1149, %v1197
    %1199 = vmatmul.bf16.gmra.mxu0 %v1077
    %v1200 = vpop.f32.mrf.mxu0
    %v1201 = vadd.f32 %v1152, %v1200
    %v1202 = vpop.f32.mrf.mxu0
    %v1203 = vadd.f32 %v1154, %v1202
    %1204 = vmatmul.bf16.gmra.mxu0 %v1081
    %v1205 = vpop.f32.mrf.mxu0
    %v1206 = vadd.f32 %v1157, %v1205
    %v1207 = vpop.f32.mrf.mxu0
    %v1208 = vadd.f32 %v1159, %v1207
    %1209 = vmatmul.bf16.gmra.mxu0 %v1085
    %v1210 = vpop.f32.mrf.mxu0
    %v1211 = vadd.f32 %v1162, %v1210
    %v1212 = vpop.f32.mrf.mxu0
    %v1213 = vadd.f32 %v1164, %v1212
    %1214 = vmatmul.bf16.gmra.mxu0 %v1089
    %v1215 = vpop.f32.mrf.mxu0
    %v1216 = vadd.f32 %v1167, %v1215
    %v1217 = vpop.f32.mrf.mxu0
    %v1218 = vadd.f32 %v1169, %v1217
    %1219 = vmatmul.bf16.gmra.mxu0 %v1093
    %v1220 = vpop.f32.mrf.mxu0
    %v1221 = vadd.f32 %v1172, %v1220
    %v1222 = vpop.f32.mrf.mxu0
    %v1223 = vadd.f32 %v1174, %v1222
    %1224 = vmatmul.bf16.gmra.mxu0 %v1097
    %v1225 = vpop.f32.mrf.mxu0
    %v1226 = vadd.f32 %v1177, %v1225
    %v1227 = vpop.f32.mrf.mxu0
    %v1228 = vadd.f32 %v1179, %v1227
    %1229 = vdwg.mxu0
    %1230 = vmatpush.bf16.msra.mxu0 %v678
    %1231 = vmatpush.bf16.msra.mxu0 %v677
    %1232 = vmatpush.bf16.msra.mxu0 %v676
    %1233 = vmatpush.bf16.msra.mxu0 %v675
    %1234 = vmatpush.bf16.msra.mxu0 %v674
    %1235 = vmatpush.bf16.msra.mxu0 %v673
    %1236 = vmatpush.bf16.msra.mxu0 %v672
    %1237 = vmatpush.bf16.msra.mxu0 %v671
    %1238 = vmatmul.bf16.gmra.mxu0 %v1070
    %v1239 = vpop.f32.mrf.mxu0
    %v1240 = vadd.f32 %v1191, %v1239
    %v1241 = vpop.f32.mrf.mxu0
    %v1242 = vadd.f32 %v1193, %v1241
    %1243 = vmatmul.bf16.gmra.mxu0 %v1074
    %v1244 = vpop.f32.mrf.mxu0
    %v1245 = vadd.f32 %v1196, %v1244
    %v1246 = vpop.f32.mrf.mxu0
    %v1247 = vadd.f32 %v1198, %v1246
    %1248 = vmatmul.bf16.gmra.mxu0 %v1078
    %v1249 = vpop.f32.mrf.mxu0
    %v1250 = vadd.f32 %v1201, %v1249
    %v1251 = vpop.f32.mrf.mxu0
    %v1252 = vadd.f32 %v1203, %v1251
    %1253 = vmatmul.bf16.gmra.mxu0 %v1082
    %v1254 = vpop.f32.mrf.mxu0
    %v1255 = vadd.f32 %v1206, %v1254
    %v1256 = vpop.f32.mrf.mxu0
    %v1257 = vadd.f32 %v1208, %v1256
    %1258 = vmatmul.bf16.gmra.mxu0 %v1086
    %v1259 = vpop.f32.mrf.mxu0
    %v1260 = vadd.f32 %v1211, %v1259
    %v1261 = vpop.f32.mrf.mxu0
    %v1262 = vadd.f32 %v1213, %v1261
    %1263 = vmatmul.bf16.gmra.mxu0 %v1090
    %v1264 = vpop.f32.mrf.mxu0
    %v1265 = vadd.f32 %v1216, %v1264
    %v1266 = vpop.f32.mrf.mxu0
    %v1267 = vadd.f32 %v1218, %v1266
    %1268 = vmatmul.bf16.gmra.mxu0 %v1094
    %v1269 = vpop.f32.mrf.mxu0
    %v1270 = vadd.f32 %v1221, %v1269
    %v1271 = vpop.f32.mrf.mxu0
    %v1272 = vadd.f32 %v1223, %v1271
    %1273 = vmatmul.bf16.gmra.mxu0 %v1098
    %v1274 = vpop.f32.mrf.mxu0
    %v1275 = vadd.f32 %v1226, %v1274
    %v1276 = vpop.f32.mrf.mxu0
    %v1277 = vadd.f32 %v1228, %v1276
    %1278 = vdwg.mxu0
    %1279 = vmatpush.bf16.msra.mxu0 %v686
    %1280 = vmatpush.bf16.msra.mxu0 %v685
    %1281 = vmatpush.bf16.msra.mxu0 %v684
    %1282 = vmatpush.bf16.msra.mxu0 %v683
    %1283 = vmatpush.bf16.msra.mxu0 %v682
    %1284 = vmatpush.bf16.msra.mxu0 %v681
    %1285 = vmatpush.bf16.msra.mxu0 %v680
    %1286 = vmatpush.bf16.msra.mxu0 %v679
    %1287 = vmatmul.bf16.gmra.mxu0 %v1071
    %v1288 = vpop.f32.mrf.mxu0
    %v1289 = vadd.f32 %v1240, %v1288
    %v1290 = vpop.f32.mrf.mxu0
    %v1291 = vadd.f32 %v1242, %v1290
    %1292 = vmatmul.bf16.gmra.mxu0 %v1075
    %v1293 = vpop.f32.mrf.mxu0
    %v1294 = vadd.f32 %v1245, %v1293
    %v1295 = vpop.f32.mrf.mxu0
    %v1296 = vadd.f32 %v1247, %v1295
    %1297 = vmatmul.bf16.gmra.mxu0 %v1079
    %v1298 = vpop.f32.mrf.mxu0
    %v1299 = vadd.f32 %v1250, %v1298
    %v1300 = vpop.f32.mrf.mxu0
    %v1301 = vadd.f32 %v1252, %v1300
    %1302 = vmatmul.bf16.gmra.mxu0 %v1083
    %v1303 = vpop.f32.mrf.mxu0
    %v1304 = vadd.f32 %v1255, %v1303
    %v1305 = vpop.f32.mrf.mxu0
    %v1306 = vadd.f32 %v1257, %v1305
    %1307 = vmatmul.bf16.gmra.mxu0 %v1087
    %v1308 = vpop.f32.mrf.mxu0
    %v1309 = vadd.f32 %v1260, %v1308
    %v1310 = vpop.f32.mrf.mxu0
    %v1311 = vadd.f32 %v1262, %v1310
    %1312 = vmatmul.bf16.gmra.mxu0 %v1091
    %v1313 = vpop.f32.mrf.mxu0
    %v1314 = vadd.f32 %v1265, %v1313
    %v1315 = vpop.f32.mrf.mxu0
    %v1316 = vadd.f32 %v1267, %v1315
    %1317 = vmatmul.bf16.gmra.mxu0 %v1095
    %v1318 = vpop.f32.mrf.mxu0
    %v1319 = vadd.f32 %v1270, %v1318
    %v1320 = vpop.f32.mrf.mxu0
    %v1321 = vadd.f32 %v1272, %v1320
    %1322 = vmatmul.bf16.gmra.mxu0 %v1099
    %v1323 = vpop.f32.mrf.mxu0
    %v1324 = vadd.f32 %v1275, %v1323
    %v1325 = vpop.f32.mrf.mxu0
    %v1326 = vadd.f32 %v1277, %v1325
    %1327 = vdwg.mxu0
    %v1328 = vpack.c.bf16 %v1291, %v1289
    %v1329 = vpack.c.bf16 %v1296, %v1294
    %v1330 = vpack.c.bf16 %v1301, %v1299
    %v1331 = vpack.c.bf16 %v1306, %v1304
    %v1332 = vpack.c.bf16 %v1311, %v1309
    %v1333 = vpack.c.bf16 %v1316, %v1314
    %v1334 = vpack.c.bf16 %v1321, %v1319
    %v1335 = vpack.c.bf16 %v1326, %v1324
    %s1336 = scalar_lea.vmem [#allocation7], 64
    %v1337 = vld [vmem:[%s1336] sm:$0xf]
    %v1338 = vld [vmem:[%s1336 + $0x4] sm:$0xf]
    %v1339 = vld [vmem:[%s1336 + $0x8] sm:$0xf]
    %v1340 = vld [vmem:[%s1336 + $0xc] sm:$0xf]
    %v1341 = vld [vmem:[%s1336 + $0x10] sm:$0xf]
    %v1342 = vld [vmem:[%s1336 + $0x14] sm:$0xf]
    %v1343 = vld [vmem:[%s1336 + $0x18] sm:$0xf]
    %v1344 = vld [vmem:[%s1336 + $0x1c] sm:$0xf]
    %v1345 = vld [vmem:[%s1336 + $0x20] sm:$0xf]
    %v1346 = vld [vmem:[%s1336 + $0x24] sm:$0xf]
    %v1347 = vld [vmem:[%s1336 + $0x28] sm:$0xf]
    %v1348 = vld [vmem:[%s1336 + $0x2c] sm:$0xf]
    %v1349 = vld [vmem:[%s1336 + $0x30] sm:$0xf]
    %v1350 = vld [vmem:[%s1336 + $0x34] sm:$0xf]
    %v1351 = vld [vmem:[%s1336 + $0x38] sm:$0xf]
    %v1352 = vld [vmem:[%s1336 + $0x3c] sm:$0xf]
    %v1369 = vunpack.c.l.b16 %v1337
    %v1370 = vunpack.c.l.b16 %v1338
    %v1371 = vunpack.c.l.b16 %v1339
    %v1372 = vunpack.c.l.b16 %v1340
    %v1373 = vunpack.c.l.b16 %v1341
    %v1374 = vunpack.c.l.b16 %v1342
    %v1375 = vunpack.c.l.b16 %v1343
    %v1376 = vunpack.c.l.b16 %v1344
    %v1377 = vunpack.c.l.b16 %v1345
    %v1378 = vunpack.c.l.b16 %v1346
    %v1379 = vunpack.c.l.b16 %v1347
    %v1380 = vunpack.c.l.b16 %v1348
    %v1381 = vunpack.c.l.b16 %v1349
    %v1382 = vunpack.c.l.b16 %v1350
    %v1383 = vunpack.c.l.b16 %v1351
    %v1384 = vunpack.c.l.b16 %v1352
    %v1385 = vpack.c.b16 %v1370, %v1369
    %v1386 = vpack.c.b16 %v1372, %v1371
    %v1387 = vpack.c.b16 %v1374, %v1373
    %v1388 = vpack.c.b16 %v1376, %v1375
    %v1389 = vpack.c.b16 %v1378, %v1377
    %v1390 = vpack.c.b16 %v1380, %v1379
    %v1391 = vpack.c.b16 %v1382, %v1381
    %v1392 = vpack.c.b16 %v1384, %v1383
    %1401 = vmatpush.bf16.msra.mxu0 %v1392
    %1402 = vmatpush.bf16.msra.mxu0 %v1391
    %1403 = vmatpush.bf16.msra.mxu0 %v1390
    %1404 = vmatpush.bf16.msra.mxu0 %v1389
    %1405 = vmatpush.bf16.msra.mxu0 %v1388
    %1406 = vmatpush.bf16.msra.mxu0 %v1387
    %1407 = vmatpush.bf16.msra.mxu0 %v1386
    %1408 = vmatpush.bf16.msra.mxu0 %v1385
    %1409 = vmatmul.bf16.gmra.mxu0 %v1328
    %v1410 = vpop.f32.mrf.mxu0
    %v1411 = vadd.f32 0.0, %v1410
    %v1412 = vpop.f32.mrf.mxu0
    %v1413 = vadd.f32 0.0, %v1412
    %1414 = vmatmul.bf16.gmra.mxu0 %v1329
    %v1415 = vpop.f32.mrf.mxu0
    %v1416 = vadd.f32 0.0, %v1415
    %v1417 = vpop.f32.mrf.mxu0
    %v1418 = vadd.f32 0.0, %v1417
    %1419 = vmatmul.bf16.gmra.mxu0 %v1330
    %v1420 = vpop.f32.mrf.mxu0
    %v1421 = vadd.f32 0.0, %v1420
    %v1422 = vpop.f32.mrf.mxu0
    %v1423 = vadd.f32 0.0, %v1422
    %1424 = vmatmul.bf16.gmra.mxu0 %v1331
    %v1425 = vpop.f32.mrf.mxu0
    %v1426 = vadd.f32 0.0, %v1425
    %v1427 = vpop.f32.mrf.mxu0
    %v1428 = vadd.f32 0.0, %v1427
    %1429 = vmatmul.bf16.gmra.mxu0 %v1332
    %v1430 = vpop.f32.mrf.mxu0
    %v1431 = vadd.f32 0.0, %v1430
    %v1432 = vpop.f32.mrf.mxu0
    %v1433 = vadd.f32 0.0, %v1432
    %1434 = vmatmul.bf16.gmra.mxu0 %v1333
    %v1435 = vpop.f32.mrf.mxu0
    %v1436 = vadd.f32 0.0, %v1435
    %v1437 = vpop.f32.mrf.mxu0
    %v1438 = vadd.f32 0.0, %v1437
    %1439 = vmatmul.bf16.gmra.mxu0 %v1334
    %v1440 = vpop.f32.mrf.mxu0
    %v1441 = vadd.f32 0.0, %v1440
    %v1442 = vpop.f32.mrf.mxu0
    %v1443 = vadd.f32 0.0, %v1442
    %1444 = vmatmul.bf16.gmra.mxu0 %v1335
    %v1445 = vpop.f32.mrf.mxu0
    %v1446 = vadd.f32 0.0, %v1445
    %v1447 = vpop.f32.mrf.mxu0
    %v1448 = vadd.f32 0.0, %v1447
    %1449 = vdwg.mxu0
    %v1466 = vunpack.c.l.b16 %v923
    %v1467 = vunpack.c.l.b16 %v924
    %v1468 = vunpack.c.l.b16 %v925
    %v1469 = vunpack.c.l.b16 %v926
    %v1470 = vunpack.c.l.b16 %v927
    %v1471 = vunpack.c.l.b16 %v928
    %v1472 = vunpack.c.l.b16 %v929
    %v1473 = vunpack.c.l.b16 %v930
    %v1474 = vunpack.c.l.b16 %v931
    %v1475 = vunpack.c.l.b16 %v932
    %v1476 = vunpack.c.l.b16 %v933
    %v1477 = vunpack.c.l.b16 %v934
    %v1478 = vunpack.c.l.b16 %v935
    %v1479 = vunpack.c.l.b16 %v936
    %v1480 = vunpack.c.l.b16 %v937
    %v1481 = vunpack.c.l.b16 %v938
    %v1482 = vpack.c.b16 %v1467, %v1466
    %v1483 = vpack.c.b16 %v1469, %v1468
    %v1484 = vpack.c.b16 %v1471, %v1470
    %v1485 = vpack.c.b16 %v1473, %v1472
    %v1486 = vpack.c.b16 %v1475, %v1474
    %v1487 = vpack.c.b16 %v1477, %v1476
    %v1488 = vpack.c.b16 %v1479, %v1478
    %v1489 = vpack.c.b16 %v1481, %v1480
    %1498 = vmatpush.bf16.msra.mxu0 %v1489
    %1499 = vmatpush.bf16.msra.mxu0 %v1488
    %1500 = vmatpush.bf16.msra.mxu0 %v1487
    %1501 = vmatpush.bf16.msra.mxu0 %v1486
    %1502 = vmatpush.bf16.msra.mxu0 %v1485
    %1503 = vmatpush.bf16.msra.mxu0 %v1484
    %1504 = vmatpush.bf16.msra.mxu0 %v1483
    %1505 = vmatpush.bf16.msra.mxu0 %v1482
    %1506 = vmatmul.bf16.gmra.mxu0 %v915
    %v1507 = vpop.f32.mrf.mxu0
    %v1508 = vadd.f32 %v1411, %v1507
    %v1509 = vpop.f32.mrf.mxu0
    %v1510 = vadd.f32 %v1413, %v1509
    %1511 = vmatmul.bf16.gmra.mxu0 %v916
    %v1512 = vpop.f32.mrf.mxu0
    %v1513 = vadd.f32 %v1416, %v1512
    %v1514 = vpop.f32.mrf.mxu0
    %v1515 = vadd.f32 %v1418, %v1514
    %1516 = vmatmul.bf16.gmra.mxu0 %v917
    %v1517 = vpop.f32.mrf.mxu0
    %v1518 = vadd.f32 %v1421, %v1517
    %v1519 = vpop.f32.mrf.mxu0
    %v1520 = vadd.f32 %v1423, %v1519
    %1521 = vmatmul.bf16.gmra.mxu0 %v918
    %v1522 = vpop.f32.mrf.mxu0
    %v1523 = vadd.f32 %v1426, %v1522
    %v1524 = vpop.f32.mrf.mxu0
    %v1525 = vadd.f32 %v1428, %v1524
    %1526 = vmatmul.bf16.gmra.mxu0 %v919
    %v1527 = vpop.f32.mrf.mxu0
    %v1528 = vadd.f32 %v1431, %v1527
    %v1529 = vpop.f32.mrf.mxu0
    %v1530 = vadd.f32 %v1433, %v1529
    %1531 = vmatmul.bf16.gmra.mxu0 %v920
    %v1532 = vpop.f32.mrf.mxu0
    %v1533 = vadd.f32 %v1436, %v1532
    %v1534 = vpop.f32.mrf.mxu0
    %v1535 = vadd.f32 %v1438, %v1534
    %1536 = vmatmul.bf16.gmra.mxu0 %v921
    %v1537 = vpop.f32.mrf.mxu0
    %v1538 = vadd.f32 %v1441, %v1537
    %v1539 = vpop.f32.mrf.mxu0
    %v1540 = vadd.f32 %v1443, %v1539
    %1541 = vmatmul.bf16.gmra.mxu0 %v922
    %v1542 = vpop.f32.mrf.mxu0
    %v1543 = vadd.f32 %v1446, %v1542
    %v1544 = vpop.f32.mrf.mxu0
    %v1545 = vadd.f32 %v1448, %v1544
    %1546 = vdwg.mxu0
    %s1547 = scalar_lea.vmem [#allocation5], 512
    %v1548 = vld [vmem:[%s1547] sm:$0xff]
    %v1549 = vld [vmem:[%s1547 + $0x8] sm:$0xff]
    %v1550 = vld [vmem:[%s1547 + $0x10] sm:$0xff]
    %v1551 = vld [vmem:[%s1547 + $0x18] sm:$0xff]
    %v1552 = vld [vmem:[%s1547 + $0x20] sm:$0xff]
    %v1553 = vld [vmem:[%s1547 + $0x28] sm:$0xff]
    %v1554 = vld [vmem:[%s1547 + $0x30] sm:$0xff]
    %v1555 = vld [vmem:[%s1547 + $0x38] sm:$0xff]
    %v1556 = vld [vmem:[%s1547 + $0x40] sm:$0xff]
    %v1557 = vld [vmem:[%s1547 + $0x48] sm:$0xff]
    %v1558 = vld [vmem:[%s1547 + $0x50] sm:$0xff]
    %v1559 = vld [vmem:[%s1547 + $0x58] sm:$0xff]
    %v1560 = vld [vmem:[%s1547 + $0x60] sm:$0xff]
    %v1561 = vld [vmem:[%s1547 + $0x68] sm:$0xff]
    %v1562 = vld [vmem:[%s1547 + $0x70] sm:$0xff]
    %v1563 = vld [vmem:[%s1547 + $0x78] sm:$0xff]
    %v1564 = vld [vmem:[%s1547 + $0x80] sm:$0xff]
    %v1565 = vld [vmem:[%s1547 + $0x88] sm:$0xff]
    %v1566 = vld [vmem:[%s1547 + $0x90] sm:$0xff]
    %v1567 = vld [vmem:[%s1547 + $0x98] sm:$0xff]
    %v1568 = vld [vmem:[%s1547 + $0xa0] sm:$0xff]
    %v1569 = vld [vmem:[%s1547 + $0xa8] sm:$0xff]
    %v1570 = vld [vmem:[%s1547 + $0xb0] sm:$0xff]
    %v1571 = vld [vmem:[%s1547 + $0xb8] sm:$0xff]
    %v1572 = vld [vmem:[%s1547 + $0xc0] sm:$0xff]
    %v1573 = vld [vmem:[%s1547 + $0xc8] sm:$0xff]
    %v1574 = vld [vmem:[%s1547 + $0xd0] sm:$0xff]
    %v1575 = vld [vmem:[%s1547 + $0xd8] sm:$0xff]
    %v1576 = vld [vmem:[%s1547 + $0xe0] sm:$0xff]
    %v1577 = vld [vmem:[%s1547 + $0xe8] sm:$0xff]
    %v1578 = vld [vmem:[%s1547 + $0xf0] sm:$0xff]
    %v1579 = vld [vmem:[%s1547 + $0xf8] sm:$0xff]
    %v1612 = vunpack.c.l.b16 %v1548
    %v1613 = vunpack.c.h.b16 %v1548
    %v1614 = vunpack.c.l.b16 %v1549
    %v1615 = vunpack.c.h.b16 %v1549
    %v1616 = vunpack.c.l.b16 %v1550
    %v1617 = vunpack.c.h.b16 %v1550
    %v1618 = vunpack.c.l.b16 %v1551
    %v1619 = vunpack.c.h.b16 %v1551
    %v1620 = vunpack.c.l.b16 %v1552
    %v1621 = vunpack.c.h.b16 %v1552
    %v1622 = vunpack.c.l.b16 %v1553
    %v1623 = vunpack.c.h.b16 %v1553
    %v1624 = vunpack.c.l.b16 %v1554
    %v1625 = vunpack.c.h.b16 %v1554
    %v1626 = vunpack.c.l.b16 %v1555
    %v1627 = vunpack.c.h.b16 %v1555
    %v1628 = vunpack.c.l.b16 %v1556
    %v1629 = vunpack.c.h.b16 %v1556
    %v1630 = vunpack.c.l.b16 %v1557
    %v1631 = vunpack.c.h.b16 %v1557
    %v1632 = vunpack.c.l.b16 %v1558
    %v1633 = vunpack.c.h.b16 %v1558
    %v1634 = vunpack.c.l.b16 %v1559
    %v1635 = vunpack.c.h.b16 %v1559
    %v1636 = vunpack.c.l.b16 %v1560
    %v1637 = vunpack.c.h.b16 %v1560
    %v1638 = vunpack.c.l.b16 %v1561
    %v1639 = vunpack.c.h.b16 %v1561
    %v1640 = vunpack.c.l.b16 %v1562
    %v1641 = vunpack.c.h.b16 %v1562
    %v1642 = vunpack.c.l.b16 %v1563
    %v1643 = vunpack.c.h.b16 %v1563
    %v1644 = vunpack.c.l.b16 %v1564
    %v1645 = vunpack.c.h.b16 %v1564
    %v1646 = vunpack.c.l.b16 %v1565
    %v1647 = vunpack.c.h.b16 %v1565
    %v1648 = vunpack.c.l.b16 %v1566
    %v1649 = vunpack.c.h.b16 %v1566
    %v1650 = vunpack.c.l.b16 %v1567
    %v1651 = vunpack.c.h.b16 %v1567
    %v1652 = vunpack.c.l.b16 %v1568
    %v1653 = vunpack.c.h.b16 %v1568
    %v1654 = vunpack.c.l.b16 %v1569
    %v1655 = vunpack.c.h.b16 %v1569
    %v1656 = vunpack.c.l.b16 %v1570
    %v1657 = vunpack.c.h.b16 %v1570
    %v1658 = vunpack.c.l.b16 %v1571
    %v1659 = vunpack.c.h.b16 %v1571
    %v1660 = vunpack.c.l.b16 %v1572
    %v1661 = vunpack.c.h.b16 %v1572
    %v1662 = vunpack.c.l.b16 %v1573
    %v1663 = vunpack.c.h.b16 %v1573
    %v1664 = vunpack.c.l.b16 %v1574
    %v1665 = vunpack.c.h.b16 %v1574
    %v1666 = vunpack.c.l.b16 %v1575
    %v1667 = vunpack.c.h.b16 %v1575
    %v1668 = vunpack.c.l.b16 %v1576
    %v1669 = vunpack.c.h.b16 %v1576
    %v1670 = vunpack.c.l.b16 %v1577
    %v1671 = vunpack.c.h.b16 %v1577
    %v1672 = vunpack.c.l.b16 %v1578
    %v1673 = vunpack.c.h.b16 %v1578
    %v1674 = vunpack.c.l.b16 %v1579
    %v1675 = vunpack.c.h.b16 %v1579
    %v1676 = vpack.c.b16 %v1616, %v1612
    %v1677 = vpack.c.b16 %v1617, %v1613
    %v1678 = vpack.c.b16 %v1618, %v1614
    %v1679 = vpack.c.b16 %v1619, %v1615
    %v1680 = vpack.c.b16 %v1624, %v1620
    %v1681 = vpack.c.b16 %v1625, %v1621
    %v1682 = vpack.c.b16 %v1626, %v1622
    %v1683 = vpack.c.b16 %v1627, %v1623
    %v1684 = vpack.c.b16 %v1632, %v1628
    %v1685 = vpack.c.b16 %v1633, %v1629
    %v1686 = vpack.c.b16 %v1634, %v1630
    %v1687 = vpack.c.b16 %v1635, %v1631
    %v1688 = vpack.c.b16 %v1640, %v1636
    %v1689 = vpack.c.b16 %v1641, %v1637
    %v1690 = vpack.c.b16 %v1642, %v1638
    %v1691 = vpack.c.b16 %v1643, %v1639
    %v1692 = vpack.c.b16 %v1648, %v1644
    %v1693 = vpack.c.b16 %v1649, %v1645
    %v1694 = vpack.c.b16 %v1650, %v1646
    %v1695 = vpack.c.b16 %v1651, %v1647
    %v1696 = vpack.c.b16 %v1656, %v1652
    %v1697 = vpack.c.b16 %v1657, %v1653
    %v1698 = vpack.c.b16 %v1658, %v1654
    %v1699 = vpack.c.b16 %v1659, %v1655
    %v1700 = vpack.c.b16 %v1664, %v1660
    %v1701 = vpack.c.b16 %v1665, %v1661
    %v1702 = vpack.c.b16 %v1666, %v1662
    %v1703 = vpack.c.b16 %v1667, %v1663
    %v1704 = vpack.c.b16 %v1672, %v1668
    %v1705 = vpack.c.b16 %v1673, %v1669
    %v1706 = vpack.c.b16 %v1674, %v1670
    %v1707 = vpack.c.b16 %v1675, %v1671
    %1740 = vmatpush.bf16.msra.mxu0 %v662
    %1741 = vmatpush.bf16.msra.mxu0 %v661
    %1742 = vmatpush.bf16.msra.mxu0 %v660
    %1743 = vmatpush.bf16.msra.mxu0 %v659
    %1744 = vmatpush.bf16.msra.mxu0 %v658
    %1745 = vmatpush.bf16.msra.mxu0 %v657
    %1746 = vmatpush.bf16.msra.mxu0 %v656
    %1747 = vmatpush.bf16.msra.mxu0 %v655
    %1748 = vmatmul.bf16.gmra.mxu0 %v1676
    %v1749 = vpop.f32.mrf.mxu0
    %v1750 = vadd.f32 0.0, %v1749
    %v1751 = vpop.f32.mrf.mxu0
    %v1752 = vadd.f32 0.0, %v1751
    %1753 = vmatmul.bf16.gmra.mxu0 %v1680
    %v1754 = vpop.f32.mrf.mxu0
    %v1755 = vadd.f32 0.0, %v1754
    %v1756 = vpop.f32.mrf.mxu0
    %v1757 = vadd.f32 0.0, %v1756
    %1758 = vmatmul.bf16.gmra.mxu0 %v1684
    %v1759 = vpop.f32.mrf.mxu0
    %v1760 = vadd.f32 0.0, %v1759
    %v1761 = vpop.f32.mrf.mxu0
    %v1762 = vadd.f32 0.0, %v1761
    %1763 = vmatmul.bf16.gmra.mxu0 %v1688
    %v1764 = vpop.f32.mrf.mxu0
    %v1765 = vadd.f32 0.0, %v1764
    %v1766 = vpop.f32.mrf.mxu0
    %v1767 = vadd.f32 0.0, %v1766
    %1768 = vmatmul.bf16.gmra.mxu0 %v1692
    %v1769 = vpop.f32.mrf.mxu0
    %v1770 = vadd.f32 0.0, %v1769
    %v1771 = vpop.f32.mrf.mxu0
    %v1772 = vadd.f32 0.0, %v1771
    %1773 = vmatmul.bf16.gmra.mxu0 %v1696
    %v1774 = vpop.f32.mrf.mxu0
    %v1775 = vadd.f32 0.0, %v1774
    %v1776 = vpop.f32.mrf.mxu0
    %v1777 = vadd.f32 0.0, %v1776
    %1778 = vmatmul.bf16.gmra.mxu0 %v1700
    %v1779 = vpop.f32.mrf.mxu0
    %v1780 = vadd.f32 0.0, %v1779
    %v1781 = vpop.f32.mrf.mxu0
    %v1782 = vadd.f32 0.0, %v1781
    %1783 = vmatmul.bf16.gmra.mxu0 %v1704
    %v1784 = vpop.f32.mrf.mxu0
    %v1785 = vadd.f32 0.0, %v1784
    %v1786 = vpop.f32.mrf.mxu0
    %v1787 = vadd.f32 0.0, %v1786
    %1788 = vdwg.mxu0
    %1789 = vmatpush.bf16.msra.mxu0 %v670
    %1790 = vmatpush.bf16.msra.mxu0 %v669
    %1791 = vmatpush.bf16.msra.mxu0 %v668
    %1792 = vmatpush.bf16.msra.mxu0 %v667
    %1793 = vmatpush.bf16.msra.mxu0 %v666
    %1794 = vmatpush.bf16.msra.mxu0 %v665
    %1795 = vmatpush.bf16.msra.mxu0 %v664
    %1796 = vmatpush.bf16.msra.mxu0 %v663
    %1797 = vmatmul.bf16.gmra.mxu0 %v1677
    %v1798 = vpop.f32.mrf.mxu0
    %v1799 = vadd.f32 %v1750, %v1798
    %v1800 = vpop.f32.mrf.mxu0
    %v1801 = vadd.f32 %v1752, %v1800
    %1802 = vmatmul.bf16.gmra.mxu0 %v1681
    %v1803 = vpop.f32.mrf.mxu0
    %v1804 = vadd.f32 %v1755, %v1803
    %v1805 = vpop.f32.mrf.mxu0
    %v1806 = vadd.f32 %v1757, %v1805
    %1807 = vmatmul.bf16.gmra.mxu0 %v1685
    %v1808 = vpop.f32.mrf.mxu0
    %v1809 = vadd.f32 %v1760, %v1808
    %v1810 = vpop.f32.mrf.mxu0
    %v1811 = vadd.f32 %v1762, %v1810
    %1812 = vmatmul.bf16.gmra.mxu0 %v1689
    %v1813 = vpop.f32.mrf.mxu0
    %v1814 = vadd.f32 %v1765, %v1813
    %v1815 = vpop.f32.mrf.mxu0
    %v1816 = vadd.f32 %v1767, %v1815
    %1817 = vmatmul.bf16.gmra.mxu0 %v1693
    %v1818 = vpop.f32.mrf.mxu0
    %v1819 = vadd.f32 %v1770, %v1818
    %v1820 = vpop.f32.mrf.mxu0
    %v1821 = vadd.f32 %v1772, %v1820
    %1822 = vmatmul.bf16.gmra.mxu0 %v1697
    %v1823 = vpop.f32.mrf.mxu0
    %v1824 = vadd.f32 %v1775, %v1823
    %v1825 = vpop.f32.mrf.mxu0
    %v1826 = vadd.f32 %v1777, %v1825
    %1827 = vmatmul.bf16.gmra.mxu0 %v1701
    %v1828 = vpop.f32.mrf.mxu0
    %v1829 = vadd.f32 %v1780, %v1828
    %v1830 = vpop.f32.mrf.mxu0
    %v1831 = vadd.f32 %v1782, %v1830
    %1832 = vmatmul.bf16.gmra.mxu0 %v1705
    %v1833 = vpop.f32.mrf.mxu0
    %v1834 = vadd.f32 %v1785, %v1833
    %v1835 = vpop.f32.mrf.mxu0
    %v1836 = vadd.f32 %v1787, %v1835
    %1837 = vdwg.mxu0
    %1838 = vmatpush.bf16.msra.mxu0 %v678
    %1839 = vmatpush.bf16.msra.mxu0 %v677
    %1840 = vmatpush.bf16.msra.mxu0 %v676
    %1841 = vmatpush.bf16.msra.mxu0 %v675
    %1842 = vmatpush.bf16.msra.mxu0 %v674
    %1843 = vmatpush.bf16.msra.mxu0 %v673
    %1844 = vmatpush.bf16.msra.mxu0 %v672
    %1845 = vmatpush.bf16.msra.mxu0 %v671
    %1846 = vmatmul.bf16.gmra.mxu0 %v1678
    %v1847 = vpop.f32.mrf.mxu0
    %v1848 = vadd.f32 %v1799, %v1847
    %v1849 = vpop.f32.mrf.mxu0
    %v1850 = vadd.f32 %v1801, %v1849
    %1851 = vmatmul.bf16.gmra.mxu0 %v1682
    %v1852 = vpop.f32.mrf.mxu0
    %v1853 = vadd.f32 %v1804, %v1852
    %v1854 = vpop.f32.mrf.mxu0
    %v1855 = vadd.f32 %v1806, %v1854
    %1856 = vmatmul.bf16.gmra.mxu0 %v1686
    %v1857 = vpop.f32.mrf.mxu0
    %v1858 = vadd.f32 %v1809, %v1857
    %v1859 = vpop.f32.mrf.mxu0
    %v1860 = vadd.f32 %v1811, %v1859
    %1861 = vmatmul.bf16.gmra.mxu0 %v1690
    %v1862 = vpop.f32.mrf.mxu0
    %v1863 = vadd.f32 %v1814, %v1862
    %v1864 = vpop.f32.mrf.mxu0
    %v1865 = vadd.f32 %v1816, %v1864
    %1866 = vmatmul.bf16.gmra.mxu0 %v1694
    %v1867 = vpop.f32.mrf.mxu0
    %v1868 = vadd.f32 %v1819, %v1867
    %v1869 = vpop.f32.mrf.mxu0
    %v1870 = vadd.f32 %v1821, %v1869
    %1871 = vmatmul.bf16.gmra.mxu0 %v1698
    %v1872 = vpop.f32.mrf.mxu0
    %v1873 = vadd.f32 %v1824, %v1872
    %v1874 = vpop.f32.mrf.mxu0
    %v1875 = vadd.f32 %v1826, %v1874
    %1876 = vmatmul.bf16.gmra.mxu0 %v1702
    %v1877 = vpop.f32.mrf.mxu0
    %v1878 = vadd.f32 %v1829, %v1877
    %v1879 = vpop.f32.mrf.mxu0
    %v1880 = vadd.f32 %v1831, %v1879
    %1881 = vmatmul.bf16.gmra.mxu0 %v1706
    %v1882 = vpop.f32.mrf.mxu0
    %v1883 = vadd.f32 %v1834, %v1882
    %v1884 = vpop.f32.mrf.mxu0
    %v1885 = vadd.f32 %v1836, %v1884
    %1886 = vdwg.mxu0
    %1887 = vmatpush.bf16.msra.mxu0 %v686
    %1888 = vmatpush.bf16.msra.mxu0 %v685
    %1889 = vmatpush.bf16.msra.mxu0 %v684
    %1890 = vmatpush.bf16.msra.mxu0 %v683
    %1891 = vmatpush.bf16.msra.mxu0 %v682
    %1892 = vmatpush.bf16.msra.mxu0 %v681
    %1893 = vmatpush.bf16.msra.mxu0 %v680
    %1894 = vmatpush.bf16.msra.mxu0 %v679
    %1895 = vmatmul.bf16.gmra.mxu0 %v1679
    %v1896 = vpop.f32.mrf.mxu0
    %v1897 = vadd.f32 %v1848, %v1896
    %v1898 = vpop.f32.mrf.mxu0
    %v1899 = vadd.f32 %v1850, %v1898
    %1900 = vmatmul.bf16.gmra.mxu0 %v1683
    %v1901 = vpop.f32.mrf.mxu0
    %v1902 = vadd.f32 %v1853, %v1901
    %v1903 = vpop.f32.mrf.mxu0
    %v1904 = vadd.f32 %v1855, %v1903
    %1905 = vmatmul.bf16.gmra.mxu0 %v1687
    %v1906 = vpop.f32.mrf.mxu0
    %v1907 = vadd.f32 %v1858, %v1906
    %v1908 = vpop.f32.mrf.mxu0
    %v1909 = vadd.f32 %v1860, %v1908
    %1910 = vmatmul.bf16.gmra.mxu0 %v1691
    %v1911 = vpop.f32.mrf.mxu0
    %v1912 = vadd.f32 %v1863, %v1911
    %v1913 = vpop.f32.mrf.mxu0
    %v1914 = vadd.f32 %v1865, %v1913
    %1915 = vmatmul.bf16.gmra.mxu0 %v1695
    %v1916 = vpop.f32.mrf.mxu0
    %v1917 = vadd.f32 %v1868, %v1916
    %v1918 = vpop.f32.mrf.mxu0
    %v1919 = vadd.f32 %v1870, %v1918
    %1920 = vmatmul.bf16.gmra.mxu0 %v1699
    %v1921 = vpop.f32.mrf.mxu0
    %v1922 = vadd.f32 %v1873, %v1921
    %v1923 = vpop.f32.mrf.mxu0
    %v1924 = vadd.f32 %v1875, %v1923
    %1925 = vmatmul.bf16.gmra.mxu0 %v1703
    %v1926 = vpop.f32.mrf.mxu0
    %v1927 = vadd.f32 %v1878, %v1926
    %v1928 = vpop.f32.mrf.mxu0
    %v1929 = vadd.f32 %v1880, %v1928
    %1930 = vmatmul.bf16.gmra.mxu0 %v1707
    %v1931 = vpop.f32.mrf.mxu0
    %v1932 = vadd.f32 %v1883, %v1931
    %v1933 = vpop.f32.mrf.mxu0
    %v1934 = vadd.f32 %v1885, %v1933
    %1935 = vdwg.mxu0
    %v1936 = vpack.c.bf16 %v1899, %v1897
    %v1937 = vpack.c.bf16 %v1904, %v1902
    %v1938 = vpack.c.bf16 %v1909, %v1907
    %v1939 = vpack.c.bf16 %v1914, %v1912
    %v1940 = vpack.c.bf16 %v1919, %v1917
    %v1941 = vpack.c.bf16 %v1924, %v1922
    %v1942 = vpack.c.bf16 %v1929, %v1927
    %v1943 = vpack.c.bf16 %v1934, %v1932
    %s1944 = scalar_lea.vmem [#allocation7], 128
    %v1945 = vld [vmem:[%s1944] sm:$0xf]
    %v1946 = vld [vmem:[%s1944 + $0x4] sm:$0xf]
    %v1947 = vld [vmem:[%s1944 + $0x8] sm:$0xf]
    %v1948 = vld [vmem:[%s1944 + $0xc] sm:$0xf]
    %v1949 = vld [vmem:[%s1944 + $0x10] sm:$0xf]
    %v1950 = vld [vmem:[%s1944 + $0x14] sm:$0xf]
    %v1951 = vld [vmem:[%s1944 + $0x18] sm:$0xf]
    %v1952 = vld [vmem:[%s1944 + $0x1c] sm:$0xf]
    %v1953 = vld [vmem:[%s1944 + $0x20] sm:$0xf]
    %v1954 = vld [vmem:[%s1944 + $0x24] sm:$0xf]
    %v1955 = vld [vmem:[%s1944 + $0x28] sm:$0xf]
    %v1956 = vld [vmem:[%s1944 + $0x2c] sm:$0xf]
    %v1957 = vld [vmem:[%s1944 + $0x30] sm:$0xf]
    %v1958 = vld [vmem:[%s1944 + $0x34] sm:$0xf]
    %v1959 = vld [vmem:[%s1944 + $0x38] sm:$0xf]
    %v1960 = vld [vmem:[%s1944 + $0x3c] sm:$0xf]
    %v1977 = vunpack.c.l.b16 %v1945
    %v1978 = vunpack.c.l.b16 %v1946
    %v1979 = vunpack.c.l.b16 %v1947
    %v1980 = vunpack.c.l.b16 %v1948
    %v1981 = vunpack.c.l.b16 %v1949
    %v1982 = vunpack.c.l.b16 %v1950
    %v1983 = vunpack.c.l.b16 %v1951
    %v1984 = vunpack.c.l.b16 %v1952
    %v1985 = vunpack.c.l.b16 %v1953
    %v1986 = vunpack.c.l.b16 %v1954
    %v1987 = vunpack.c.l.b16 %v1955
    %v1988 = vunpack.c.l.b16 %v1956
    %v1989 = vunpack.c.l.b16 %v1957
    %v1990 = vunpack.c.l.b16 %v1958
    %v1991 = vunpack.c.l.b16 %v1959
    %v1992 = vunpack.c.l.b16 %v1960
    %v1993 = vpack.c.b16 %v1978, %v1977
    %v1994 = vpack.c.b16 %v1980, %v1979
    %v1995 = vpack.c.b16 %v1982, %v1981
    %v1996 = vpack.c.b16 %v1984, %v1983
    %v1997 = vpack.c.b16 %v1986, %v1985
    %v1998 = vpack.c.b16 %v1988, %v1987
    %v1999 = vpack.c.b16 %v1990, %v1989
    %v2000 = vpack.c.b16 %v1992, %v1991
    %2009 = vmatpush.bf16.msra.mxu0 %v2000
    %2010 = vmatpush.bf16.msra.mxu0 %v1999
    %2011 = vmatpush.bf16.msra.mxu0 %v1998
    %2012 = vmatpush.bf16.msra.mxu0 %v1997
    %2013 = vmatpush.bf16.msra.mxu0 %v1996
    %2014 = vmatpush.bf16.msra.mxu0 %v1995
    %2015 = vmatpush.bf16.msra.mxu0 %v1994
    %2016 = vmatpush.bf16.msra.mxu0 %v1993
    %2017 = vmatmul.bf16.gmra.mxu0 %v1936
    %v2018 = vpop.f32.mrf.mxu0
    %v2019 = vadd.f32 0.0, %v2018
    %v2020 = vpop.f32.mrf.mxu0
    %v2021 = vadd.f32 0.0, %v2020
    %2022 = vmatmul.bf16.gmra.mxu0 %v1937
    %v2023 = vpop.f32.mrf.mxu0
    %v2024 = vadd.f32 0.0, %v2023
    %v2025 = vpop.f32.mrf.mxu0
    %v2026 = vadd.f32 0.0, %v2025
    %2027 = vmatmul.bf16.gmra.mxu0 %v1938
    %v2028 = vpop.f32.mrf.mxu0
    %v2029 = vadd.f32 0.0, %v2028
    %v2030 = vpop.f32.mrf.mxu0
    %v2031 = vadd.f32 0.0, %v2030
    %2032 = vmatmul.bf16.gmra.mxu0 %v1939
    %v2033 = vpop.f32.mrf.mxu0
    %v2034 = vadd.f32 0.0, %v2033
    %v2035 = vpop.f32.mrf.mxu0
    %v2036 = vadd.f32 0.0, %v2035
    %2037 = vmatmul.bf16.gmra.mxu0 %v1940
    %v2038 = vpop.f32.mrf.mxu0
    %v2039 = vadd.f32 0.0, %v2038
    %v2040 = vpop.f32.mrf.mxu0
    %v2041 = vadd.f32 0.0, %v2040
    %2042 = vmatmul.bf16.gmra.mxu0 %v1941
    %v2043 = vpop.f32.mrf.mxu0
    %v2044 = vadd.f32 0.0, %v2043
    %v2045 = vpop.f32.mrf.mxu0
    %v2046 = vadd.f32 0.0, %v2045
    %2047 = vmatmul.bf16.gmra.mxu0 %v1942
    %v2048 = vpop.f32.mrf.mxu0
    %v2049 = vadd.f32 0.0, %v2048
    %v2050 = vpop.f32.mrf.mxu0
    %v2051 = vadd.f32 0.0, %v2050
    %2052 = vmatmul.bf16.gmra.mxu0 %v1943
    %v2053 = vpop.f32.mrf.mxu0
    %v2054 = vadd.f32 0.0, %v2053
    %v2055 = vpop.f32.mrf.mxu0
    %v2056 = vadd.f32 0.0, %v2055
    %2057 = vdwg.mxu0
    %v2058 = vadd.f32 %v1508, %v2019
    %v2059 = vadd.f32 %v1510, %v2021
    %v2060 = vadd.f32 %v1513, %v2024
    %v2061 = vadd.f32 %v1515, %v2026
    %v2062 = vadd.f32 %v1518, %v2029
    %v2063 = vadd.f32 %v1520, %v2031
    %v2064 = vadd.f32 %v1523, %v2034
    %v2065 = vadd.f32 %v1525, %v2036
    %v2066 = vadd.f32 %v1528, %v2039
    %v2067 = vadd.f32 %v1530, %v2041
    %v2068 = vadd.f32 %v1533, %v2044
    %v2069 = vadd.f32 %v1535, %v2046
    %v2070 = vadd.f32 %v1538, %v2049
    %v2071 = vadd.f32 %v1540, %v2051
    %v2072 = vadd.f32 %v1543, %v2054
    %v2073 = vadd.f32 %v1545, %v2056
    %s2074 = scalar_lea.vmem [#allocation5], 768
    %v2075 = vld [vmem:[%s2074] sm:$0xff]
    %v2076 = vld [vmem:[%s2074 + $0x8] sm:$0xff]
    %v2077 = vld [vmem:[%s2074 + $0x10] sm:$0xff]
    %v2078 = vld [vmem:[%s2074 + $0x18] sm:$0xff]
    %v2079 = vld [vmem:[%s2074 + $0x20] sm:$0xff]
    %v2080 = vld [vmem:[%s2074 + $0x28] sm:$0xff]
    %v2081 = vld [vmem:[%s2074 + $0x30] sm:$0xff]
    %v2082 = vld [vmem:[%s2074 + $0x38] sm:$0xff]
    %v2083 = vld [vmem:[%s2074 + $0x40] sm:$0xff]
    %v2084 = vld [vmem:[%s2074 + $0x48] sm:$0xff]
    %v2085 = vld [vmem:[%s2074 + $0x50] sm:$0xff]
    %v2086 = vld [vmem:[%s2074 + $0x58] sm:$0xff]
    %v2087 = vld [vmem:[%s2074 + $0x60] sm:$0xff]
    %v2088 = vld [vmem:[%s2074 + $0x68] sm:$0xff]
    %v2089 = vld [vmem:[%s2074 + $0x70] sm:$0xff]
    %v2090 = vld [vmem:[%s2074 + $0x78] sm:$0xff]
    %v2091 = vld [vmem:[%s2074 + $0x80] sm:$0xff]
    %v2092 = vld [vmem:[%s2074 + $0x88] sm:$0xff]
    %v2093 = vld [vmem:[%s2074 + $0x90] sm:$0xff]
    %v2094 = vld [vmem:[%s2074 + $0x98] sm:$0xff]
    %v2095 = vld [vmem:[%s2074 + $0xa0] sm:$0xff]
    %v2096 = vld [vmem:[%s2074 + $0xa8] sm:$0xff]
    %v2097 = vld [vmem:[%s2074 + $0xb0] sm:$0xff]
    %v2098 = vld [vmem:[%s2074 + $0xb8] sm:$0xff]
    %v2099 = vld [vmem:[%s2074 + $0xc0] sm:$0xff]
    %v2100 = vld [vmem:[%s2074 + $0xc8] sm:$0xff]
    %v2101 = vld [vmem:[%s2074 + $0xd0] sm:$0xff]
    %v2102 = vld [vmem:[%s2074 + $0xd8] sm:$0xff]
    %v2103 = vld [vmem:[%s2074 + $0xe0] sm:$0xff]
    %v2104 = vld [vmem:[%s2074 + $0xe8] sm:$0xff]
    %v2105 = vld [vmem:[%s2074 + $0xf0] sm:$0xff]
    %v2106 = vld [vmem:[%s2074 + $0xf8] sm:$0xff]
    %v2139 = vunpack.c.l.b16 %v2075
    %v2140 = vunpack.c.h.b16 %v2075
    %v2141 = vunpack.c.l.b16 %v2076
    %v2142 = vunpack.c.h.b16 %v2076
    %v2143 = vunpack.c.l.b16 %v2077
    %v2144 = vunpack.c.h.b16 %v2077
    %v2145 = vunpack.c.l.b16 %v2078
    %v2146 = vunpack.c.h.b16 %v2078
    %v2147 = vunpack.c.l.b16 %v2079
    %v2148 = vunpack.c.h.b16 %v2079
    %v2149 = vunpack.c.l.b16 %v2080
    %v2150 = vunpack.c.h.b16 %v2080
    %v2151 = vunpack.c.l.b16 %v2081
    %v2152 = vunpack.c.h.b16 %v2081
    %v2153 = vunpack.c.l.b16 %v2082
    %v2154 = vunpack.c.h.b16 %v2082
    %v2155 = vunpack.c.l.b16 %v2083
    %v2156 = vunpack.c.h.b16 %v2083
    %v2157 = vunpack.c.l.b16 %v2084
    %v2158 = vunpack.c.h.b16 %v2084
    %v2159 = vunpack.c.l.b16 %v2085
    %v2160 = vunpack.c.h.b16 %v2085
    %v2161 = vunpack.c.l.b16 %v2086
    %v2162 = vunpack.c.h.b16 %v2086
    %v2163 = vunpack.c.l.b16 %v2087
    %v2164 = vunpack.c.h.b16 %v2087
    %v2165 = vunpack.c.l.b16 %v2088
    %v2166 = vunpack.c.h.b16 %v2088
    %v2167 = vunpack.c.l.b16 %v2089
    %v2168 = vunpack.c.h.b16 %v2089
    %v2169 = vunpack.c.l.b16 %v2090
    %v2170 = vunpack.c.h.b16 %v2090
    %v2171 = vunpack.c.l.b16 %v2091
    %v2172 = vunpack.c.h.b16 %v2091
    %v2173 = vunpack.c.l.b16 %v2092
    %v2174 = vunpack.c.h.b16 %v2092
    %v2175 = vunpack.c.l.b16 %v2093
    %v2176 = vunpack.c.h.b16 %v2093
    %v2177 = vunpack.c.l.b16 %v2094
    %v2178 = vunpack.c.h.b16 %v2094
    %v2179 = vunpack.c.l.b16 %v2095
    %v2180 = vunpack.c.h.b16 %v2095
    %v2181 = vunpack.c.l.b16 %v2096
    %v2182 = vunpack.c.h.b16 %v2096
    %v2183 = vunpack.c.l.b16 %v2097
    %v2184 = vunpack.c.h.b16 %v2097
    %v2185 = vunpack.c.l.b16 %v2098
    %v2186 = vunpack.c.h.b16 %v2098
    %v2187 = vunpack.c.l.b16 %v2099
    %v2188 = vunpack.c.h.b16 %v2099
    %v2189 = vunpack.c.l.b16 %v2100
    %v2190 = vunpack.c.h.b16 %v2100
    %v2191 = vunpack.c.l.b16 %v2101
    %v2192 = vunpack.c.h.b16 %v2101
    %v2193 = vunpack.c.l.b16 %v2102
    %v2194 = vunpack.c.h.b16 %v2102
    %v2195 = vunpack.c.l.b16 %v2103
    %v2196 = vunpack.c.h.b16 %v2103
    %v2197 = vunpack.c.l.b16 %v2104
    %v2198 = vunpack.c.h.b16 %v2104
    %v2199 = vunpack.c.l.b16 %v2105
    %v2200 = vunpack.c.h.b16 %v2105
    %v2201 = vunpack.c.l.b16 %v2106
    %v2202 = vunpack.c.h.b16 %v2106
    %v2203 = vpack.c.b16 %v2143, %v2139
    %v2204 = vpack.c.b16 %v2144, %v2140
    %v2205 = vpack.c.b16 %v2145, %v2141
    %v2206 = vpack.c.b16 %v2146, %v2142
    %v2207 = vpack.c.b16 %v2151, %v2147
    %v2208 = vpack.c.b16 %v2152, %v2148
    %v2209 = vpack.c.b16 %v2153, %v2149
    %v2210 = vpack.c.b16 %v2154, %v2150
    %v2211 = vpack.c.b16 %v2159, %v2155
    %v2212 = vpack.c.b16 %v2160, %v2156
    %v2213 = vpack.c.b16 %v2161, %v2157
    %v2214 = vpack.c.b16 %v2162, %v2158
    %v2215 = vpack.c.b16 %v2167, %v2163
    %v2216 = vpack.c.b16 %v2168, %v2164
    %v2217 = vpack.c.b16 %v2169, %v2165
    %v2218 = vpack.c.b16 %v2170, %v2166
    %v2219 = vpack.c.b16 %v2175, %v2171
    %v2220 = vpack.c.b16 %v2176, %v2172
    %v2221 = vpack.c.b16 %v2177, %v2173
    %v2222 = vpack.c.b16 %v2178, %v2174
    %v2223 = vpack.c.b16 %v2183, %v2179
    %v2224 = vpack.c.b16 %v2184, %v2180
    %v2225 = vpack.c.b16 %v2185, %v2181
    %v2226 = vpack.c.b16 %v2186, %v2182
    %v2227 = vpack.c.b16 %v2191, %v2187
    %v2228 = vpack.c.b16 %v2192, %v2188
    %v2229 = vpack.c.b16 %v2193, %v2189
    %v2230 = vpack.c.b16 %v2194, %v2190
    %v2231 = vpack.c.b16 %v2199, %v2195
    %v2232 = vpack.c.b16 %v2200, %v2196
    %v2233 = vpack.c.b16 %v2201, %v2197
    %v2234 = vpack.c.b16 %v2202, %v2198
    %2267 = vmatpush.bf16.msra.mxu0 %v662
    %2268 = vmatpush.bf16.msra.mxu0 %v661
    %2269 = vmatpush.bf16.msra.mxu0 %v660
    %2270 = vmatpush.bf16.msra.mxu0 %v659
    %2271 = vmatpush.bf16.msra.mxu0 %v658
    %2272 = vmatpush.bf16.msra.mxu0 %v657
    %2273 = vmatpush.bf16.msra.mxu0 %v656
    %2274 = vmatpush.bf16.msra.mxu0 %v655
    %2275 = vmatmul.bf16.gmra.mxu0 %v2203
    %v2276 = vpop.f32.mrf.mxu0
    %v2277 = vadd.f32 0.0, %v2276
    %v2278 = vpop.f32.mrf.mxu0
    %v2279 = vadd.f32 0.0, %v2278
    %2280 = vmatmul.bf16.gmra.mxu0 %v2207
    %v2281 = vpop.f32.mrf.mxu0
    %v2282 = vadd.f32 0.0, %v2281
    %v2283 = vpop.f32.mrf.mxu0
    %v2284 = vadd.f32 0.0, %v2283
    %2285 = vmatmul.bf16.gmra.mxu0 %v2211
    %v2286 = vpop.f32.mrf.mxu0
    %v2287 = vadd.f32 0.0, %v2286
    %v2288 = vpop.f32.mrf.mxu0
    %v2289 = vadd.f32 0.0, %v2288
    %2290 = vmatmul.bf16.gmra.mxu0 %v2215
    %v2291 = vpop.f32.mrf.mxu0
    %v2292 = vadd.f32 0.0, %v2291
    %v2293 = vpop.f32.mrf.mxu0
    %v2294 = vadd.f32 0.0, %v2293
    %2295 = vmatmul.bf16.gmra.mxu0 %v2219
    %v2296 = vpop.f32.mrf.mxu0
    %v2297 = vadd.f32 0.0, %v2296
    %v2298 = vpop.f32.mrf.mxu0
    %v2299 = vadd.f32 0.0, %v2298
    %2300 = vmatmul.bf16.gmra.mxu0 %v2223
    %v2301 = vpop.f32.mrf.mxu0
    %v2302 = vadd.f32 0.0, %v2301
    %v2303 = vpop.f32.mrf.mxu0
    %v2304 = vadd.f32 0.0, %v2303
    %2305 = vmatmul.bf16.gmra.mxu0 %v2227
    %v2306 = vpop.f32.mrf.mxu0
    %v2307 = vadd.f32 0.0, %v2306
    %v2308 = vpop.f32.mrf.mxu0
    %v2309 = vadd.f32 0.0, %v2308
    %2310 = vmatmul.bf16.gmra.mxu0 %v2231
    %v2311 = vpop.f32.mrf.mxu0
    %v2312 = vadd.f32 0.0, %v2311
    %v2313 = vpop.f32.mrf.mxu0
    %v2314 = vadd.f32 0.0, %v2313
    %2315 = vdwg.mxu0
    %2316 = vmatpush.bf16.msra.mxu0 %v670
    %2317 = vmatpush.bf16.msra.mxu0 %v669
    %2318 = vmatpush.bf16.msra.mxu0 %v668
    %2319 = vmatpush.bf16.msra.mxu0 %v667
    %2320 = vmatpush.bf16.msra.mxu0 %v666
    %2321 = vmatpush.bf16.msra.mxu0 %v665
    %2322 = vmatpush.bf16.msra.mxu0 %v664
    %2323 = vmatpush.bf16.msra.mxu0 %v663
    %2324 = vmatmul.bf16.gmra.mxu0 %v2204
    %v2325 = vpop.f32.mrf.mxu0
    %v2326 = vadd.f32 %v2277, %v2325
    %v2327 = vpop.f32.mrf.mxu0
    %v2328 = vadd.f32 %v2279, %v2327
    %2329 = vmatmul.bf16.gmra.mxu0 %v2208
    %v2330 = vpop.f32.mrf.mxu0
    %v2331 = vadd.f32 %v2282, %v2330
    %v2332 = vpop.f32.mrf.mxu0
    %v2333 = vadd.f32 %v2284, %v2332
    %2334 = vmatmul.bf16.gmra.mxu0 %v2212
    %v2335 = vpop.f32.mrf.mxu0
    %v2336 = vadd.f32 %v2287, %v2335
    %v2337 = vpop.f32.mrf.mxu0
    %v2338 = vadd.f32 %v2289, %v2337
    %2339 = vmatmul.bf16.gmra.mxu0 %v2216
    %v2340 = vpop.f32.mrf.mxu0
    %v2341 = vadd.f32 %v2292, %v2340
    %v2342 = vpop.f32.mrf.mxu0
    %v2343 = vadd.f32 %v2294, %v2342
    %2344 = vmatmul.bf16.gmra.mxu0 %v2220
    %v2345 = vpop.f32.mrf.mxu0
    %v2346 = vadd.f32 %v2297, %v2345
    %v2347 = vpop.f32.mrf.mxu0
    %v2348 = vadd.f32 %v2299, %v2347
    %2349 = vmatmul.bf16.gmra.mxu0 %v2224
    %v2350 = vpop.f32.mrf.mxu0
    %v2351 = vadd.f32 %v2302, %v2350
    %v2352 = vpop.f32.mrf.mxu0
    %v2353 = vadd.f32 %v2304, %v2352
    %2354 = vmatmul.bf16.gmra.mxu0 %v2228
    %v2355 = vpop.f32.mrf.mxu0
    %v2356 = vadd.f32 %v2307, %v2355
    %v2357 = vpop.f32.mrf.mxu0
    %v2358 = vadd.f32 %v2309, %v2357
    %2359 = vmatmul.bf16.gmra.mxu0 %v2232
    %v2360 = vpop.f32.mrf.mxu0
    %v2361 = vadd.f32 %v2312, %v2360
    %v2362 = vpop.f32.mrf.mxu0
    %v2363 = vadd.f32 %v2314, %v2362
    %2364 = vdwg.mxu0
    %2365 = vmatpush.bf16.msra.mxu0 %v678
    %2366 = vmatpush.bf16.msra.mxu0 %v677
    %2367 = vmatpush.bf16.msra.mxu0 %v676
    %2368 = vmatpush.bf16.msra.mxu0 %v675
    %2369 = vmatpush.bf16.msra.mxu0 %v674
    %2370 = vmatpush.bf16.msra.mxu0 %v673
    %2371 = vmatpush.bf16.msra.mxu0 %v672
    %2372 = vmatpush.bf16.msra.mxu0 %v671
    %2373 = vmatmul.bf16.gmra.mxu0 %v2205
    %v2374 = vpop.f32.mrf.mxu0
    %v2375 = vadd.f32 %v2326, %v2374
    %v2376 = vpop.f32.mrf.mxu0
    %v2377 = vadd.f32 %v2328, %v2376
    %2378 = vmatmul.bf16.gmra.mxu0 %v2209
    %v2379 = vpop.f32.mrf.mxu0
    %v2380 = vadd.f32 %v2331, %v2379
    %v2381 = vpop.f32.mrf.mxu0
    %v2382 = vadd.f32 %v2333, %v2381
    %2383 = vmatmul.bf16.gmra.mxu0 %v2213
    %v2384 = vpop.f32.mrf.mxu0
    %v2385 = vadd.f32 %v2336, %v2384
    %v2386 = vpop.f32.mrf.mxu0
    %v2387 = vadd.f32 %v2338, %v2386
    %2388 = vmatmul.bf16.gmra.mxu0 %v2217
    %v2389 = vpop.f32.mrf.mxu0
    %v2390 = vadd.f32 %v2341, %v2389
    %v2391 = vpop.f32.mrf.mxu0
    %v2392 = vadd.f32 %v2343, %v2391
    %2393 = vmatmul.bf16.gmra.mxu0 %v2221
    %v2394 = vpop.f32.mrf.mxu0
    %v2395 = vadd.f32 %v2346, %v2394
    %v2396 = vpop.f32.mrf.mxu0
    %v2397 = vadd.f32 %v2348, %v2396
    %2398 = vmatmul.bf16.gmra.mxu0 %v2225
    %v2399 = vpop.f32.mrf.mxu0
    %v2400 = vadd.f32 %v2351, %v2399
    %v2401 = vpop.f32.mrf.mxu0
    %v2402 = vadd.f32 %v2353, %v2401
    %2403 = vmatmul.bf16.gmra.mxu0 %v2229
    %v2404 = vpop.f32.mrf.mxu0
    %v2405 = vadd.f32 %v2356, %v2404
    %v2406 = vpop.f32.mrf.mxu0
    %v2407 = vadd.f32 %v2358, %v2406
    %2408 = vmatmul.bf16.gmra.mxu0 %v2233
    %v2409 = vpop.f32.mrf.mxu0
    %v2410 = vadd.f32 %v2361, %v2409
    %v2411 = vpop.f32.mrf.mxu0
    %v2412 = vadd.f32 %v2363, %v2411
    %2413 = vdwg.mxu0
    %2414 = vmatpush.bf16.msra.mxu0 %v686
    %2415 = vmatpush.bf16.msra.mxu0 %v685
    %2416 = vmatpush.bf16.msra.mxu0 %v684
    %2417 = vmatpush.bf16.msra.mxu0 %v683
    %2418 = vmatpush.bf16.msra.mxu0 %v682
    %2419 = vmatpush.bf16.msra.mxu0 %v681
    %2420 = vmatpush.bf16.msra.mxu0 %v680
    %2421 = vmatpush.bf16.msra.mxu0 %v679
    %2422 = vmatmul.bf16.gmra.mxu0 %v2206
    %v2423 = vpop.f32.mrf.mxu0
    %v2424 = vadd.f32 %v2375, %v2423
    %v2425 = vpop.f32.mrf.mxu0
    %v2426 = vadd.f32 %v2377, %v2425
    %2427 = vmatmul.bf16.gmra.mxu0 %v2210
    %v2428 = vpop.f32.mrf.mxu0
    %v2429 = vadd.f32 %v2380, %v2428
    %v2430 = vpop.f32.mrf.mxu0
    %v2431 = vadd.f32 %v2382, %v2430
    %2432 = vmatmul.bf16.gmra.mxu0 %v2214
    %v2433 = vpop.f32.mrf.mxu0
    %v2434 = vadd.f32 %v2385, %v2433
    %v2435 = vpop.f32.mrf.mxu0
    %v2436 = vadd.f32 %v2387, %v2435
    %2437 = vmatmul.bf16.gmra.mxu0 %v2218
    %v2438 = vpop.f32.mrf.mxu0
    %v2439 = vadd.f32 %v2390, %v2438
    %v2440 = vpop.f32.mrf.mxu0
    %v2441 = vadd.f32 %v2392, %v2440
    %2442 = vmatmul.bf16.gmra.mxu0 %v2222
    %v2443 = vpop.f32.mrf.mxu0
    %v2444 = vadd.f32 %v2395, %v2443
    %v2445 = vpop.f32.mrf.mxu0
    %v2446 = vadd.f32 %v2397, %v2445
    %2447 = vmatmul.bf16.gmra.mxu0 %v2226
    %v2448 = vpop.f32.mrf.mxu0
    %v2449 = vadd.f32 %v2400, %v2448
    %v2450 = vpop.f32.mrf.mxu0
    %v2451 = vadd.f32 %v2402, %v2450
    %2452 = vmatmul.bf16.gmra.mxu0 %v2230
    %v2453 = vpop.f32.mrf.mxu0
    %v2454 = vadd.f32 %v2405, %v2453
    %v2455 = vpop.f32.mrf.mxu0
    %v2456 = vadd.f32 %v2407, %v2455
    %2457 = vmatmul.bf16.gmra.mxu0 %v2234
    %v2458 = vpop.f32.mrf.mxu0
    %v2459 = vadd.f32 %v2410, %v2458
    %v2460 = vpop.f32.mrf.mxu0
    %v2461 = vadd.f32 %v2412, %v2460
    %2462 = vdwg.mxu0
    %v2463 = vpack.c.bf16 %v2426, %v2424
    %v2464 = vpack.c.bf16 %v2431, %v2429
    %v2465 = vpack.c.bf16 %v2436, %v2434
    %v2466 = vpack.c.bf16 %v2441, %v2439
    %v2467 = vpack.c.bf16 %v2446, %v2444
    %v2468 = vpack.c.bf16 %v2451, %v2449
    %v2469 = vpack.c.bf16 %v2456, %v2454
    %v2470 = vpack.c.bf16 %v2461, %v2459
    %s2471 = scalar_lea.vmem [#allocation7], 192
    %v2472 = vld [vmem:[%s2471] sm:$0xf]
    %v2473 = vld [vmem:[%s2471 + $0x4] sm:$0xf]
    %v2474 = vld [vmem:[%s2471 + $0x8] sm:$0xf]
    %v2475 = vld [vmem:[%s2471 + $0xc] sm:$0xf]
    %v2476 = vld [vmem:[%s2471 + $0x10] sm:$0xf]
    %v2477 = vld [vmem:[%s2471 + $0x14] sm:$0xf]
    %v2478 = vld [vmem:[%s2471 + $0x18] sm:$0xf]
    %v2479 = vld [vmem:[%s2471 + $0x1c] sm:$0xf]
    %v2480 = vld [vmem:[%s2471 + $0x20] sm:$0xf]
    %v2481 = vld [vmem:[%s2471 + $0x24] sm:$0xf]
    %v2482 = vld [vmem:[%s2471 + $0x28] sm:$0xf]
    %v2483 = vld [vmem:[%s2471 + $0x2c] sm:$0xf]
    %v2484 = vld [vmem:[%s2471 + $0x30] sm:$0xf]
    %v2485 = vld [vmem:[%s2471 + $0x34] sm:$0xf]
    %v2486 = vld [vmem:[%s2471 + $0x38] sm:$0xf]
    %v2487 = vld [vmem:[%s2471 + $0x3c] sm:$0xf]
    %v2504 = vunpack.c.l.b16 %v2472
    %v2505 = vunpack.c.l.b16 %v2473
    %v2506 = vunpack.c.l.b16 %v2474
    %v2507 = vunpack.c.l.b16 %v2475
    %v2508 = vunpack.c.l.b16 %v2476
    %v2509 = vunpack.c.l.b16 %v2477
    %v2510 = vunpack.c.l.b16 %v2478
    %v2511 = vunpack.c.l.b16 %v2479
    %v2512 = vunpack.c.l.b16 %v2480
    %v2513 = vunpack.c.l.b16 %v2481
    %v2514 = vunpack.c.l.b16 %v2482
    %v2515 = vunpack.c.l.b16 %v2483
    %v2516 = vunpack.c.l.b16 %v2484
    %v2517 = vunpack.c.l.b16 %v2485
    %v2518 = vunpack.c.l.b16 %v2486
    %v2519 = vunpack.c.l.b16 %v2487
    %v2520 = vpack.c.b16 %v2505, %v2504
    %v2521 = vpack.c.b16 %v2507, %v2506
    %v2522 = vpack.c.b16 %v2509, %v2508
    %v2523 = vpack.c.b16 %v2511, %v2510
    %v2524 = vpack.c.b16 %v2513, %v2512
    %v2525 = vpack.c.b16 %v2515, %v2514
    %v2526 = vpack.c.b16 %v2517, %v2516
    %v2527 = vpack.c.b16 %v2519, %v2518
    %2536 = vmatpush.bf16.msra.mxu0 %v2527
    %2537 = vmatpush.bf16.msra.mxu0 %v2526
    %2538 = vmatpush.bf16.msra.mxu0 %v2525
    %2539 = vmatpush.bf16.msra.mxu0 %v2524
    %2540 = vmatpush.bf16.msra.mxu0 %v2523
    %2541 = vmatpush.bf16.msra.mxu0 %v2522
    %2542 = vmatpush.bf16.msra.mxu0 %v2521
    %2543 = vmatpush.bf16.msra.mxu0 %v2520
    %2544 = vmatmul.bf16.gmra.mxu0 %v2463
    %v2545 = vpop.f32.mrf.mxu0
    %v2546 = vadd.f32 0.0, %v2545
    %v2547 = vpop.f32.mrf.mxu0
    %v2548 = vadd.f32 0.0, %v2547
    %2549 = vmatmul.bf16.gmra.mxu0 %v2464
    %v2550 = vpop.f32.mrf.mxu0
    %v2551 = vadd.f32 0.0, %v2550
    %v2552 = vpop.f32.mrf.mxu0
    %v2553 = vadd.f32 0.0, %v2552
    %2554 = vmatmul.bf16.gmra.mxu0 %v2465
    %v2555 = vpop.f32.mrf.mxu0
    %v2556 = vadd.f32 0.0, %v2555
    %v2557 = vpop.f32.mrf.mxu0
    %v2558 = vadd.f32 0.0, %v2557
    %2559 = vmatmul.bf16.gmra.mxu0 %v2466
    %v2560 = vpop.f32.mrf.mxu0
    %v2561 = vadd.f32 0.0, %v2560
    %v2562 = vpop.f32.mrf.mxu0
    %v2563 = vadd.f32 0.0, %v2562
    %2564 = vmatmul.bf16.gmra.mxu0 %v2467
    %v2565 = vpop.f32.mrf.mxu0
    %v2566 = vadd.f32 0.0, %v2565
    %v2567 = vpop.f32.mrf.mxu0
    %v2568 = vadd.f32 0.0, %v2567
    %2569 = vmatmul.bf16.gmra.mxu0 %v2468
    %v2570 = vpop.f32.mrf.mxu0
    %v2571 = vadd.f32 0.0, %v2570
    %v2572 = vpop.f32.mrf.mxu0
    %v2573 = vadd.f32 0.0, %v2572
    %2574 = vmatmul.bf16.gmra.mxu0 %v2469
    %v2575 = vpop.f32.mrf.mxu0
    %v2576 = vadd.f32 0.0, %v2575
    %v2577 = vpop.f32.mrf.mxu0
    %v2578 = vadd.f32 0.0, %v2577
    %2579 = vmatmul.bf16.gmra.mxu0 %v2470
    %v2580 = vpop.f32.mrf.mxu0
    %v2581 = vadd.f32 0.0, %v2580
    %v2582 = vpop.f32.mrf.mxu0
    %v2583 = vadd.f32 0.0, %v2582
    %2584 = vdwg.mxu0
    %v2585 = vadd.f32 %v2058, %v2546
    %v2586 = vadd.f32 %v2059, %v2548
    %v2587 = vadd.f32 %v2060, %v2551
    %v2588 = vadd.f32 %v2061, %v2553
    %v2589 = vadd.f32 %v2062, %v2556
    %v2590 = vadd.f32 %v2063, %v2558
    %v2591 = vadd.f32 %v2064, %v2561
    %v2592 = vadd.f32 %v2065, %v2563
    %v2593 = vadd.f32 %v2066, %v2566
    %v2594 = vadd.f32 %v2067, %v2568
    %v2595 = vadd.f32 %v2068, %v2571
    %v2596 = vadd.f32 %v2069, %v2573
    %v2597 = vadd.f32 %v2070, %v2576
    %v2598 = vadd.f32 %v2071, %v2578
    %v2599 = vadd.f32 %v2072, %v2581
    %v2600 = vadd.f32 %v2073, %v2583
    %s2601 = scalar_lea.vmem [#allocation5], 1024
    %v2602 = vld [vmem:[%s2601] sm:$0xff]
    %v2603 = vld [vmem:[%s2601 + $0x8] sm:$0xff]
    %v2604 = vld [vmem:[%s2601 + $0x10] sm:$0xff]
    %v2605 = vld [vmem:[%s2601 + $0x18] sm:$0xff]
    %v2606 = vld [vmem:[%s2601 + $0x20] sm:$0xff]
    %v2607 = vld [vmem:[%s2601 + $0x28] sm:$0xff]
    %v2608 = vld [vmem:[%s2601 + $0x30] sm:$0xff]
    %v2609 = vld [vmem:[%s2601 + $0x38] sm:$0xff]
    %v2610 = vld [vmem:[%s2601 + $0x40] sm:$0xff]
    %v2611 = vld [vmem:[%s2601 + $0x48] sm:$0xff]
    %v2612 = vld [vmem:[%s2601 + $0x50] sm:$0xff]
    %v2613 = vld [vmem:[%s2601 + $0x58] sm:$0xff]
    %v2614 = vld [vmem:[%s2601 + $0x60] sm:$0xff]
    %v2615 = vld [vmem:[%s2601 + $0x68] sm:$0xff]
    %v2616 = vld [vmem:[%s2601 + $0x70] sm:$0xff]
    %v2617 = vld [vmem:[%s2601 + $0x78] sm:$0xff]
    %v2618 = vld [vmem:[%s2601 + $0x80] sm:$0xff]
    %v2619 = vld [vmem:[%s2601 + $0x88] sm:$0xff]
    %v2620 = vld [vmem:[%s2601 + $0x90] sm:$0xff]
    %v2621 = vld [vmem:[%s2601 + $0x98] sm:$0xff]
    %v2622 = vld [vmem:[%s2601 + $0xa0] sm:$0xff]
    %v2623 = vld [vmem:[%s2601 + $0xa8] sm:$0xff]
    %v2624 = vld [vmem:[%s2601 + $0xb0] sm:$0xff]
    %v2625 = vld [vmem:[%s2601 + $0xb8] sm:$0xff]
    %v2626 = vld [vmem:[%s2601 + $0xc0] sm:$0xff]
    %v2627 = vld [vmem:[%s2601 + $0xc8] sm:$0xff]
    %v2628 = vld [vmem:[%s2601 + $0xd0] sm:$0xff]
    %v2629 = vld [vmem:[%s2601 + $0xd8] sm:$0xff]
    %v2630 = vld [vmem:[%s2601 + $0xe0] sm:$0xff]
    %v2631 = vld [vmem:[%s2601 + $0xe8] sm:$0xff]
    %v2632 = vld [vmem:[%s2601 + $0xf0] sm:$0xff]
    %v2633 = vld [vmem:[%s2601 + $0xf8] sm:$0xff]
    %v2666 = vunpack.c.l.b16 %v2602
    %v2667 = vunpack.c.h.b16 %v2602
    %v2668 = vunpack.c.l.b16 %v2603
    %v2669 = vunpack.c.h.b16 %v2603
    %v2670 = vunpack.c.l.b16 %v2604
    %v2671 = vunpack.c.h.b16 %v2604
    %v2672 = vunpack.c.l.b16 %v2605
    %v2673 = vunpack.c.h.b16 %v2605
    %v2674 = vunpack.c.l.b16 %v2606
    %v2675 = vunpack.c.h.b16 %v2606
    %v2676 = vunpack.c.l.b16 %v2607
    %v2677 = vunpack.c.h.b16 %v2607
    %v2678 = vunpack.c.l.b16 %v2608
    %v2679 = vunpack.c.h.b16 %v2608
    %v2680 = vunpack.c.l.b16 %v2609
    %v2681 = vunpack.c.h.b16 %v2609
    %v2682 = vunpack.c.l.b16 %v2610
    %v2683 = vunpack.c.h.b16 %v2610
    %v2684 = vunpack.c.l.b16 %v2611
    %v2685 = vunpack.c.h.b16 %v2611
    %v2686 = vunpack.c.l.b16 %v2612
    %v2687 = vunpack.c.h.b16 %v2612
    %v2688 = vunpack.c.l.b16 %v2613
    %v2689 = vunpack.c.h.b16 %v2613
    %v2690 = vunpack.c.l.b16 %v2614
    %v2691 = vunpack.c.h.b16 %v2614
    %v2692 = vunpack.c.l.b16 %v2615
    %v2693 = vunpack.c.h.b16 %v2615
    %v2694 = vunpack.c.l.b16 %v2616
    %v2695 = vunpack.c.h.b16 %v2616
    %v2696 = vunpack.c.l.b16 %v2617
    %v2697 = vunpack.c.h.b16 %v2617
    %v2698 = vunpack.c.l.b16 %v2618
    %v2699 = vunpack.c.h.b16 %v2618
    %v2700 = vunpack.c.l.b16 %v2619
    %v2701 = vunpack.c.h.b16 %v2619
    %v2702 = vunpack.c.l.b16 %v2620
    %v2703 = vunpack.c.h.b16 %v2620
    %v2704 = vunpack.c.l.b16 %v2621
    %v2705 = vunpack.c.h.b16 %v2621
    %v2706 = vunpack.c.l.b16 %v2622
    %v2707 = vunpack.c.h.b16 %v2622
    %v2708 = vunpack.c.l.b16 %v2623
    %v2709 = vunpack.c.h.b16 %v2623
    %v2710 = vunpack.c.l.b16 %v2624
    %v2711 = vunpack.c.h.b16 %v2624
    %v2712 = vunpack.c.l.b16 %v2625
    %v2713 = vunpack.c.h.b16 %v2625
    %v2714 = vunpack.c.l.b16 %v2626
    %v2715 = vunpack.c.h.b16 %v2626
    %v2716 = vunpack.c.l.b16 %v2627
    %v2717 = vunpack.c.h.b16 %v2627
    %v2718 = vunpack.c.l.b16 %v2628
    %v2719 = vunpack.c.h.b16 %v2628
    %v2720 = vunpack.c.l.b16 %v2629
    %v2721 = vunpack.c.h.b16 %v2629
    %v2722 = vunpack.c.l.b16 %v2630
    %v2723 = vunpack.c.h.b16 %v2630
    %v2724 = vunpack.c.l.b16 %v2631
    %v2725 = vunpack.c.h.b16 %v2631
    %v2726 = vunpack.c.l.b16 %v2632
    %v2727 = vunpack.c.h.b16 %v2632
    %v2728 = vunpack.c.l.b16 %v2633
    %v2729 = vunpack.c.h.b16 %v2633
    %v2730 = vpack.c.b16 %v2670, %v2666
    %v2731 = vpack.c.b16 %v2671, %v2667
    %v2732 = vpack.c.b16 %v2672, %v2668
    %v2733 = vpack.c.b16 %v2673, %v2669
    %v2734 = vpack.c.b16 %v2678, %v2674
    %v2735 = vpack.c.b16 %v2679, %v2675
    %v2736 = vpack.c.b16 %v2680, %v2676
    %v2737 = vpack.c.b16 %v2681, %v2677
    %v2738 = vpack.c.b16 %v2686, %v2682
    %v2739 = vpack.c.b16 %v2687, %v2683
    %v2740 = vpack.c.b16 %v2688, %v2684
    %v2741 = vpack.c.b16 %v2689, %v2685
    %v2742 = vpack.c.b16 %v2694, %v2690
    %v2743 = vpack.c.b16 %v2695, %v2691
    %v2744 = vpack.c.b16 %v2696, %v2692
    %v2745 = vpack.c.b16 %v2697, %v2693
    %v2746 = vpack.c.b16 %v2702, %v2698
    %v2747 = vpack.c.b16 %v2703, %v2699
    %v2748 = vpack.c.b16 %v2704, %v2700
    %v2749 = vpack.c.b16 %v2705, %v2701
    %v2750 = vpack.c.b16 %v2710, %v2706
    %v2751 = vpack.c.b16 %v2711, %v2707
    %v2752 = vpack.c.b16 %v2712, %v2708
    %v2753 = vpack.c.b16 %v2713, %v2709
    %v2754 = vpack.c.b16 %v2718, %v2714
    %v2755 = vpack.c.b16 %v2719, %v2715
    %v2756 = vpack.c.b16 %v2720, %v2716
    %v2757 = vpack.c.b16 %v2721, %v2717
    %v2758 = vpack.c.b16 %v2726, %v2722
    %v2759 = vpack.c.b16 %v2727, %v2723
    %v2760 = vpack.c.b16 %v2728, %v2724
    %v2761 = vpack.c.b16 %v2729, %v2725
    %2794 = vmatpush.bf16.msra.mxu0 %v662
    %2795 = vmatpush.bf16.msra.mxu0 %v661
    %2796 = vmatpush.bf16.msra.mxu0 %v660
    %2797 = vmatpush.bf16.msra.mxu0 %v659
    %2798 = vmatpush.bf16.msra.mxu0 %v658
    %2799 = vmatpush.bf16.msra.mxu0 %v657
    %2800 = vmatpush.bf16.msra.mxu0 %v656
    %2801 = vmatpush.bf16.msra.mxu0 %v655
    %2802 = vmatmul.bf16.gmra.mxu0 %v2730
    %v2803 = vpop.f32.mrf.mxu0
    %v2804 = vadd.f32 0.0, %v2803
    %v2805 = vpop.f32.mrf.mxu0
    %v2806 = vadd.f32 0.0, %v2805
    %2807 = vmatmul.bf16.gmra.mxu0 %v2734
    %v2808 = vpop.f32.mrf.mxu0
    %v2809 = vadd.f32 0.0, %v2808
    %v2810 = vpop.f32.mrf.mxu0
    %v2811 = vadd.f32 0.0, %v2810
    %2812 = vmatmul.bf16.gmra.mxu0 %v2738
    %v2813 = vpop.f32.mrf.mxu0
    %v2814 = vadd.f32 0.0, %v2813
    %v2815 = vpop.f32.mrf.mxu0
    %v2816 = vadd.f32 0.0, %v2815
    %2817 = vmatmul.bf16.gmra.mxu0 %v2742
    %v2818 = vpop.f32.mrf.mxu0
    %v2819 = vadd.f32 0.0, %v2818
    %v2820 = vpop.f32.mrf.mxu0
    %v2821 = vadd.f32 0.0, %v2820
    %2822 = vmatmul.bf16.gmra.mxu0 %v2746
    %v2823 = vpop.f32.mrf.mxu0
    %v2824 = vadd.f32 0.0, %v2823
    %v2825 = vpop.f32.mrf.mxu0
    %v2826 = vadd.f32 0.0, %v2825
    %2827 = vmatmul.bf16.gmra.mxu0 %v2750
    %v2828 = vpop.f32.mrf.mxu0
    %v2829 = vadd.f32 0.0, %v2828
    %v2830 = vpop.f32.mrf.mxu0
    %v2831 = vadd.f32 0.0, %v2830
    %2832 = vmatmul.bf16.gmra.mxu0 %v2754
    %v2833 = vpop.f32.mrf.mxu0
    %v2834 = vadd.f32 0.0, %v2833
    %v2835 = vpop.f32.mrf.mxu0
    %v2836 = vadd.f32 0.0, %v2835
    %2837 = vmatmul.bf16.gmra.mxu0 %v2758
    %v2838 = vpop.f32.mrf.mxu0
    %v2839 = vadd.f32 0.0, %v2838
    %v2840 = vpop.f32.mrf.mxu0
    %v2841 = vadd.f32 0.0, %v2840
    %2842 = vdwg.mxu0
    %2843 = vmatpush.bf16.msra.mxu0 %v670
    %2844 = vmatpush.bf16.msra.mxu0 %v669
    %2845 = vmatpush.bf16.msra.mxu0 %v668
    %2846 = vmatpush.bf16.msra.mxu0 %v667
    %2847 = vmatpush.bf16.msra.mxu0 %v666
    %2848 = vmatpush.bf16.msra.mxu0 %v665
    %2849 = vmatpush.bf16.msra.mxu0 %v664
    %2850 = vmatpush.bf16.msra.mxu0 %v663
    %2851 = vmatmul.bf16.gmra.mxu0 %v2731
    %v2852 = vpop.f32.mrf.mxu0
    %v2853 = vadd.f32 %v2804, %v2852
    %v2854 = vpop.f32.mrf.mxu0
    %v2855 = vadd.f32 %v2806, %v2854
    %2856 = vmatmul.bf16.gmra.mxu0 %v2735
    %v2857 = vpop.f32.mrf.mxu0
    %v2858 = vadd.f32 %v2809, %v2857
    %v2859 = vpop.f32.mrf.mxu0
    %v2860 = vadd.f32 %v2811, %v2859
    %2861 = vmatmul.bf16.gmra.mxu0 %v2739
    %v2862 = vpop.f32.mrf.mxu0
    %v2863 = vadd.f32 %v2814, %v2862
    %v2864 = vpop.f32.mrf.mxu0
    %v2865 = vadd.f32 %v2816, %v2864
    %2866 = vmatmul.bf16.gmra.mxu0 %v2743
    %v2867 = vpop.f32.mrf.mxu0
    %v2868 = vadd.f32 %v2819, %v2867
    %v2869 = vpop.f32.mrf.mxu0
    %v2870 = vadd.f32 %v2821, %v2869
    %2871 = vmatmul.bf16.gmra.mxu0 %v2747
    %v2872 = vpop.f32.mrf.mxu0
    %v2873 = vadd.f32 %v2824, %v2872
    %v2874 = vpop.f32.mrf.mxu0
    %v2875 = vadd.f32 %v2826, %v2874
    %2876 = vmatmul.bf16.gmra.mxu0 %v2751
    %v2877 = vpop.f32.mrf.mxu0
    %v2878 = vadd.f32 %v2829, %v2877
    %v2879 = vpop.f32.mrf.mxu0
    %v2880 = vadd.f32 %v2831, %v2879
    %2881 = vmatmul.bf16.gmra.mxu0 %v2755
    %v2882 = vpop.f32.mrf.mxu0
    %v2883 = vadd.f32 %v2834, %v2882
    %v2884 = vpop.f32.mrf.mxu0
    %v2885 = vadd.f32 %v2836, %v2884
    %2886 = vmatmul.bf16.gmra.mxu0 %v2759
    %v2887 = vpop.f32.mrf.mxu0
    %v2888 = vadd.f32 %v2839, %v2887
    %v2889 = vpop.f32.mrf.mxu0
    %v2890 = vadd.f32 %v2841, %v2889
    %2891 = vdwg.mxu0
    %2892 = vmatpush.bf16.msra.mxu0 %v678
    %2893 = vmatpush.bf16.msra.mxu0 %v677
    %2894 = vmatpush.bf16.msra.mxu0 %v676
    %2895 = vmatpush.bf16.msra.mxu0 %v675
    %2896 = vmatpush.bf16.msra.mxu0 %v674
    %2897 = vmatpush.bf16.msra.mxu0 %v673
    %2898 = vmatpush.bf16.msra.mxu0 %v672
    %2899 = vmatpush.bf16.msra.mxu0 %v671
    %2900 = vmatmul.bf16.gmra.mxu0 %v2732
    %v2901 = vpop.f32.mrf.mxu0
    %v2902 = vadd.f32 %v2853, %v2901
    %v2903 = vpop.f32.mrf.mxu0
    %v2904 = vadd.f32 %v2855, %v2903
    %2905 = vmatmul.bf16.gmra.mxu0 %v2736
    %v2906 = vpop.f32.mrf.mxu0
    %v2907 = vadd.f32 %v2858, %v2906
    %v2908 = vpop.f32.mrf.mxu0
    %v2909 = vadd.f32 %v2860, %v2908
    %2910 = vmatmul.bf16.gmra.mxu0 %v2740
    %v2911 = vpop.f32.mrf.mxu0
    %v2912 = vadd.f32 %v2863, %v2911
    %v2913 = vpop.f32.mrf.mxu0
    %v2914 = vadd.f32 %v2865, %v2913
    %2915 = vmatmul.bf16.gmra.mxu0 %v2744
    %v2916 = vpop.f32.mrf.mxu0
    %v2917 = vadd.f32 %v2868, %v2916
    %v2918 = vpop.f32.mrf.mxu0
    %v2919 = vadd.f32 %v2870, %v2918
    %2920 = vmatmul.bf16.gmra.mxu0 %v2748
    %v2921 = vpop.f32.mrf.mxu0
    %v2922 = vadd.f32 %v2873, %v2921
    %v2923 = vpop.f32.mrf.mxu0
    %v2924 = vadd.f32 %v2875, %v2923
    %2925 = vmatmul.bf16.gmra.mxu0 %v2752
    %v2926 = vpop.f32.mrf.mxu0
    %v2927 = vadd.f32 %v2878, %v2926
    %v2928 = vpop.f32.mrf.mxu0
    %v2929 = vadd.f32 %v2880, %v2928
    %2930 = vmatmul.bf16.gmra.mxu0 %v2756
    %v2931 = vpop.f32.mrf.mxu0
    %v2932 = vadd.f32 %v2883, %v2931
    %v2933 = vpop.f32.mrf.mxu0
    %v2934 = vadd.f32 %v2885, %v2933
    %2935 = vmatmul.bf16.gmra.mxu0 %v2760
    %v2936 = vpop.f32.mrf.mxu0
    %v2937 = vadd.f32 %v2888, %v2936
    %v2938 = vpop.f32.mrf.mxu0
    %v2939 = vadd.f32 %v2890, %v2938
    %2940 = vdwg.mxu0
    %2941 = vmatpush.bf16.msra.mxu0 %v686
    %2942 = vmatpush.bf16.msra.mxu0 %v685
    %2943 = vmatpush.bf16.msra.mxu0 %v684
    %2944 = vmatpush.bf16.msra.mxu0 %v683
    %2945 = vmatpush.bf16.msra.mxu0 %v682
    %2946 = vmatpush.bf16.msra.mxu0 %v681
    %2947 = vmatpush.bf16.msra.mxu0 %v680
    %2948 = vmatpush.bf16.msra.mxu0 %v679
    %2949 = vmatmul.bf16.gmra.mxu0 %v2733
    %v2950 = vpop.f32.mrf.mxu0
    %v2951 = vadd.f32 %v2902, %v2950
    %v2952 = vpop.f32.mrf.mxu0
    %v2953 = vadd.f32 %v2904, %v2952
    %2954 = vmatmul.bf16.gmra.mxu0 %v2737
    %v2955 = vpop.f32.mrf.mxu0
    %v2956 = vadd.f32 %v2907, %v2955
    %v2957 = vpop.f32.mrf.mxu0
    %v2958 = vadd.f32 %v2909, %v2957
    %2959 = vmatmul.bf16.gmra.mxu0 %v2741
    %v2960 = vpop.f32.mrf.mxu0
    %v2961 = vadd.f32 %v2912, %v2960
    %v2962 = vpop.f32.mrf.mxu0
    %v2963 = vadd.f32 %v2914, %v2962
    %2964 = vmatmul.bf16.gmra.mxu0 %v2745
    %v2965 = vpop.f32.mrf.mxu0
    %v2966 = vadd.f32 %v2917, %v2965
    %v2967 = vpop.f32.mrf.mxu0
    %v2968 = vadd.f32 %v2919, %v2967
    %2969 = vmatmul.bf16.gmra.mxu0 %v2749
    %v2970 = vpop.f32.mrf.mxu0
    %v2971 = vadd.f32 %v2922, %v2970
    %v2972 = vpop.f32.mrf.mxu0
    %v2973 = vadd.f32 %v2924, %v2972
    %2974 = vmatmul.bf16.gmra.mxu0 %v2753
    %v2975 = vpop.f32.mrf.mxu0
    %v2976 = vadd.f32 %v2927, %v2975
    %v2977 = vpop.f32.mrf.mxu0
    %v2978 = vadd.f32 %v2929, %v2977
    %2979 = vmatmul.bf16.gmra.mxu0 %v2757
    %v2980 = vpop.f32.mrf.mxu0
    %v2981 = vadd.f32 %v2932, %v2980
    %v2982 = vpop.f32.mrf.mxu0
    %v2983 = vadd.f32 %v2934, %v2982
    %2984 = vmatmul.bf16.gmra.mxu0 %v2761
    %v2985 = vpop.f32.mrf.mxu0
    %v2986 = vadd.f32 %v2937, %v2985
    %v2987 = vpop.f32.mrf.mxu0
    %v2988 = vadd.f32 %v2939, %v2987
    %2989 = vdwg.mxu0
    %v2990 = vpack.c.bf16 %v2953, %v2951
    %v2991 = vpack.c.bf16 %v2958, %v2956
    %v2992 = vpack.c.bf16 %v2963, %v2961
    %v2993 = vpack.c.bf16 %v2968, %v2966
    %v2994 = vpack.c.bf16 %v2973, %v2971
    %v2995 = vpack.c.bf16 %v2978, %v2976
    %v2996 = vpack.c.bf16 %v2983, %v2981
    %v2997 = vpack.c.bf16 %v2988, %v2986
    %s2998 = scalar_lea.vmem [#allocation7], 256
    %v2999 = vld [vmem:[%s2998] sm:$0xf]
    %v3000 = vld [vmem:[%s2998 + $0x4] sm:$0xf]
    %v3001 = vld [vmem:[%s2998 + $0x8] sm:$0xf]
    %v3002 = vld [vmem:[%s2998 + $0xc] sm:$0xf]
    %v3003 = vld [vmem:[%s2998 + $0x10] sm:$0xf]
    %v3004 = vld [vmem:[%s2998 + $0x14] sm:$0xf]
    %v3005 = vld [vmem:[%s2998 + $0x18] sm:$0xf]
    %v3006 = vld [vmem:[%s2998 + $0x1c] sm:$0xf]
    %v3007 = vld [vmem:[%s2998 + $0x20] sm:$0xf]
    %v3008 = vld [vmem:[%s2998 + $0x24] sm:$0xf]
    %v3009 = vld [vmem:[%s2998 + $0x28] sm:$0xf]
    %v3010 = vld [vmem:[%s2998 + $0x2c] sm:$0xf]
    %v3011 = vld [vmem:[%s2998 + $0x30] sm:$0xf]
    %v3012 = vld [vmem:[%s2998 + $0x34] sm:$0xf]
    %v3013 = vld [vmem:[%s2998 + $0x38] sm:$0xf]
    %v3014 = vld [vmem:[%s2998 + $0x3c] sm:$0xf]
    %v3031 = vunpack.c.l.b16 %v2999
    %v3032 = vunpack.c.l.b16 %v3000
    %v3033 = vunpack.c.l.b16 %v3001
    %v3034 = vunpack.c.l.b16 %v3002
    %v3035 = vunpack.c.l.b16 %v3003
    %v3036 = vunpack.c.l.b16 %v3004
    %v3037 = vunpack.c.l.b16 %v3005
    %v3038 = vunpack.c.l.b16 %v3006
    %v3039 = vunpack.c.l.b16 %v3007
    %v3040 = vunpack.c.l.b16 %v3008
    %v3041 = vunpack.c.l.b16 %v3009
    %v3042 = vunpack.c.l.b16 %v3010
    %v3043 = vunpack.c.l.b16 %v3011
    %v3044 = vunpack.c.l.b16 %v3012
    %v3045 = vunpack.c.l.b16 %v3013
    %v3046 = vunpack.c.l.b16 %v3014
    %v3047 = vpack.c.b16 %v3032, %v3031
    %v3048 = vpack.c.b16 %v3034, %v3033
    %v3049 = vpack.c.b16 %v3036, %v3035
    %v3050 = vpack.c.b16 %v3038, %v3037
    %v3051 = vpack.c.b16 %v3040, %v3039
    %v3052 = vpack.c.b16 %v3042, %v3041
    %v3053 = vpack.c.b16 %v3044, %v3043
    %v3054 = vpack.c.b16 %v3046, %v3045
    %3063 = vmatpush.bf16.msra.mxu0 %v3054
    %3064 = vmatpush.bf16.msra.mxu0 %v3053
    %3065 = vmatpush.bf16.msra.mxu0 %v3052
    %3066 = vmatpush.bf16.msra.mxu0 %v3051
    %3067 = vmatpush.bf16.msra.mxu0 %v3050
    %3068 = vmatpush.bf16.msra.mxu0 %v3049
    %3069 = vmatpush.bf16.msra.mxu0 %v3048
    %3070 = vmatpush.bf16.msra.mxu0 %v3047
    %3071 = vmatmul.bf16.gmra.mxu0 %v2990
    %v3072 = vpop.f32.mrf.mxu0
    %v3073 = vadd.f32 0.0, %v3072
    %v3074 = vpop.f32.mrf.mxu0
    %v3075 = vadd.f32 0.0, %v3074
    %3076 = vmatmul.bf16.gmra.mxu0 %v2991
    %v3077 = vpop.f32.mrf.mxu0
    %v3078 = vadd.f32 0.0, %v3077
    %v3079 = vpop.f32.mrf.mxu0
    %v3080 = vadd.f32 0.0, %v3079
    %3081 = vmatmul.bf16.gmra.mxu0 %v2992
    %v3082 = vpop.f32.mrf.mxu0
    %v3083 = vadd.f32 0.0, %v3082
    %v3084 = vpop.f32.mrf.mxu0
    %v3085 = vadd.f32 0.0, %v3084
    %3086 = vmatmul.bf16.gmra.mxu0 %v2993
    %v3087 = vpop.f32.mrf.mxu0
    %v3088 = vadd.f32 0.0, %v3087
    %v3089 = vpop.f32.mrf.mxu0
    %v3090 = vadd.f32 0.0, %v3089
    %3091 = vmatmul.bf16.gmra.mxu0 %v2994
    %v3092 = vpop.f32.mrf.mxu0
    %v3093 = vadd.f32 0.0, %v3092
    %v3094 = vpop.f32.mrf.mxu0
    %v3095 = vadd.f32 0.0, %v3094
    %3096 = vmatmul.bf16.gmra.mxu0 %v2995
    %v3097 = vpop.f32.mrf.mxu0
    %v3098 = vadd.f32 0.0, %v3097
    %v3099 = vpop.f32.mrf.mxu0
    %v3100 = vadd.f32 0.0, %v3099
    %3101 = vmatmul.bf16.gmra.mxu0 %v2996
    %v3102 = vpop.f32.mrf.mxu0
    %v3103 = vadd.f32 0.0, %v3102
    %v3104 = vpop.f32.mrf.mxu0
    %v3105 = vadd.f32 0.0, %v3104
    %3106 = vmatmul.bf16.gmra.mxu0 %v2997
    %v3107 = vpop.f32.mrf.mxu0
    %v3108 = vadd.f32 0.0, %v3107
    %v3109 = vpop.f32.mrf.mxu0
    %v3110 = vadd.f32 0.0, %v3109
    %3111 = vdwg.mxu0
    %v3112 = vadd.f32 %v2585, %v3073
    %v3113 = vadd.f32 %v2586, %v3075
    %v3114 = vadd.f32 %v2587, %v3078
    %v3115 = vadd.f32 %v2588, %v3080
    %v3116 = vadd.f32 %v2589, %v3083
    %v3117 = vadd.f32 %v2590, %v3085
    %v3118 = vadd.f32 %v2591, %v3088
    %v3119 = vadd.f32 %v2592, %v3090
    %v3120 = vadd.f32 %v2593, %v3093
    %v3121 = vadd.f32 %v2594, %v3095
    %v3122 = vadd.f32 %v2595, %v3098
    %v3123 = vadd.f32 %v2596, %v3100
    %v3124 = vadd.f32 %v2597, %v3103
    %v3125 = vadd.f32 %v2598, %v3105
    %v3126 = vadd.f32 %v2599, %v3108
    %v3127 = vadd.f32 %v2600, %v3110
    %s3128 = scalar_lea.vmem [#allocation5], 1280
    %v3129 = vld [vmem:[%s3128] sm:$0xff]
    %v3130 = vld [vmem:[%s3128 + $0x8] sm:$0xff]
    %v3131 = vld [vmem:[%s3128 + $0x10] sm:$0xff]
    %v3132 = vld [vmem:[%s3128 + $0x18] sm:$0xff]
    %v3133 = vld [vmem:[%s3128 + $0x20] sm:$0xff]
    %v3134 = vld [vmem:[%s3128 + $0x28] sm:$0xff]
    %v3135 = vld [vmem:[%s3128 + $0x30] sm:$0xff]
    %v3136 = vld [vmem:[%s3128 + $0x38] sm:$0xff]
    %v3137 = vld [vmem:[%s3128 + $0x40] sm:$0xff]
    %v3138 = vld [vmem:[%s3128 + $0x48] sm:$0xff]
    %v3139 = vld [vmem:[%s3128 + $0x50] sm:$0xff]
    %v3140 = vld [vmem:[%s3128 + $0x58] sm:$0xff]
    %v3141 = vld [vmem:[%s3128 + $0x60] sm:$0xff]
    %v3142 = vld [vmem:[%s3128 + $0x68] sm:$0xff]
    %v3143 = vld [vmem:[%s3128 + $0x70] sm:$0xff]
    %v3144 = vld [vmem:[%s3128 + $0x78] sm:$0xff]
    %v3145 = vld [vmem:[%s3128 + $0x80] sm:$0xff]
    %v3146 = vld [vmem:[%s3128 + $0x88] sm:$0xff]
    %v3147 = vld [vmem:[%s3128 + $0x90] sm:$0xff]
    %v3148 = vld [vmem:[%s3128 + $0x98] sm:$0xff]
    %v3149 = vld [vmem:[%s3128 + $0xa0] sm:$0xff]
    %v3150 = vld [vmem:[%s3128 + $0xa8] sm:$0xff]
    %v3151 = vld [vmem:[%s3128 + $0xb0] sm:$0xff]
    %v3152 = vld [vmem:[%s3128 + $0xb8] sm:$0xff]
    %v3153 = vld [vmem:[%s3128 + $0xc0] sm:$0xff]
    %v3154 = vld [vmem:[%s3128 + $0xc8] sm:$0xff]
    %v3155 = vld [vmem:[%s3128 + $0xd0] sm:$0xff]
    %v3156 = vld [vmem:[%s3128 + $0xd8] sm:$0xff]
    %v3157 = vld [vmem:[%s3128 + $0xe0] sm:$0xff]
    %v3158 = vld [vmem:[%s3128 + $0xe8] sm:$0xff]
    %v3159 = vld [vmem:[%s3128 + $0xf0] sm:$0xff]
    %v3160 = vld [vmem:[%s3128 + $0xf8] sm:$0xff]
    %v3193 = vunpack.c.l.b16 %v3129
    %v3194 = vunpack.c.h.b16 %v3129
    %v3195 = vunpack.c.l.b16 %v3130
    %v3196 = vunpack.c.h.b16 %v3130
    %v3197 = vunpack.c.l.b16 %v3131
    %v3198 = vunpack.c.h.b16 %v3131
    %v3199 = vunpack.c.l.b16 %v3132
    %v3200 = vunpack.c.h.b16 %v3132
    %v3201 = vunpack.c.l.b16 %v3133
    %v3202 = vunpack.c.h.b16 %v3133
    %v3203 = vunpack.c.l.b16 %v3134
    %v3204 = vunpack.c.h.b16 %v3134
    %v3205 = vunpack.c.l.b16 %v3135
    %v3206 = vunpack.c.h.b16 %v3135
    %v3207 = vunpack.c.l.b16 %v3136
    %v3208 = vunpack.c.h.b16 %v3136
    %v3209 = vunpack.c.l.b16 %v3137
    %v3210 = vunpack.c.h.b16 %v3137
    %v3211 = vunpack.c.l.b16 %v3138
    %v3212 = vunpack.c.h.b16 %v3138
    %v3213 = vunpack.c.l.b16 %v3139
    %v3214 = vunpack.c.h.b16 %v3139
    %v3215 = vunpack.c.l.b16 %v3140
    %v3216 = vunpack.c.h.b16 %v3140
    %v3217 = vunpack.c.l.b16 %v3141
    %v3218 = vunpack.c.h.b16 %v3141
    %v3219 = vunpack.c.l.b16 %v3142
    %v3220 = vunpack.c.h.b16 %v3142
    %v3221 = vunpack.c.l.b16 %v3143
    %v3222 = vunpack.c.h.b16 %v3143
    %v3223 = vunpack.c.l.b16 %v3144
    %v3224 = vunpack.c.h.b16 %v3144
    %v3225 = vunpack.c.l.b16 %v3145
    %v3226 = vunpack.c.h.b16 %v3145
    %v3227 = vunpack.c.l.b16 %v3146
    %v3228 = vunpack.c.h.b16 %v3146
    %v3229 = vunpack.c.l.b16 %v3147
    %v3230 = vunpack.c.h.b16 %v3147
    %v3231 = vunpack.c.l.b16 %v3148
    %v3232 = vunpack.c.h.b16 %v3148
    %v3233 = vunpack.c.l.b16 %v3149
    %v3234 = vunpack.c.h.b16 %v3149
    %v3235 = vunpack.c.l.b16 %v3150
    %v3236 = vunpack.c.h.b16 %v3150
    %v3237 = vunpack.c.l.b16 %v3151
    %v3238 = vunpack.c.h.b16 %v3151
    %v3239 = vunpack.c.l.b16 %v3152
    %v3240 = vunpack.c.h.b16 %v3152
    %v3241 = vunpack.c.l.b16 %v3153
    %v3242 = vunpack.c.h.b16 %v3153
    %v3243 = vunpack.c.l.b16 %v3154
    %v3244 = vunpack.c.h.b16 %v3154
    %v3245 = vunpack.c.l.b16 %v3155
    %v3246 = vunpack.c.h.b16 %v3155
    %v3247 = vunpack.c.l.b16 %v3156
    %v3248 = vunpack.c.h.b16 %v3156
    %v3249 = vunpack.c.l.b16 %v3157
    %v3250 = vunpack.c.h.b16 %v3157
    %v3251 = vunpack.c.l.b16 %v3158
    %v3252 = vunpack.c.h.b16 %v3158
    %v3253 = vunpack.c.l.b16 %v3159
    %v3254 = vunpack.c.h.b16 %v3159
    %v3255 = vunpack.c.l.b16 %v3160
    %v3256 = vunpack.c.h.b16 %v3160
    %v3257 = vpack.c.b16 %v3197, %v3193
    %v3258 = vpack.c.b16 %v3198, %v3194
    %v3259 = vpack.c.b16 %v3199, %v3195
    %v3260 = vpack.c.b16 %v3200, %v3196
    %v3261 = vpack.c.b16 %v3205, %v3201
    %v3262 = vpack.c.b16 %v3206, %v3202
    %v3263 = vpack.c.b16 %v3207, %v3203
    %v3264 = vpack.c.b16 %v3208, %v3204
    %v3265 = vpack.c.b16 %v3213, %v3209
    %v3266 = vpack.c.b16 %v3214, %v3210
    %v3267 = vpack.c.b16 %v3215, %v3211
    %v3268 = vpack.c.b16 %v3216, %v3212
    %v3269 = vpack.c.b16 %v3221, %v3217
    %v3270 = vpack.c.b16 %v3222, %v3218
    %v3271 = vpack.c.b16 %v3223, %v3219
    %v3272 = vpack.c.b16 %v3224, %v3220
    %v3273 = vpack.c.b16 %v3229, %v3225
    %v3274 = vpack.c.b16 %v3230, %v3226
    %v3275 = vpack.c.b16 %v3231, %v3227
    %v3276 = vpack.c.b16 %v3232, %v3228
    %v3277 = vpack.c.b16 %v3237, %v3233
    %v3278 = vpack.c.b16 %v3238, %v3234
    %v3279 = vpack.c.b16 %v3239, %v3235
    %v3280 = vpack.c.b16 %v3240, %v3236
    %v3281 = vpack.c.b16 %v3245, %v3241
    %v3282 = vpack.c.b16 %v3246, %v3242
    %v3283 = vpack.c.b16 %v3247, %v3243
    %v3284 = vpack.c.b16 %v3248, %v3244
    %v3285 = vpack.c.b16 %v3253, %v3249
    %v3286 = vpack.c.b16 %v3254, %v3250
    %v3287 = vpack.c.b16 %v3255, %v3251
    %v3288 = vpack.c.b16 %v3256, %v3252
    %3321 = vmatpush.bf16.msra.mxu0 %v662
    %3322 = vmatpush.bf16.msra.mxu0 %v661
    %3323 = vmatpush.bf16.msra.mxu0 %v660
    %3324 = vmatpush.bf16.msra.mxu0 %v659
    %3325 = vmatpush.bf16.msra.mxu0 %v658
    %3326 = vmatpush.bf16.msra.mxu0 %v657
    %3327 = vmatpush.bf16.msra.mxu0 %v656
    %3328 = vmatpush.bf16.msra.mxu0 %v655
    %3329 = vmatmul.bf16.gmra.mxu0 %v3257
    %v3330 = vpop.f32.mrf.mxu0
    %v3331 = vadd.f32 0.0, %v3330
    %v3332 = vpop.f32.mrf.mxu0
    %v3333 = vadd.f32 0.0, %v3332
    %3334 = vmatmul.bf16.gmra.mxu0 %v3261
    %v3335 = vpop.f32.mrf.mxu0
    %v3336 = vadd.f32 0.0, %v3335
    %v3337 = vpop.f32.mrf.mxu0
    %v3338 = vadd.f32 0.0, %v3337
    %3339 = vmatmul.bf16.gmra.mxu0 %v3265
    %v3340 = vpop.f32.mrf.mxu0
    %v3341 = vadd.f32 0.0, %v3340
    %v3342 = vpop.f32.mrf.mxu0
    %v3343 = vadd.f32 0.0, %v3342
    %3344 = vmatmul.bf16.gmra.mxu0 %v3269
    %v3345 = vpop.f32.mrf.mxu0
    %v3346 = vadd.f32 0.0, %v3345
    %v3347 = vpop.f32.mrf.mxu0
    %v3348 = vadd.f32 0.0, %v3347
    %3349 = vmatmul.bf16.gmra.mxu0 %v3273
    %v3350 = vpop.f32.mrf.mxu0
    %v3351 = vadd.f32 0.0, %v3350
    %v3352 = vpop.f32.mrf.mxu0
    %v3353 = vadd.f32 0.0, %v3352
    %3354 = vmatmul.bf16.gmra.mxu0 %v3277
    %v3355 = vpop.f32.mrf.mxu0
    %v3356 = vadd.f32 0.0, %v3355
    %v3357 = vpop.f32.mrf.mxu0
    %v3358 = vadd.f32 0.0, %v3357
    %3359 = vmatmul.bf16.gmra.mxu0 %v3281
    %v3360 = vpop.f32.mrf.mxu0
    %v3361 = vadd.f32 0.0, %v3360
    %v3362 = vpop.f32.mrf.mxu0
    %v3363 = vadd.f32 0.0, %v3362
    %3364 = vmatmul.bf16.gmra.mxu0 %v3285
    %v3365 = vpop.f32.mrf.mxu0
    %v3366 = vadd.f32 0.0, %v3365
    %v3367 = vpop.f32.mrf.mxu0
    %v3368 = vadd.f32 0.0, %v3367
    %3369 = vdwg.mxu0
    %3370 = vmatpush.bf16.msra.mxu0 %v670
    %3371 = vmatpush.bf16.msra.mxu0 %v669
    %3372 = vmatpush.bf16.msra.mxu0 %v668
    %3373 = vmatpush.bf16.msra.mxu0 %v667
    %3374 = vmatpush.bf16.msra.mxu0 %v666
    %3375 = vmatpush.bf16.msra.mxu0 %v665
    %3376 = vmatpush.bf16.msra.mxu0 %v664
    %3377 = vmatpush.bf16.msra.mxu0 %v663
    %3378 = vmatmul.bf16.gmra.mxu0 %v3258
    %v3379 = vpop.f32.mrf.mxu0
    %v3380 = vadd.f32 %v3331, %v3379
    %v3381 = vpop.f32.mrf.mxu0
    %v3382 = vadd.f32 %v3333, %v3381
    %3383 = vmatmul.bf16.gmra.mxu0 %v3262
    %v3384 = vpop.f32.mrf.mxu0
    %v3385 = vadd.f32 %v3336, %v3384
    %v3386 = vpop.f32.mrf.mxu0
    %v3387 = vadd.f32 %v3338, %v3386
    %3388 = vmatmul.bf16.gmra.mxu0 %v3266
    %v3389 = vpop.f32.mrf.mxu0
    %v3390 = vadd.f32 %v3341, %v3389
    %v3391 = vpop.f32.mrf.mxu0
    %v3392 = vadd.f32 %v3343, %v3391
    %3393 = vmatmul.bf16.gmra.mxu0 %v3270
    %v3394 = vpop.f32.mrf.mxu0
    %v3395 = vadd.f32 %v3346, %v3394
    %v3396 = vpop.f32.mrf.mxu0
    %v3397 = vadd.f32 %v3348, %v3396
    %3398 = vmatmul.bf16.gmra.mxu0 %v3274
    %v3399 = vpop.f32.mrf.mxu0
    %v3400 = vadd.f32 %v3351, %v3399
    %v3401 = vpop.f32.mrf.mxu0
    %v3402 = vadd.f32 %v3353, %v3401
    %3403 = vmatmul.bf16.gmra.mxu0 %v3278
    %v3404 = vpop.f32.mrf.mxu0
    %v3405 = vadd.f32 %v3356, %v3404
    %v3406 = vpop.f32.mrf.mxu0
    %v3407 = vadd.f32 %v3358, %v3406
    %3408 = vmatmul.bf16.gmra.mxu0 %v3282
    %v3409 = vpop.f32.mrf.mxu0
    %v3410 = vadd.f32 %v3361, %v3409
    %v3411 = vpop.f32.mrf.mxu0
    %v3412 = vadd.f32 %v3363, %v3411
    %3413 = vmatmul.bf16.gmra.mxu0 %v3286
    %v3414 = vpop.f32.mrf.mxu0
    %v3415 = vadd.f32 %v3366, %v3414
    %v3416 = vpop.f32.mrf.mxu0
    %v3417 = vadd.f32 %v3368, %v3416
    %3418 = vdwg.mxu0
    %3419 = vmatpush.bf16.msra.mxu0 %v678
    %3420 = vmatpush.bf16.msra.mxu0 %v677
    %3421 = vmatpush.bf16.msra.mxu0 %v676
    %3422 = vmatpush.bf16.msra.mxu0 %v675
    %3423 = vmatpush.bf16.msra.mxu0 %v674
    %3424 = vmatpush.bf16.msra.mxu0 %v673
    %3425 = vmatpush.bf16.msra.mxu0 %v672
    %3426 = vmatpush.bf16.msra.mxu0 %v671
    %3427 = vmatmul.bf16.gmra.mxu0 %v3259
    %v3428 = vpop.f32.mrf.mxu0
    %v3429 = vadd.f32 %v3380, %v3428
    %v3430 = vpop.f32.mrf.mxu0
    %v3431 = vadd.f32 %v3382, %v3430
    %3432 = vmatmul.bf16.gmra.mxu0 %v3263
    %v3433 = vpop.f32.mrf.mxu0
    %v3434 = vadd.f32 %v3385, %v3433
    %v3435 = vpop.f32.mrf.mxu0
    %v3436 = vadd.f32 %v3387, %v3435
    %3437 = vmatmul.bf16.gmra.mxu0 %v3267
    %v3438 = vpop.f32.mrf.mxu0
    %v3439 = vadd.f32 %v3390, %v3438
    %v3440 = vpop.f32.mrf.mxu0
    %v3441 = vadd.f32 %v3392, %v3440
    %3442 = vmatmul.bf16.gmra.mxu0 %v3271
    %v3443 = vpop.f32.mrf.mxu0
    %v3444 = vadd.f32 %v3395, %v3443
    %v3445 = vpop.f32.mrf.mxu0
    %v3446 = vadd.f32 %v3397, %v3445
    %3447 = vmatmul.bf16.gmra.mxu0 %v3275
    %v3448 = vpop.f32.mrf.mxu0
    %v3449 = vadd.f32 %v3400, %v3448
    %v3450 = vpop.f32.mrf.mxu0
    %v3451 = vadd.f32 %v3402, %v3450
    %3452 = vmatmul.bf16.gmra.mxu0 %v3279
    %v3453 = vpop.f32.mrf.mxu0
    %v3454 = vadd.f32 %v3405, %v3453
    %v3455 = vpop.f32.mrf.mxu0
    %v3456 = vadd.f32 %v3407, %v3455
    %3457 = vmatmul.bf16.gmra.mxu0 %v3283
    %v3458 = vpop.f32.mrf.mxu0
    %v3459 = vadd.f32 %v3410, %v3458
    %v3460 = vpop.f32.mrf.mxu0
    %v3461 = vadd.f32 %v3412, %v3460
    %3462 = vmatmul.bf16.gmra.mxu0 %v3287
    %v3463 = vpop.f32.mrf.mxu0
    %v3464 = vadd.f32 %v3415, %v3463
    %v3465 = vpop.f32.mrf.mxu0
    %v3466 = vadd.f32 %v3417, %v3465
    %3467 = vdwg.mxu0
    %3468 = vmatpush.bf16.msra.mxu0 %v686
    %3469 = vmatpush.bf16.msra.mxu0 %v685
    %3470 = vmatpush.bf16.msra.mxu0 %v684
    %3471 = vmatpush.bf16.msra.mxu0 %v683
    %3472 = vmatpush.bf16.msra.mxu0 %v682
    %3473 = vmatpush.bf16.msra.mxu0 %v681
    %3474 = vmatpush.bf16.msra.mxu0 %v680
    %3475 = vmatpush.bf16.msra.mxu0 %v679
    %3476 = vmatmul.bf16.gmra.mxu0 %v3260
    %v3477 = vpop.f32.mrf.mxu0
    %v3478 = vadd.f32 %v3429, %v3477
    %v3479 = vpop.f32.mrf.mxu0
    %v3480 = vadd.f32 %v3431, %v3479
    %3481 = vmatmul.bf16.gmra.mxu0 %v3264
    %v3482 = vpop.f32.mrf.mxu0
    %v3483 = vadd.f32 %v3434, %v3482
    %v3484 = vpop.f32.mrf.mxu0
    %v3485 = vadd.f32 %v3436, %v3484
    %3486 = vmatmul.bf16.gmra.mxu0 %v3268
    %v3487 = vpop.f32.mrf.mxu0
    %v3488 = vadd.f32 %v3439, %v3487
    %v3489 = vpop.f32.mrf.mxu0
    %v3490 = vadd.f32 %v3441, %v3489
    %3491 = vmatmul.bf16.gmra.mxu0 %v3272
    %v3492 = vpop.f32.mrf.mxu0
    %v3493 = vadd.f32 %v3444, %v3492
    %v3494 = vpop.f32.mrf.mxu0
    %v3495 = vadd.f32 %v3446, %v3494
    %3496 = vmatmul.bf16.gmra.mxu0 %v3276
    %v3497 = vpop.f32.mrf.mxu0
    %v3498 = vadd.f32 %v3449, %v3497
    %v3499 = vpop.f32.mrf.mxu0
    %v3500 = vadd.f32 %v3451, %v3499
    %3501 = vmatmul.bf16.gmra.mxu0 %v3280
    %v3502 = vpop.f32.mrf.mxu0
    %v3503 = vadd.f32 %v3454, %v3502
    %v3504 = vpop.f32.mrf.mxu0
    %v3505 = vadd.f32 %v3456, %v3504
    %3506 = vmatmul.bf16.gmra.mxu0 %v3284
    %v3507 = vpop.f32.mrf.mxu0
    %v3508 = vadd.f32 %v3459, %v3507
    %v3509 = vpop.f32.mrf.mxu0
    %v3510 = vadd.f32 %v3461, %v3509
    %3511 = vmatmul.bf16.gmra.mxu0 %v3288
    %v3512 = vpop.f32.mrf.mxu0
    %v3513 = vadd.f32 %v3464, %v3512
    %v3514 = vpop.f32.mrf.mxu0
    %v3515 = vadd.f32 %v3466, %v3514
    %3516 = vdwg.mxu0
    %v3517 = vpack.c.bf16 %v3480, %v3478
    %v3518 = vpack.c.bf16 %v3485, %v3483
    %v3519 = vpack.c.bf16 %v3490, %v3488
    %v3520 = vpack.c.bf16 %v3495, %v3493
    %v3521 = vpack.c.bf16 %v3500, %v3498
    %v3522 = vpack.c.bf16 %v3505, %v3503
    %v3523 = vpack.c.bf16 %v3510, %v3508
    %v3524 = vpack.c.bf16 %v3515, %v3513
    %s3525 = scalar_lea.vmem [#allocation7], 320
    %v3526 = vld [vmem:[%s3525] sm:$0xf]
    %v3527 = vld [vmem:[%s3525 + $0x4] sm:$0xf]
    %v3528 = vld [vmem:[%s3525 + $0x8] sm:$0xf]
    %v3529 = vld [vmem:[%s3525 + $0xc] sm:$0xf]
    %v3530 = vld [vmem:[%s3525 + $0x10] sm:$0xf]
    %v3531 = vld [vmem:[%s3525 + $0x14] sm:$0xf]
    %v3532 = vld [vmem:[%s3525 + $0x18] sm:$0xf]
    %v3533 = vld [vmem:[%s3525 + $0x1c] sm:$0xf]
    %v3534 = vld [vmem:[%s3525 + $0x20] sm:$0xf]
    %v3535 = vld [vmem:[%s3525 + $0x24] sm:$0xf]
    %v3536 = vld [vmem:[%s3525 + $0x28] sm:$0xf]
    %v3537 = vld [vmem:[%s3525 + $0x2c] sm:$0xf]
    %v3538 = vld [vmem:[%s3525 + $0x30] sm:$0xf]
    %v3539 = vld [vmem:[%s3525 + $0x34] sm:$0xf]
    %v3540 = vld [vmem:[%s3525 + $0x38] sm:$0xf]
    %v3541 = vld [vmem:[%s3525 + $0x3c] sm:$0xf]
    %v3558 = vunpack.c.l.b16 %v3526
    %v3559 = vunpack.c.l.b16 %v3527
    %v3560 = vunpack.c.l.b16 %v3528
    %v3561 = vunpack.c.l.b16 %v3529
    %v3562 = vunpack.c.l.b16 %v3530
    %v3563 = vunpack.c.l.b16 %v3531
    %v3564 = vunpack.c.l.b16 %v3532
    %v3565 = vunpack.c.l.b16 %v3533
    %v3566 = vunpack.c.l.b16 %v3534
    %v3567 = vunpack.c.l.b16 %v3535
    %v3568 = vunpack.c.l.b16 %v3536
    %v3569 = vunpack.c.l.b16 %v3537
    %v3570 = vunpack.c.l.b16 %v3538
    %v3571 = vunpack.c.l.b16 %v3539
    %v3572 = vunpack.c.l.b16 %v3540
    %v3573 = vunpack.c.l.b16 %v3541
    %v3574 = vpack.c.b16 %v3559, %v3558
    %v3575 = vpack.c.b16 %v3561, %v3560
    %v3576 = vpack.c.b16 %v3563, %v3562
    %v3577 = vpack.c.b16 %v3565, %v3564
    %v3578 = vpack.c.b16 %v3567, %v3566
    %v3579 = vpack.c.b16 %v3569, %v3568
    %v3580 = vpack.c.b16 %v3571, %v3570
    %v3581 = vpack.c.b16 %v3573, %v3572
    %3590 = vmatpush.bf16.msra.mxu0 %v3581
    %3591 = vmatpush.bf16.msra.mxu0 %v3580
    %3592 = vmatpush.bf16.msra.mxu0 %v3579
    %3593 = vmatpush.bf16.msra.mxu0 %v3578
    %3594 = vmatpush.bf16.msra.mxu0 %v3577
    %3595 = vmatpush.bf16.msra.mxu0 %v3576
    %3596 = vmatpush.bf16.msra.mxu0 %v3575
    %3597 = vmatpush.bf16.msra.mxu0 %v3574
    %3598 = vmatmul.bf16.gmra.mxu0 %v3517
    %v3599 = vpop.f32.mrf.mxu0
    %v3600 = vadd.f32 0.0, %v3599
    %v3601 = vpop.f32.mrf.mxu0
    %v3602 = vadd.f32 0.0, %v3601
    %3603 = vmatmul.bf16.gmra.mxu0 %v3518
    %v3604 = vpop.f32.mrf.mxu0
    %v3605 = vadd.f32 0.0, %v3604
    %v3606 = vpop.f32.mrf.mxu0
    %v3607 = vadd.f32 0.0, %v3606
    %3608 = vmatmul.bf16.gmra.mxu0 %v3519
    %v3609 = vpop.f32.mrf.mxu0
    %v3610 = vadd.f32 0.0, %v3609
    %v3611 = vpop.f32.mrf.mxu0
    %v3612 = vadd.f32 0.0, %v3611
    %3613 = vmatmul.bf16.gmra.mxu0 %v3520
    %v3614 = vpop.f32.mrf.mxu0
    %v3615 = vadd.f32 0.0, %v3614
    %v3616 = vpop.f32.mrf.mxu0
    %v3617 = vadd.f32 0.0, %v3616
    %3618 = vmatmul.bf16.gmra.mxu0 %v3521
    %v3619 = vpop.f32.mrf.mxu0
    %v3620 = vadd.f32 0.0, %v3619
    %v3621 = vpop.f32.mrf.mxu0
    %v3622 = vadd.f32 0.0, %v3621
    %3623 = vmatmul.bf16.gmra.mxu0 %v3522
    %v3624 = vpop.f32.mrf.mxu0
    %v3625 = vadd.f32 0.0, %v3624
    %v3626 = vpop.f32.mrf.mxu0
    %v3627 = vadd.f32 0.0, %v3626
    %3628 = vmatmul.bf16.gmra.mxu0 %v3523
    %v3629 = vpop.f32.mrf.mxu0
    %v3630 = vadd.f32 0.0, %v3629
    %v3631 = vpop.f32.mrf.mxu0
    %v3632 = vadd.f32 0.0, %v3631
    %3633 = vmatmul.bf16.gmra.mxu0 %v3524
    %v3634 = vpop.f32.mrf.mxu0
    %v3635 = vadd.f32 0.0, %v3634
    %v3636 = vpop.f32.mrf.mxu0
    %v3637 = vadd.f32 0.0, %v3636
    %3638 = vdwg.mxu0
    %v3639 = vadd.f32 %v3112, %v3600
    %v3640 = vadd.f32 %v3113, %v3602
    %v3641 = vadd.f32 %v3114, %v3605
    %v3642 = vadd.f32 %v3115, %v3607
    %v3643 = vadd.f32 %v3116, %v3610
    %v3644 = vadd.f32 %v3117, %v3612
    %v3645 = vadd.f32 %v3118, %v3615
    %v3646 = vadd.f32 %v3119, %v3617
    %v3647 = vadd.f32 %v3120, %v3620
    %v3648 = vadd.f32 %v3121, %v3622
    %v3649 = vadd.f32 %v3122, %v3625
    %v3650 = vadd.f32 %v3123, %v3627
    %v3651 = vadd.f32 %v3124, %v3630
    %v3652 = vadd.f32 %v3125, %v3632
    %v3653 = vadd.f32 %v3126, %v3635
    %v3654 = vadd.f32 %v3127, %v3637
    %s3655 = scalar_lea.vmem [#allocation5], 1536
    %v3656 = vld [vmem:[%s3655] sm:$0xff]
    %v3657 = vld [vmem:[%s3655 + $0x8] sm:$0xff]
    %v3658 = vld [vmem:[%s3655 + $0x10] sm:$0xff]
    %v3659 = vld [vmem:[%s3655 + $0x18] sm:$0xff]
    %v3660 = vld [vmem:[%s3655 + $0x20] sm:$0xff]
    %v3661 = vld [vmem:[%s3655 + $0x28] sm:$0xff]
    %v3662 = vld [vmem:[%s3655 + $0x30] sm:$0xff]
    %v3663 = vld [vmem:[%s3655 + $0x38] sm:$0xff]
    %v3664 = vld [vmem:[%s3655 + $0x40] sm:$0xff]
    %v3665 = vld [vmem:[%s3655 + $0x48] sm:$0xff]
    %v3666 = vld [vmem:[%s3655 + $0x50] sm:$0xff]
    %v3667 = vld [vmem:[%s3655 + $0x58] sm:$0xff]
    %v3668 = vld [vmem:[%s3655 + $0x60] sm:$0xff]
    %v3669 = vld [vmem:[%s3655 + $0x68] sm:$0xff]
    %v3670 = vld [vmem:[%s3655 + $0x70] sm:$0xff]
    %v3671 = vld [vmem:[%s3655 + $0x78] sm:$0xff]
    %v3672 = vld [vmem:[%s3655 + $0x80] sm:$0xff]
    %v3673 = vld [vmem:[%s3655 + $0x88] sm:$0xff]
    %v3674 = vld [vmem:[%s3655 + $0x90] sm:$0xff]
    %v3675 = vld [vmem:[%s3655 + $0x98] sm:$0xff]
    %v3676 = vld [vmem:[%s3655 + $0xa0] sm:$0xff]
    %v3677 = vld [vmem:[%s3655 + $0xa8] sm:$0xff]
    %v3678 = vld [vmem:[%s3655 + $0xb0] sm:$0xff]
    %v3679 = vld [vmem:[%s3655 + $0xb8] sm:$0xff]
    %v3680 = vld [vmem:[%s3655 + $0xc0] sm:$0xff]
    %v3681 = vld [vmem:[%s3655 + $0xc8] sm:$0xff]
    %v3682 = vld [vmem:[%s3655 + $0xd0] sm:$0xff]
    %v3683 = vld [vmem:[%s3655 + $0xd8] sm:$0xff]
    %v3684 = vld [vmem:[%s3655 + $0xe0] sm:$0xff]
    %v3685 = vld [vmem:[%s3655 + $0xe8] sm:$0xff]
    %v3686 = vld [vmem:[%s3655 + $0xf0] sm:$0xff]
    %v3687 = vld [vmem:[%s3655 + $0xf8] sm:$0xff]
    %v3720 = vunpack.c.l.b16 %v3656
    %v3721 = vunpack.c.h.b16 %v3656
    %v3722 = vunpack.c.l.b16 %v3657
    %v3723 = vunpack.c.h.b16 %v3657
    %v3724 = vunpack.c.l.b16 %v3658
    %v3725 = vunpack.c.h.b16 %v3658
    %v3726 = vunpack.c.l.b16 %v3659
    %v3727 = vunpack.c.h.b16 %v3659
    %v3728 = vunpack.c.l.b16 %v3660
    %v3729 = vunpack.c.h.b16 %v3660
    %v3730 = vunpack.c.l.b16 %v3661
    %v3731 = vunpack.c.h.b16 %v3661
    %v3732 = vunpack.c.l.b16 %v3662
    %v3733 = vunpack.c.h.b16 %v3662
    %v3734 = vunpack.c.l.b16 %v3663
    %v3735 = vunpack.c.h.b16 %v3663
    %v3736 = vunpack.c.l.b16 %v3664
    %v3737 = vunpack.c.h.b16 %v3664
    %v3738 = vunpack.c.l.b16 %v3665
    %v3739 = vunpack.c.h.b16 %v3665
    %v3740 = vunpack.c.l.b16 %v3666
    %v3741 = vunpack.c.h.b16 %v3666
    %v3742 = vunpack.c.l.b16 %v3667
    %v3743 = vunpack.c.h.b16 %v3667
    %v3744 = vunpack.c.l.b16 %v3668
    %v3745 = vunpack.c.h.b16 %v3668
    %v3746 = vunpack.c.l.b16 %v3669
    %v3747 = vunpack.c.h.b16 %v3669
    %v3748 = vunpack.c.l.b16 %v3670
    %v3749 = vunpack.c.h.b16 %v3670
    %v3750 = vunpack.c.l.b16 %v3671
    %v3751 = vunpack.c.h.b16 %v3671
    %v3752 = vunpack.c.l.b16 %v3672
    %v3753 = vunpack.c.h.b16 %v3672
    %v3754 = vunpack.c.l.b16 %v3673
    %v3755 = vunpack.c.h.b16 %v3673
    %v3756 = vunpack.c.l.b16 %v3674
    %v3757 = vunpack.c.h.b16 %v3674
    %v3758 = vunpack.c.l.b16 %v3675
    %v3759 = vunpack.c.h.b16 %v3675
    %v3760 = vunpack.c.l.b16 %v3676
    %v3761 = vunpack.c.h.b16 %v3676
    %v3762 = vunpack.c.l.b16 %v3677
    %v3763 = vunpack.c.h.b16 %v3677
    %v3764 = vunpack.c.l.b16 %v3678
    %v3765 = vunpack.c.h.b16 %v3678
    %v3766 = vunpack.c.l.b16 %v3679
    %v3767 = vunpack.c.h.b16 %v3679
    %v3768 = vunpack.c.l.b16 %v3680
    %v3769 = vunpack.c.h.b16 %v3680
    %v3770 = vunpack.c.l.b16 %v3681
    %v3771 = vunpack.c.h.b16 %v3681
    %v3772 = vunpack.c.l.b16 %v3682
    %v3773 = vunpack.c.h.b16 %v3682
    %v3774 = vunpack.c.l.b16 %v3683
    %v3775 = vunpack.c.h.b16 %v3683
    %v3776 = vunpack.c.l.b16 %v3684
    %v3777 = vunpack.c.h.b16 %v3684
    %v3778 = vunpack.c.l.b16 %v3685
    %v3779 = vunpack.c.h.b16 %v3685
    %v3780 = vunpack.c.l.b16 %v3686
    %v3781 = vunpack.c.h.b16 %v3686
    %v3782 = vunpack.c.l.b16 %v3687
    %v3783 = vunpack.c.h.b16 %v3687
    %v3784 = vpack.c.b16 %v3724, %v3720
    %v3785 = vpack.c.b16 %v3725, %v3721
    %v3786 = vpack.c.b16 %v3726, %v3722
    %v3787 = vpack.c.b16 %v3727, %v3723
    %v3788 = vpack.c.b16 %v3732, %v3728
    %v3789 = vpack.c.b16 %v3733, %v3729
    %v3790 = vpack.c.b16 %v3734, %v3730
    %v3791 = vpack.c.b16 %v3735, %v3731
    %v3792 = vpack.c.b16 %v3740, %v3736
    %v3793 = vpack.c.b16 %v3741, %v3737
    %v3794 = vpack.c.b16 %v3742, %v3738
    %v3795 = vpack.c.b16 %v3743, %v3739
    %v3796 = vpack.c.b16 %v3748, %v3744
    %v3797 = vpack.c.b16 %v3749, %v3745
    %v3798 = vpack.c.b16 %v3750, %v3746
    %v3799 = vpack.c.b16 %v3751, %v3747
    %v3800 = vpack.c.b16 %v3756, %v3752
    %v3801 = vpack.c.b16 %v3757, %v3753
    %v3802 = vpack.c.b16 %v3758, %v3754
    %v3803 = vpack.c.b16 %v3759, %v3755
    %v3804 = vpack.c.b16 %v3764, %v3760
    %v3805 = vpack.c.b16 %v3765, %v3761
    %v3806 = vpack.c.b16 %v3766, %v3762
    %v3807 = vpack.c.b16 %v3767, %v3763
    %v3808 = vpack.c.b16 %v3772, %v3768
    %v3809 = vpack.c.b16 %v3773, %v3769
    %v3810 = vpack.c.b16 %v3774, %v3770
    %v3811 = vpack.c.b16 %v3775, %v3771
    %v3812 = vpack.c.b16 %v3780, %v3776
    %v3813 = vpack.c.b16 %v3781, %v3777
    %v3814 = vpack.c.b16 %v3782, %v3778
    %v3815 = vpack.c.b16 %v3783, %v3779
    %3848 = vmatpush.bf16.msra.mxu0 %v662
    %3849 = vmatpush.bf16.msra.mxu0 %v661
    %3850 = vmatpush.bf16.msra.mxu0 %v660
    %3851 = vmatpush.bf16.msra.mxu0 %v659
    %3852 = vmatpush.bf16.msra.mxu0 %v658
    %3853 = vmatpush.bf16.msra.mxu0 %v657
    %3854 = vmatpush.bf16.msra.mxu0 %v656
    %3855 = vmatpush.bf16.msra.mxu0 %v655
    %3856 = vmatmul.bf16.gmra.mxu0 %v3784
    %v3857 = vpop.f32.mrf.mxu0
    %v3858 = vadd.f32 0.0, %v3857
    %v3859 = vpop.f32.mrf.mxu0
    %v3860 = vadd.f32 0.0, %v3859
    %3861 = vmatmul.bf16.gmra.mxu0 %v3788
    %v3862 = vpop.f32.mrf.mxu0
    %v3863 = vadd.f32 0.0, %v3862
    %v3864 = vpop.f32.mrf.mxu0
    %v3865 = vadd.f32 0.0, %v3864
    %3866 = vmatmul.bf16.gmra.mxu0 %v3792
    %v3867 = vpop.f32.mrf.mxu0
    %v3868 = vadd.f32 0.0, %v3867
    %v3869 = vpop.f32.mrf.mxu0
    %v3870 = vadd.f32 0.0, %v3869
    %3871 = vmatmul.bf16.gmra.mxu0 %v3796
    %v3872 = vpop.f32.mrf.mxu0
    %v3873 = vadd.f32 0.0, %v3872
    %v3874 = vpop.f32.mrf.mxu0
    %v3875 = vadd.f32 0.0, %v3874
    %3876 = vmatmul.bf16.gmra.mxu0 %v3800
    %v3877 = vpop.f32.mrf.mxu0
    %v3878 = vadd.f32 0.0, %v3877
    %v3879 = vpop.f32.mrf.mxu0
    %v3880 = vadd.f32 0.0, %v3879
    %3881 = vmatmul.bf16.gmra.mxu0 %v3804
    %v3882 = vpop.f32.mrf.mxu0
    %v3883 = vadd.f32 0.0, %v3882
    %v3884 = vpop.f32.mrf.mxu0
    %v3885 = vadd.f32 0.0, %v3884
    %3886 = vmatmul.bf16.gmra.mxu0 %v3808
    %v3887 = vpop.f32.mrf.mxu0
    %v3888 = vadd.f32 0.0, %v3887
    %v3889 = vpop.f32.mrf.mxu0
    %v3890 = vadd.f32 0.0, %v3889
    %3891 = vmatmul.bf16.gmra.mxu0 %v3812
    %v3892 = vpop.f32.mrf.mxu0
    %v3893 = vadd.f32 0.0, %v3892
    %v3894 = vpop.f32.mrf.mxu0
    %v3895 = vadd.f32 0.0, %v3894
    %3896 = vdwg.mxu0
    %3897 = vmatpush.bf16.msra.mxu0 %v670
    %3898 = vmatpush.bf16.msra.mxu0 %v669
    %3899 = vmatpush.bf16.msra.mxu0 %v668
    %3900 = vmatpush.bf16.msra.mxu0 %v667
    %3901 = vmatpush.bf16.msra.mxu0 %v666
    %3902 = vmatpush.bf16.msra.mxu0 %v665
    %3903 = vmatpush.bf16.msra.mxu0 %v664
    %3904 = vmatpush.bf16.msra.mxu0 %v663
    %3905 = vmatmul.bf16.gmra.mxu0 %v3785
    %v3906 = vpop.f32.mrf.mxu0
    %v3907 = vadd.f32 %v3858, %v3906
    %v3908 = vpop.f32.mrf.mxu0
    %v3909 = vadd.f32 %v3860, %v3908
    %3910 = vmatmul.bf16.gmra.mxu0 %v3789
    %v3911 = vpop.f32.mrf.mxu0
    %v3912 = vadd.f32 %v3863, %v3911
    %v3913 = vpop.f32.mrf.mxu0
    %v3914 = vadd.f32 %v3865, %v3913
    %3915 = vmatmul.bf16.gmra.mxu0 %v3793
    %v3916 = vpop.f32.mrf.mxu0
    %v3917 = vadd.f32 %v3868, %v3916
    %v3918 = vpop.f32.mrf.mxu0
    %v3919 = vadd.f32 %v3870, %v3918
    %3920 = vmatmul.bf16.gmra.mxu0 %v3797
    %v3921 = vpop.f32.mrf.mxu0
    %v3922 = vadd.f32 %v3873, %v3921
    %v3923 = vpop.f32.mrf.mxu0
    %v3924 = vadd.f32 %v3875, %v3923
    %3925 = vmatmul.bf16.gmra.mxu0 %v3801
    %v3926 = vpop.f32.mrf.mxu0
    %v3927 = vadd.f32 %v3878, %v3926
    %v3928 = vpop.f32.mrf.mxu0
    %v3929 = vadd.f32 %v3880, %v3928
    %3930 = vmatmul.bf16.gmra.mxu0 %v3805
    %v3931 = vpop.f32.mrf.mxu0
    %v3932 = vadd.f32 %v3883, %v3931
    %v3933 = vpop.f32.mrf.mxu0
    %v3934 = vadd.f32 %v3885, %v3933
    %3935 = vmatmul.bf16.gmra.mxu0 %v3809
    %v3936 = vpop.f32.mrf.mxu0
    %v3937 = vadd.f32 %v3888, %v3936
    %v3938 = vpop.f32.mrf.mxu0
    %v3939 = vadd.f32 %v3890, %v3938
    %3940 = vmatmul.bf16.gmra.mxu0 %v3813
    %v3941 = vpop.f32.mrf.mxu0
    %v3942 = vadd.f32 %v3893, %v3941
    %v3943 = vpop.f32.mrf.mxu0
    %v3944 = vadd.f32 %v3895, %v3943
    %3945 = vdwg.mxu0
    %3946 = vmatpush.bf16.msra.mxu0 %v678
    %3947 = vmatpush.bf16.msra.mxu0 %v677
    %3948 = vmatpush.bf16.msra.mxu0 %v676
    %3949 = vmatpush.bf16.msra.mxu0 %v675
    %3950 = vmatpush.bf16.msra.mxu0 %v674
    %3951 = vmatpush.bf16.msra.mxu0 %v673
    %3952 = vmatpush.bf16.msra.mxu0 %v672
    %3953 = vmatpush.bf16.msra.mxu0 %v671
    %3954 = vmatmul.bf16.gmra.mxu0 %v3786
    %v3955 = vpop.f32.mrf.mxu0
    %v3956 = vadd.f32 %v3907, %v3955
    %v3957 = vpop.f32.mrf.mxu0
    %v3958 = vadd.f32 %v3909, %v3957
    %3959 = vmatmul.bf16.gmra.mxu0 %v3790
    %v3960 = vpop.f32.mrf.mxu0
    %v3961 = vadd.f32 %v3912, %v3960
    %v3962 = vpop.f32.mrf.mxu0
    %v3963 = vadd.f32 %v3914, %v3962
    %3964 = vmatmul.bf16.gmra.mxu0 %v3794
    %v3965 = vpop.f32.mrf.mxu0
    %v3966 = vadd.f32 %v3917, %v3965
    %v3967 = vpop.f32.mrf.mxu0
    %v3968 = vadd.f32 %v3919, %v3967
    %3969 = vmatmul.bf16.gmra.mxu0 %v3798
    %v3970 = vpop.f32.mrf.mxu0
    %v3971 = vadd.f32 %v3922, %v3970
    %v3972 = vpop.f32.mrf.mxu0
    %v3973 = vadd.f32 %v3924, %v3972
    %3974 = vmatmul.bf16.gmra.mxu0 %v3802
    %v3975 = vpop.f32.mrf.mxu0
    %v3976 = vadd.f32 %v3927, %v3975
    %v3977 = vpop.f32.mrf.mxu0
    %v3978 = vadd.f32 %v3929, %v3977
    %3979 = vmatmul.bf16.gmra.mxu0 %v3806
    %v3980 = vpop.f32.mrf.mxu0
    %v3981 = vadd.f32 %v3932, %v3980
    %v3982 = vpop.f32.mrf.mxu0
    %v3983 = vadd.f32 %v3934, %v3982
    %3984 = vmatmul.bf16.gmra.mxu0 %v3810
    %v3985 = vpop.f32.mrf.mxu0
    %v3986 = vadd.f32 %v3937, %v3985
    %v3987 = vpop.f32.mrf.mxu0
    %v3988 = vadd.f32 %v3939, %v3987
    %3989 = vmatmul.bf16.gmra.mxu0 %v3814
    %v3990 = vpop.f32.mrf.mxu0
    %v3991 = vadd.f32 %v3942, %v3990
    %v3992 = vpop.f32.mrf.mxu0
    %v3993 = vadd.f32 %v3944, %v3992
    %3994 = vdwg.mxu0
    %3995 = vmatpush.bf16.msra.mxu0 %v686
    %3996 = vmatpush.bf16.msra.mxu0 %v685
    %3997 = vmatpush.bf16.msra.mxu0 %v684
    %3998 = vmatpush.bf16.msra.mxu0 %v683
    %3999 = vmatpush.bf16.msra.mxu0 %v682
    %4000 = vmatpush.bf16.msra.mxu0 %v681
    %4001 = vmatpush.bf16.msra.mxu0 %v680
    %4002 = vmatpush.bf16.msra.mxu0 %v679
    %4003 = vmatmul.bf16.gmra.mxu0 %v3787
    %v4004 = vpop.f32.mrf.mxu0
    %v4005 = vadd.f32 %v3956, %v4004
    %v4006 = vpop.f32.mrf.mxu0
    %v4007 = vadd.f32 %v3958, %v4006
    %4008 = vmatmul.bf16.gmra.mxu0 %v3791
    %v4009 = vpop.f32.mrf.mxu0
    %v4010 = vadd.f32 %v3961, %v4009
    %v4011 = vpop.f32.mrf.mxu0
    %v4012 = vadd.f32 %v3963, %v4011
    %4013 = vmatmul.bf16.gmra.mxu0 %v3795
    %v4014 = vpop.f32.mrf.mxu0
    %v4015 = vadd.f32 %v3966, %v4014
    %v4016 = vpop.f32.mrf.mxu0
    %v4017 = vadd.f32 %v3968, %v4016
    %4018 = vmatmul.bf16.gmra.mxu0 %v3799
    %v4019 = vpop.f32.mrf.mxu0
    %v4020 = vadd.f32 %v3971, %v4019
    %v4021 = vpop.f32.mrf.mxu0
    %v4022 = vadd.f32 %v3973, %v4021
    %4023 = vmatmul.bf16.gmra.mxu0 %v3803
    %v4024 = vpop.f32.mrf.mxu0
    %v4025 = vadd.f32 %v3976, %v4024
    %v4026 = vpop.f32.mrf.mxu0
    %v4027 = vadd.f32 %v3978, %v4026
    %4028 = vmatmul.bf16.gmra.mxu0 %v3807
    %v4029 = vpop.f32.mrf.mxu0
    %v4030 = vadd.f32 %v3981, %v4029
    %v4031 = vpop.f32.mrf.mxu0
    %v4032 = vadd.f32 %v3983, %v4031
    %4033 = vmatmul.bf16.gmra.mxu0 %v3811
    %v4034 = vpop.f32.mrf.mxu0
    %v4035 = vadd.f32 %v3986, %v4034
    %v4036 = vpop.f32.mrf.mxu0
    %v4037 = vadd.f32 %v3988, %v4036
    %4038 = vmatmul.bf16.gmra.mxu0 %v3815
    %v4039 = vpop.f32.mrf.mxu0
    %v4040 = vadd.f32 %v3991, %v4039
    %v4041 = vpop.f32.mrf.mxu0
    %v4042 = vadd.f32 %v3993, %v4041
    %4043 = vdwg.mxu0
    %v4044 = vpack.c.bf16 %v4007, %v4005
    %v4045 = vpack.c.bf16 %v4012, %v4010
    %v4046 = vpack.c.bf16 %v4017, %v4015
    %v4047 = vpack.c.bf16 %v4022, %v4020
    %v4048 = vpack.c.bf16 %v4027, %v4025
    %v4049 = vpack.c.bf16 %v4032, %v4030
    %v4050 = vpack.c.bf16 %v4037, %v4035
    %v4051 = vpack.c.bf16 %v4042, %v4040
    %s4052 = scalar_lea.vmem [#allocation7], 384
    %v4053 = vld [vmem:[%s4052] sm:$0xf]
    %v4054 = vld [vmem:[%s4052 + $0x4] sm:$0xf]
    %v4055 = vld [vmem:[%s4052 + $0x8] sm:$0xf]
    %v4056 = vld [vmem:[%s4052 + $0xc] sm:$0xf]
    %v4057 = vld [vmem:[%s4052 + $0x10] sm:$0xf]
    %v4058 = vld [vmem:[%s4052 + $0x14] sm:$0xf]
    %v4059 = vld [vmem:[%s4052 + $0x18] sm:$0xf]
    %v4060 = vld [vmem:[%s4052 + $0x1c] sm:$0xf]
    %v4061 = vld [vmem:[%s4052 + $0x20] sm:$0xf]
    %v4062 = vld [vmem:[%s4052 + $0x24] sm:$0xf]
    %v4063 = vld [vmem:[%s4052 + $0x28] sm:$0xf]
    %v4064 = vld [vmem:[%s4052 + $0x2c] sm:$0xf]
    %v4065 = vld [vmem:[%s4052 + $0x30] sm:$0xf]
    %v4066 = vld [vmem:[%s4052 + $0x34] sm:$0xf]
    %v4067 = vld [vmem:[%s4052 + $0x38] sm:$0xf]
    %v4068 = vld [vmem:[%s4052 + $0x3c] sm:$0xf]
    %v4085 = vunpack.c.l.b16 %v4053
    %v4086 = vunpack.c.l.b16 %v4054
    %v4087 = vunpack.c.l.b16 %v4055
    %v4088 = vunpack.c.l.b16 %v4056
    %v4089 = vunpack.c.l.b16 %v4057
    %v4090 = vunpack.c.l.b16 %v4058
    %v4091 = vunpack.c.l.b16 %v4059
    %v4092 = vunpack.c.l.b16 %v4060
    %v4093 = vunpack.c.l.b16 %v4061
    %v4094 = vunpack.c.l.b16 %v4062
    %v4095 = vunpack.c.l.b16 %v4063
    %v4096 = vunpack.c.l.b16 %v4064
    %v4097 = vunpack.c.l.b16 %v4065
    %v4098 = vunpack.c.l.b16 %v4066
    %v4099 = vunpack.c.l.b16 %v4067
    %v4100 = vunpack.c.l.b16 %v4068
    %v4101 = vpack.c.b16 %v4086, %v4085
    %v4102 = vpack.c.b16 %v4088, %v4087
    %v4103 = vpack.c.b16 %v4090, %v4089
    %v4104 = vpack.c.b16 %v4092, %v4091
    %v4105 = vpack.c.b16 %v4094, %v4093
    %v4106 = vpack.c.b16 %v4096, %v4095
    %v4107 = vpack.c.b16 %v4098, %v4097
    %v4108 = vpack.c.b16 %v4100, %v4099
    %4117 = vmatpush.bf16.msra.mxu0 %v4108
    %4118 = vmatpush.bf16.msra.mxu0 %v4107
    %4119 = vmatpush.bf16.msra.mxu0 %v4106
    %4120 = vmatpush.bf16.msra.mxu0 %v4105
    %4121 = vmatpush.bf16.msra.mxu0 %v4104
    %4122 = vmatpush.bf16.msra.mxu0 %v4103
    %4123 = vmatpush.bf16.msra.mxu0 %v4102
    %4124 = vmatpush.bf16.msra.mxu0 %v4101
    %4125 = vmatmul.bf16.gmra.mxu0 %v4044
    %v4126 = vpop.f32.mrf.mxu0
    %v4127 = vadd.f32 0.0, %v4126
    %v4128 = vpop.f32.mrf.mxu0
    %v4129 = vadd.f32 0.0, %v4128
    %4130 = vmatmul.bf16.gmra.mxu0 %v4045
    %v4131 = vpop.f32.mrf.mxu0
    %v4132 = vadd.f32 0.0, %v4131
    %v4133 = vpop.f32.mrf.mxu0
    %v4134 = vadd.f32 0.0, %v4133
    %4135 = vmatmul.bf16.gmra.mxu0 %v4046
    %v4136 = vpop.f32.mrf.mxu0
    %v4137 = vadd.f32 0.0, %v4136
    %v4138 = vpop.f32.mrf.mxu0
    %v4139 = vadd.f32 0.0, %v4138
    %4140 = vmatmul.bf16.gmra.mxu0 %v4047
    %v4141 = vpop.f32.mrf.mxu0
    %v4142 = vadd.f32 0.0, %v4141
    %v4143 = vpop.f32.mrf.mxu0
    %v4144 = vadd.f32 0.0, %v4143
    %4145 = vmatmul.bf16.gmra.mxu0 %v4048
    %v4146 = vpop.f32.mrf.mxu0
    %v4147 = vadd.f32 0.0, %v4146
    %v4148 = vpop.f32.mrf.mxu0
    %v4149 = vadd.f32 0.0, %v4148
    %4150 = vmatmul.bf16.gmra.mxu0 %v4049
    %v4151 = vpop.f32.mrf.mxu0
    %v4152 = vadd.f32 0.0, %v4151
    %v4153 = vpop.f32.mrf.mxu0
    %v4154 = vadd.f32 0.0, %v4153
    %4155 = vmatmul.bf16.gmra.mxu0 %v4050
    %v4156 = vpop.f32.mrf.mxu0
    %v4157 = vadd.f32 0.0, %v4156
    %v4158 = vpop.f32.mrf.mxu0
    %v4159 = vadd.f32 0.0, %v4158
    %4160 = vmatmul.bf16.gmra.mxu0 %v4051
    %v4161 = vpop.f32.mrf.mxu0
    %v4162 = vadd.f32 0.0, %v4161
    %v4163 = vpop.f32.mrf.mxu0
    %v4164 = vadd.f32 0.0, %v4163
    %4165 = vdwg.mxu0
    %v4166 = vadd.f32 %v3639, %v4127
    %v4167 = vadd.f32 %v3640, %v4129
    %v4168 = vadd.f32 %v3641, %v4132
    %v4169 = vadd.f32 %v3642, %v4134
    %v4170 = vadd.f32 %v3643, %v4137
    %v4171 = vadd.f32 %v3644, %v4139
    %v4172 = vadd.f32 %v3645, %v4142
    %v4173 = vadd.f32 %v3646, %v4144
    %v4174 = vadd.f32 %v3647, %v4147
    %v4175 = vadd.f32 %v3648, %v4149
    %v4176 = vadd.f32 %v3649, %v4152
    %v4177 = vadd.f32 %v3650, %v4154
    %v4178 = vadd.f32 %v3651, %v4157
    %v4179 = vadd.f32 %v3652, %v4159
    %v4180 = vadd.f32 %v3653, %v4162
    %v4181 = vadd.f32 %v3654, %v4164
    %s4182 = scalar_lea.vmem [#allocation5], 1792
    %v4183 = vld [vmem:[%s4182] sm:$0xff]
    %v4184 = vld [vmem:[%s4182 + $0x8] sm:$0xff]
    %v4185 = vld [vmem:[%s4182 + $0x10] sm:$0xff]
    %v4186 = vld [vmem:[%s4182 + $0x18] sm:$0xff]
    %v4187 = vld [vmem:[%s4182 + $0x20] sm:$0xff]
    %v4188 = vld [vmem:[%s4182 + $0x28] sm:$0xff]
    %v4189 = vld [vmem:[%s4182 + $0x30] sm:$0xff]
    %v4190 = vld [vmem:[%s4182 + $0x38] sm:$0xff]
    %v4191 = vld [vmem:[%s4182 + $0x40] sm:$0xff]
    %v4192 = vld [vmem:[%s4182 + $0x48] sm:$0xff]
    %v4193 = vld [vmem:[%s4182 + $0x50] sm:$0xff]
    %v4194 = vld [vmem:[%s4182 + $0x58] sm:$0xff]
    %v4195 = vld [vmem:[%s4182 + $0x60] sm:$0xff]
    %v4196 = vld [vmem:[%s4182 + $0x68] sm:$0xff]
    %v4197 = vld [vmem:[%s4182 + $0x70] sm:$0xff]
    %v4198 = vld [vmem:[%s4182 + $0x78] sm:$0xff]
    %v4199 = vld [vmem:[%s4182 + $0x80] sm:$0xff]
    %v4200 = vld [vmem:[%s4182 + $0x88] sm:$0xff]
    %v4201 = vld [vmem:[%s4182 + $0x90] sm:$0xff]
    %v4202 = vld [vmem:[%s4182 + $0x98] sm:$0xff]
    %v4203 = vld [vmem:[%s4182 + $0xa0] sm:$0xff]
    %v4204 = vld [vmem:[%s4182 + $0xa8] sm:$0xff]
    %v4205 = vld [vmem:[%s4182 + $0xb0] sm:$0xff]
    %v4206 = vld [vmem:[%s4182 + $0xb8] sm:$0xff]
    %v4207 = vld [vmem:[%s4182 + $0xc0] sm:$0xff]
    %v4208 = vld [vmem:[%s4182 + $0xc8] sm:$0xff]
    %v4209 = vld [vmem:[%s4182 + $0xd0] sm:$0xff]
    %v4210 = vld [vmem:[%s4182 + $0xd8] sm:$0xff]
    %v4211 = vld [vmem:[%s4182 + $0xe0] sm:$0xff]
    %v4212 = vld [vmem:[%s4182 + $0xe8] sm:$0xff]
    %v4213 = vld [vmem:[%s4182 + $0xf0] sm:$0xff]
    %v4214 = vld [vmem:[%s4182 + $0xf8] sm:$0xff]
    %v4247 = vunpack.c.l.b16 %v4183
    %v4248 = vunpack.c.h.b16 %v4183
    %v4249 = vunpack.c.l.b16 %v4184
    %v4250 = vunpack.c.h.b16 %v4184
    %v4251 = vunpack.c.l.b16 %v4185
    %v4252 = vunpack.c.h.b16 %v4185
    %v4253 = vunpack.c.l.b16 %v4186
    %v4254 = vunpack.c.h.b16 %v4186
    %v4255 = vunpack.c.l.b16 %v4187
    %v4256 = vunpack.c.h.b16 %v4187
    %v4257 = vunpack.c.l.b16 %v4188
    %v4258 = vunpack.c.h.b16 %v4188
    %v4259 = vunpack.c.l.b16 %v4189
    %v4260 = vunpack.c.h.b16 %v4189
    %v4261 = vunpack.c.l.b16 %v4190
    %v4262 = vunpack.c.h.b16 %v4190
    %v4263 = vunpack.c.l.b16 %v4191
    %v4264 = vunpack.c.h.b16 %v4191
    %v4265 = vunpack.c.l.b16 %v4192
    %v4266 = vunpack.c.h.b16 %v4192
    %v4267 = vunpack.c.l.b16 %v4193
    %v4268 = vunpack.c.h.b16 %v4193
    %v4269 = vunpack.c.l.b16 %v4194
    %v4270 = vunpack.c.h.b16 %v4194
    %v4271 = vunpack.c.l.b16 %v4195
    %v4272 = vunpack.c.h.b16 %v4195
    %v4273 = vunpack.c.l.b16 %v4196
    %v4274 = vunpack.c.h.b16 %v4196
    %v4275 = vunpack.c.l.b16 %v4197
    %v4276 = vunpack.c.h.b16 %v4197
    %v4277 = vunpack.c.l.b16 %v4198
    %v4278 = vunpack.c.h.b16 %v4198
    %v4279 = vunpack.c.l.b16 %v4199
    %v4280 = vunpack.c.h.b16 %v4199
    %v4281 = vunpack.c.l.b16 %v4200
    %v4282 = vunpack.c.h.b16 %v4200
    %v4283 = vunpack.c.l.b16 %v4201
    %v4284 = vunpack.c.h.b16 %v4201
    %v4285 = vunpack.c.l.b16 %v4202
    %v4286 = vunpack.c.h.b16 %v4202
    %v4287 = vunpack.c.l.b16 %v4203
    %v4288 = vunpack.c.h.b16 %v4203
    %v4289 = vunpack.c.l.b16 %v4204
    %v4290 = vunpack.c.h.b16 %v4204
    %v4291 = vunpack.c.l.b16 %v4205
    %v4292 = vunpack.c.h.b16 %v4205
    %v4293 = vunpack.c.l.b16 %v4206
    %v4294 = vunpack.c.h.b16 %v4206
    %v4295 = vunpack.c.l.b16 %v4207
    %v4296 = vunpack.c.h.b16 %v4207
    %v4297 = vunpack.c.l.b16 %v4208
    %v4298 = vunpack.c.h.b16 %v4208
    %v4299 = vunpack.c.l.b16 %v4209
    %v4300 = vunpack.c.h.b16 %v4209
    %v4301 = vunpack.c.l.b16 %v4210
    %v4302 = vunpack.c.h.b16 %v4210
    %v4303 = vunpack.c.l.b16 %v4211
    %v4304 = vunpack.c.h.b16 %v4211
    %v4305 = vunpack.c.l.b16 %v4212
    %v4306 = vunpack.c.h.b16 %v4212
    %v4307 = vunpack.c.l.b16 %v4213
    %v4308 = vunpack.c.h.b16 %v4213
    %v4309 = vunpack.c.l.b16 %v4214
    %v4310 = vunpack.c.h.b16 %v4214
    %v4311 = vpack.c.b16 %v4251, %v4247
    %v4312 = vpack.c.b16 %v4252, %v4248
    %v4313 = vpack.c.b16 %v4253, %v4249
    %v4314 = vpack.c.b16 %v4254, %v4250
    %v4315 = vpack.c.b16 %v4259, %v4255
    %v4316 = vpack.c.b16 %v4260, %v4256
    %v4317 = vpack.c.b16 %v4261, %v4257
    %v4318 = vpack.c.b16 %v4262, %v4258
    %v4319 = vpack.c.b16 %v4267, %v4263
    %v4320 = vpack.c.b16 %v4268, %v4264
    %v4321 = vpack.c.b16 %v4269, %v4265
    %v4322 = vpack.c.b16 %v4270, %v4266
    %v4323 = vpack.c.b16 %v4275, %v4271
    %v4324 = vpack.c.b16 %v4276, %v4272
    %v4325 = vpack.c.b16 %v4277, %v4273
    %v4326 = vpack.c.b16 %v4278, %v4274
    %v4327 = vpack.c.b16 %v4283, %v4279
    %v4328 = vpack.c.b16 %v4284, %v4280
    %v4329 = vpack.c.b16 %v4285, %v4281
    %v4330 = vpack.c.b16 %v4286, %v4282
    %v4331 = vpack.c.b16 %v4291, %v4287
    %v4332 = vpack.c.b16 %v4292, %v4288
    %v4333 = vpack.c.b16 %v4293, %v4289
    %v4334 = vpack.c.b16 %v4294, %v4290
    %v4335 = vpack.c.b16 %v4299, %v4295
    %v4336 = vpack.c.b16 %v4300, %v4296
    %v4337 = vpack.c.b16 %v4301, %v4297
    %v4338 = vpack.c.b16 %v4302, %v4298
    %v4339 = vpack.c.b16 %v4307, %v4303
    %v4340 = vpack.c.b16 %v4308, %v4304
    %v4341 = vpack.c.b16 %v4309, %v4305
    %v4342 = vpack.c.b16 %v4310, %v4306
    %4375 = vmatpush.bf16.msra.mxu0 %v662
    %4376 = vmatpush.bf16.msra.mxu0 %v661
    %4377 = vmatpush.bf16.msra.mxu0 %v660
    %4378 = vmatpush.bf16.msra.mxu0 %v659
    %4379 = vmatpush.bf16.msra.mxu0 %v658
    %4380 = vmatpush.bf16.msra.mxu0 %v657
    %4381 = vmatpush.bf16.msra.mxu0 %v656
    %4382 = vmatpush.bf16.msra.mxu0 %v655
    %4383 = vmatmul.bf16.gmra.mxu0 %v4311
    %v4384 = vpop.f32.mrf.mxu0
    %v4385 = vadd.f32 0.0, %v4384
    %v4386 = vpop.f32.mrf.mxu0
    %v4387 = vadd.f32 0.0, %v4386
    %4388 = vmatmul.bf16.gmra.mxu0 %v4315
    %v4389 = vpop.f32.mrf.mxu0
    %v4390 = vadd.f32 0.0, %v4389
    %v4391 = vpop.f32.mrf.mxu0
    %v4392 = vadd.f32 0.0, %v4391
    %4393 = vmatmul.bf16.gmra.mxu0 %v4319
    %v4394 = vpop.f32.mrf.mxu0
    %v4395 = vadd.f32 0.0, %v4394
    %v4396 = vpop.f32.mrf.mxu0
    %v4397 = vadd.f32 0.0, %v4396
    %4398 = vmatmul.bf16.gmra.mxu0 %v4323
    %v4399 = vpop.f32.mrf.mxu0
    %v4400 = vadd.f32 0.0, %v4399
    %v4401 = vpop.f32.mrf.mxu0
    %v4402 = vadd.f32 0.0, %v4401
    %4403 = vmatmul.bf16.gmra.mxu0 %v4327
    %v4404 = vpop.f32.mrf.mxu0
    %v4405 = vadd.f32 0.0, %v4404
    %v4406 = vpop.f32.mrf.mxu0
    %v4407 = vadd.f32 0.0, %v4406
    %4408 = vmatmul.bf16.gmra.mxu0 %v4331
    %v4409 = vpop.f32.mrf.mxu0
    %v4410 = vadd.f32 0.0, %v4409
    %v4411 = vpop.f32.mrf.mxu0
    %v4412 = vadd.f32 0.0, %v4411
    %4413 = vmatmul.bf16.gmra.mxu0 %v4335
    %v4414 = vpop.f32.mrf.mxu0
    %v4415 = vadd.f32 0.0, %v4414
    %v4416 = vpop.f32.mrf.mxu0
    %v4417 = vadd.f32 0.0, %v4416
    %4418 = vmatmul.bf16.gmra.mxu0 %v4339
    %v4419 = vpop.f32.mrf.mxu0
    %v4420 = vadd.f32 0.0, %v4419
    %v4421 = vpop.f32.mrf.mxu0
    %v4422 = vadd.f32 0.0, %v4421
    %4423 = vdwg.mxu0
    %4424 = vmatpush.bf16.msra.mxu0 %v670
    %4425 = vmatpush.bf16.msra.mxu0 %v669
    %4426 = vmatpush.bf16.msra.mxu0 %v668
    %4427 = vmatpush.bf16.msra.mxu0 %v667
    %4428 = vmatpush.bf16.msra.mxu0 %v666
    %4429 = vmatpush.bf16.msra.mxu0 %v665
    %4430 = vmatpush.bf16.msra.mxu0 %v664
    %4431 = vmatpush.bf16.msra.mxu0 %v663
    %4432 = vmatmul.bf16.gmra.mxu0 %v4312
    %v4433 = vpop.f32.mrf.mxu0
    %v4434 = vadd.f32 %v4385, %v4433
    %v4435 = vpop.f32.mrf.mxu0
    %v4436 = vadd.f32 %v4387, %v4435
    %4437 = vmatmul.bf16.gmra.mxu0 %v4316
    %v4438 = vpop.f32.mrf.mxu0
    %v4439 = vadd.f32 %v4390, %v4438
    %v4440 = vpop.f32.mrf.mxu0
    %v4441 = vadd.f32 %v4392, %v4440
    %4442 = vmatmul.bf16.gmra.mxu0 %v4320
    %v4443 = vpop.f32.mrf.mxu0
    %v4444 = vadd.f32 %v4395, %v4443
    %v4445 = vpop.f32.mrf.mxu0
    %v4446 = vadd.f32 %v4397, %v4445
    %4447 = vmatmul.bf16.gmra.mxu0 %v4324
    %v4448 = vpop.f32.mrf.mxu0
    %v4449 = vadd.f32 %v4400, %v4448
    %v4450 = vpop.f32.mrf.mxu0
    %v4451 = vadd.f32 %v4402, %v4450
    %4452 = vmatmul.bf16.gmra.mxu0 %v4328
    %v4453 = vpop.f32.mrf.mxu0
    %v4454 = vadd.f32 %v4405, %v4453
    %v4455 = vpop.f32.mrf.mxu0
    %v4456 = vadd.f32 %v4407, %v4455
    %4457 = vmatmul.bf16.gmra.mxu0 %v4332
    %v4458 = vpop.f32.mrf.mxu0
    %v4459 = vadd.f32 %v4410, %v4458
    %v4460 = vpop.f32.mrf.mxu0
    %v4461 = vadd.f32 %v4412, %v4460
    %4462 = vmatmul.bf16.gmra.mxu0 %v4336
    %v4463 = vpop.f32.mrf.mxu0
    %v4464 = vadd.f32 %v4415, %v4463
    %v4465 = vpop.f32.mrf.mxu0
    %v4466 = vadd.f32 %v4417, %v4465
    %4467 = vmatmul.bf16.gmra.mxu0 %v4340
    %v4468 = vpop.f32.mrf.mxu0
    %v4469 = vadd.f32 %v4420, %v4468
    %v4470 = vpop.f32.mrf.mxu0
    %v4471 = vadd.f32 %v4422, %v4470
    %4472 = vdwg.mxu0
    %4473 = vmatpush.bf16.msra.mxu0 %v678
    %4474 = vmatpush.bf16.msra.mxu0 %v677
    %4475 = vmatpush.bf16.msra.mxu0 %v676
    %4476 = vmatpush.bf16.msra.mxu0 %v675
    %4477 = vmatpush.bf16.msra.mxu0 %v674
    %4478 = vmatpush.bf16.msra.mxu0 %v673
    %4479 = vmatpush.bf16.msra.mxu0 %v672
    %4480 = vmatpush.bf16.msra.mxu0 %v671
    %4481 = vmatmul.bf16.gmra.mxu0 %v4313
    %v4482 = vpop.f32.mrf.mxu0
    %v4483 = vadd.f32 %v4434, %v4482
    %v4484 = vpop.f32.mrf.mxu0
    %v4485 = vadd.f32 %v4436, %v4484
    %4486 = vmatmul.bf16.gmra.mxu0 %v4317
    %v4487 = vpop.f32.mrf.mxu0
    %v4488 = vadd.f32 %v4439, %v4487
    %v4489 = vpop.f32.mrf.mxu0
    %v4490 = vadd.f32 %v4441, %v4489
    %4491 = vmatmul.bf16.gmra.mxu0 %v4321
    %v4492 = vpop.f32.mrf.mxu0
    %v4493 = vadd.f32 %v4444, %v4492
    %v4494 = vpop.f32.mrf.mxu0
    %v4495 = vadd.f32 %v4446, %v4494
    %4496 = vmatmul.bf16.gmra.mxu0 %v4325
    %v4497 = vpop.f32.mrf.mxu0
    %v4498 = vadd.f32 %v4449, %v4497
    %v4499 = vpop.f32.mrf.mxu0
    %v4500 = vadd.f32 %v4451, %v4499
    %4501 = vmatmul.bf16.gmra.mxu0 %v4329
    %v4502 = vpop.f32.mrf.mxu0
    %v4503 = vadd.f32 %v4454, %v4502
    %v4504 = vpop.f32.mrf.mxu0
    %v4505 = vadd.f32 %v4456, %v4504
    %4506 = vmatmul.bf16.gmra.mxu0 %v4333
    %v4507 = vpop.f32.mrf.mxu0
    %v4508 = vadd.f32 %v4459, %v4507
    %v4509 = vpop.f32.mrf.mxu0
    %v4510 = vadd.f32 %v4461, %v4509
    %4511 = vmatmul.bf16.gmra.mxu0 %v4337
    %v4512 = vpop.f32.mrf.mxu0
    %v4513 = vadd.f32 %v4464, %v4512
    %v4514 = vpop.f32.mrf.mxu0
    %v4515 = vadd.f32 %v4466, %v4514
    %4516 = vmatmul.bf16.gmra.mxu0 %v4341
    %v4517 = vpop.f32.mrf.mxu0
    %v4518 = vadd.f32 %v4469, %v4517
    %v4519 = vpop.f32.mrf.mxu0
    %v4520 = vadd.f32 %v4471, %v4519
    %4521 = vdwg.mxu0
    %4522 = vmatpush.bf16.msra.mxu0 %v686
    %4523 = vmatpush.bf16.msra.mxu0 %v685
    %4524 = vmatpush.bf16.msra.mxu0 %v684
    %4525 = vmatpush.bf16.msra.mxu0 %v683
    %4526 = vmatpush.bf16.msra.mxu0 %v682
    %4527 = vmatpush.bf16.msra.mxu0 %v681
    %4528 = vmatpush.bf16.msra.mxu0 %v680
    %4529 = vmatpush.bf16.msra.mxu0 %v679
    %4530 = vmatmul.bf16.gmra.mxu0 %v4314
    %v4531 = vpop.f32.mrf.mxu0
    %v4532 = vadd.f32 %v4483, %v4531
    %v4533 = vpop.f32.mrf.mxu0
    %v4534 = vadd.f32 %v4485, %v4533
    %4535 = vmatmul.bf16.gmra.mxu0 %v4318
    %v4536 = vpop.f32.mrf.mxu0
    %v4537 = vadd.f32 %v4488, %v4536
    %v4538 = vpop.f32.mrf.mxu0
    %v4539 = vadd.f32 %v4490, %v4538
    %4540 = vmatmul.bf16.gmra.mxu0 %v4322
    %v4541 = vpop.f32.mrf.mxu0
    %v4542 = vadd.f32 %v4493, %v4541
    %v4543 = vpop.f32.mrf.mxu0
    %v4544 = vadd.f32 %v4495, %v4543
    %4545 = vmatmul.bf16.gmra.mxu0 %v4326
    %v4546 = vpop.f32.mrf.mxu0
    %v4547 = vadd.f32 %v4498, %v4546
    %v4548 = vpop.f32.mrf.mxu0
    %v4549 = vadd.f32 %v4500, %v4548
    %4550 = vmatmul.bf16.gmra.mxu0 %v4330
    %v4551 = vpop.f32.mrf.mxu0
    %v4552 = vadd.f32 %v4503, %v4551
    %v4553 = vpop.f32.mrf.mxu0
    %v4554 = vadd.f32 %v4505, %v4553
    %4555 = vmatmul.bf16.gmra.mxu0 %v4334
    %v4556 = vpop.f32.mrf.mxu0
    %v4557 = vadd.f32 %v4508, %v4556
    %v4558 = vpop.f32.mrf.mxu0
    %v4559 = vadd.f32 %v4510, %v4558
    %4560 = vmatmul.bf16.gmra.mxu0 %v4338
    %v4561 = vpop.f32.mrf.mxu0
    %v4562 = vadd.f32 %v4513, %v4561
    %v4563 = vpop.f32.mrf.mxu0
    %v4564 = vadd.f32 %v4515, %v4563
    %4565 = vmatmul.bf16.gmra.mxu0 %v4342
    %v4566 = vpop.f32.mrf.mxu0
    %v4567 = vadd.f32 %v4518, %v4566
    %v4568 = vpop.f32.mrf.mxu0
    %v4569 = vadd.f32 %v4520, %v4568
    %4570 = vdwg.mxu0
    %v4571 = vpack.c.bf16 %v4534, %v4532
    %v4572 = vpack.c.bf16 %v4539, %v4537
    %v4573 = vpack.c.bf16 %v4544, %v4542
    %v4574 = vpack.c.bf16 %v4549, %v4547
    %v4575 = vpack.c.bf16 %v4554, %v4552
    %v4576 = vpack.c.bf16 %v4559, %v4557
    %v4577 = vpack.c.bf16 %v4564, %v4562
    %v4578 = vpack.c.bf16 %v4569, %v4567
    %s4579 = scalar_lea.vmem [#allocation7], 448
    %v4580 = vld [vmem:[%s4579] sm:$0xf]
    %v4581 = vld [vmem:[%s4579 + $0x4] sm:$0xf]
    %v4582 = vld [vmem:[%s4579 + $0x8] sm:$0xf]
    %v4583 = vld [vmem:[%s4579 + $0xc] sm:$0xf]
    %v4584 = vld [vmem:[%s4579 + $0x10] sm:$0xf]
    %v4585 = vld [vmem:[%s4579 + $0x14] sm:$0xf]
    %v4586 = vld [vmem:[%s4579 + $0x18] sm:$0xf]
    %v4587 = vld [vmem:[%s4579 + $0x1c] sm:$0xf]
    %v4588 = vld [vmem:[%s4579 + $0x20] sm:$0xf]
    %v4589 = vld [vmem:[%s4579 + $0x24] sm:$0xf]
    %v4590 = vld [vmem:[%s4579 + $0x28] sm:$0xf]
    %v4591 = vld [vmem:[%s4579 + $0x2c] sm:$0xf]
    %v4592 = vld [vmem:[%s4579 + $0x30] sm:$0xf]
    %v4593 = vld [vmem:[%s4579 + $0x34] sm:$0xf]
    %v4594 = vld [vmem:[%s4579 + $0x38] sm:$0xf]
    %v4595 = vld [vmem:[%s4579 + $0x3c] sm:$0xf]
    %v4612 = vunpack.c.l.b16 %v4580
    %v4613 = vunpack.c.l.b16 %v4581
    %v4614 = vunpack.c.l.b16 %v4582
    %v4615 = vunpack.c.l.b16 %v4583
    %v4616 = vunpack.c.l.b16 %v4584
    %v4617 = vunpack.c.l.b16 %v4585
    %v4618 = vunpack.c.l.b16 %v4586
    %v4619 = vunpack.c.l.b16 %v4587
    %v4620 = vunpack.c.l.b16 %v4588
    %v4621 = vunpack.c.l.b16 %v4589
    %v4622 = vunpack.c.l.b16 %v4590
    %v4623 = vunpack.c.l.b16 %v4591
    %v4624 = vunpack.c.l.b16 %v4592
    %v4625 = vunpack.c.l.b16 %v4593
    %v4626 = vunpack.c.l.b16 %v4594
    %v4627 = vunpack.c.l.b16 %v4595
    %v4628 = vpack.c.b16 %v4613, %v4612
    %v4629 = vpack.c.b16 %v4615, %v4614
    %v4630 = vpack.c.b16 %v4617, %v4616
    %v4631 = vpack.c.b16 %v4619, %v4618
    %v4632 = vpack.c.b16 %v4621, %v4620
    %v4633 = vpack.c.b16 %v4623, %v4622
    %v4634 = vpack.c.b16 %v4625, %v4624
    %v4635 = vpack.c.b16 %v4627, %v4626
    %4644 = vmatpush.bf16.msra.mxu0 %v4635
    %4645 = vmatpush.bf16.msra.mxu0 %v4634
    %4646 = vmatpush.bf16.msra.mxu0 %v4633
    %4647 = vmatpush.bf16.msra.mxu0 %v4632
    %4648 = vmatpush.bf16.msra.mxu0 %v4631
    %4649 = vmatpush.bf16.msra.mxu0 %v4630
    %4650 = vmatpush.bf16.msra.mxu0 %v4629
    %4651 = vmatpush.bf16.msra.mxu0 %v4628
    %4652 = vmatmul.bf16.gmra.mxu0 %v4571
    %v4653 = vpop.f32.mrf.mxu0
    %v4654 = vadd.f32 0.0, %v4653
    %v4655 = vpop.f32.mrf.mxu0
    %v4656 = vadd.f32 0.0, %v4655
    %4657 = vmatmul.bf16.gmra.mxu0 %v4572
    %v4658 = vpop.f32.mrf.mxu0
    %v4659 = vadd.f32 0.0, %v4658
    %v4660 = vpop.f32.mrf.mxu0
    %v4661 = vadd.f32 0.0, %v4660
    %4662 = vmatmul.bf16.gmra.mxu0 %v4573
    %v4663 = vpop.f32.mrf.mxu0
    %v4664 = vadd.f32 0.0, %v4663
    %v4665 = vpop.f32.mrf.mxu0
    %v4666 = vadd.f32 0.0, %v4665
    %4667 = vmatmul.bf16.gmra.mxu0 %v4574
    %v4668 = vpop.f32.mrf.mxu0
    %v4669 = vadd.f32 0.0, %v4668
    %v4670 = vpop.f32.mrf.mxu0
    %v4671 = vadd.f32 0.0, %v4670
    %4672 = vmatmul.bf16.gmra.mxu0 %v4575
    %v4673 = vpop.f32.mrf.mxu0
    %v4674 = vadd.f32 0.0, %v4673
    %v4675 = vpop.f32.mrf.mxu0
    %v4676 = vadd.f32 0.0, %v4675
    %4677 = vmatmul.bf16.gmra.mxu0 %v4576
    %v4678 = vpop.f32.mrf.mxu0
    %v4679 = vadd.f32 0.0, %v4678
    %v4680 = vpop.f32.mrf.mxu0
    %v4681 = vadd.f32 0.0, %v4680
    %4682 = vmatmul.bf16.gmra.mxu0 %v4577
    %v4683 = vpop.f32.mrf.mxu0
    %v4684 = vadd.f32 0.0, %v4683
    %v4685 = vpop.f32.mrf.mxu0
    %v4686 = vadd.f32 0.0, %v4685
    %4687 = vmatmul.bf16.gmra.mxu0 %v4578
    %v4688 = vpop.f32.mrf.mxu0
    %v4689 = vadd.f32 0.0, %v4688
    %v4690 = vpop.f32.mrf.mxu0
    %v4691 = vadd.f32 0.0, %v4690
    %4692 = vdwg.mxu0
    %v4693 = vadd.f32 %v4166, %v4654
    %v4694 = vadd.f32 %v4167, %v4656
    %v4695 = vadd.f32 %v4168, %v4659
    %v4696 = vadd.f32 %v4169, %v4661
    %v4697 = vadd.f32 %v4170, %v4664
    %v4698 = vadd.f32 %v4171, %v4666
    %v4699 = vadd.f32 %v4172, %v4669
    %v4700 = vadd.f32 %v4173, %v4671
    %v4701 = vadd.f32 %v4174, %v4674
    %v4702 = vadd.f32 %v4175, %v4676
    %v4703 = vadd.f32 %v4176, %v4679
    %v4704 = vadd.f32 %v4177, %v4681
    %v4705 = vadd.f32 %v4178, %v4684
    %v4706 = vadd.f32 %v4179, %v4686
    %v4707 = vadd.f32 %v4180, %v4689
    %v4708 = vadd.f32 %v4181, %v4691
    %s4709 = scalar_lea.vmem [#allocation5], 2048
    %v4710 = vld [vmem:[%s4709] sm:$0xff]
    %v4711 = vld [vmem:[%s4709 + $0x8] sm:$0xff]
    %v4712 = vld [vmem:[%s4709 + $0x10] sm:$0xff]
    %v4713 = vld [vmem:[%s4709 + $0x18] sm:$0xff]
    %v4714 = vld [vmem:[%s4709 + $0x20] sm:$0xff]
    %v4715 = vld [vmem:[%s4709 + $0x28] sm:$0xff]
    %v4716 = vld [vmem:[%s4709 + $0x30] sm:$0xff]
    %v4717 = vld [vmem:[%s4709 + $0x38] sm:$0xff]
    %v4718 = vld [vmem:[%s4709 + $0x40] sm:$0xff]
    %v4719 = vld [vmem:[%s4709 + $0x48] sm:$0xff]
    %v4720 = vld [vmem:[%s4709 + $0x50] sm:$0xff]
    %v4721 = vld [vmem:[%s4709 + $0x58] sm:$0xff]
    %v4722 = vld [vmem:[%s4709 + $0x60] sm:$0xff]
    %v4723 = vld [vmem:[%s4709 + $0x68] sm:$0xff]
    %v4724 = vld [vmem:[%s4709 + $0x70] sm:$0xff]
    %v4725 = vld [vmem:[%s4709 + $0x78] sm:$0xff]
    %v4726 = vld [vmem:[%s4709 + $0x80] sm:$0xff]
    %v4727 = vld [vmem:[%s4709 + $0x88] sm:$0xff]
    %v4728 = vld [vmem:[%s4709 + $0x90] sm:$0xff]
    %v4729 = vld [vmem:[%s4709 + $0x98] sm:$0xff]
    %v4730 = vld [vmem:[%s4709 + $0xa0] sm:$0xff]
    %v4731 = vld [vmem:[%s4709 + $0xa8] sm:$0xff]
    %v4732 = vld [vmem:[%s4709 + $0xb0] sm:$0xff]
    %v4733 = vld [vmem:[%s4709 + $0xb8] sm:$0xff]
    %v4734 = vld [vmem:[%s4709 + $0xc0] sm:$0xff]
    %v4735 = vld [vmem:[%s4709 + $0xc8] sm:$0xff]
    %v4736 = vld [vmem:[%s4709 + $0xd0] sm:$0xff]
    %v4737 = vld [vmem:[%s4709 + $0xd8] sm:$0xff]
    %v4738 = vld [vmem:[%s4709 + $0xe0] sm:$0xff]
    %v4739 = vld [vmem:[%s4709 + $0xe8] sm:$0xff]
    %v4740 = vld [vmem:[%s4709 + $0xf0] sm:$0xff]
    %v4741 = vld [vmem:[%s4709 + $0xf8] sm:$0xff]
    %v4774 = vunpack.c.l.b16 %v4710
    %v4775 = vunpack.c.h.b16 %v4710
    %v4776 = vunpack.c.l.b16 %v4711
    %v4777 = vunpack.c.h.b16 %v4711
    %v4778 = vunpack.c.l.b16 %v4712
    %v4779 = vunpack.c.h.b16 %v4712
    %v4780 = vunpack.c.l.b16 %v4713
    %v4781 = vunpack.c.h.b16 %v4713
    %v4782 = vunpack.c.l.b16 %v4714
    %v4783 = vunpack.c.h.b16 %v4714
    %v4784 = vunpack.c.l.b16 %v4715
    %v4785 = vunpack.c.h.b16 %v4715
    %v4786 = vunpack.c.l.b16 %v4716
    %v4787 = vunpack.c.h.b16 %v4716
    %v4788 = vunpack.c.l.b16 %v4717
    %v4789 = vunpack.c.h.b16 %v4717
    %v4790 = vunpack.c.l.b16 %v4718
    %v4791 = vunpack.c.h.b16 %v4718
    %v4792 = vunpack.c.l.b16 %v4719
    %v4793 = vunpack.c.h.b16 %v4719
    %v4794 = vunpack.c.l.b16 %v4720
    %v4795 = vunpack.c.h.b16 %v4720
    %v4796 = vunpack.c.l.b16 %v4721
    %v4797 = vunpack.c.h.b16 %v4721
    %v4798 = vunpack.c.l.b16 %v4722
    %v4799 = vunpack.c.h.b16 %v4722
    %v4800 = vunpack.c.l.b16 %v4723
    %v4801 = vunpack.c.h.b16 %v4723
    %v4802 = vunpack.c.l.b16 %v4724
    %v4803 = vunpack.c.h.b16 %v4724
    %v4804 = vunpack.c.l.b16 %v4725
    %v4805 = vunpack.c.h.b16 %v4725
    %v4806 = vunpack.c.l.b16 %v4726
    %v4807 = vunpack.c.h.b16 %v4726
    %v4808 = vunpack.c.l.b16 %v4727
    %v4809 = vunpack.c.h.b16 %v4727
    %v4810 = vunpack.c.l.b16 %v4728
    %v4811 = vunpack.c.h.b16 %v4728
    %v4812 = vunpack.c.l.b16 %v4729
    %v4813 = vunpack.c.h.b16 %v4729
    %v4814 = vunpack.c.l.b16 %v4730
    %v4815 = vunpack.c.h.b16 %v4730
    %v4816 = vunpack.c.l.b16 %v4731
    %v4817 = vunpack.c.h.b16 %v4731
    %v4818 = vunpack.c.l.b16 %v4732
    %v4819 = vunpack.c.h.b16 %v4732
    %v4820 = vunpack.c.l.b16 %v4733
    %v4821 = vunpack.c.h.b16 %v4733
    %v4822 = vunpack.c.l.b16 %v4734
    %v4823 = vunpack.c.h.b16 %v4734
    %v4824 = vunpack.c.l.b16 %v4735
    %v4825 = vunpack.c.h.b16 %v4735
    %v4826 = vunpack.c.l.b16 %v4736
    %v4827 = vunpack.c.h.b16 %v4736
    %v4828 = vunpack.c.l.b16 %v4737
    %v4829 = vunpack.c.h.b16 %v4737
    %v4830 = vunpack.c.l.b16 %v4738
    %v4831 = vunpack.c.h.b16 %v4738
    %v4832 = vunpack.c.l.b16 %v4739
    %v4833 = vunpack.c.h.b16 %v4739
    %v4834 = vunpack.c.l.b16 %v4740
    %v4835 = vunpack.c.h.b16 %v4740
    %v4836 = vunpack.c.l.b16 %v4741
    %v4837 = vunpack.c.h.b16 %v4741
    %v4838 = vpack.c.b16 %v4778, %v4774
    %v4839 = vpack.c.b16 %v4779, %v4775
    %v4840 = vpack.c.b16 %v4780, %v4776
    %v4841 = vpack.c.b16 %v4781, %v4777
    %v4842 = vpack.c.b16 %v4786, %v4782
    %v4843 = vpack.c.b16 %v4787, %v4783
    %v4844 = vpack.c.b16 %v4788, %v4784
    %v4845 = vpack.c.b16 %v4789, %v4785
    %v4846 = vpack.c.b16 %v4794, %v4790
    %v4847 = vpack.c.b16 %v4795, %v4791
    %v4848 = vpack.c.b16 %v4796, %v4792
    %v4849 = vpack.c.b16 %v4797, %v4793
    %v4850 = vpack.c.b16 %v4802, %v4798
    %v4851 = vpack.c.b16 %v4803, %v4799
    %v4852 = vpack.c.b16 %v4804, %v4800
    %v4853 = vpack.c.b16 %v4805, %v4801
    %v4854 = vpack.c.b16 %v4810, %v4806
    %v4855 = vpack.c.b16 %v4811, %v4807
    %v4856 = vpack.c.b16 %v4812, %v4808
    %v4857 = vpack.c.b16 %v4813, %v4809
    %v4858 = vpack.c.b16 %v4818, %v4814
    %v4859 = vpack.c.b16 %v4819, %v4815
    %v4860 = vpack.c.b16 %v4820, %v4816
    %v4861 = vpack.c.b16 %v4821, %v4817
    %v4862 = vpack.c.b16 %v4826, %v4822
    %v4863 = vpack.c.b16 %v4827, %v4823
    %v4864 = vpack.c.b16 %v4828, %v4824
    %v4865 = vpack.c.b16 %v4829, %v4825
    %v4866 = vpack.c.b16 %v4834, %v4830
    %v4867 = vpack.c.b16 %v4835, %v4831
    %v4868 = vpack.c.b16 %v4836, %v4832
    %v4869 = vpack.c.b16 %v4837, %v4833
    %4902 = vmatpush.bf16.msra.mxu0 %v662
    %4903 = vmatpush.bf16.msra.mxu0 %v661
    %4904 = vmatpush.bf16.msra.mxu0 %v660
    %4905 = vmatpush.bf16.msra.mxu0 %v659
    %4906 = vmatpush.bf16.msra.mxu0 %v658
    %4907 = vmatpush.bf16.msra.mxu0 %v657
    %4908 = vmatpush.bf16.msra.mxu0 %v656
    %4909 = vmatpush.bf16.msra.mxu0 %v655
    %4910 = vmatmul.bf16.gmra.mxu0 %v4838
    %v4911 = vpop.f32.mrf.mxu0
    %v4912 = vadd.f32 0.0, %v4911
    %v4913 = vpop.f32.mrf.mxu0
    %v4914 = vadd.f32 0.0, %v4913
    %4915 = vmatmul.bf16.gmra.mxu0 %v4842
    %v4916 = vpop.f32.mrf.mxu0
    %v4917 = vadd.f32 0.0, %v4916
    %v4918 = vpop.f32.mrf.mxu0
    %v4919 = vadd.f32 0.0, %v4918
    %4920 = vmatmul.bf16.gmra.mxu0 %v4846
    %v4921 = vpop.f32.mrf.mxu0
    %v4922 = vadd.f32 0.0, %v4921
    %v4923 = vpop.f32.mrf.mxu0
    %v4924 = vadd.f32 0.0, %v4923
    %4925 = vmatmul.bf16.gmra.mxu0 %v4850
    %v4926 = vpop.f32.mrf.mxu0
    %v4927 = vadd.f32 0.0, %v4926
    %v4928 = vpop.f32.mrf.mxu0
    %v4929 = vadd.f32 0.0, %v4928
    %4930 = vmatmul.bf16.gmra.mxu0 %v4854
    %v4931 = vpop.f32.mrf.mxu0
    %v4932 = vadd.f32 0.0, %v4931
    %v4933 = vpop.f32.mrf.mxu0
    %v4934 = vadd.f32 0.0, %v4933
    %4935 = vmatmul.bf16.gmra.mxu0 %v4858
    %v4936 = vpop.f32.mrf.mxu0
    %v4937 = vadd.f32 0.0, %v4936
    %v4938 = vpop.f32.mrf.mxu0
    %v4939 = vadd.f32 0.0, %v4938
    %4940 = vmatmul.bf16.gmra.mxu0 %v4862
    %v4941 = vpop.f32.mrf.mxu0
    %v4942 = vadd.f32 0.0, %v4941
    %v4943 = vpop.f32.mrf.mxu0
    %v4944 = vadd.f32 0.0, %v4943
    %4945 = vmatmul.bf16.gmra.mxu0 %v4866
    %v4946 = vpop.f32.mrf.mxu0
    %v4947 = vadd.f32 0.0, %v4946
    %v4948 = vpop.f32.mrf.mxu0
    %v4949 = vadd.f32 0.0, %v4948
    %4950 = vdwg.mxu0
    %4951 = vmatpush.bf16.msra.mxu0 %v670
    %4952 = vmatpush.bf16.msra.mxu0 %v669
    %4953 = vmatpush.bf16.msra.mxu0 %v668
    %4954 = vmatpush.bf16.msra.mxu0 %v667
    %4955 = vmatpush.bf16.msra.mxu0 %v666
    %4956 = vmatpush.bf16.msra.mxu0 %v665
    %4957 = vmatpush.bf16.msra.mxu0 %v664
    %4958 = vmatpush.bf16.msra.mxu0 %v663
    %4959 = vmatmul.bf16.gmra.mxu0 %v4839
    %v4960 = vpop.f32.mrf.mxu0
    %v4961 = vadd.f32 %v4912, %v4960
    %v4962 = vpop.f32.mrf.mxu0
    %v4963 = vadd.f32 %v4914, %v4962
    %4964 = vmatmul.bf16.gmra.mxu0 %v4843
    %v4965 = vpop.f32.mrf.mxu0
    %v4966 = vadd.f32 %v4917, %v4965
    %v4967 = vpop.f32.mrf.mxu0
    %v4968 = vadd.f32 %v4919, %v4967
    %4969 = vmatmul.bf16.gmra.mxu0 %v4847
    %v4970 = vpop.f32.mrf.mxu0
    %v4971 = vadd.f32 %v4922, %v4970
    %v4972 = vpop.f32.mrf.mxu0
    %v4973 = vadd.f32 %v4924, %v4972
    %4974 = vmatmul.bf16.gmra.mxu0 %v4851
    %v4975 = vpop.f32.mrf.mxu0
    %v4976 = vadd.f32 %v4927, %v4975
    %v4977 = vpop.f32.mrf.mxu0
    %v4978 = vadd.f32 %v4929, %v4977
    %4979 = vmatmul.bf16.gmra.mxu0 %v4855
    %v4980 = vpop.f32.mrf.mxu0
    %v4981 = vadd.f32 %v4932, %v4980
    %v4982 = vpop.f32.mrf.mxu0
    %v4983 = vadd.f32 %v4934, %v4982
    %4984 = vmatmul.bf16.gmra.mxu0 %v4859
    %v4985 = vpop.f32.mrf.mxu0
    %v4986 = vadd.f32 %v4937, %v4985
    %v4987 = vpop.f32.mrf.mxu0
    %v4988 = vadd.f32 %v4939, %v4987
    %4989 = vmatmul.bf16.gmra.mxu0 %v4863
    %v4990 = vpop.f32.mrf.mxu0
    %v4991 = vadd.f32 %v4942, %v4990
    %v4992 = vpop.f32.mrf.mxu0
    %v4993 = vadd.f32 %v4944, %v4992
    %4994 = vmatmul.bf16.gmra.mxu0 %v4867
    %v4995 = vpop.f32.mrf.mxu0
    %v4996 = vadd.f32 %v4947, %v4995
    %v4997 = vpop.f32.mrf.mxu0
    %v4998 = vadd.f32 %v4949, %v4997
    %4999 = vdwg.mxu0
    %5000 = vmatpush.bf16.msra.mxu0 %v678
    %5001 = vmatpush.bf16.msra.mxu0 %v677
    %5002 = vmatpush.bf16.msra.mxu0 %v676
    %5003 = vmatpush.bf16.msra.mxu0 %v675
    %5004 = vmatpush.bf16.msra.mxu0 %v674
    %5005 = vmatpush.bf16.msra.mxu0 %v673
    %5006 = vmatpush.bf16.msra.mxu0 %v672
    %5007 = vmatpush.bf16.msra.mxu0 %v671
    %5008 = vmatmul.bf16.gmra.mxu0 %v4840
    %v5009 = vpop.f32.mrf.mxu0
    %v5010 = vadd.f32 %v4961, %v5009
    %v5011 = vpop.f32.mrf.mxu0
    %v5012 = vadd.f32 %v4963, %v5011
    %5013 = vmatmul.bf16.gmra.mxu0 %v4844
    %v5014 = vpop.f32.mrf.mxu0
    %v5015 = vadd.f32 %v4966, %v5014
    %v5016 = vpop.f32.mrf.mxu0
    %v5017 = vadd.f32 %v4968, %v5016
    %5018 = vmatmul.bf16.gmra.mxu0 %v4848
    %v5019 = vpop.f32.mrf.mxu0
    %v5020 = vadd.f32 %v4971, %v5019
    %v5021 = vpop.f32.mrf.mxu0
    %v5022 = vadd.f32 %v4973, %v5021
    %5023 = vmatmul.bf16.gmra.mxu0 %v4852
    %v5024 = vpop.f32.mrf.mxu0
    %v5025 = vadd.f32 %v4976, %v5024
    %v5026 = vpop.f32.mrf.mxu0
    %v5027 = vadd.f32 %v4978, %v5026
    %5028 = vmatmul.bf16.gmra.mxu0 %v4856
    %v5029 = vpop.f32.mrf.mxu0
    %v5030 = vadd.f32 %v4981, %v5029
    %v5031 = vpop.f32.mrf.mxu0
    %v5032 = vadd.f32 %v4983, %v5031
    %5033 = vmatmul.bf16.gmra.mxu0 %v4860
    %v5034 = vpop.f32.mrf.mxu0
    %v5035 = vadd.f32 %v4986, %v5034
    %v5036 = vpop.f32.mrf.mxu0
    %v5037 = vadd.f32 %v4988, %v5036
    %5038 = vmatmul.bf16.gmra.mxu0 %v4864
    %v5039 = vpop.f32.mrf.mxu0
    %v5040 = vadd.f32 %v4991, %v5039
    %v5041 = vpop.f32.mrf.mxu0
    %v5042 = vadd.f32 %v4993, %v5041
    %5043 = vmatmul.bf16.gmra.mxu0 %v4868
    %v5044 = vpop.f32.mrf.mxu0
    %v5045 = vadd.f32 %v4996, %v5044
    %v5046 = vpop.f32.mrf.mxu0
    %v5047 = vadd.f32 %v4998, %v5046
    %5048 = vdwg.mxu0
    %5049 = vmatpush.bf16.msra.mxu0 %v686
    %5050 = vmatpush.bf16.msra.mxu0 %v685
    %5051 = vmatpush.bf16.msra.mxu0 %v684
    %5052 = vmatpush.bf16.msra.mxu0 %v683
    %5053 = vmatpush.bf16.msra.mxu0 %v682
    %5054 = vmatpush.bf16.msra.mxu0 %v681
    %5055 = vmatpush.bf16.msra.mxu0 %v680
    %5056 = vmatpush.bf16.msra.mxu0 %v679
    %5057 = vmatmul.bf16.gmra.mxu0 %v4841
    %v5058 = vpop.f32.mrf.mxu0
    %v5059 = vadd.f32 %v5010, %v5058
    %v5060 = vpop.f32.mrf.mxu0
    %v5061 = vadd.f32 %v5012, %v5060
    %5062 = vmatmul.bf16.gmra.mxu0 %v4845
    %v5063 = vpop.f32.mrf.mxu0
    %v5064 = vadd.f32 %v5015, %v5063
    %v5065 = vpop.f32.mrf.mxu0
    %v5066 = vadd.f32 %v5017, %v5065
    %5067 = vmatmul.bf16.gmra.mxu0 %v4849
    %v5068 = vpop.f32.mrf.mxu0
    %v5069 = vadd.f32 %v5020, %v5068
    %v5070 = vpop.f32.mrf.mxu0
    %v5071 = vadd.f32 %v5022, %v5070
    %5072 = vmatmul.bf16.gmra.mxu0 %v4853
    %v5073 = vpop.f32.mrf.mxu0
    %v5074 = vadd.f32 %v5025, %v5073
    %v5075 = vpop.f32.mrf.mxu0
    %v5076 = vadd.f32 %v5027, %v5075
    %5077 = vmatmul.bf16.gmra.mxu0 %v4857
    %v5078 = vpop.f32.mrf.mxu0
    %v5079 = vadd.f32 %v5030, %v5078
    %v5080 = vpop.f32.mrf.mxu0
    %v5081 = vadd.f32 %v5032, %v5080
    %5082 = vmatmul.bf16.gmra.mxu0 %v4861
    %v5083 = vpop.f32.mrf.mxu0
    %v5084 = vadd.f32 %v5035, %v5083
    %v5085 = vpop.f32.mrf.mxu0
    %v5086 = vadd.f32 %v5037, %v5085
    %5087 = vmatmul.bf16.gmra.mxu0 %v4865
    %v5088 = vpop.f32.mrf.mxu0
    %v5089 = vadd.f32 %v5040, %v5088
    %v5090 = vpop.f32.mrf.mxu0
    %v5091 = vadd.f32 %v5042, %v5090
    %5092 = vmatmul.bf16.gmra.mxu0 %v4869
    %v5093 = vpop.f32.mrf.mxu0
    %v5094 = vadd.f32 %v5045, %v5093
    %v5095 = vpop.f32.mrf.mxu0
    %v5096 = vadd.f32 %v5047, %v5095
    %5097 = vdwg.mxu0
    %v5098 = vpack.c.bf16 %v5061, %v5059
    %v5099 = vpack.c.bf16 %v5066, %v5064
    %v5100 = vpack.c.bf16 %v5071, %v5069
    %v5101 = vpack.c.bf16 %v5076, %v5074
    %v5102 = vpack.c.bf16 %v5081, %v5079
    %v5103 = vpack.c.bf16 %v5086, %v5084
    %v5104 = vpack.c.bf16 %v5091, %v5089
    %v5105 = vpack.c.bf16 %v5096, %v5094
    %s5106 = scalar_lea.vmem [#allocation7], 512
    %v5107 = vld [vmem:[%s5106] sm:$0xf]
    %v5108 = vld [vmem:[%s5106 + $0x4] sm:$0xf]
    %v5109 = vld [vmem:[%s5106 + $0x8] sm:$0xf]
    %v5110 = vld [vmem:[%s5106 + $0xc] sm:$0xf]
    %v5111 = vld [vmem:[%s5106 + $0x10] sm:$0xf]
    %v5112 = vld [vmem:[%s5106 + $0x14] sm:$0xf]
    %v5113 = vld [vmem:[%s5106 + $0x18] sm:$0xf]
    %v5114 = vld [vmem:[%s5106 + $0x1c] sm:$0xf]
    %v5115 = vld [vmem:[%s5106 + $0x20] sm:$0xf]
    %v5116 = vld [vmem:[%s5106 + $0x24] sm:$0xf]
    %v5117 = vld [vmem:[%s5106 + $0x28] sm:$0xf]
    %v5118 = vld [vmem:[%s5106 + $0x2c] sm:$0xf]
    %v5119 = vld [vmem:[%s5106 + $0x30] sm:$0xf]
    %v5120 = vld [vmem:[%s5106 + $0x34] sm:$0xf]
    %v5121 = vld [vmem:[%s5106 + $0x38] sm:$0xf]
    %v5122 = vld [vmem:[%s5106 + $0x3c] sm:$0xf]
    %v5139 = vunpack.c.l.b16 %v5107
    %v5140 = vunpack.c.l.b16 %v5108
    %v5141 = vunpack.c.l.b16 %v5109
    %v5142 = vunpack.c.l.b16 %v5110
    %v5143 = vunpack.c.l.b16 %v5111
    %v5144 = vunpack.c.l.b16 %v5112
    %v5145 = vunpack.c.l.b16 %v5113
    %v5146 = vunpack.c.l.b16 %v5114
    %v5147 = vunpack.c.l.b16 %v5115
    %v5148 = vunpack.c.l.b16 %v5116
    %v5149 = vunpack.c.l.b16 %v5117
    %v5150 = vunpack.c.l.b16 %v5118
    %v5151 = vunpack.c.l.b16 %v5119
    %v5152 = vunpack.c.l.b16 %v5120
    %v5153 = vunpack.c.l.b16 %v5121
    %v5154 = vunpack.c.l.b16 %v5122
    %v5155 = vpack.c.b16 %v5140, %v5139
    %v5156 = vpack.c.b16 %v5142, %v5141
    %v5157 = vpack.c.b16 %v5144, %v5143
    %v5158 = vpack.c.b16 %v5146, %v5145
    %v5159 = vpack.c.b16 %v5148, %v5147
    %v5160 = vpack.c.b16 %v5150, %v5149
    %v5161 = vpack.c.b16 %v5152, %v5151
    %v5162 = vpack.c.b16 %v5154, %v5153
    %5171 = vmatpush.bf16.msra.mxu0 %v5162
    %5172 = vmatpush.bf16.msra.mxu0 %v5161
    %5173 = vmatpush.bf16.msra.mxu0 %v5160
    %5174 = vmatpush.bf16.msra.mxu0 %v5159
    %5175 = vmatpush.bf16.msra.mxu0 %v5158
    %5176 = vmatpush.bf16.msra.mxu0 %v5157
    %5177 = vmatpush.bf16.msra.mxu0 %v5156
    %5178 = vmatpush.bf16.msra.mxu0 %v5155
    %5179 = vmatmul.bf16.gmra.mxu0 %v5098
    %v5180 = vpop.f32.mrf.mxu0
    %v5181 = vadd.f32 0.0, %v5180
    %v5182 = vpop.f32.mrf.mxu0
    %v5183 = vadd.f32 0.0, %v5182
    %5184 = vmatmul.bf16.gmra.mxu0 %v5099
    %v5185 = vpop.f32.mrf.mxu0
    %v5186 = vadd.f32 0.0, %v5185
    %v5187 = vpop.f32.mrf.mxu0
    %v5188 = vadd.f32 0.0, %v5187
    %5189 = vmatmul.bf16.gmra.mxu0 %v5100
    %v5190 = vpop.f32.mrf.mxu0
    %v5191 = vadd.f32 0.0, %v5190
    %v5192 = vpop.f32.mrf.mxu0
    %v5193 = vadd.f32 0.0, %v5192
    %5194 = vmatmul.bf16.gmra.mxu0 %v5101
    %v5195 = vpop.f32.mrf.mxu0
    %v5196 = vadd.f32 0.0, %v5195
    %v5197 = vpop.f32.mrf.mxu0
    %v5198 = vadd.f32 0.0, %v5197
    %5199 = vmatmul.bf16.gmra.mxu0 %v5102
    %v5200 = vpop.f32.mrf.mxu0
    %v5201 = vadd.f32 0.0, %v5200
    %v5202 = vpop.f32.mrf.mxu0
    %v5203 = vadd.f32 0.0, %v5202
    %5204 = vmatmul.bf16.gmra.mxu0 %v5103
    %v5205 = vpop.f32.mrf.mxu0
    %v5206 = vadd.f32 0.0, %v5205
    %v5207 = vpop.f32.mrf.mxu0
    %v5208 = vadd.f32 0.0, %v5207
    %5209 = vmatmul.bf16.gmra.mxu0 %v5104
    %v5210 = vpop.f32.mrf.mxu0
    %v5211 = vadd.f32 0.0, %v5210
    %v5212 = vpop.f32.mrf.mxu0
    %v5213 = vadd.f32 0.0, %v5212
    %5214 = vmatmul.bf16.gmra.mxu0 %v5105
    %v5215 = vpop.f32.mrf.mxu0
    %v5216 = vadd.f32 0.0, %v5215
    %v5217 = vpop.f32.mrf.mxu0
    %v5218 = vadd.f32 0.0, %v5217
    %5219 = vdwg.mxu0
    %v5220 = vadd.f32 %v4693, %v5181
    %v5221 = vadd.f32 %v4694, %v5183
    %v5222 = vadd.f32 %v4695, %v5186
    %v5223 = vadd.f32 %v4696, %v5188
    %v5224 = vadd.f32 %v4697, %v5191
    %v5225 = vadd.f32 %v4698, %v5193
    %v5226 = vadd.f32 %v4699, %v5196
    %v5227 = vadd.f32 %v4700, %v5198
    %v5228 = vadd.f32 %v4701, %v5201
    %v5229 = vadd.f32 %v4702, %v5203
    %v5230 = vadd.f32 %v4703, %v5206
    %v5231 = vadd.f32 %v4704, %v5208
    %v5232 = vadd.f32 %v4705, %v5211
    %v5233 = vadd.f32 %v4706, %v5213
    %v5234 = vadd.f32 %v4707, %v5216
    %v5235 = vadd.f32 %v4708, %v5218
    %v5236 = vadd.f32 %v5220, %v5221
    %v5237 = vadd.f32 %v5236, %v5222
    %v5238 = vadd.f32 %v5237, %v5223
    %v5239 = vadd.f32 %v5238, %v5224
    %v5240 = vadd.f32 %v5239, %v5225
    %v5241 = vadd.f32 %v5240, %v5226
    %v5242 = vadd.f32 %v5241, %v5227
    %v5243 = vadd.f32 %v5242, %v5228
    %v5244 = vadd.f32 %v5243, %v5229
    %v5245 = vadd.f32 %v5244, %v5230
    %v5246 = vadd.f32 %v5245, %v5231
    %v5247 = vadd.f32 %v5246, %v5232
    %v5248 = vadd.f32 %v5247, %v5233
    %v5249 = vadd.f32 %v5248, %v5234
    %v5250 = vadd.f32 %v5249, %v5235
    %v5251 = vrot.slane %v5250, 4
    %v5252 = vadd.f32 %v5250, %v5251
    %v5253 = vrot.slane %v5252, 2
    %v5254 = vadd.f32 %v5252, %v5253
    %v5255 = vrot.slane %v5254, 1
    %v5256 = vadd.f32 %v5254, %v5255
    %v5257 = vrcp.pop 128.0
    %v5258 = vmul.f32 128.0, %v5257
    %v5259 = vsub.f32 1.0, %v5258
    %v5260 = vmul.f32 %v5257, %v5259
    %v5261 = vadd.f32 %v5257, %v5260
    %vm5262 = vweird.f32 %v5257
    %v5263 = vsel %vm5262, %v5257, %v5261
    %v5264 = vmul.f32 %v5256, %v5263
    %v5265 = vsub.f32 %v5220, %v5264
    %v5266 = vsub.f32 %v5221, %v5264
    %v5267 = vsub.f32 %v5222, %v5264
    %v5268 = vsub.f32 %v5223, %v5264
    %v5269 = vsub.f32 %v5224, %v5264
    %v5270 = vsub.f32 %v5225, %v5264
    %v5271 = vsub.f32 %v5226, %v5264
    %v5272 = vsub.f32 %v5227, %v5264
    %v5273 = vsub.f32 %v5228, %v5264
    %v5274 = vsub.f32 %v5229, %v5264
    %v5275 = vsub.f32 %v5230, %v5264
    %v5276 = vsub.f32 %v5231, %v5264
    %v5277 = vsub.f32 %v5232, %v5264
    %v5278 = vsub.f32 %v5233, %v5264
    %v5279 = vsub.f32 %v5234, %v5264
    %v5280 = vsub.f32 %v5235, %v5264
    %v5281 = vmul.f32 %v5265, %v5265
    %v5282 = vmul.f32 %v5266, %v5266
    %v5283 = vmul.f32 %v5267, %v5267
    %v5284 = vmul.f32 %v5268, %v5268
    %v5285 = vmul.f32 %v5269, %v5269
    %v5286 = vmul.f32 %v5270, %v5270
    %v5287 = vmul.f32 %v5271, %v5271
    %v5288 = vmul.f32 %v5272, %v5272
    %v5289 = vmul.f32 %v5273, %v5273
    %v5290 = vmul.f32 %v5274, %v5274
    %v5291 = vmul.f32 %v5275, %v5275
    %v5292 = vmul.f32 %v5276, %v5276
    %v5293 = vmul.f32 %v5277, %v5277
    %v5294 = vmul.f32 %v5278, %v5278
    %v5295 = vmul.f32 %v5279, %v5279
    %v5296 = vmul.f32 %v5280, %v5280
    %v5297 = vadd.f32 %v5281, %v5282
    %v5298 = vadd.f32 %v5297, %v5283
    %v5299 = vadd.f32 %v5298, %v5284
    %v5300 = vadd.f32 %v5299, %v5285
    %v5301 = vadd.f32 %v5300, %v5286
    %v5302 = vadd.f32 %v5301, %v5287
    %v5303 = vadd.f32 %v5302, %v5288
    %v5304 = vadd.f32 %v5303, %v5289
    %v5305 = vadd.f32 %v5304, %v5290
    %v5306 = vadd.f32 %v5305, %v5291
    %v5307 = vadd.f32 %v5306, %v5292
    %v5308 = vadd.f32 %v5307, %v5293
    %v5309 = vadd.f32 %v5308, %v5294
    %v5310 = vadd.f32 %v5309, %v5295
    %v5311 = vadd.f32 %v5310, %v5296
    %v5312 = vrot.slane %v5311, 4
    %v5313 = vadd.f32 %v5311, %v5312
    %v5314 = vrot.slane %v5313, 2
    %v5315 = vadd.f32 %v5313, %v5314
    %v5316 = vrot.slane %v5315, 1
    %v5317 = vadd.f32 %v5315, %v5316
    %v5318 = vmul.f32 %v5317, %v5263
    %v5319 = vadd.f32 %v5318, 1e-05
    %v5320 = vrsqrt.pop %v5319
    %v5321 = vmul.f32 %v5320, %v5319
    %v5322 = vmul.f32 %v5321, %v5320
    %v5323 = vmul.f32 0.5, %v5322
    %v5324 = vsub.f32 1.5, %v5323
    %v5325 = vmul.f32 %v5320, %v5324
    %vm5326 = vweird.f32 %v5319
    %vm5327 = vweird.f32 %v5320
    %vm5328 = vmor %vm5326, %vm5327
    %v5329 = vsel %vm5328, %v5320, %v5325
    %v5330 = vmul.f32 %v5265, %v5329
    %v5331 = vmul.f32 %v5266, %v5329
    %v5332 = vmul.f32 %v5267, %v5329
    %v5333 = vmul.f32 %v5268, %v5329
    %v5334 = vmul.f32 %v5269, %v5329
    %v5335 = vmul.f32 %v5270, %v5329
    %v5336 = vmul.f32 %v5271, %v5329
    %v5337 = vmul.f32 %v5272, %v5329
    %v5338 = vmul.f32 %v5273, %v5329
    %v5339 = vmul.f32 %v5274, %v5329
    %v5340 = vmul.f32 %v5275, %v5329
    %v5341 = vmul.f32 %v5276, %v5329
    %v5342 = vmul.f32 %v5277, %v5329
    %v5343 = vmul.f32 %v5278, %v5329
    %v5344 = vmul.f32 %v5279, %v5329
    %v5345 = vmul.f32 %v5280, %v5329
    %v5346 = vld [vmem:[#allocation8] sm:$0x1]
    %v5348 = vperm.slane %v5346, 0
    %v5350 = vmul.f32 %v5330, %v5348
    %v5351 = vmul.f32 %v5331, %v5348
    %v5352 = vmul.f32 %v5332, %v5348
    %v5353 = vmul.f32 %v5333, %v5348
    %v5354 = vmul.f32 %v5334, %v5348
    %v5355 = vmul.f32 %v5335, %v5348
    %v5356 = vmul.f32 %v5336, %v5348
    %v5357 = vmul.f32 %v5337, %v5348
    %v5358 = vmul.f32 %v5338, %v5348
    %v5359 = vmul.f32 %v5339, %v5348
    %v5360 = vmul.f32 %v5340, %v5348
    %v5361 = vmul.f32 %v5341, %v5348
    %v5362 = vmul.f32 %v5342, %v5348
    %v5363 = vmul.f32 %v5343, %v5348
    %v5364 = vmul.f32 %v5344, %v5348
    %v5365 = vmul.f32 %v5345, %v5348
    %v5366 = vld [vmem:[#allocation10] sm:$0x1]
    %v5368 = vperm.slane %v5366, 0
    %v5370 = vadd.f32 %v5350, %v5368
    %v5371 = vadd.f32 %v5351, %v5368
    %v5372 = vadd.f32 %v5352, %v5368
    %v5373 = vadd.f32 %v5353, %v5368
    %v5374 = vadd.f32 %v5354, %v5368
    %v5375 = vadd.f32 %v5355, %v5368
    %v5376 = vadd.f32 %v5356, %v5368
    %v5377 = vadd.f32 %v5357, %v5368
    %v5378 = vadd.f32 %v5358, %v5368
    %v5379 = vadd.f32 %v5359, %v5368
    %v5380 = vadd.f32 %v5360, %v5368
    %v5381 = vadd.f32 %v5361, %v5368
    %v5382 = vadd.f32 %v5362, %v5368
    %v5383 = vadd.f32 %v5363, %v5368
    %v5384 = vadd.f32 %v5364, %v5368
    %v5385 = vadd.f32 %v5365, %v5368
    %v5386 = vmax.f32 %v5370, 0.0
    %v5387 = vmax.f32 %v5371, 0.0
    %v5388 = vmax.f32 %v5372, 0.0
    %v5389 = vmax.f32 %v5373, 0.0
    %v5390 = vmax.f32 %v5374, 0.0
    %v5391 = vmax.f32 %v5375, 0.0
    %v5392 = vmax.f32 %v5376, 0.0
    %v5393 = vmax.f32 %v5377, 0.0
    %v5394 = vmax.f32 %v5378, 0.0
    %v5395 = vmax.f32 %v5379, 0.0
    %v5396 = vmax.f32 %v5380, 0.0
    %v5397 = vmax.f32 %v5381, 0.0
    %v5398 = vmax.f32 %v5382, 0.0
    %v5399 = vmax.f32 %v5383, 0.0
    %v5400 = vmax.f32 %v5384, 0.0
    %v5401 = vmax.f32 %v5385, 0.0
    %v5402 = vpack.c.bf16 %v5387, %v5386
    %v5403 = vpack.c.bf16 %v5389, %v5388
    %v5404 = vpack.c.bf16 %v5391, %v5390
    %v5405 = vpack.c.bf16 %v5393, %v5392
    %v5406 = vpack.c.bf16 %v5395, %v5394
    %v5407 = vpack.c.bf16 %v5397, %v5396
    %v5408 = vpack.c.bf16 %v5399, %v5398
    %v5409 = vpack.c.bf16 %v5401, %v5400
    %v5410 = vld [vmem:[#allocation11] sm:$0xf]
    %v5411 = vld [vmem:[#allocation11 + $0x4] sm:$0xf]
    %v5412 = vld [vmem:[#allocation11 + $0x8] sm:$0xf]
    %v5413 = vld [vmem:[#allocation11 + $0xc] sm:$0xf]
    %v5418 = vunpack.c.l.b16 %v5410
    %v5419 = vunpack.c.l.b16 %v5411
    %v5420 = vunpack.c.l.b16 %v5412
    %v5421 = vunpack.c.l.b16 %v5413
    %v5422 = vpack.c.b16 %v5419, %v5418
    %v5423 = vpack.c.b16 %v5421, %v5420
    %5426 = vmatpush.bf16.msra.mxu0 %v5409
    %5427 = vmatpush.bf16.msra.mxu0 %v5408
    %5428 = vmatpush.bf16.msra.mxu0 %v5407
    %5429 = vmatpush.bf16.msra.mxu0 %v5406
    %5430 = vmatpush.bf16.msra.mxu0 %v5405
    %5431 = vmatpush.bf16.msra.mxu0 %v5404
    %5432 = vmatpush.bf16.msra.mxu0 %v5403
    %5433 = vmatpush.bf16.msra.mxu0 %v5402
    %5434 = vmatmul.bf16.gmra.mxu0 %v5422
    %v5435 = vpop.f32.mrf.mxu0
    %v5436 = vadd.f32 0.0, %v5435
    %v5437 = vpop.f32.mrf.mxu0
    %v5438 = vadd.f32 0.0, %v5437
    %5439 = vmatmul.bf16.gmra.mxu0 %v5423
    %v5440 = vpop.f32.mrf.mxu0
    %v5441 = vadd.f32 0.0, %v5440
    %v5442 = vpop.f32.mrf.mxu0
    %v5443 = vadd.f32 0.0, %v5442
    %5444 = vdwg.mxu0
    %v5445 = vpack.c.bf16 %v5438, %v5436
    %v5446 = vpack.c.bf16 %v5443, %v5441
    %v5447 = vld [vmem:[#allocation13] sm:$0xf]
    %v5448 = vld [vmem:[#allocation13 + $0x4] sm:$0xf]
    %v5449 = vld [vmem:[#allocation13 + $0x8] sm:$0xf]
    %v5450 = vld [vmem:[#allocation13 + $0xc] sm:$0xf]
    %v5451 = vld [vmem:[#allocation13 + $0x10] sm:$0xf]
    %v5452 = vld [vmem:[#allocation13 + $0x14] sm:$0xf]
    %v5453 = vld [vmem:[#allocation13 + $0x18] sm:$0xf]
    %v5454 = vld [vmem:[#allocation13 + $0x1c] sm:$0xf]
    %v5455 = vld [vmem:[#allocation13 + $0x20] sm:$0xf]
    %v5456 = vld [vmem:[#allocation13 + $0x24] sm:$0xf]
    %v5457 = vld [vmem:[#allocation13 + $0x28] sm:$0xf]
    %v5458 = vld [vmem:[#allocation13 + $0x2c] sm:$0xf]
    %v5459 = vld [vmem:[#allocation13 + $0x30] sm:$0xf]
    %v5460 = vld [vmem:[#allocation13 + $0x34] sm:$0xf]
    %v5461 = vld [vmem:[#allocation13 + $0x38] sm:$0xf]
    %v5462 = vld [vmem:[#allocation13 + $0x3c] sm:$0xf]
    %s5463 = scalar_lea.vmem [#allocation11], 16
    %v5464 = vld [vmem:[%s5463] sm:$0xf]
    %v5465 = vld [vmem:[%s5463 + $0x4] sm:$0xf]
    %v5466 = vld [vmem:[%s5463 + $0x8] sm:$0xf]
    %v5467 = vld [vmem:[%s5463 + $0xc] sm:$0xf]
    %v5472 = vunpack.c.l.b16 %v5464
    %v5473 = vunpack.c.l.b16 %v5465
    %v5474 = vunpack.c.l.b16 %v5466
    %v5475 = vunpack.c.l.b16 %v5467
    %v5476 = vpack.c.b16 %v5473, %v5472
    %v5477 = vpack.c.b16 %v5475, %v5474
    %5480 = vmatpush.bf16.msra.mxu0 %v5409
    %5481 = vmatpush.bf16.msra.mxu0 %v5408
    %5482 = vmatpush.bf16.msra.mxu0 %v5407
    %5483 = vmatpush.bf16.msra.mxu0 %v5406
    %5484 = vmatpush.bf16.msra.mxu0 %v5405
    %5485 = vmatpush.bf16.msra.mxu0 %v5404
    %5486 = vmatpush.bf16.msra.mxu0 %v5403
    %5487 = vmatpush.bf16.msra.mxu0 %v5402
    %5488 = vmatmul.bf16.gmra.mxu0 %v5476
    %v5489 = vpop.f32.mrf.mxu0
    %v5490 = vadd.f32 0.0, %v5489
    %v5491 = vpop.f32.mrf.mxu0
    %v5492 = vadd.f32 0.0, %v5491
    %5493 = vmatmul.bf16.gmra.mxu0 %v5477
    %v5494 = vpop.f32.mrf.mxu0
    %v5495 = vadd.f32 0.0, %v5494
    %v5496 = vpop.f32.mrf.mxu0
    %v5497 = vadd.f32 0.0, %v5496
    %5498 = vdwg.mxu0
    %v5499 = vpack.c.bf16 %v5492, %v5490
    %v5500 = vpack.c.bf16 %v5497, %v5495
    %s5501 = scalar_lea.vmem [#allocation13], 64
    %v5502 = vld [vmem:[%s5501] sm:$0xf]
    %v5503 = vld [vmem:[%s5501 + $0x4] sm:$0xf]
    %v5504 = vld [vmem:[%s5501 + $0x8] sm:$0xf]
    %v5505 = vld [vmem:[%s5501 + $0xc] sm:$0xf]
    %v5506 = vld [vmem:[%s5501 + $0x10] sm:$0xf]
    %v5507 = vld [vmem:[%s5501 + $0x14] sm:$0xf]
    %v5508 = vld [vmem:[%s5501 + $0x18] sm:$0xf]
    %v5509 = vld [vmem:[%s5501 + $0x1c] sm:$0xf]
    %v5510 = vld [vmem:[%s5501 + $0x20] sm:$0xf]
    %v5511 = vld [vmem:[%s5501 + $0x24] sm:$0xf]
    %v5512 = vld [vmem:[%s5501 + $0x28] sm:$0xf]
    %v5513 = vld [vmem:[%s5501 + $0x2c] sm:$0xf]
    %v5514 = vld [vmem:[%s5501 + $0x30] sm:$0xf]
    %v5515 = vld [vmem:[%s5501 + $0x34] sm:$0xf]
    %v5516 = vld [vmem:[%s5501 + $0x38] sm:$0xf]
    %v5517 = vld [vmem:[%s5501 + $0x3c] sm:$0xf]
    %v5534 = vunpack.c.l.b16 %v5502
    %v5535 = vunpack.c.l.b16 %v5503
    %v5536 = vunpack.c.l.b16 %v5504
    %v5537 = vunpack.c.l.b16 %v5505
    %v5538 = vunpack.c.l.b16 %v5506
    %v5539 = vunpack.c.l.b16 %v5507
    %v5540 = vunpack.c.l.b16 %v5508
    %v5541 = vunpack.c.l.b16 %v5509
    %v5542 = vunpack.c.l.b16 %v5510
    %v5543 = vunpack.c.l.b16 %v5511
    %v5544 = vunpack.c.l.b16 %v5512
    %v5545 = vunpack.c.l.b16 %v5513
    %v5546 = vunpack.c.l.b16 %v5514
    %v5547 = vunpack.c.l.b16 %v5515
    %v5548 = vunpack.c.l.b16 %v5516
    %v5549 = vunpack.c.l.b16 %v5517
    %v5550 = vpack.c.b16 %v5535, %v5534
    %v5551 = vpack.c.b16 %v5537, %v5536
    %v5552 = vpack.c.b16 %v5539, %v5538
    %v5553 = vpack.c.b16 %v5541, %v5540
    %v5554 = vpack.c.b16 %v5543, %v5542
    %v5555 = vpack.c.b16 %v5545, %v5544
    %v5556 = vpack.c.b16 %v5547, %v5546
    %v5557 = vpack.c.b16 %v5549, %v5548
    %5566 = vmatpush.bf16.msra.mxu0 %v5557
    %5567 = vmatpush.bf16.msra.mxu0 %v5556
    %5568 = vmatpush.bf16.msra.mxu0 %v5555
    %5569 = vmatpush.bf16.msra.mxu0 %v5554
    %5570 = vmatpush.bf16.msra.mxu0 %v5553
    %5571 = vmatpush.bf16.msra.mxu0 %v5552
    %5572 = vmatpush.bf16.msra.mxu0 %v5551
    %5573 = vmatpush.bf16.msra.mxu0 %v5550
    %5574 = vmatmul.bf16.gmra.mxu0 %v5499
    %v5575 = vpop.f32.mrf.mxu0
    %v5576 = vadd.f32 0.0, %v5575
    %v5577 = vpop.f32.mrf.mxu0
    %v5578 = vadd.f32 0.0, %v5577
    %5579 = vmatmul.bf16.gmra.mxu0 %v5500
    %v5580 = vpop.f32.mrf.mxu0
    %v5581 = vadd.f32 0.0, %v5580
    %v5582 = vpop.f32.mrf.mxu0
    %v5583 = vadd.f32 0.0, %v5582
    %5584 = vdwg.mxu0
    %v5601 = vunpack.c.l.b16 %v5447
    %v5602 = vunpack.c.l.b16 %v5448
    %v5603 = vunpack.c.l.b16 %v5449
    %v5604 = vunpack.c.l.b16 %v5450
    %v5605 = vunpack.c.l.b16 %v5451
    %v5606 = vunpack.c.l.b16 %v5452
    %v5607 = vunpack.c.l.b16 %v5453
    %v5608 = vunpack.c.l.b16 %v5454
    %v5609 = vunpack.c.l.b16 %v5455
    %v5610 = vunpack.c.l.b16 %v5456
    %v5611 = vunpack.c.l.b16 %v5457
    %v5612 = vunpack.c.l.b16 %v5458
    %v5613 = vunpack.c.l.b16 %v5459
    %v5614 = vunpack.c.l.b16 %v5460
    %v5615 = vunpack.c.l.b16 %v5461
    %v5616 = vunpack.c.l.b16 %v5462
    %v5617 = vpack.c.b16 %v5602, %v5601
    %v5618 = vpack.c.b16 %v5604, %v5603
    %v5619 = vpack.c.b16 %v5606, %v5605
    %v5620 = vpack.c.b16 %v5608, %v5607
    %v5621 = vpack.c.b16 %v5610, %v5609
    %v5622 = vpack.c.b16 %v5612, %v5611
    %v5623 = vpack.c.b16 %v5614, %v5613
    %v5624 = vpack.c.b16 %v5616, %v5615
    %5633 = vmatpush.bf16.msra.mxu0 %v5624
    %5634 = vmatpush.bf16.msra.mxu0 %v5623
    %5635 = vmatpush.bf16.msra.mxu0 %v5622
    %5636 = vmatpush.bf16.msra.mxu0 %v5621
    %5637 = vmatpush.bf16.msra.mxu0 %v5620
    %5638 = vmatpush.bf16.msra.mxu0 %v5619
    %5639 = vmatpush.bf16.msra.mxu0 %v5618
    %5640 = vmatpush.bf16.msra.mxu0 %v5617
    %5641 = vmatmul.bf16.gmra.mxu0 %v5445
    %v5642 = vpop.f32.mrf.mxu0
    %v5643 = vadd.f32 %v5576, %v5642
    %v5644 = vpop.f32.mrf.mxu0
    %v5645 = vadd.f32 %v5578, %v5644
    %5646 = vmatmul.bf16.gmra.mxu0 %v5446
    %v5647 = vpop.f32.mrf.mxu0
    %v5648 = vadd.f32 %v5581, %v5647
    %v5649 = vpop.f32.mrf.mxu0
    %v5650 = vadd.f32 %v5583, %v5649
    %5651 = vdwg.mxu0
    %s5652 = scalar_lea.vmem [#allocation11], 32
    %v5653 = vld [vmem:[%s5652] sm:$0xf]
    %v5654 = vld [vmem:[%s5652 + $0x4] sm:$0xf]
    %v5655 = vld [vmem:[%s5652 + $0x8] sm:$0xf]
    %v5656 = vld [vmem:[%s5652 + $0xc] sm:$0xf]
    %v5661 = vunpack.c.l.b16 %v5653
    %v5662 = vunpack.c.l.b16 %v5654
    %v5663 = vunpack.c.l.b16 %v5655
    %v5664 = vunpack.c.l.b16 %v5656
    %v5665 = vpack.c.b16 %v5662, %v5661
    %v5666 = vpack.c.b16 %v5664, %v5663
    %5669 = vmatpush.bf16.msra.mxu0 %v5409
    %5670 = vmatpush.bf16.msra.mxu0 %v5408
    %5671 = vmatpush.bf16.msra.mxu0 %v5407
    %5672 = vmatpush.bf16.msra.mxu0 %v5406
    %5673 = vmatpush.bf16.msra.mxu0 %v5405
    %5674 = vmatpush.bf16.msra.mxu0 %v5404
    %5675 = vmatpush.bf16.msra.mxu0 %v5403
    %5676 = vmatpush.bf16.msra.mxu0 %v5402
    %5677 = vmatmul.bf16.gmra.mxu0 %v5665
    %v5678 = vpop.f32.mrf.mxu0
    %v5679 = vadd.f32 0.0, %v5678
    %v5680 = vpop.f32.mrf.mxu0
    %v5681 = vadd.f32 0.0, %v5680
    %5682 = vmatmul.bf16.gmra.mxu0 %v5666
    %v5683 = vpop.f32.mrf.mxu0
    %v5684 = vadd.f32 0.0, %v5683
    %v5685 = vpop.f32.mrf.mxu0
    %v5686 = vadd.f32 0.0, %v5685
    %5687 = vdwg.mxu0
    %v5688 = vpack.c.bf16 %v5681, %v5679
    %v5689 = vpack.c.bf16 %v5686, %v5684
    %s5690 = scalar_lea.vmem [#allocation13], 128
    %v5691 = vld [vmem:[%s5690] sm:$0xf]
    %v5692 = vld [vmem:[%s5690 + $0x4] sm:$0xf]
    %v5693 = vld [vmem:[%s5690 + $0x8] sm:$0xf]
    %v5694 = vld [vmem:[%s5690 + $0xc] sm:$0xf]
    %v5695 = vld [vmem:[%s5690 + $0x10] sm:$0xf]
    %v5696 = vld [vmem:[%s5690 + $0x14] sm:$0xf]
    %v5697 = vld [vmem:[%s5690 + $0x18] sm:$0xf]
    %v5698 = vld [vmem:[%s5690 + $0x1c] sm:$0xf]
    %v5699 = vld [vmem:[%s5690 + $0x20] sm:$0xf]
    %v5700 = vld [vmem:[%s5690 + $0x24] sm:$0xf]
    %v5701 = vld [vmem:[%s5690 + $0x28] sm:$0xf]
    %v5702 = vld [vmem:[%s5690 + $0x2c] sm:$0xf]
    %v5703 = vld [vmem:[%s5690 + $0x30] sm:$0xf]
    %v5704 = vld [vmem:[%s5690 + $0x34] sm:$0xf]
    %v5705 = vld [vmem:[%s5690 + $0x38] sm:$0xf]
    %v5706 = vld [vmem:[%s5690 + $0x3c] sm:$0xf]
    %v5723 = vunpack.c.l.b16 %v5691
    %v5724 = vunpack.c.l.b16 %v5692
    %v5725 = vunpack.c.l.b16 %v5693
    %v5726 = vunpack.c.l.b16 %v5694
    %v5727 = vunpack.c.l.b16 %v5695
    %v5728 = vunpack.c.l.b16 %v5696
    %v5729 = vunpack.c.l.b16 %v5697
    %v5730 = vunpack.c.l.b16 %v5698
    %v5731 = vunpack.c.l.b16 %v5699
    %v5732 = vunpack.c.l.b16 %v5700
    %v5733 = vunpack.c.l.b16 %v5701
    %v5734 = vunpack.c.l.b16 %v5702
    %v5735 = vunpack.c.l.b16 %v5703
    %v5736 = vunpack.c.l.b16 %v5704
    %v5737 = vunpack.c.l.b16 %v5705
    %v5738 = vunpack.c.l.b16 %v5706
    %v5739 = vpack.c.b16 %v5724, %v5723
    %v5740 = vpack.c.b16 %v5726, %v5725
    %v5741 = vpack.c.b16 %v5728, %v5727
    %v5742 = vpack.c.b16 %v5730, %v5729
    %v5743 = vpack.c.b16 %v5732, %v5731
    %v5744 = vpack.c.b16 %v5734, %v5733
    %v5745 = vpack.c.b16 %v5736, %v5735
    %v5746 = vpack.c.b16 %v5738, %v5737
    %5755 = vmatpush.bf16.msra.mxu0 %v5746
    %5756 = vmatpush.bf16.msra.mxu0 %v5745
    %5757 = vmatpush.bf16.msra.mxu0 %v5744
    %5758 = vmatpush.bf16.msra.mxu0 %v5743
    %5759 = vmatpush.bf16.msra.mxu0 %v5742
    %5760 = vmatpush.bf16.msra.mxu0 %v5741
    %5761 = vmatpush.bf16.msra.mxu0 %v5740
    %5762 = vmatpush.bf16.msra.mxu0 %v5739
    %5763 = vmatmul.bf16.gmra.mxu0 %v5688
    %v5764 = vpop.f32.mrf.mxu0
    %v5765 = vadd.f32 0.0, %v5764
    %v5766 = vpop.f32.mrf.mxu0
    %v5767 = vadd.f32 0.0, %v5766
    %5768 = vmatmul.bf16.gmra.mxu0 %v5689
    %v5769 = vpop.f32.mrf.mxu0
    %v5770 = vadd.f32 0.0, %v5769
    %v5771 = vpop.f32.mrf.mxu0
    %v5772 = vadd.f32 0.0, %v5771
    %5773 = vdwg.mxu0
    %v5774 = vadd.f32 %v5643, %v5765
    %v5775 = vadd.f32 %v5645, %v5767
    %v5776 = vadd.f32 %v5648, %v5770
    %v5777 = vadd.f32 %v5650, %v5772
    %s5778 = scalar_lea.vmem [#allocation11], 48
    %v5779 = vld [vmem:[%s5778] sm:$0xf]
    %v5780 = vld [vmem:[%s5778 + $0x4] sm:$0xf]
    %v5781 = vld [vmem:[%s5778 + $0x8] sm:$0xf]
    %v5782 = vld [vmem:[%s5778 + $0xc] sm:$0xf]
    %v5787 = vunpack.c.l.b16 %v5779
    %v5788 = vunpack.c.l.b16 %v5780
    %v5789 = vunpack.c.l.b16 %v5781
    %v5790 = vunpack.c.l.b16 %v5782
    %v5791 = vpack.c.b16 %v5788, %v5787
    %v5792 = vpack.c.b16 %v5790, %v5789
    %5795 = vmatpush.bf16.msra.mxu0 %v5409
    %5796 = vmatpush.bf16.msra.mxu0 %v5408
    %5797 = vmatpush.bf16.msra.mxu0 %v5407
    %5798 = vmatpush.bf16.msra.mxu0 %v5406
    %5799 = vmatpush.bf16.msra.mxu0 %v5405
    %5800 = vmatpush.bf16.msra.mxu0 %v5404
    %5801 = vmatpush.bf16.msra.mxu0 %v5403
    %5802 = vmatpush.bf16.msra.mxu0 %v5402
    %5803 = vmatmul.bf16.gmra.mxu0 %v5791
    %v5804 = vpop.f32.mrf.mxu0
    %v5805 = vadd.f32 0.0, %v5804
    %v5806 = vpop.f32.mrf.mxu0
    %v5807 = vadd.f32 0.0, %v5806
    %5808 = vmatmul.bf16.gmra.mxu0 %v5792
    %v5809 = vpop.f32.mrf.mxu0
    %v5810 = vadd.f32 0.0, %v5809
    %v5811 = vpop.f32.mrf.mxu0
    %v5812 = vadd.f32 0.0, %v5811
    %5813 = vdwg.mxu0
    %v5814 = vpack.c.bf16 %v5807, %v5805
    %v5815 = vpack.c.bf16 %v5812, %v5810
    %s5816 = scalar_lea.vmem [#allocation13], 192
    %v5817 = vld [vmem:[%s5816] sm:$0xf]
    %v5818 = vld [vmem:[%s5816 + $0x4] sm:$0xf]
    %v5819 = vld [vmem:[%s5816 + $0x8] sm:$0xf]
    %v5820 = vld [vmem:[%s5816 + $0xc] sm:$0xf]
    %v5821 = vld [vmem:[%s5816 + $0x10] sm:$0xf]
    %v5822 = vld [vmem:[%s5816 + $0x14] sm:$0xf]
    %v5823 = vld [vmem:[%s5816 + $0x18] sm:$0xf]
    %v5824 = vld [vmem:[%s5816 + $0x1c] sm:$0xf]
    %v5825 = vld [vmem:[%s5816 + $0x20] sm:$0xf]
    %v5826 = vld [vmem:[%s5816 + $0x24] sm:$0xf]
    %v5827 = vld [vmem:[%s5816 + $0x28] sm:$0xf]
    %v5828 = vld [vmem:[%s5816 + $0x2c] sm:$0xf]
    %v5829 = vld [vmem:[%s5816 + $0x30] sm:$0xf]
    %v5830 = vld [vmem:[%s5816 + $0x34] sm:$0xf]
    %v5831 = vld [vmem:[%s5816 + $0x38] sm:$0xf]
    %v5832 = vld [vmem:[%s5816 + $0x3c] sm:$0xf]
    %v5849 = vunpack.c.l.b16 %v5817
    %v5850 = vunpack.c.l.b16 %v5818
    %v5851 = vunpack.c.l.b16 %v5819
    %v5852 = vunpack.c.l.b16 %v5820
    %v5853 = vunpack.c.l.b16 %v5821
    %v5854 = vunpack.c.l.b16 %v5822
    %v5855 = vunpack.c.l.b16 %v5823
    %v5856 = vunpack.c.l.b16 %v5824
    %v5857 = vunpack.c.l.b16 %v5825
    %v5858 = vunpack.c.l.b16 %v5826
    %v5859 = vunpack.c.l.b16 %v5827
    %v5860 = vunpack.c.l.b16 %v5828
    %v5861 = vunpack.c.l.b16 %v5829
    %v5862 = vunpack.c.l.b16 %v5830
    %v5863 = vunpack.c.l.b16 %v5831
    %v5864 = vunpack.c.l.b16 %v5832
    %v5865 = vpack.c.b16 %v5850, %v5849
    %v5866 = vpack.c.b16 %v5852, %v5851
    %v5867 = vpack.c.b16 %v5854, %v5853
    %v5868 = vpack.c.b16 %v5856, %v5855
    %v5869 = vpack.c.b16 %v5858, %v5857
    %v5870 = vpack.c.b16 %v5860, %v5859
    %v5871 = vpack.c.b16 %v5862, %v5861
    %v5872 = vpack.c.b16 %v5864, %v5863
    %5881 = vmatpush.bf16.msra.mxu0 %v5872
    %5882 = vmatpush.bf16.msra.mxu0 %v5871
    %5883 = vmatpush.bf16.msra.mxu0 %v5870
    %5884 = vmatpush.bf16.msra.mxu0 %v5869
    %5885 = vmatpush.bf16.msra.mxu0 %v5868
    %5886 = vmatpush.bf16.msra.mxu0 %v5867
    %5887 = vmatpush.bf16.msra.mxu0 %v5866
    %5888 = vmatpush.bf16.msra.mxu0 %v5865
    %5889 = vmatmul.bf16.gmra.mxu0 %v5814
    %v5890 = vpop.f32.mrf.mxu0
    %v5891 = vadd.f32 0.0, %v5890
    %v5892 = vpop.f32.mrf.mxu0
    %v5893 = vadd.f32 0.0, %v5892
    %5894 = vmatmul.bf16.gmra.mxu0 %v5815
    %v5895 = vpop.f32.mrf.mxu0
    %v5896 = vadd.f32 0.0, %v5895
    %v5897 = vpop.f32.mrf.mxu0
    %v5898 = vadd.f32 0.0, %v5897
    %5899 = vdwg.mxu0
    %v5900 = vadd.f32 %v5774, %v5891
    %v5901 = vadd.f32 %v5775, %v5893
    %v5902 = vadd.f32 %v5776, %v5896
    %v5903 = vadd.f32 %v5777, %v5898
    %s5904 = scalar_lea.vmem [#allocation11], 64
    %v5905 = vld [vmem:[%s5904] sm:$0xf]
    %v5906 = vld [vmem:[%s5904 + $0x4] sm:$0xf]
    %v5907 = vld [vmem:[%s5904 + $0x8] sm:$0xf]
    %v5908 = vld [vmem:[%s5904 + $0xc] sm:$0xf]
    %v5913 = vunpack.c.l.b16 %v5905
    %v5914 = vunpack.c.l.b16 %v5906
    %v5915 = vunpack.c.l.b16 %v5907
    %v5916 = vunpack.c.l.b16 %v5908
    %v5917 = vpack.c.b16 %v5914, %v5913
    %v5918 = vpack.c.b16 %v5916, %v5915
    %5921 = vmatpush.bf16.msra.mxu0 %v5409
    %5922 = vmatpush.bf16.msra.mxu0 %v5408
    %5923 = vmatpush.bf16.msra.mxu0 %v5407
    %5924 = vmatpush.bf16.msra.mxu0 %v5406
    %5925 = vmatpush.bf16.msra.mxu0 %v5405
    %5926 = vmatpush.bf16.msra.mxu0 %v5404
    %5927 = vmatpush.bf16.msra.mxu0 %v5403
    %5928 = vmatpush.bf16.msra.mxu0 %v5402
    %5929 = vmatmul.bf16.gmra.mxu0 %v5917
    %v5930 = vpop.f32.mrf.mxu0
    %v5931 = vadd.f32 0.0, %v5930
    %v5932 = vpop.f32.mrf.mxu0
    %v5933 = vadd.f32 0.0, %v5932
    %5934 = vmatmul.bf16.gmra.mxu0 %v5918
    %v5935 = vpop.f32.mrf.mxu0
    %v5936 = vadd.f32 0.0, %v5935
    %v5937 = vpop.f32.mrf.mxu0
    %v5938 = vadd.f32 0.0, %v5937
    %5939 = vdwg.mxu0
    %v5940 = vpack.c.bf16 %v5933, %v5931
    %v5941 = vpack.c.bf16 %v5938, %v5936
    %s5942 = scalar_lea.vmem [#allocation13], 256
    %v5943 = vld [vmem:[%s5942] sm:$0xf]
    %v5944 = vld [vmem:[%s5942 + $0x4] sm:$0xf]
    %v5945 = vld [vmem:[%s5942 + $0x8] sm:$0xf]
    %v5946 = vld [vmem:[%s5942 + $0xc] sm:$0xf]
    %v5947 = vld [vmem:[%s5942 + $0x10] sm:$0xf]
    %v5948 = vld [vmem:[%s5942 + $0x14] sm:$0xf]
    %v5949 = vld [vmem:[%s5942 + $0x18] sm:$0xf]
    %v5950 = vld [vmem:[%s5942 + $0x1c] sm:$0xf]
    %v5951 = vld [vmem:[%s5942 + $0x20] sm:$0xf]
    %v5952 = vld [vmem:[%s5942 + $0x24] sm:$0xf]
    %v5953 = vld [vmem:[%s5942 + $0x28] sm:$0xf]
    %v5954 = vld [vmem:[%s5942 + $0x2c] sm:$0xf]
    %v5955 = vld [vmem:[%s5942 + $0x30] sm:$0xf]
    %v5956 = vld [vmem:[%s5942 + $0x34] sm:$0xf]
    %v5957 = vld [vmem:[%s5942 + $0x38] sm:$0xf]
    %v5958 = vld [vmem:[%s5942 + $0x3c] sm:$0xf]
    %v5975 = vunpack.c.l.b16 %v5943
    %v5976 = vunpack.c.l.b16 %v5944
    %v5977 = vunpack.c.l.b16 %v5945
    %v5978 = vunpack.c.l.b16 %v5946
    %v5979 = vunpack.c.l.b16 %v5947
    %v5980 = vunpack.c.l.b16 %v5948
    %v5981 = vunpack.c.l.b16 %v5949
    %v5982 = vunpack.c.l.b16 %v5950
    %v5983 = vunpack.c.l.b16 %v5951
    %v5984 = vunpack.c.l.b16 %v5952
    %v5985 = vunpack.c.l.b16 %v5953
    %v5986 = vunpack.c.l.b16 %v5954
    %v5987 = vunpack.c.l.b16 %v5955
    %v5988 = vunpack.c.l.b16 %v5956
    %v5989 = vunpack.c.l.b16 %v5957
    %v5990 = vunpack.c.l.b16 %v5958
    %v5991 = vpack.c.b16 %v5976, %v5975
    %v5992 = vpack.c.b16 %v5978, %v5977
    %v5993 = vpack.c.b16 %v5980, %v5979
    %v5994 = vpack.c.b16 %v5982, %v5981
    %v5995 = vpack.c.b16 %v5984, %v5983
    %v5996 = vpack.c.b16 %v5986, %v5985
    %v5997 = vpack.c.b16 %v5988, %v5987
    %v5998 = vpack.c.b16 %v5990, %v5989
    %6007 = vmatpush.bf16.msra.mxu0 %v5998
    %6008 = vmatpush.bf16.msra.mxu0 %v5997
    %6009 = vmatpush.bf16.msra.mxu0 %v5996
    %6010 = vmatpush.bf16.msra.mxu0 %v5995
    %6011 = vmatpush.bf16.msra.mxu0 %v5994
    %6012 = vmatpush.bf16.msra.mxu0 %v5993
    %6013 = vmatpush.bf16.msra.mxu0 %v5992
    %6014 = vmatpush.bf16.msra.mxu0 %v5991
    %6015 = vmatmul.bf16.gmra.mxu0 %v5940
    %v6016 = vpop.f32.mrf.mxu0
    %v6017 = vadd.f32 0.0, %v6016
    %v6018 = vpop.f32.mrf.mxu0
    %v6019 = vadd.f32 0.0, %v6018
    %6020 = vmatmul.bf16.gmra.mxu0 %v5941
    %v6021 = vpop.f32.mrf.mxu0
    %v6022 = vadd.f32 0.0, %v6021
    %v6023 = vpop.f32.mrf.mxu0
    %v6024 = vadd.f32 0.0, %v6023
    %6025 = vdwg.mxu0
    %v6026 = vadd.f32 %v5900, %v6017
    %v6027 = vadd.f32 %v5901, %v6019
    %v6028 = vadd.f32 %v5902, %v6022
    %v6029 = vadd.f32 %v5903, %v6024
    %s6030 = scalar_lea.vmem [#allocation11], 80
    %v6031 = vld [vmem:[%s6030] sm:$0xf]
    %v6032 = vld [vmem:[%s6030 + $0x4] sm:$0xf]
    %v6033 = vld [vmem:[%s6030 + $0x8] sm:$0xf]
    %v6034 = vld [vmem:[%s6030 + $0xc] sm:$0xf]
    %v6039 = vunpack.c.l.b16 %v6031
    %v6040 = vunpack.c.l.b16 %v6032
    %v6041 = vunpack.c.l.b16 %v6033
    %v6042 = vunpack.c.l.b16 %v6034
    %v6043 = vpack.c.b16 %v6040, %v6039
    %v6044 = vpack.c.b16 %v6042, %v6041
    %6047 = vmatpush.bf16.msra.mxu0 %v5409
    %6048 = vmatpush.bf16.msra.mxu0 %v5408
    %6049 = vmatpush.bf16.msra.mxu0 %v5407
    %6050 = vmatpush.bf16.msra.mxu0 %v5406
    %6051 = vmatpush.bf16.msra.mxu0 %v5405
    %6052 = vmatpush.bf16.msra.mxu0 %v5404
    %6053 = vmatpush.bf16.msra.mxu0 %v5403
    %6054 = vmatpush.bf16.msra.mxu0 %v5402
    %6055 = vmatmul.bf16.gmra.mxu0 %v6043
    %v6056 = vpop.f32.mrf.mxu0
    %v6057 = vadd.f32 0.0, %v6056
    %v6058 = vpop.f32.mrf.mxu0
    %v6059 = vadd.f32 0.0, %v6058
    %6060 = vmatmul.bf16.gmra.mxu0 %v6044
    %v6061 = vpop.f32.mrf.mxu0
    %v6062 = vadd.f32 0.0, %v6061
    %v6063 = vpop.f32.mrf.mxu0
    %v6064 = vadd.f32 0.0, %v6063
    %6065 = vdwg.mxu0
    %v6066 = vpack.c.bf16 %v6059, %v6057
    %v6067 = vpack.c.bf16 %v6064, %v6062
    %s6068 = scalar_lea.vmem [#allocation13], 320
    %v6069 = vld [vmem:[%s6068] sm:$0xf]
    %v6070 = vld [vmem:[%s6068 + $0x4] sm:$0xf]
    %v6071 = vld [vmem:[%s6068 + $0x8] sm:$0xf]
    %v6072 = vld [vmem:[%s6068 + $0xc] sm:$0xf]
    %v6073 = vld [vmem:[%s6068 + $0x10] sm:$0xf]
    %v6074 = vld [vmem:[%s6068 + $0x14] sm:$0xf]
    %v6075 = vld [vmem:[%s6068 + $0x18] sm:$0xf]
    %v6076 = vld [vmem:[%s6068 + $0x1c] sm:$0xf]
    %v6077 = vld [vmem:[%s6068 + $0x20] sm:$0xf]
    %v6078 = vld [vmem:[%s6068 + $0x24] sm:$0xf]
    %v6079 = vld [vmem:[%s6068 + $0x28] sm:$0xf]
    %v6080 = vld [vmem:[%s6068 + $0x2c] sm:$0xf]
    %v6081 = vld [vmem:[%s6068 + $0x30] sm:$0xf]
    %v6082 = vld [vmem:[%s6068 + $0x34] sm:$0xf]
    %v6083 = vld [vmem:[%s6068 + $0x38] sm:$0xf]
    %v6084 = vld [vmem:[%s6068 + $0x3c] sm:$0xf]
    %v6101 = vunpack.c.l.b16 %v6069
    %v6102 = vunpack.c.l.b16 %v6070
    %v6103 = vunpack.c.l.b16 %v6071
    %v6104 = vunpack.c.l.b16 %v6072
    %v6105 = vunpack.c.l.b16 %v6073
    %v6106 = vunpack.c.l.b16 %v6074
    %v6107 = vunpack.c.l.b16 %v6075
    %v6108 = vunpack.c.l.b16 %v6076
    %v6109 = vunpack.c.l.b16 %v6077
    %v6110 = vunpack.c.l.b16 %v6078
    %v6111 = vunpack.c.l.b16 %v6079
    %v6112 = vunpack.c.l.b16 %v6080
    %v6113 = vunpack.c.l.b16 %v6081
    %v6114 = vunpack.c.l.b16 %v6082
    %v6115 = vunpack.c.l.b16 %v6083
    %v6116 = vunpack.c.l.b16 %v6084
    %v6117 = vpack.c.b16 %v6102, %v6101
    %v6118 = vpack.c.b16 %v6104, %v6103
    %v6119 = vpack.c.b16 %v6106, %v6105
    %v6120 = vpack.c.b16 %v6108, %v6107
    %v6121 = vpack.c.b16 %v6110, %v6109
    %v6122 = vpack.c.b16 %v6112, %v6111
    %v6123 = vpack.c.b16 %v6114, %v6113
    %v6124 = vpack.c.b16 %v6116, %v6115
    %6133 = vmatpush.bf16.msra.mxu0 %v6124
    %6134 = vmatpush.bf16.msra.mxu0 %v6123
    %6135 = vmatpush.bf16.msra.mxu0 %v6122
    %6136 = vmatpush.bf16.msra.mxu0 %v6121
    %6137 = vmatpush.bf16.msra.mxu0 %v6120
    %6138 = vmatpush.bf16.msra.mxu0 %v6119
    %6139 = vmatpush.bf16.msra.mxu0 %v6118
    %6140 = vmatpush.bf16.msra.mxu0 %v6117
    %6141 = vmatmul.bf16.gmra.mxu0 %v6066
    %v6142 = vpop.f32.mrf.mxu0
    %v6143 = vadd.f32 0.0, %v6142
    %v6144 = vpop.f32.mrf.mxu0
    %v6145 = vadd.f32 0.0, %v6144
    %6146 = vmatmul.bf16.gmra.mxu0 %v6067
    %v6147 = vpop.f32.mrf.mxu0
    %v6148 = vadd.f32 0.0, %v6147
    %v6149 = vpop.f32.mrf.mxu0
    %v6150 = vadd.f32 0.0, %v6149
    %6151 = vdwg.mxu0
    %v6152 = vadd.f32 %v6026, %v6143
    %v6153 = vadd.f32 %v6027, %v6145
    %v6154 = vadd.f32 %v6028, %v6148
    %v6155 = vadd.f32 %v6029, %v6150
    %s6156 = scalar_lea.vmem [#allocation11], 96
    %v6157 = vld [vmem:[%s6156] sm:$0xf]
    %v6158 = vld [vmem:[%s6156 + $0x4] sm:$0xf]
    %v6159 = vld [vmem:[%s6156 + $0x8] sm:$0xf]
    %v6160 = vld [vmem:[%s6156 + $0xc] sm:$0xf]
    %v6165 = vunpack.c.l.b16 %v6157
    %v6166 = vunpack.c.l.b16 %v6158
    %v6167 = vunpack.c.l.b16 %v6159
    %v6168 = vunpack.c.l.b16 %v6160
    %v6169 = vpack.c.b16 %v6166, %v6165
    %v6170 = vpack.c.b16 %v6168, %v6167
    %6173 = vmatpush.bf16.msra.mxu0 %v5409
    %6174 = vmatpush.bf16.msra.mxu0 %v5408
    %6175 = vmatpush.bf16.msra.mxu0 %v5407
    %6176 = vmatpush.bf16.msra.mxu0 %v5406
    %6177 = vmatpush.bf16.msra.mxu0 %v5405
    %6178 = vmatpush.bf16.msra.mxu0 %v5404
    %6179 = vmatpush.bf16.msra.mxu0 %v5403
    %6180 = vmatpush.bf16.msra.mxu0 %v5402
    %6181 = vmatmul.bf16.gmra.mxu0 %v6169
    %v6182 = vpop.f32.mrf.mxu0
    %v6183 = vadd.f32 0.0, %v6182
    %v6184 = vpop.f32.mrf.mxu0
    %v6185 = vadd.f32 0.0, %v6184
    %6186 = vmatmul.bf16.gmra.mxu0 %v6170
    %v6187 = vpop.f32.mrf.mxu0
    %v6188 = vadd.f32 0.0, %v6187
    %v6189 = vpop.f32.mrf.mxu0
    %v6190 = vadd.f32 0.0, %v6189
    %6191 = vdwg.mxu0
    %v6192 = vpack.c.bf16 %v6185, %v6183
    %v6193 = vpack.c.bf16 %v6190, %v6188
    %s6194 = scalar_lea.vmem [#allocation13], 384
    %v6195 = vld [vmem:[%s6194] sm:$0xf]
    %v6196 = vld [vmem:[%s6194 + $0x4] sm:$0xf]
    %v6197 = vld [vmem:[%s6194 + $0x8] sm:$0xf]
    %v6198 = vld [vmem:[%s6194 + $0xc] sm:$0xf]
    %v6199 = vld [vmem:[%s6194 + $0x10] sm:$0xf]
    %v6200 = vld [vmem:[%s6194 + $0x14] sm:$0xf]
    %v6201 = vld [vmem:[%s6194 + $0x18] sm:$0xf]
    %v6202 = vld [vmem:[%s6194 + $0x1c] sm:$0xf]
    %v6203 = vld [vmem:[%s6194 + $0x20] sm:$0xf]
    %v6204 = vld [vmem:[%s6194 + $0x24] sm:$0xf]
    %v6205 = vld [vmem:[%s6194 + $0x28] sm:$0xf]
    %v6206 = vld [vmem:[%s6194 + $0x2c] sm:$0xf]
    %v6207 = vld [vmem:[%s6194 + $0x30] sm:$0xf]
    %v6208 = vld [vmem:[%s6194 + $0x34] sm:$0xf]
    %v6209 = vld [vmem:[%s6194 + $0x38] sm:$0xf]
    %v6210 = vld [vmem:[%s6194 + $0x3c] sm:$0xf]
    %v6227 = vunpack.c.l.b16 %v6195
    %v6228 = vunpack.c.l.b16 %v6196
    %v6229 = vunpack.c.l.b16 %v6197
    %v6230 = vunpack.c.l.b16 %v6198
    %v6231 = vunpack.c.l.b16 %v6199
    %v6232 = vunpack.c.l.b16 %v6200
    %v6233 = vunpack.c.l.b16 %v6201
    %v6234 = vunpack.c.l.b16 %v6202
    %v6235 = vunpack.c.l.b16 %v6203
    %v6236 = vunpack.c.l.b16 %v6204
    %v6237 = vunpack.c.l.b16 %v6205
    %v6238 = vunpack.c.l.b16 %v6206
    %v6239 = vunpack.c.l.b16 %v6207
    %v6240 = vunpack.c.l.b16 %v6208
    %v6241 = vunpack.c.l.b16 %v6209
    %v6242 = vunpack.c.l.b16 %v6210
    %v6243 = vpack.c.b16 %v6228, %v6227
    %v6244 = vpack.c.b16 %v6230, %v6229
    %v6245 = vpack.c.b16 %v6232, %v6231
    %v6246 = vpack.c.b16 %v6234, %v6233
    %v6247 = vpack.c.b16 %v6236, %v6235
    %v6248 = vpack.c.b16 %v6238, %v6237
    %v6249 = vpack.c.b16 %v6240, %v6239
    %v6250 = vpack.c.b16 %v6242, %v6241
    %6259 = vmatpush.bf16.msra.mxu0 %v6250
    %6260 = vmatpush.bf16.msra.mxu0 %v6249
    %6261 = vmatpush.bf16.msra.mxu0 %v6248
    %6262 = vmatpush.bf16.msra.mxu0 %v6247
    %6263 = vmatpush.bf16.msra.mxu0 %v6246
    %6264 = vmatpush.bf16.msra.mxu0 %v6245
    %6265 = vmatpush.bf16.msra.mxu0 %v6244
    %6266 = vmatpush.bf16.msra.mxu0 %v6243
    %6267 = vmatmul.bf16.gmra.mxu0 %v6192
    %v6268 = vpop.f32.mrf.mxu0
    %v6269 = vadd.f32 0.0, %v6268
    %v6270 = vpop.f32.mrf.mxu0
    %v6271 = vadd.f32 0.0, %v6270
    %6272 = vmatmul.bf16.gmra.mxu0 %v6193
    %v6273 = vpop.f32.mrf.mxu0
    %v6274 = vadd.f32 0.0, %v6273
    %v6275 = vpop.f32.mrf.mxu0
    %v6276 = vadd.f32 0.0, %v6275
    %6277 = vdwg.mxu0
    %v6278 = vadd.f32 %v6152, %v6269
    %v6279 = vadd.f32 %v6153, %v6271
    %v6280 = vadd.f32 %v6154, %v6274
    %v6281 = vadd.f32 %v6155, %v6276
    %s6282 = scalar_lea.vmem [#allocation11], 112
    %v6283 = vld [vmem:[%s6282] sm:$0xf]
    %v6284 = vld [vmem:[%s6282 + $0x4] sm:$0xf]
    %v6285 = vld [vmem:[%s6282 + $0x8] sm:$0xf]
    %v6286 = vld [vmem:[%s6282 + $0xc] sm:$0xf]
    %v6291 = vunpack.c.l.b16 %v6283
    %v6292 = vunpack.c.l.b16 %v6284
    %v6293 = vunpack.c.l.b16 %v6285
    %v6294 = vunpack.c.l.b16 %v6286
    %v6295 = vpack.c.b16 %v6292, %v6291
    %v6296 = vpack.c.b16 %v6294, %v6293
    %6299 = vmatpush.bf16.msra.mxu0 %v5409
    %6300 = vmatpush.bf16.msra.mxu0 %v5408
    %6301 = vmatpush.bf16.msra.mxu0 %v5407
    %6302 = vmatpush.bf16.msra.mxu0 %v5406
    %6303 = vmatpush.bf16.msra.mxu0 %v5405
    %6304 = vmatpush.bf16.msra.mxu0 %v5404
    %6305 = vmatpush.bf16.msra.mxu0 %v5403
    %6306 = vmatpush.bf16.msra.mxu0 %v5402
    %6307 = vmatmul.bf16.gmra.mxu0 %v6295
    %v6308 = vpop.f32.mrf.mxu0
    %v6309 = vadd.f32 0.0, %v6308
    %v6310 = vpop.f32.mrf.mxu0
    %v6311 = vadd.f32 0.0, %v6310
    %6312 = vmatmul.bf16.gmra.mxu0 %v6296
    %v6313 = vpop.f32.mrf.mxu0
    %v6314 = vadd.f32 0.0, %v6313
    %v6315 = vpop.f32.mrf.mxu0
    %v6316 = vadd.f32 0.0, %v6315
    %6317 = vdwg.mxu0
    %v6318 = vpack.c.bf16 %v6311, %v6309
    %v6319 = vpack.c.bf16 %v6316, %v6314
    %s6320 = scalar_lea.vmem [#allocation13], 448
    %v6321 = vld [vmem:[%s6320] sm:$0xf]
    %v6322 = vld [vmem:[%s6320 + $0x4] sm:$0xf]
    %v6323 = vld [vmem:[%s6320 + $0x8] sm:$0xf]
    %v6324 = vld [vmem:[%s6320 + $0xc] sm:$0xf]
    %v6325 = vld [vmem:[%s6320 + $0x10] sm:$0xf]
    %v6326 = vld [vmem:[%s6320 + $0x14] sm:$0xf]
    %v6327 = vld [vmem:[%s6320 + $0x18] sm:$0xf]
    %v6328 = vld [vmem:[%s6320 + $0x1c] sm:$0xf]
    %v6329 = vld [vmem:[%s6320 + $0x20] sm:$0xf]
    %v6330 = vld [vmem:[%s6320 + $0x24] sm:$0xf]
    %v6331 = vld [vmem:[%s6320 + $0x28] sm:$0xf]
    %v6332 = vld [vmem:[%s6320 + $0x2c] sm:$0xf]
    %v6333 = vld [vmem:[%s6320 + $0x30] sm:$0xf]
    %v6334 = vld [vmem:[%s6320 + $0x34] sm:$0xf]
    %v6335 = vld [vmem:[%s6320 + $0x38] sm:$0xf]
    %v6336 = vld [vmem:[%s6320 + $0x3c] sm:$0xf]
    %v6353 = vunpack.c.l.b16 %v6321
    %v6354 = vunpack.c.l.b16 %v6322
    %v6355 = vunpack.c.l.b16 %v6323
    %v6356 = vunpack.c.l.b16 %v6324
    %v6357 = vunpack.c.l.b16 %v6325
    %v6358 = vunpack.c.l.b16 %v6326
    %v6359 = vunpack.c.l.b16 %v6327
    %v6360 = vunpack.c.l.b16 %v6328
    %v6361 = vunpack.c.l.b16 %v6329
    %v6362 = vunpack.c.l.b16 %v6330
    %v6363 = vunpack.c.l.b16 %v6331
    %v6364 = vunpack.c.l.b16 %v6332
    %v6365 = vunpack.c.l.b16 %v6333
    %v6366 = vunpack.c.l.b16 %v6334
    %v6367 = vunpack.c.l.b16 %v6335
    %v6368 = vunpack.c.l.b16 %v6336
    %v6369 = vpack.c.b16 %v6354, %v6353
    %v6370 = vpack.c.b16 %v6356, %v6355
    %v6371 = vpack.c.b16 %v6358, %v6357
    %v6372 = vpack.c.b16 %v6360, %v6359
    %v6373 = vpack.c.b16 %v6362, %v6361
    %v6374 = vpack.c.b16 %v6364, %v6363
    %v6375 = vpack.c.b16 %v6366, %v6365
    %v6376 = vpack.c.b16 %v6368, %v6367
    %6385 = vmatpush.bf16.msra.mxu0 %v6376
    %6386 = vmatpush.bf16.msra.mxu0 %v6375
    %6387 = vmatpush.bf16.msra.mxu0 %v6374
    %6388 = vmatpush.bf16.msra.mxu0 %v6373
    %6389 = vmatpush.bf16.msra.mxu0 %v6372
    %6390 = vmatpush.bf16.msra.mxu0 %v6371
    %6391 = vmatpush.bf16.msra.mxu0 %v6370
    %6392 = vmatpush.bf16.msra.mxu0 %v6369
    %6393 = vmatmul.bf16.gmra.mxu0 %v6318
    %v6394 = vpop.f32.mrf.mxu0
    %v6395 = vadd.f32 0.0, %v6394
    %v6396 = vpop.f32.mrf.mxu0
    %v6397 = vadd.f32 0.0, %v6396
    %6398 = vmatmul.bf16.gmra.mxu0 %v6319
    %v6399 = vpop.f32.mrf.mxu0
    %v6400 = vadd.f32 0.0, %v6399
    %v6401 = vpop.f32.mrf.mxu0
    %v6402 = vadd.f32 0.0, %v6401
    %6403 = vdwg.mxu0
    %v6404 = vadd.f32 %v6278, %v6395
    %v6405 = vadd.f32 %v6279, %v6397
    %v6406 = vadd.f32 %v6280, %v6400
    %v6407 = vadd.f32 %v6281, %v6402
    %s6408 = scalar_lea.vmem [#allocation11], 128
    %v6409 = vld [vmem:[%s6408] sm:$0xf]
    %v6410 = vld [vmem:[%s6408 + $0x4] sm:$0xf]
    %v6411 = vld [vmem:[%s6408 + $0x8] sm:$0xf]
    %v6412 = vld [vmem:[%s6408 + $0xc] sm:$0xf]
    %v6417 = vunpack.c.l.b16 %v6409
    %v6418 = vunpack.c.l.b16 %v6410
    %v6419 = vunpack.c.l.b16 %v6411
    %v6420 = vunpack.c.l.b16 %v6412
    %v6421 = vpack.c.b16 %v6418, %v6417
    %v6422 = vpack.c.b16 %v6420, %v6419
    %6425 = vmatpush.bf16.msra.mxu0 %v5409
    %6426 = vmatpush.bf16.msra.mxu0 %v5408
    %6427 = vmatpush.bf16.msra.mxu0 %v5407
    %6428 = vmatpush.bf16.msra.mxu0 %v5406
    %6429 = vmatpush.bf16.msra.mxu0 %v5405
    %6430 = vmatpush.bf16.msra.mxu0 %v5404
    %6431 = vmatpush.bf16.msra.mxu0 %v5403
    %6432 = vmatpush.bf16.msra.mxu0 %v5402
    %6433 = vmatmul.bf16.gmra.mxu0 %v6421
    %v6434 = vpop.f32.mrf.mxu0
    %v6435 = vadd.f32 0.0, %v6434
    %v6436 = vpop.f32.mrf.mxu0
    %v6437 = vadd.f32 0.0, %v6436
    %6438 = vmatmul.bf16.gmra.mxu0 %v6422
    %v6439 = vpop.f32.mrf.mxu0
    %v6440 = vadd.f32 0.0, %v6439
    %v6441 = vpop.f32.mrf.mxu0
    %v6442 = vadd.f32 0.0, %v6441
    %6443 = vdwg.mxu0
    %v6444 = vpack.c.bf16 %v6437, %v6435
    %v6445 = vpack.c.bf16 %v6442, %v6440
    %s6446 = scalar_lea.vmem [#allocation13], 512
    %v6447 = vld [vmem:[%s6446] sm:$0xf]
    %v6448 = vld [vmem:[%s6446 + $0x4] sm:$0xf]
    %v6449 = vld [vmem:[%s6446 + $0x8] sm:$0xf]
    %v6450 = vld [vmem:[%s6446 + $0xc] sm:$0xf]
    %v6451 = vld [vmem:[%s6446 + $0x10] sm:$0xf]
    %v6452 = vld [vmem:[%s6446 + $0x14] sm:$0xf]
    %v6453 = vld [vmem:[%s6446 + $0x18] sm:$0xf]
    %v6454 = vld [vmem:[%s6446 + $0x1c] sm:$0xf]
    %v6455 = vld [vmem:[%s6446 + $0x20] sm:$0xf]
    %v6456 = vld [vmem:[%s6446 + $0x24] sm:$0xf]
    %v6457 = vld [vmem:[%s6446 + $0x28] sm:$0xf]
    %v6458 = vld [vmem:[%s6446 + $0x2c] sm:$0xf]
    %v6459 = vld [vmem:[%s6446 + $0x30] sm:$0xf]
    %v6460 = vld [vmem:[%s6446 + $0x34] sm:$0xf]
    %v6461 = vld [vmem:[%s6446 + $0x38] sm:$0xf]
    %v6462 = vld [vmem:[%s6446 + $0x3c] sm:$0xf]
    %v6479 = vunpack.c.l.b16 %v6447
    %v6480 = vunpack.c.l.b16 %v6448
    %v6481 = vunpack.c.l.b16 %v6449
    %v6482 = vunpack.c.l.b16 %v6450
    %v6483 = vunpack.c.l.b16 %v6451
    %v6484 = vunpack.c.l.b16 %v6452
    %v6485 = vunpack.c.l.b16 %v6453
    %v6486 = vunpack.c.l.b16 %v6454
    %v6487 = vunpack.c.l.b16 %v6455
    %v6488 = vunpack.c.l.b16 %v6456
    %v6489 = vunpack.c.l.b16 %v6457
    %v6490 = vunpack.c.l.b16 %v6458
    %v6491 = vunpack.c.l.b16 %v6459
    %v6492 = vunpack.c.l.b16 %v6460
    %v6493 = vunpack.c.l.b16 %v6461
    %v6494 = vunpack.c.l.b16 %v6462
    %v6495 = vpack.c.b16 %v6480, %v6479
    %v6496 = vpack.c.b16 %v6482, %v6481
    %v6497 = vpack.c.b16 %v6484, %v6483
    %v6498 = vpack.c.b16 %v6486, %v6485
    %v6499 = vpack.c.b16 %v6488, %v6487
    %v6500 = vpack.c.b16 %v6490, %v6489
    %v6501 = vpack.c.b16 %v6492, %v6491
    %v6502 = vpack.c.b16 %v6494, %v6493
    %6511 = vmatpush.bf16.msra.mxu0 %v6502
    %6512 = vmatpush.bf16.msra.mxu0 %v6501
    %6513 = vmatpush.bf16.msra.mxu0 %v6500
    %6514 = vmatpush.bf16.msra.mxu0 %v6499
    %6515 = vmatpush.bf16.msra.mxu0 %v6498
    %6516 = vmatpush.bf16.msra.mxu0 %v6497
    %6517 = vmatpush.bf16.msra.mxu0 %v6496
    %6518 = vmatpush.bf16.msra.mxu0 %v6495
    %6519 = vmatmul.bf16.gmra.mxu0 %v6444
    %v6520 = vpop.f32.mrf.mxu0
    %v6521 = vadd.f32 0.0, %v6520
    %v6522 = vpop.f32.mrf.mxu0
    %v6523 = vadd.f32 0.0, %v6522
    %6524 = vmatmul.bf16.gmra.mxu0 %v6445
    %v6525 = vpop.f32.mrf.mxu0
    %v6526 = vadd.f32 0.0, %v6525
    %v6527 = vpop.f32.mrf.mxu0
    %v6528 = vadd.f32 0.0, %v6527
    %6529 = vdwg.mxu0
    %v6530 = vadd.f32 %v6404, %v6521
    %v6531 = vadd.f32 %v6405, %v6523
    %v6532 = vadd.f32 %v6406, %v6526
    %v6533 = vadd.f32 %v6407, %v6528
    %v6534 = vadd.f32 %v6530, %v6531
    %v6535 = vadd.f32 %v6534, %v6532
    %v6536 = vadd.f32 %v6535, %v6533
    %v6537 = vrot.slane %v6536, 4
    %v6538 = vadd.f32 %v6536, %v6537
    %v6539 = vrot.slane %v6538, 2
    %v6540 = vadd.f32 %v6538, %v6539
    %v6541 = vrot.slane %v6540, 1
    %v6542 = vadd.f32 %v6540, %v6541
    %v6543 = vrcp.pop 32.0
    %v6544 = vmul.f32 32.0, %v6543
    %v6545 = vsub.f32 1.0, %v6544
    %v6546 = vmul.f32 %v6543, %v6545
    %v6547 = vadd.f32 %v6543, %v6546
    %vm6548 = vweird.f32 %v6543
    %v6549 = vsel %vm6548, %v6543, %v6547
    %v6550 = vmul.f32 %v6542, %v6549
    %v6551 = vsub.f32 %v6530, %v6550
    %v6552 = vsub.f32 %v6531, %v6550
    %v6553 = vsub.f32 %v6532, %v6550
    %v6554 = vsub.f32 %v6533, %v6550
    %v6555 = vmul.f32 %v6551, %v6551
    %v6556 = vmul.f32 %v6552, %v6552
    %v6557 = vmul.f32 %v6553, %v6553
    %v6558 = vmul.f32 %v6554, %v6554
    %v6559 = vadd.f32 %v6555, %v6556
    %v6560 = vadd.f32 %v6559, %v6557
    %v6561 = vadd.f32 %v6560, %v6558
    %v6562 = vrot.slane %v6561, 4
    %v6563 = vadd.f32 %v6561, %v6562
    %v6564 = vrot.slane %v6563, 2
    %v6565 = vadd.f32 %v6563, %v6564
    %v6566 = vrot.slane %v6565, 1
    %v6567 = vadd.f32 %v6565, %v6566
    %v6568 = vmul.f32 %v6567, %v6549
    %v6569 = vadd.f32 %v6568, 1e-05
    %v6570 = vrsqrt.pop %v6569
    %v6571 = vmul.f32 %v6570, %v6569
    %v6572 = vmul.f32 %v6571, %v6570
    %v6573 = vmul.f32 0.5, %v6572
    %v6574 = vsub.f32 1.5, %v6573
    %v6575 = vmul.f32 %v6570, %v6574
    %vm6576 = vweird.f32 %v6569
    %vm6577 = vweird.f32 %v6570
    %vm6578 = vmor %vm6576, %vm6577
    %v6579 = vsel %vm6578, %v6570, %v6575
    %v6580 = vmul.f32 %v6551, %v6579
    %v6581 = vmul.f32 %v6552, %v6579
    %v6582 = vmul.f32 %v6553, %v6579
    %v6583 = vmul.f32 %v6554, %v6579
    %v6584 = vld [vmem:[#allocation14] sm:$0x1]
    %v6586 = vperm.slane %v6584, 0
    %v6588 = vmul.f32 %v6580, %v6586
    %v6589 = vmul.f32 %v6581, %v6586
    %v6590 = vmul.f32 %v6582, %v6586
    %v6591 = vmul.f32 %v6583, %v6586
    %v6592 = vld [vmem:[#allocation16] sm:$0x1]
    %v6594 = vperm.slane %v6592, 0
    %v6596 = vadd.f32 %v6588, %v6594
    %v6597 = vadd.f32 %v6589, %v6594
    %v6598 = vadd.f32 %v6590, %v6594
    %v6599 = vadd.f32 %v6591, %v6594
    %v6600 = vmax.f32 %v6596, 0.0
    %v6601 = vmax.f32 %v6597, 0.0
    %v6602 = vmax.f32 %v6598, 0.0
    %v6603 = vmax.f32 %v6599, 0.0
    %v6604 = vpack.c.bf16 %v6601, %v6600
    %v6605 = vpack.c.bf16 %v6603, %v6602
    %v6606 = vld [vmem:[#allocation17] sm:$0xf]
    %vm6607 = vcmask 261120
    %v6609 = vsel %vm6607, %v6606, 0
    %6611 = vmatpush.bf16.msra.mxu0 0
    %6612 = vmatpush.bf16.msra.mxu0 0
    %6613 = vmatpush.bf16.msra.mxu0 0
    %6614 = vmatpush.bf16.msra.mxu0 0
    %6615 = vmatpush.bf16.msra.mxu0 0
    %6616 = vmatpush.bf16.msra.mxu0 0
    %6617 = vmatpush.bf16.msra.mxu0 %v6605
    %6618 = vmatpush.bf16.msra.mxu0 %v6604
    %6619 = vmatmul.bf16.gmra.mxu0 %v6609
    %v6620 = vpop.f32.mrf.mxu0
    %v6621 = vadd.f32 0.0, %v6620
    %v6622 = vpop.f32.mrf.mxu0
    %6623 = vdwg.mxu0
    %v6624 = vpack.c.bf16 %v6621, %v6621
    %v6625 = vld [vmem:[#allocation19] sm:$0xf]
    %v6626 = vld [vmem:[#allocation19 + $0x4] sm:$0xf]
    %v6627 = vld [vmem:[#allocation19 + $0x8] sm:$0xf]
    %v6628 = vld [vmem:[#allocation19 + $0xc] sm:$0xf]
    %v6629 = vld [vmem:[#allocation19 + $0x10] sm:$0xf]
    %v6630 = vld [vmem:[#allocation19 + $0x14] sm:$0xf]
    %v6631 = vld [vmem:[#allocation19 + $0x18] sm:$0xf]
    %v6632 = vld [vmem:[#allocation19 + $0x1c] sm:$0xf]
    %v6633 = vld [vmem:[#allocation19 + $0x20] sm:$0xf]
    %v6634 = vld [vmem:[#allocation19 + $0x24] sm:$0xf]
    %v6635 = vld [vmem:[#allocation19 + $0x28] sm:$0xf]
    %v6636 = vld [vmem:[#allocation19 + $0x2c] sm:$0xf]
    %v6637 = vld [vmem:[#allocation19 + $0x30] sm:$0xf]
    %v6638 = vld [vmem:[#allocation19 + $0x34] sm:$0xf]
    %v6639 = vld [vmem:[#allocation19 + $0x38] sm:$0xf]
    %v6640 = vld [vmem:[#allocation19 + $0x3c] sm:$0xf]
    %s6641 = scalar_lea.vmem [#allocation17], 4
    %v6642 = vld [vmem:[%s6641] sm:$0xf]
    %v6644 = vsel %vm6607, %v6642, 0
    %6646 = vmatpush.bf16.msra.mxu0 0
    %6647 = vmatpush.bf16.msra.mxu0 0
    %6648 = vmatpush.bf16.msra.mxu0 0
    %6649 = vmatpush.bf16.msra.mxu0 0
    %6650 = vmatpush.bf16.msra.mxu0 0
    %6651 = vmatpush.bf16.msra.mxu0 0
    %6652 = vmatpush.bf16.msra.mxu0 %v6605
    %6653 = vmatpush.bf16.msra.mxu0 %v6604
    %6654 = vmatmul.bf16.gmra.mxu0 %v6644
    %v6655 = vpop.f32.mrf.mxu0
    %v6656 = vadd.f32 0.0, %v6655
    %v6657 = vpop.f32.mrf.mxu0
    %6658 = vdwg.mxu0
    %v6659 = vpack.c.bf16 %v6656, %v6656
    %s6660 = scalar_lea.vmem [#allocation19], 64
    %v6661 = vld [vmem:[%s6660] sm:$0xf]
    %v6662 = vld [vmem:[%s6660 + $0x4] sm:$0xf]
    %v6663 = vld [vmem:[%s6660 + $0x8] sm:$0xf]
    %v6664 = vld [vmem:[%s6660 + $0xc] sm:$0xf]
    %v6665 = vld [vmem:[%s6660 + $0x10] sm:$0xf]
    %v6666 = vld [vmem:[%s6660 + $0x14] sm:$0xf]
    %v6667 = vld [vmem:[%s6660 + $0x18] sm:$0xf]
    %v6668 = vld [vmem:[%s6660 + $0x1c] sm:$0xf]
    %v6669 = vld [vmem:[%s6660 + $0x20] sm:$0xf]
    %v6670 = vld [vmem:[%s6660 + $0x24] sm:$0xf]
    %v6671 = vld [vmem:[%s6660 + $0x28] sm:$0xf]
    %v6672 = vld [vmem:[%s6660 + $0x2c] sm:$0xf]
    %v6673 = vld [vmem:[%s6660 + $0x30] sm:$0xf]
    %v6674 = vld [vmem:[%s6660 + $0x34] sm:$0xf]
    %v6675 = vld [vmem:[%s6660 + $0x38] sm:$0xf]
    %v6676 = vld [vmem:[%s6660 + $0x3c] sm:$0xf]
    %v6693 = vunpack.c.l.b16 %v6661
    %v6694 = vunpack.c.l.b16 %v6662
    %v6695 = vunpack.c.l.b16 %v6663
    %v6696 = vunpack.c.l.b16 %v6664
    %v6697 = vunpack.c.l.b16 %v6665
    %v6698 = vunpack.c.l.b16 %v6666
    %v6699 = vunpack.c.l.b16 %v6667
    %v6700 = vunpack.c.l.b16 %v6668
    %v6701 = vunpack.c.l.b16 %v6669
    %v6702 = vunpack.c.l.b16 %v6670
    %v6703 = vunpack.c.l.b16 %v6671
    %v6704 = vunpack.c.l.b16 %v6672
    %v6705 = vunpack.c.l.b16 %v6673
    %v6706 = vunpack.c.l.b16 %v6674
    %v6707 = vunpack.c.l.b16 %v6675
    %v6708 = vunpack.c.l.b16 %v6676
    %v6709 = vpack.c.b16 %v6694, %v6693
    %v6710 = vpack.c.b16 %v6696, %v6695
    %v6711 = vpack.c.b16 %v6698, %v6697
    %v6712 = vpack.c.b16 %v6700, %v6699
    %v6713 = vpack.c.b16 %v6702, %v6701
    %v6714 = vpack.c.b16 %v6704, %v6703
    %v6715 = vpack.c.b16 %v6706, %v6705
    %v6716 = vpack.c.b16 %v6708, %v6707
    %6725 = vmatpush.bf16.msra.mxu0 %v6716
    %6726 = vmatpush.bf16.msra.mxu0 %v6715
    %6727 = vmatpush.bf16.msra.mxu0 %v6714
    %6728 = vmatpush.bf16.msra.mxu0 %v6713
    %6729 = vmatpush.bf16.msra.mxu0 %v6712
    %6730 = vmatpush.bf16.msra.mxu0 %v6711
    %6731 = vmatpush.bf16.msra.mxu0 %v6710
    %6732 = vmatpush.bf16.msra.mxu0 %v6709
    %6733 = vmatmul.bf16.gmra.mxu0 %v6659
    %v6734 = vpop.f32.mrf.mxu0
    %v6735 = vadd.f32 0.0, %v6734
    %v6736 = vpop.f32.mrf.mxu0
    %6737 = vdwg.mxu0
    %v6754 = vunpack.c.l.b16 %v6625
    %v6755 = vunpack.c.l.b16 %v6626
    %v6756 = vunpack.c.l.b16 %v6627
    %v6757 = vunpack.c.l.b16 %v6628
    %v6758 = vunpack.c.l.b16 %v6629
    %v6759 = vunpack.c.l.b16 %v6630
    %v6760 = vunpack.c.l.b16 %v6631
    %v6761 = vunpack.c.l.b16 %v6632
    %v6762 = vunpack.c.l.b16 %v6633
    %v6763 = vunpack.c.l.b16 %v6634
    %v6764 = vunpack.c.l.b16 %v6635
    %v6765 = vunpack.c.l.b16 %v6636
    %v6766 = vunpack.c.l.b16 %v6637
    %v6767 = vunpack.c.l.b16 %v6638
    %v6768 = vunpack.c.l.b16 %v6639
    %v6769 = vunpack.c.l.b16 %v6640
    %v6770 = vpack.c.b16 %v6755, %v6754
    %v6771 = vpack.c.b16 %v6757, %v6756
    %v6772 = vpack.c.b16 %v6759, %v6758
    %v6773 = vpack.c.b16 %v6761, %v6760
    %v6774 = vpack.c.b16 %v6763, %v6762
    %v6775 = vpack.c.b16 %v6765, %v6764
    %v6776 = vpack.c.b16 %v6767, %v6766
    %v6777 = vpack.c.b16 %v6769, %v6768
    %6786 = vmatpush.bf16.msra.mxu0 %v6777
    %6787 = vmatpush.bf16.msra.mxu0 %v6776
    %6788 = vmatpush.bf16.msra.mxu0 %v6775
    %6789 = vmatpush.bf16.msra.mxu0 %v6774
    %6790 = vmatpush.bf16.msra.mxu0 %v6773
    %6791 = vmatpush.bf16.msra.mxu0 %v6772
    %6792 = vmatpush.bf16.msra.mxu0 %v6771
    %6793 = vmatpush.bf16.msra.mxu0 %v6770
    %6794 = vmatmul.bf16.gmra.mxu0 %v6624
    %v6795 = vpop.f32.mrf.mxu0
    %v6796 = vadd.f32 %v6735, %v6795
    %v6797 = vpop.f32.mrf.mxu0
    %6798 = vdwg.mxu0
    %s6799 = scalar_lea.vmem [#allocation17], 8
    %v6800 = vld [vmem:[%s6799] sm:$0xf]
    %v6802 = vsel %vm6607, %v6800, 0
    %6804 = vmatpush.bf16.msra.mxu0 0
    %6805 = vmatpush.bf16.msra.mxu0 0
    %6806 = vmatpush.bf16.msra.mxu0 0
    %6807 = vmatpush.bf16.msra.mxu0 0
    %6808 = vmatpush.bf16.msra.mxu0 0
    %6809 = vmatpush.bf16.msra.mxu0 0
    %6810 = vmatpush.bf16.msra.mxu0 %v6605
    %6811 = vmatpush.bf16.msra.mxu0 %v6604
    %6812 = vmatmul.bf16.gmra.mxu0 %v6802
    %v6813 = vpop.f32.mrf.mxu0
    %v6814 = vadd.f32 0.0, %v6813
    %v6815 = vpop.f32.mrf.mxu0
    %6816 = vdwg.mxu0
    %v6817 = vpack.c.bf16 %v6814, %v6814
    %s6818 = scalar_lea.vmem [#allocation19], 128
    %v6819 = vld [vmem:[%s6818] sm:$0xf]
    %v6820 = vld [vmem:[%s6818 + $0x4] sm:$0xf]
    %v6821 = vld [vmem:[%s6818 + $0x8] sm:$0xf]
    %v6822 = vld [vmem:[%s6818 + $0xc] sm:$0xf]
    %v6823 = vld [vmem:[%s6818 + $0x10] sm:$0xf]
    %v6824 = vld [vmem:[%s6818 + $0x14] sm:$0xf]
    %v6825 = vld [vmem:[%s6818 + $0x18] sm:$0xf]
    %v6826 = vld [vmem:[%s6818 + $0x1c] sm:$0xf]
    %v6827 = vld [vmem:[%s6818 + $0x20] sm:$0xf]
    %v6828 = vld [vmem:[%s6818 + $0x24] sm:$0xf]
    %v6829 = vld [vmem:[%s6818 + $0x28] sm:$0xf]
    %v6830 = vld [vmem:[%s6818 + $0x2c] sm:$0xf]
    %v6831 = vld [vmem:[%s6818 + $0x30] sm:$0xf]
    %v6832 = vld [vmem:[%s6818 + $0x34] sm:$0xf]
    %v6833 = vld [vmem:[%s6818 + $0x38] sm:$0xf]
    %v6834 = vld [vmem:[%s6818 + $0x3c] sm:$0xf]
    %v6851 = vunpack.c.l.b16 %v6819
    %v6852 = vunpack.c.l.b16 %v6820
    %v6853 = vunpack.c.l.b16 %v6821
    %v6854 = vunpack.c.l.b16 %v6822
    %v6855 = vunpack.c.l.b16 %v6823
    %v6856 = vunpack.c.l.b16 %v6824
    %v6857 = vunpack.c.l.b16 %v6825
    %v6858 = vunpack.c.l.b16 %v6826
    %v6859 = vunpack.c.l.b16 %v6827
    %v6860 = vunpack.c.l.b16 %v6828
    %v6861 = vunpack.c.l.b16 %v6829
    %v6862 = vunpack.c.l.b16 %v6830
    %v6863 = vunpack.c.l.b16 %v6831
    %v6864 = vunpack.c.l.b16 %v6832
    %v6865 = vunpack.c.l.b16 %v6833
    %v6866 = vunpack.c.l.b16 %v6834
    %v6867 = vpack.c.b16 %v6852, %v6851
    %v6868 = vpack.c.b16 %v6854, %v6853
    %v6869 = vpack.c.b16 %v6856, %v6855
    %v6870 = vpack.c.b16 %v6858, %v6857
    %v6871 = vpack.c.b16 %v6860, %v6859
    %v6872 = vpack.c.b16 %v6862, %v6861
    %v6873 = vpack.c.b16 %v6864, %v6863
    %v6874 = vpack.c.b16 %v6866, %v6865
    %6883 = vmatpush.bf16.msra.mxu0 %v6874
    %6884 = vmatpush.bf16.msra.mxu0 %v6873
    %6885 = vmatpush.bf16.msra.mxu0 %v6872
    %6886 = vmatpush.bf16.msra.mxu0 %v6871
    %6887 = vmatpush.bf16.msra.mxu0 %v6870
    %6888 = vmatpush.bf16.msra.mxu0 %v6869
    %6889 = vmatpush.bf16.msra.mxu0 %v6868
    %6890 = vmatpush.bf16.msra.mxu0 %v6867
    %6891 = vmatmul.bf16.gmra.mxu0 %v6817
    %v6892 = vpop.f32.mrf.mxu0
    %v6893 = vadd.f32 0.0, %v6892
    %v6894 = vpop.f32.mrf.mxu0
    %6895 = vdwg.mxu0
    %v6896 = vadd.f32 %v6796, %v6893
    %s6897 = scalar_lea.vmem [#allocation17], 12
    %v6898 = vld [vmem:[%s6897] sm:$0xf]
    %v6900 = vsel %vm6607, %v6898, 0
    %6902 = vmatpush.bf16.msra.mxu0 0
    %6903 = vmatpush.bf16.msra.mxu0 0
    %6904 = vmatpush.bf16.msra.mxu0 0
    %6905 = vmatpush.bf16.msra.mxu0 0
    %6906 = vmatpush.bf16.msra.mxu0 0
    %6907 = vmatpush.bf16.msra.mxu0 0
    %6908 = vmatpush.bf16.msra.mxu0 %v6605
    %6909 = vmatpush.bf16.msra.mxu0 %v6604
    %6910 = vmatmul.bf16.gmra.mxu0 %v6900
    %v6911 = vpop.f32.mrf.mxu0
    %v6912 = vadd.f32 0.0, %v6911
    %v6913 = vpop.f32.mrf.mxu0
    %6914 = vdwg.mxu0
    %v6915 = vpack.c.bf16 %v6912, %v6912
    %s6916 = scalar_lea.vmem [#allocation19], 192
    %v6917 = vld [vmem:[%s6916] sm:$0xf]
    %v6918 = vld [vmem:[%s6916 + $0x4] sm:$0xf]
    %v6919 = vld [vmem:[%s6916 + $0x8] sm:$0xf]
    %v6920 = vld [vmem:[%s6916 + $0xc] sm:$0xf]
    %v6921 = vld [vmem:[%s6916 + $0x10] sm:$0xf]
    %v6922 = vld [vmem:[%s6916 + $0x14] sm:$0xf]
    %v6923 = vld [vmem:[%s6916 + $0x18] sm:$0xf]
    %v6924 = vld [vmem:[%s6916 + $0x1c] sm:$0xf]
    %v6925 = vld [vmem:[%s6916 + $0x20] sm:$0xf]
    %v6926 = vld [vmem:[%s6916 + $0x24] sm:$0xf]
    %v6927 = vld [vmem:[%s6916 + $0x28] sm:$0xf]
    %v6928 = vld [vmem:[%s6916 + $0x2c] sm:$0xf]
    %v6929 = vld [vmem:[%s6916 + $0x30] sm:$0xf]
    %v6930 = vld [vmem:[%s6916 + $0x34] sm:$0xf]
    %v6931 = vld [vmem:[%s6916 + $0x38] sm:$0xf]
    %v6932 = vld [vmem:[%s6916 + $0x3c] sm:$0xf]
    %v6949 = vunpack.c.l.b16 %v6917
    %v6950 = vunpack.c.l.b16 %v6918
    %v6951 = vunpack.c.l.b16 %v6919
    %v6952 = vunpack.c.l.b16 %v6920
    %v6953 = vunpack.c.l.b16 %v6921
    %v6954 = vunpack.c.l.b16 %v6922
    %v6955 = vunpack.c.l.b16 %v6923
    %v6956 = vunpack.c.l.b16 %v6924
    %v6957 = vunpack.c.l.b16 %v6925
    %v6958 = vunpack.c.l.b16 %v6926
    %v6959 = vunpack.c.l.b16 %v6927
    %v6960 = vunpack.c.l.b16 %v6928
    %v6961 = vunpack.c.l.b16 %v6929
    %v6962 = vunpack.c.l.b16 %v6930
    %v6963 = vunpack.c.l.b16 %v6931
    %v6964 = vunpack.c.l.b16 %v6932
    %v6965 = vpack.c.b16 %v6950, %v6949
    %v6966 = vpack.c.b16 %v6952, %v6951
    %v6967 = vpack.c.b16 %v6954, %v6953
    %v6968 = vpack.c.b16 %v6956, %v6955
    %v6969 = vpack.c.b16 %v6958, %v6957
    %v6970 = vpack.c.b16 %v6960, %v6959
    %v6971 = vpack.c.b16 %v6962, %v6961
    %v6972 = vpack.c.b16 %v6964, %v6963
    %6981 = vmatpush.bf16.msra.mxu0 %v6972
    %6982 = vmatpush.bf16.msra.mxu0 %v6971
    %6983 = vmatpush.bf16.msra.mxu0 %v6970
    %6984 = vmatpush.bf16.msra.mxu0 %v6969
    %6985 = vmatpush.bf16.msra.mxu0 %v6968
    %6986 = vmatpush.bf16.msra.mxu0 %v6967
    %6987 = vmatpush.bf16.msra.mxu0 %v6966
    %6988 = vmatpush.bf16.msra.mxu0 %v6965
    %6989 = vmatmul.bf16.gmra.mxu0 %v6915
    %v6990 = vpop.f32.mrf.mxu0
    %v6991 = vadd.f32 0.0, %v6990
    %v6992 = vpop.f32.mrf.mxu0
    %6993 = vdwg.mxu0
    %v6994 = vadd.f32 %v6896, %v6991
    %s6995 = scalar_lea.vmem [#allocation17], 16
    %v6996 = vld [vmem:[%s6995] sm:$0xf]
    %v6998 = vsel %vm6607, %v6996, 0
    %7000 = vmatpush.bf16.msra.mxu0 0
    %7001 = vmatpush.bf16.msra.mxu0 0
    %7002 = vmatpush.bf16.msra.mxu0 0
    %7003 = vmatpush.bf16.msra.mxu0 0
    %7004 = vmatpush.bf16.msra.mxu0 0
    %7005 = vmatpush.bf16.msra.mxu0 0
    %7006 = vmatpush.bf16.msra.mxu0 %v6605
    %7007 = vmatpush.bf16.msra.mxu0 %v6604
    %7008 = vmatmul.bf16.gmra.mxu0 %v6998
    %v7009 = vpop.f32.mrf.mxu0
    %v7010 = vadd.f32 0.0, %v7009
    %v7011 = vpop.f32.mrf.mxu0
    %7012 = vdwg.mxu0
    %v7013 = vpack.c.bf16 %v7010, %v7010
    %s7014 = scalar_lea.vmem [#allocation19], 256
    %v7015 = vld [vmem:[%s7014] sm:$0xf]
    %v7016 = vld [vmem:[%s7014 + $0x4] sm:$0xf]
    %v7017 = vld [vmem:[%s7014 + $0x8] sm:$0xf]
    %v7018 = vld [vmem:[%s7014 + $0xc] sm:$0xf]
    %v7019 = vld [vmem:[%s7014 + $0x10] sm:$0xf]
    %v7020 = vld [vmem:[%s7014 + $0x14] sm:$0xf]
    %v7021 = vld [vmem:[%s7014 + $0x18] sm:$0xf]
    %v7022 = vld [vmem:[%s7014 + $0x1c] sm:$0xf]
    %v7023 = vld [vmem:[%s7014 + $0x20] sm:$0xf]
    %v7024 = vld [vmem:[%s7014 + $0x24] sm:$0xf]
    %v7025 = vld [vmem:[%s7014 + $0x28] sm:$0xf]
    %v7026 = vld [vmem:[%s7014 + $0x2c] sm:$0xf]
    %v7027 = vld [vmem:[%s7014 + $0x30] sm:$0xf]
    %v7028 = vld [vmem:[%s7014 + $0x34] sm:$0xf]
    %v7029 = vld [vmem:[%s7014 + $0x38] sm:$0xf]
    %v7030 = vld [vmem:[%s7014 + $0x3c] sm:$0xf]
    %v7047 = vunpack.c.l.b16 %v7015
    %v7048 = vunpack.c.l.b16 %v7016
    %v7049 = vunpack.c.l.b16 %v7017
    %v7050 = vunpack.c.l.b16 %v7018
    %v7051 = vunpack.c.l.b16 %v7019
    %v7052 = vunpack.c.l.b16 %v7020
    %v7053 = vunpack.c.l.b16 %v7021
    %v7054 = vunpack.c.l.b16 %v7022
    %v7055 = vunpack.c.l.b16 %v7023
    %v7056 = vunpack.c.l.b16 %v7024
    %v7057 = vunpack.c.l.b16 %v7025
    %v7058 = vunpack.c.l.b16 %v7026
    %v7059 = vunpack.c.l.b16 %v7027
    %v7060 = vunpack.c.l.b16 %v7028
    %v7061 = vunpack.c.l.b16 %v7029
    %v7062 = vunpack.c.l.b16 %v7030
    %v7063 = vpack.c.b16 %v7048, %v7047
    %v7064 = vpack.c.b16 %v7050, %v7049
    %v7065 = vpack.c.b16 %v7052, %v7051
    %v7066 = vpack.c.b16 %v7054, %v7053
    %v7067 = vpack.c.b16 %v7056, %v7055
    %v7068 = vpack.c.b16 %v7058, %v7057
    %v7069 = vpack.c.b16 %v7060, %v7059
    %v7070 = vpack.c.b16 %v7062, %v7061
    %7079 = vmatpush.bf16.msra.mxu0 %v7070
    %7080 = vmatpush.bf16.msra.mxu0 %v7069
    %7081 = vmatpush.bf16.msra.mxu0 %v7068
    %7082 = vmatpush.bf16.msra.mxu0 %v7067
    %7083 = vmatpush.bf16.msra.mxu0 %v7066
    %7084 = vmatpush.bf16.msra.mxu0 %v7065
    %7085 = vmatpush.bf16.msra.mxu0 %v7064
    %7086 = vmatpush.bf16.msra.mxu0 %v7063
    %7087 = vmatmul.bf16.gmra.mxu0 %v7013
    %v7088 = vpop.f32.mrf.mxu0
    %v7089 = vadd.f32 0.0, %v7088
    %v7090 = vpop.f32.mrf.mxu0
    %7091 = vdwg.mxu0
    %v7092 = vadd.f32 %v6994, %v7089
    %s7093 = scalar_lea.vmem [#allocation17], 20
    %v7094 = vld [vmem:[%s7093] sm:$0xf]
    %v7096 = vsel %vm6607, %v7094, 0
    %7098 = vmatpush.bf16.msra.mxu0 0
    %7099 = vmatpush.bf16.msra.mxu0 0
    %7100 = vmatpush.bf16.msra.mxu0 0
    %7101 = vmatpush.bf16.msra.mxu0 0
    %7102 = vmatpush.bf16.msra.mxu0 0
    %7103 = vmatpush.bf16.msra.mxu0 0
    %7104 = vmatpush.bf16.msra.mxu0 %v6605
    %7105 = vmatpush.bf16.msra.mxu0 %v6604
    %7106 = vmatmul.bf16.gmra.mxu0 %v7096
    %v7107 = vpop.f32.mrf.mxu0
    %v7108 = vadd.f32 0.0, %v7107
    %v7109 = vpop.f32.mrf.mxu0
    %7110 = vdwg.mxu0
    %v7111 = vpack.c.bf16 %v7108, %v7108
    %s7112 = scalar_lea.vmem [#allocation19], 320
    %v7113 = vld [vmem:[%s7112] sm:$0xf]
    %v7114 = vld [vmem:[%s7112 + $0x4] sm:$0xf]
    %v7115 = vld [vmem:[%s7112 + $0x8] sm:$0xf]
    %v7116 = vld [vmem:[%s7112 + $0xc] sm:$0xf]
    %v7117 = vld [vmem:[%s7112 + $0x10] sm:$0xf]
    %v7118 = vld [vmem:[%s7112 + $0x14] sm:$0xf]
    %v7119 = vld [vmem:[%s7112 + $0x18] sm:$0xf]
    %v7120 = vld [vmem:[%s7112 + $0x1c] sm:$0xf]
    %v7121 = vld [vmem:[%s7112 + $0x20] sm:$0xf]
    %v7122 = vld [vmem:[%s7112 + $0x24] sm:$0xf]
    %v7123 = vld [vmem:[%s7112 + $0x28] sm:$0xf]
    %v7124 = vld [vmem:[%s7112 + $0x2c] sm:$0xf]
    %v7125 = vld [vmem:[%s7112 + $0x30] sm:$0xf]
    %v7126 = vld [vmem:[%s7112 + $0x34] sm:$0xf]
    %v7127 = vld [vmem:[%s7112 + $0x38] sm:$0xf]
    %v7128 = vld [vmem:[%s7112 + $0x3c] sm:$0xf]
    %v7145 = vunpack.c.l.b16 %v7113
    %v7146 = vunpack.c.l.b16 %v7114
    %v7147 = vunpack.c.l.b16 %v7115
    %v7148 = vunpack.c.l.b16 %v7116
    %v7149 = vunpack.c.l.b16 %v7117
    %v7150 = vunpack.c.l.b16 %v7118
    %v7151 = vunpack.c.l.b16 %v7119
    %v7152 = vunpack.c.l.b16 %v7120
    %v7153 = vunpack.c.l.b16 %v7121
    %v7154 = vunpack.c.l.b16 %v7122
    %v7155 = vunpack.c.l.b16 %v7123
    %v7156 = vunpack.c.l.b16 %v7124
    %v7157 = vunpack.c.l.b16 %v7125
    %v7158 = vunpack.c.l.b16 %v7126
    %v7159 = vunpack.c.l.b16 %v7127
    %v7160 = vunpack.c.l.b16 %v7128
    %v7161 = vpack.c.b16 %v7146, %v7145
    %v7162 = vpack.c.b16 %v7148, %v7147
    %v7163 = vpack.c.b16 %v7150, %v7149
    %v7164 = vpack.c.b16 %v7152, %v7151
    %v7165 = vpack.c.b16 %v7154, %v7153
    %v7166 = vpack.c.b16 %v7156, %v7155
    %v7167 = vpack.c.b16 %v7158, %v7157
    %v7168 = vpack.c.b16 %v7160, %v7159
    %7177 = vmatpush.bf16.msra.mxu0 %v7168
    %7178 = vmatpush.bf16.msra.mxu0 %v7167
    %7179 = vmatpush.bf16.msra.mxu0 %v7166
    %7180 = vmatpush.bf16.msra.mxu0 %v7165
    %7181 = vmatpush.bf16.msra.mxu0 %v7164
    %7182 = vmatpush.bf16.msra.mxu0 %v7163
    %7183 = vmatpush.bf16.msra.mxu0 %v7162
    %7184 = vmatpush.bf16.msra.mxu0 %v7161
    %7185 = vmatmul.bf16.gmra.mxu0 %v7111
    %v7186 = vpop.f32.mrf.mxu0
    %v7187 = vadd.f32 0.0, %v7186
    %v7188 = vpop.f32.mrf.mxu0
    %7189 = vdwg.mxu0
    %v7190 = vadd.f32 %v7092, %v7187
    %s7191 = scalar_lea.vmem [#allocation17], 24
    %v7192 = vld [vmem:[%s7191] sm:$0xf]
    %v7194 = vsel %vm6607, %v7192, 0
    %7196 = vmatpush.bf16.msra.mxu0 0
    %7197 = vmatpush.bf16.msra.mxu0 0
    %7198 = vmatpush.bf16.msra.mxu0 0
    %7199 = vmatpush.bf16.msra.mxu0 0
    %7200 = vmatpush.bf16.msra.mxu0 0
    %7201 = vmatpush.bf16.msra.mxu0 0
    %7202 = vmatpush.bf16.msra.mxu0 %v6605
    %7203 = vmatpush.bf16.msra.mxu0 %v6604
    %7204 = vmatmul.bf16.gmra.mxu0 %v7194
    %v7205 = vpop.f32.mrf.mxu0
    %v7206 = vadd.f32 0.0, %v7205
    %v7207 = vpop.f32.mrf.mxu0
    %7208 = vdwg.mxu0
    %v7209 = vpack.c.bf16 %v7206, %v7206
    %s7210 = scalar_lea.vmem [#allocation19], 384
    %v7211 = vld [vmem:[%s7210] sm:$0xf]
    %v7212 = vld [vmem:[%s7210 + $0x4] sm:$0xf]
    %v7213 = vld [vmem:[%s7210 + $0x8] sm:$0xf]
    %v7214 = vld [vmem:[%s7210 + $0xc] sm:$0xf]
    %v7215 = vld [vmem:[%s7210 + $0x10] sm:$0xf]
    %v7216 = vld [vmem:[%s7210 + $0x14] sm:$0xf]
    %v7217 = vld [vmem:[%s7210 + $0x18] sm:$0xf]
    %v7218 = vld [vmem:[%s7210 + $0x1c] sm:$0xf]
    %v7219 = vld [vmem:[%s7210 + $0x20] sm:$0xf]
    %v7220 = vld [vmem:[%s7210 + $0x24] sm:$0xf]
    %v7221 = vld [vmem:[%s7210 + $0x28] sm:$0xf]
    %v7222 = vld [vmem:[%s7210 + $0x2c] sm:$0xf]
    %v7223 = vld [vmem:[%s7210 + $0x30] sm:$0xf]
    %v7224 = vld [vmem:[%s7210 + $0x34] sm:$0xf]
    %v7225 = vld [vmem:[%s7210 + $0x38] sm:$0xf]
    %v7226 = vld [vmem:[%s7210 + $0x3c] sm:$0xf]
    %v7243 = vunpack.c.l.b16 %v7211
    %v7244 = vunpack.c.l.b16 %v7212
    %v7245 = vunpack.c.l.b16 %v7213
    %v7246 = vunpack.c.l.b16 %v7214
    %v7247 = vunpack.c.l.b16 %v7215
    %v7248 = vunpack.c.l.b16 %v7216
    %v7249 = vunpack.c.l.b16 %v7217
    %v7250 = vunpack.c.l.b16 %v7218
    %v7251 = vunpack.c.l.b16 %v7219
    %v7252 = vunpack.c.l.b16 %v7220
    %v7253 = vunpack.c.l.b16 %v7221
    %v7254 = vunpack.c.l.b16 %v7222
    %v7255 = vunpack.c.l.b16 %v7223
    %v7256 = vunpack.c.l.b16 %v7224
    %v7257 = vunpack.c.l.b16 %v7225
    %v7258 = vunpack.c.l.b16 %v7226
    %v7259 = vpack.c.b16 %v7244, %v7243
    %v7260 = vpack.c.b16 %v7246, %v7245
    %v7261 = vpack.c.b16 %v7248, %v7247
    %v7262 = vpack.c.b16 %v7250, %v7249
    %v7263 = vpack.c.b16 %v7252, %v7251
    %v7264 = vpack.c.b16 %v7254, %v7253
    %v7265 = vpack.c.b16 %v7256, %v7255
    %v7266 = vpack.c.b16 %v7258, %v7257
    %7275 = vmatpush.bf16.msra.mxu0 %v7266
    %7276 = vmatpush.bf16.msra.mxu0 %v7265
    %7277 = vmatpush.bf16.msra.mxu0 %v7264
    %7278 = vmatpush.bf16.msra.mxu0 %v7263
    %7279 = vmatpush.bf16.msra.mxu0 %v7262
    %7280 = vmatpush.bf16.msra.mxu0 %v7261
    %7281 = vmatpush.bf16.msra.mxu0 %v7260
    %7282 = vmatpush.bf16.msra.mxu0 %v7259
    %7283 = vmatmul.bf16.gmra.mxu0 %v7209
    %v7284 = vpop.f32.mrf.mxu0
    %v7285 = vadd.f32 0.0, %v7284
    %v7286 = vpop.f32.mrf.mxu0
    %7287 = vdwg.mxu0
    %v7288 = vadd.f32 %v7190, %v7285
    %s7289 = scalar_lea.vmem [#allocation17], 28
    %v7290 = vld [vmem:[%s7289] sm:$0xf]
    %v7292 = vsel %vm6607, %v7290, 0
    %7294 = vmatpush.bf16.msra.mxu0 0
    %7295 = vmatpush.bf16.msra.mxu0 0
    %7296 = vmatpush.bf16.msra.mxu0 0
    %7297 = vmatpush.bf16.msra.mxu0 0
    %7298 = vmatpush.bf16.msra.mxu0 0
    %7299 = vmatpush.bf16.msra.mxu0 0
    %7300 = vmatpush.bf16.msra.mxu0 %v6605
    %7301 = vmatpush.bf16.msra.mxu0 %v6604
    %7302 = vmatmul.bf16.gmra.mxu0 %v7292
    %v7303 = vpop.f32.mrf.mxu0
    %v7304 = vadd.f32 0.0, %v7303
    %v7305 = vpop.f32.mrf.mxu0
    %7306 = vdwg.mxu0
    %v7307 = vpack.c.bf16 %v7304, %v7304
    %s7308 = scalar_lea.vmem [#allocation19], 448
    %v7309 = vld [vmem:[%s7308] sm:$0xf]
    %v7310 = vld [vmem:[%s7308 + $0x4] sm:$0xf]
    %v7311 = vld [vmem:[%s7308 + $0x8] sm:$0xf]
    %v7312 = vld [vmem:[%s7308 + $0xc] sm:$0xf]
    %v7313 = vld [vmem:[%s7308 + $0x10] sm:$0xf]
    %v7314 = vld [vmem:[%s7308 + $0x14] sm:$0xf]
    %v7315 = vld [vmem:[%s7308 + $0x18] sm:$0xf]
    %v7316 = vld [vmem:[%s7308 + $0x1c] sm:$0xf]
    %v7317 = vld [vmem:[%s7308 + $0x20] sm:$0xf]
    %v7318 = vld [vmem:[%s7308 + $0x24] sm:$0xf]
    %v7319 = vld [vmem:[%s7308 + $0x28] sm:$0xf]
    %v7320 = vld [vmem:[%s7308 + $0x2c] sm:$0xf]
    %v7321 = vld [vmem:[%s7308 + $0x30] sm:$0xf]
    %v7322 = vld [vmem:[%s7308 + $0x34] sm:$0xf]
    %v7323 = vld [vmem:[%s7308 + $0x38] sm:$0xf]
    %v7324 = vld [vmem:[%s7308 + $0x3c] sm:$0xf]
    %v7341 = vunpack.c.l.b16 %v7309
    %v7342 = vunpack.c.l.b16 %v7310
    %v7343 = vunpack.c.l.b16 %v7311
    %v7344 = vunpack.c.l.b16 %v7312
    %v7345 = vunpack.c.l.b16 %v7313
    %v7346 = vunpack.c.l.b16 %v7314
    %v7347 = vunpack.c.l.b16 %v7315
    %v7348 = vunpack.c.l.b16 %v7316
    %v7349 = vunpack.c.l.b16 %v7317
    %v7350 = vunpack.c.l.b16 %v7318
    %v7351 = vunpack.c.l.b16 %v7319
    %v7352 = vunpack.c.l.b16 %v7320
    %v7353 = vunpack.c.l.b16 %v7321
    %v7354 = vunpack.c.l.b16 %v7322
    %v7355 = vunpack.c.l.b16 %v7323
    %v7356 = vunpack.c.l.b16 %v7324
    %v7357 = vpack.c.b16 %v7342, %v7341
    %v7358 = vpack.c.b16 %v7344, %v7343
    %v7359 = vpack.c.b16 %v7346, %v7345
    %v7360 = vpack.c.b16 %v7348, %v7347
    %v7361 = vpack.c.b16 %v7350, %v7349
    %v7362 = vpack.c.b16 %v7352, %v7351
    %v7363 = vpack.c.b16 %v7354, %v7353
    %v7364 = vpack.c.b16 %v7356, %v7355
    %7373 = vmatpush.bf16.msra.mxu0 %v7364
    %7374 = vmatpush.bf16.msra.mxu0 %v7363
    %7375 = vmatpush.bf16.msra.mxu0 %v7362
    %7376 = vmatpush.bf16.msra.mxu0 %v7361
    %7377 = vmatpush.bf16.msra.mxu0 %v7360
    %7378 = vmatpush.bf16.msra.mxu0 %v7359
    %7379 = vmatpush.bf16.msra.mxu0 %v7358
    %7380 = vmatpush.bf16.msra.mxu0 %v7357
    %7381 = vmatmul.bf16.gmra.mxu0 %v7307
    %v7382 = vpop.f32.mrf.mxu0
    %v7383 = vadd.f32 0.0, %v7382
    %v7384 = vpop.f32.mrf.mxu0
    %7385 = vdwg.mxu0
    %v7386 = vadd.f32 %v7288, %v7383
    %s7387 = scalar_lea.vmem [#allocation17], 32
    %v7388 = vld [vmem:[%s7387] sm:$0xf]
    %v7390 = vsel %vm6607, %v7388, 0
    %7392 = vmatpush.bf16.msra.mxu0 0
    %7393 = vmatpush.bf16.msra.mxu0 0
    %7394 = vmatpush.bf16.msra.mxu0 0
    %7395 = vmatpush.bf16.msra.mxu0 0
    %7396 = vmatpush.bf16.msra.mxu0 0
    %7397 = vmatpush.bf16.msra.mxu0 0
    %7398 = vmatpush.bf16.msra.mxu0 %v6605
    %7399 = vmatpush.bf16.msra.mxu0 %v6604
    %7400 = vmatmul.bf16.gmra.mxu0 %v7390
    %v7401 = vpop.f32.mrf.mxu0
    %v7402 = vadd.f32 0.0, %v7401
    %v7403 = vpop.f32.mrf.mxu0
    %7404 = vdwg.mxu0
    %v7405 = vpack.c.bf16 %v7402, %v7402
    %s7406 = scalar_lea.vmem [#allocation19], 512
    %v7407 = vld [vmem:[%s7406] sm:$0xf]
    %v7408 = vld [vmem:[%s7406 + $0x4] sm:$0xf]
    %v7409 = vld [vmem:[%s7406 + $0x8] sm:$0xf]
    %v7410 = vld [vmem:[%s7406 + $0xc] sm:$0xf]
    %v7411 = vld [vmem:[%s7406 + $0x10] sm:$0xf]
    %v7412 = vld [vmem:[%s7406 + $0x14] sm:$0xf]
    %v7413 = vld [vmem:[%s7406 + $0x18] sm:$0xf]
    %v7414 = vld [vmem:[%s7406 + $0x1c] sm:$0xf]
    %v7415 = vld [vmem:[%s7406 + $0x20] sm:$0xf]
    %v7416 = vld [vmem:[%s7406 + $0x24] sm:$0xf]
    %v7417 = vld [vmem:[%s7406 + $0x28] sm:$0xf]
    %v7418 = vld [vmem:[%s7406 + $0x2c] sm:$0xf]
    %v7419 = vld [vmem:[%s7406 + $0x30] sm:$0xf]
    %v7420 = vld [vmem:[%s7406 + $0x34] sm:$0xf]
    %v7421 = vld [vmem:[%s7406 + $0x38] sm:$0xf]
    %v7422 = vld [vmem:[%s7406 + $0x3c] sm:$0xf]
    %v7439 = vunpack.c.l.b16 %v7407
    %v7440 = vunpack.c.l.b16 %v7408
    %v7441 = vunpack.c.l.b16 %v7409
    %v7442 = vunpack.c.l.b16 %v7410
    %v7443 = vunpack.c.l.b16 %v7411
    %v7444 = vunpack.c.l.b16 %v7412
    %v7445 = vunpack.c.l.b16 %v7413
    %v7446 = vunpack.c.l.b16 %v7414
    %v7447 = vunpack.c.l.b16 %v7415
    %v7448 = vunpack.c.l.b16 %v7416
    %v7449 = vunpack.c.l.b16 %v7417
    %v7450 = vunpack.c.l.b16 %v7418
    %v7451 = vunpack.c.l.b16 %v7419
    %v7452 = vunpack.c.l.b16 %v7420
    %v7453 = vunpack.c.l.b16 %v7421
    %v7454 = vunpack.c.l.b16 %v7422
    %v7455 = vpack.c.b16 %v7440, %v7439
    %v7456 = vpack.c.b16 %v7442, %v7441
    %v7457 = vpack.c.b16 %v7444, %v7443
    %v7458 = vpack.c.b16 %v7446, %v7445
    %v7459 = vpack.c.b16 %v7448, %v7447
    %v7460 = vpack.c.b16 %v7450, %v7449
    %v7461 = vpack.c.b16 %v7452, %v7451
    %v7462 = vpack.c.b16 %v7454, %v7453
    %7471 = vmatpush.bf16.msra.mxu0 %v7462
    %7472 = vmatpush.bf16.msra.mxu0 %v7461
    %7473 = vmatpush.bf16.msra.mxu0 %v7460
    %7474 = vmatpush.bf16.msra.mxu0 %v7459
    %7475 = vmatpush.bf16.msra.mxu0 %v7458
    %7476 = vmatpush.bf16.msra.mxu0 %v7457
    %7477 = vmatpush.bf16.msra.mxu0 %v7456
    %7478 = vmatpush.bf16.msra.mxu0 %v7455
    %7479 = vmatmul.bf16.gmra.mxu0 %v7405
    %v7480 = vpop.f32.mrf.mxu0
    %v7481 = vadd.f32 0.0, %v7480
    %v7482 = vpop.f32.mrf.mxu0
    %7483 = vdwg.mxu0
    %v7484 = vadd.f32 %v7386, %v7481
    %v7485 = vrot.slane %v7484, 4
    %v7486 = vadd.f32 %v7484, %v7485
    %v7487 = vrot.slane %v7486, 2
    %v7488 = vadd.f32 %v7486, %v7487
    %v7489 = vrot.slane %v7488, 1
    %v7490 = vadd.f32 %v7488, %v7489
    %v7491 = vrcp.pop 8.0
    %v7492 = vmul.f32 8.0, %v7491
    %v7493 = vsub.f32 1.0, %v7492
    %v7494 = vmul.f32 %v7491, %v7493
    %v7495 = vadd.f32 %v7491, %v7494
    %vm7496 = vweird.f32 %v7491
    %v7497 = vsel %vm7496, %v7491, %v7495
    %v7498 = vmul.f32 %v7490, %v7497
    %v7499 = vsub.f32 %v7484, %v7498
    %v7500 = vmul.f32 %v7499, %v7499
    %v7501 = vrot.slane %v7500, 4
    %v7502 = vadd.f32 %v7500, %v7501
    %v7503 = vrot.slane %v7502, 2
    %v7504 = vadd.f32 %v7502, %v7503
    %v7505 = vrot.slane %v7504, 1
    %v7506 = vadd.f32 %v7504, %v7505
    %v7507 = vmul.f32 %v7506, %v7497
    %v7508 = vadd.f32 %v7507, 1e-05
    %v7509 = vrsqrt.pop %v7508
    %v7510 = vmul.f32 %v7509, %v7508
    %v7511 = vmul.f32 %v7510, %v7509
    %v7512 = vmul.f32 0.5, %v7511
    %v7513 = vsub.f32 1.5, %v7512
    %v7514 = vmul.f32 %v7509, %v7513
    %vm7515 = vweird.f32 %v7508
    %vm7516 = vweird.f32 %v7509
    %vm7517 = vmor %vm7515, %vm7516
    %v7518 = vsel %vm7517, %v7509, %v7514
    %v7519 = vmul.f32 %v7499, %v7518
    %v7520 = vld [vmem:[#allocation20] sm:$0x1]
    %v7522 = vperm.slane %v7520, 0
    %v7524 = vmul.f32 %v7519, %v7522
    %v7525 = vld [vmem:[#allocation22] sm:$0x1]
    %v7527 = vperm.slane %v7525, 0
    %v7529 = vadd.f32 %v7524, %v7527
    %v7530 = vmax.f32 %v7529, 0.0
    %v7532 = vrot.slane %v7530, 3
    %vm7534 = vcmask 1040384
    %v7535 = vsel %vm7534, %v7530, %v7532
    %v7536 = vld [vmem:[#allocation23] sm:$0xff]
    %v7537 = vld [vmem:[#allocation23 + $0x8] sm:$0xff]
    %v7538 = vld [vmem:[#allocation23 + $0x10] sm:$0xff]
    %v7539 = vld [vmem:[#allocation23 + $0x18] sm:$0xff]
    %v7540 = vld [vmem:[#allocation23 + $0x20] sm:$0xff]
    %v7541 = vld [vmem:[#allocation23 + $0x28] sm:$0xff]
    %v7542 = vld [vmem:[#allocation23 + $0x30] sm:$0xff]
    %v7543 = vld [vmem:[#allocation23 + $0x38] sm:$0xff]
    %v7544 = vld [vmem:[#allocation23 + $0x40] sm:$0xff]
    %v7545 = vld [vmem:[#allocation23 + $0x48] sm:$0xff]
    %v7546 = vld [vmem:[#allocation23 + $0x50] sm:$0xff]
    %v7547 = vld [vmem:[#allocation23 + $0x58] sm:$0xff]
    %v7548 = vld [vmem:[#allocation23 + $0x60] sm:$0xff]
    %v7549 = vld [vmem:[#allocation23 + $0x68] sm:$0xff]
    %v7550 = vld [vmem:[#allocation23 + $0x70] sm:$0xff]
    %v7551 = vld [vmem:[#allocation23 + $0x78] sm:$0xff]
    %v7552 = vrot.slane %v7530, 1
    %v7554 = vrot.slane %v7530, 4
    %v7556 = vsel %vm7534, %v7552, %v7554
    %s7557 = scalar_lea.vmem [#allocation23], 128
    %v7558 = vld [vmem:[%s7557] sm:$0xff]
    %v7559 = vld [vmem:[%s7557 + $0x8] sm:$0xff]
    %v7560 = vld [vmem:[%s7557 + $0x10] sm:$0xff]
    %v7561 = vld [vmem:[%s7557 + $0x18] sm:$0xff]
    %v7562 = vld [vmem:[%s7557 + $0x20] sm:$0xff]
    %v7563 = vld [vmem:[%s7557 + $0x28] sm:$0xff]
    %v7564 = vld [vmem:[%s7557 + $0x30] sm:$0xff]
    %v7565 = vld [vmem:[%s7557 + $0x38] sm:$0xff]
    %v7566 = vld [vmem:[%s7557 + $0x40] sm:$0xff]
    %v7567 = vld [vmem:[%s7557 + $0x48] sm:$0xff]
    %v7568 = vld [vmem:[%s7557 + $0x50] sm:$0xff]
    %v7569 = vld [vmem:[%s7557 + $0x58] sm:$0xff]
    %v7570 = vld [vmem:[%s7557 + $0x60] sm:$0xff]
    %v7571 = vld [vmem:[%s7557 + $0x68] sm:$0xff]
    %v7572 = vld [vmem:[%s7557 + $0x70] sm:$0xff]
    %v7573 = vld [vmem:[%s7557 + $0x78] sm:$0xff]
    %7574 = vmatpush.msra.mxu0 %v7573
    %7575 = vmatpush.msra.mxu0 %v7572
    %7576 = vmatpush.msra.mxu0 %v7571
    %7577 = vmatpush.msra.mxu0 %v7570
    %7578 = vmatpush.msra.mxu0 %v7569
    %7579 = vmatpush.msra.mxu0 %v7568
    %7580 = vmatpush.msra.mxu0 %v7567
    %7581 = vmatpush.msra.mxu0 %v7566
    %7582 = vmatpush.msra.mxu0 %v7565
    %7583 = vmatpush.msra.mxu0 %v7564
    %7584 = vmatpush.msra.mxu0 %v7563
    %7585 = vmatpush.msra.mxu0 %v7562
    %7586 = vmatpush.msra.mxu0 %v7561
    %7587 = vmatpush.msra.mxu0 %v7560
    %7588 = vmatpush.msra.mxu0 %v7559
    %7589 = vmatpush.msra.mxu0 %v7558
    %7590 = vmatmul.f32.gmra.mxu0 %v7556
    %v7591 = vpop.f32.mrf.mxu0
    %v7592 = vadd.f32 0.0, %v7591
    %7593 = vdwg.mxu0
    %7594 = vmatpush.msra.mxu0 %v7551
    %7595 = vmatpush.msra.mxu0 %v7550
    %7596 = vmatpush.msra.mxu0 %v7549
    %7597 = vmatpush.msra.mxu0 %v7548
    %7598 = vmatpush.msra.mxu0 %v7547
    %7599 = vmatpush.msra.mxu0 %v7546
    %7600 = vmatpush.msra.mxu0 %v7545
    %7601 = vmatpush.msra.mxu0 %v7544
    %7602 = vmatpush.msra.mxu0 %v7543
    %7603 = vmatpush.msra.mxu0 %v7542
    %7604 = vmatpush.msra.mxu0 %v7541
    %7605 = vmatpush.msra.mxu0 %v7540
    %7606 = vmatpush.msra.mxu0 %v7539
    %7607 = vmatpush.msra.mxu0 %v7538
    %7608 = vmatpush.msra.mxu0 %v7537
    %7609 = vmatpush.msra.mxu0 %v7536
    %7610 = vmatmul.f32.gmra.mxu0 %v7535
    %v7611 = vpop.f32.mrf.mxu0
    %v7612 = vadd.f32 %v7592, %v7611
    %7613 = vdwg.mxu0
    %v7614 = vrot.slane %v7530, 2
    %v7616 = vrot.slane %v7530, 5
    %v7618 = vsel %vm7534, %v7614, %v7616
    %s7619 = scalar_lea.vmem [#allocation23], 256
    %v7620 = vld [vmem:[%s7619] sm:$0xff]
    %v7621 = vld [vmem:[%s7619 + $0x8] sm:$0xff]
    %v7622 = vld [vmem:[%s7619 + $0x10] sm:$0xff]
    %v7623 = vld [vmem:[%s7619 + $0x18] sm:$0xff]
    %v7624 = vld [vmem:[%s7619 + $0x20] sm:$0xff]
    %v7625 = vld [vmem:[%s7619 + $0x28] sm:$0xff]
    %v7626 = vld [vmem:[%s7619 + $0x30] sm:$0xff]
    %v7627 = vld [vmem:[%s7619 + $0x38] sm:$0xff]
    %v7628 = vld [vmem:[%s7619 + $0x40] sm:$0xff]
    %v7629 = vld [vmem:[%s7619 + $0x48] sm:$0xff]
    %v7630 = vld [vmem:[%s7619 + $0x50] sm:$0xff]
    %v7631 = vld [vmem:[%s7619 + $0x58] sm:$0xff]
    %v7632 = vld [vmem:[%s7619 + $0x60] sm:$0xff]
    %v7633 = vld [vmem:[%s7619 + $0x68] sm:$0xff]
    %v7634 = vld [vmem:[%s7619 + $0x70] sm:$0xff]
    %v7635 = vld [vmem:[%s7619 + $0x78] sm:$0xff]
    %7636 = vmatpush.msra.mxu0 %v7635
    %7637 = vmatpush.msra.mxu0 %v7634
    %7638 = vmatpush.msra.mxu0 %v7633
    %7639 = vmatpush.msra.mxu0 %v7632
    %7640 = vmatpush.msra.mxu0 %v7631
    %7641 = vmatpush.msra.mxu0 %v7630
    %7642 = vmatpush.msra.mxu0 %v7629
    %7643 = vmatpush.msra.mxu0 %v7628
    %7644 = vmatpush.msra.mxu0 %v7627
    %7645 = vmatpush.msra.mxu0 %v7626
    %7646 = vmatpush.msra.mxu0 %v7625
    %7647 = vmatpush.msra.mxu0 %v7624
    %7648 = vmatpush.msra.mxu0 %v7623
    %7649 = vmatpush.msra.mxu0 %v7622
    %7650 = vmatpush.msra.mxu0 %v7621
    %7651 = vmatpush.msra.mxu0 %v7620
    %7652 = vmatmul.f32.gmra.mxu0 %v7618
    %v7653 = vpop.f32.mrf.mxu0
    %v7654 = vadd.f32 0.0, %v7653
    %7655 = vdwg.mxu0
    %v7656 = vadd.f32 %v7612, %v7654
    %v7657 = vrot.slane %v7530, 6
    %v7659 = vsel %vm7534, %v7532, %v7657
    %s7660 = scalar_lea.vmem [#allocation23], 384
    %v7661 = vld [vmem:[%s7660] sm:$0xff]
    %v7662 = vld [vmem:[%s7660 + $0x8] sm:$0xff]
    %v7663 = vld [vmem:[%s7660 + $0x10] sm:$0xff]
    %v7664 = vld [vmem:[%s7660 + $0x18] sm:$0xff]
    %v7665 = vld [vmem:[%s7660 + $0x20] sm:$0xff]
    %v7666 = vld [vmem:[%s7660 + $0x28] sm:$0xff]
    %v7667 = vld [vmem:[%s7660 + $0x30] sm:$0xff]
    %v7668 = vld [vmem:[%s7660 + $0x38] sm:$0xff]
    %v7669 = vld [vmem:[%s7660 + $0x40] sm:$0xff]
    %v7670 = vld [vmem:[%s7660 + $0x48] sm:$0xff]
    %v7671 = vld [vmem:[%s7660 + $0x50] sm:$0xff]
    %v7672 = vld [vmem:[%s7660 + $0x58] sm:$0xff]
    %v7673 = vld [vmem:[%s7660 + $0x60] sm:$0xff]
    %v7674 = vld [vmem:[%s7660 + $0x68] sm:$0xff]
    %v7675 = vld [vmem:[%s7660 + $0x70] sm:$0xff]
    %v7676 = vld [vmem:[%s7660 + $0x78] sm:$0xff]
    %7677 = vmatpush.msra.mxu0 %v7676
    %7678 = vmatpush.msra.mxu0 %v7675
    %7679 = vmatpush.msra.mxu0 %v7674
    %7680 = vmatpush.msra.mxu0 %v7673
    %7681 = vmatpush.msra.mxu0 %v7672
    %7682 = vmatpush.msra.mxu0 %v7671
    %7683 = vmatpush.msra.mxu0 %v7670
    %7684 = vmatpush.msra.mxu0 %v7669
    %7685 = vmatpush.msra.mxu0 %v7668
    %7686 = vmatpush.msra.mxu0 %v7667
    %7687 = vmatpush.msra.mxu0 %v7666
    %7688 = vmatpush.msra.mxu0 %v7665
    %7689 = vmatpush.msra.mxu0 %v7664
    %7690 = vmatpush.msra.mxu0 %v7663
    %7691 = vmatpush.msra.mxu0 %v7662
    %7692 = vmatpush.msra.mxu0 %v7661
    %7693 = vmatmul.f32.gmra.mxu0 %v7659
    %v7694 = vpop.f32.mrf.mxu0
    %v7695 = vadd.f32 0.0, %v7694
    %7696 = vdwg.mxu0
    %v7697 = vadd.f32 %v7656, %v7695
    %v7698 = vld [vmem:[#allocation25] sm:$0x1]
    %v7700 = vperm.slane %v7698, 0
    %v7702 = vadd.f32 %v7697, %v7700
    %7703 = vst [vmem:[#allocation26] sm:$0x3] %v7702
    // Predicated region
    $region122: #{tpu_custom_call.1} parent=1 // pred_check
      _
    $region123: #{tpu_custom_call.1} parent=1 // pred_check_branch
      %7705 = sbr.rel (0) target = $region125
    $region124: #{tpu_custom_call.1} parent=1 // pred_region
      %7707 = vsyncadd [#allocation4], 0
      %s7709 = sshll.u32 [#allocation26], 4
      %s7710 = int_to_ptr.vmem [resolvable:$true] %s7709
      %s7711 = sshll.u32 %s15, 4
      %s7712 = int_to_ptr.hbm [resolvable:$true] %s7711
      %7714 = dma.vmem_to_hbm [thread:$0]  %s7710, 32, %s7712, [#allocation4]
    $region125: #{tpu_custom_call.1} parent=1 // pred_fallthru
      _
    // Predicated region
    $region126: #{tpu_custom_call.1} parent=1 // pred_check
      _
    $region127: #{tpu_custom_call.1} parent=1 // pred_check_branch
      %7716 = sbr.rel (0) target = $region129
    $region128: #{tpu_custom_call.1} parent=1 // pred_region
      %7718 = dma.done [#allocation4], 32
    $region129: #{tpu_custom_call.1} parent=1 // pred_fallthru
      _
    %7719 = vsyncpa [#allocation3], 1
    %7720 = vsyncpa [#allocation6], 1
    %7721 = vsyncpa [#allocation9], 1
    %7722 = vsyncpa [#allocation12], 1
    %7723 = vsyncpa [#allocation15], 1
    %7724 = vsyncpa [#allocation18], 1
    %7725 = vsyncpa [#allocation21], 1
    %7726 = vsyncpa [#allocation24], 1
    %7727 = vsyncpa [#allocation4], 1

</llo_original>
